<compile_context>
chip_gen: v6e
topology: v6e:2x2x1
jax: 0.10.0
libtpu: 0.0.40
codegen_flags: <defaults>
</compile_context>

<pallas_src>
import jax
import jax.numpy as jnp
from jax import lax
from jax.experimental import pallas as pl
from jax.experimental.pallas import tpu as pltpu


def _round_up(x, m):
    return ((x + m - 1) // m) * m


def _make_kernel(H, Wp, Cin, Cmid, Cout_pad):
    """Kernel closure over the static geometry. Processes one batch element."""
    M = H * Wp  # flattened (row-major) spatial extent at padded width

    def kernel(x_ref, mask_ref, w1_ref, b1_ref, w2_ref, b2_ref,
               w3_ref, b3_ref, o_ref, h1_scr):
        f32 = jnp.float32
        Hp = h1_scr.shape[0]

        # ---- CNNBlock 1: 3x3 conv (pad=1) + folded BN + LeakyReLU(0.1) ----
        # One contiguous (M, Cin) slab per kernel row dy (leading-axis slice;
        # the (H, Wp, C) -> (M, C) reshape is layout-preserving since
        # Wp % 16 == 0).  The dx=0/1/2 taps accumulate into three separate
        # accumulators; the column shift is applied afterwards with rolls.
        a0 = jnp.zeros((M, Cmid), f32)
        a1 = jnp.zeros((M, Cmid), f32)
        a2 = jnp.zeros((M, Cmid), f32)
        for dy in range(3):
            slab = x_ref[0, dy:dy + H, :, :].reshape(M, Cin)        # bf16
            a0 += jnp.dot(slab, w1_ref[3 * dy + 0], preferred_element_type=f32)
            a1 += jnp.dot(slab, w1_ref[3 * dy + 1], preferred_element_type=f32)
            a2 += jnp.dot(slab, w1_ref[3 * dy + 2], preferred_element_type=f32)
        # out[.., wp] = a0[.., wp-1] + a1[.., wp] + a2[.., wp+1]  (wp interior)
        y1 = (pltpu.roll(a0, shift=1, axis=0) + a1
              + pltpu.roll(a2, shift=M - 1, axis=0) + b1_ref[...])
        y1 = jnp.maximum(y1, 0.1 * y1)            # LeakyReLU(0.1)
        y1 = y1 * mask_ref[...]                   # zero W-halo columns (conv2 pad)

        # Padded intermediate in scratch: zero row halo + full-width interior.
        zero_row = jnp.zeros((Wp, Cmid), h1_scr.dtype)
        h1_scr[0] = zero_row
        h1_scr[Hp - 1] = zero_row
        h1_scr[1:H + 1] = y1.astype(h1_scr.dtype).reshape(H, Wp, Cmid)

        # ---- CNNBlock 2: 3x3 conv (pad=1) + folded BN + LeakyReLU(0.1) ----
        c0 = jnp.zeros((M, Cin), f32)
        c1 = jnp.zeros((M, Cin), f32)
        c2 = jnp.zeros((M, Cin), f32)
        for dy in range(3):
            slab = h1_scr[dy:dy + H].reshape(M, Cmid)               # bf16
            c0 += jnp.dot(slab, w2_ref[3 * dy + 0], preferred_element_type=f32)
            c1 += jnp.dot(slab, w2_ref[3 * dy + 1], preferred_element_type=f32)
            c2 += jnp.dot(slab, w2_ref[3 * dy + 2], preferred_element_type=f32)
        y2 = (pltpu.roll(c0, shift=1, axis=0) + c1
              + pltpu.roll(c2, shift=M - 1, axis=0) + b2_ref[...])
        y2 = jnp.maximum(y2, 0.1 * y2)            # LeakyReLU(0.1)
        # (y2's halo columns hold garbage, but they only reach padded output
        #  columns which the wrapper slices off.)

        # ---- CNNBlock 3: 1x1 conv (lane-dense: Cout padded to 128) ----
        y3 = jnp.dot(y2.astype(w3_ref.dtype), w3_ref[...],
                     preferred_element_type=f32) + b3_ref[...]
        o_ref[0] = y3.reshape(H, Wp, Cout_pad)

    return kernel


def _prepare_params(params, eps=1e-5):
    """Fold BN (eval mode) into the conv weights / bias; cast weights to bf16."""
    def fold(w_oihw, b_conv, gamma, beta, mean, var):
        s = gamma / jnp.sqrt(var + eps)
        w = w_oihw * s[:, None, None, None]                       # scale per O
        w_hwio = jnp.transpose(w, (2, 3, 1, 0)).astype(jnp.bfloat16)
        bias = (s * (b_conv - mean) + beta).astype(jnp.float32)
        return w_hwio, bias

    w1_hwio, bias1 = fold(params["w1"], params["b1"], params["g1"],
                          params["be1"], params["m1"], params["v1"])
    w2_hwio, bias2 = fold(params["w2"], params["b2"], params["g2"],
                          params["be2"], params["m2"], params["v2"])
    w3 = params["w3"][:, :, 0, 0].T.astype(jnp.bfloat16)          # (Cin, Cout)
    b3 = params["b3"].astype(jnp.float32)                         # (Cout,)
    return w1_hwio, bias1, w2_hwio, bias2, w3, b3


def scale_prediction(x_nchw, params, num_anchors, num_classes):
    N, Cin, H, W = x_nchw.shape
    Cmid = Cin // 2
    Cout = num_anchors * (num_classes + 5)
    Cout_pad = _round_up(Cout, 128)          # lane-dense output / MXU N dim
    Hp = H + 2
    Wp = _round_up(W + 2, 16)                # sublane-friendly padded width (bf16)

    w1_hwio, bias1, w2_hwio, bias2, w3, b3 = _prepare_params(params)
    w1_k = w1_hwio.reshape(9, Cin, Cmid)     # tap-major: index = 3*dy + dx
    w2_k = w2_hwio.reshape(9, Cmid, Cin)
    w3_pad = jnp.zeros((Cin, Cout_pad), jnp.bfloat16).at[:, :Cout].set(w3)
    b3_pad = jnp.zeros((1, Cout_pad), jnp.float32).at[0, :Cout].set(b3)
    bias1_r = bias1.reshape(1, Cmid)
    bias2_r = bias2.reshape(1, Cin)

    # NCHW -> NHWC, 1px halo + alignment padding, bf16 matmul inputs.
    # TODO(synk): the halo pad could be built in-kernel (offset DMA into a
    # zeroed scratch) to avoid one extra HBM round-trip of the input.
    x_nhwc = jnp.transpose(x_nchw, (0, 2, 3, 1)).astype(jnp.bfloat16)
    x_pad = jnp.pad(x_nhwc, ((0, 0), (1, 1), (1, Wp - W - 1), (0, 0)))

    # Column mask that zeroes the conv1 W-halo columns (= conv2 zero padding).
    wp_idx = jnp.arange(Wp)
    col_mask = jnp.tile(((wp_idx >= 1) & (wp_idx <= W)).astype(jnp.float32),
                        (H,)).reshape(H * Wp, 1)

    kernel = _make_kernel(H, Wp, Cin, Cmid, Cout_pad)

    out_pad = pl.pallas_call(
        kernel,
        out_shape=jax.ShapeDtypeStruct((N, H, Wp, Cout_pad), jnp.float32),
        grid_spec=pltpu.PrefetchScalarGridSpec(
            num_scalar_prefetch=0,
            grid=(N,),                       # one (independent) batch element/step
            in_specs=[
                pl.BlockSpec((1, Hp, Wp, Cin), lambda n: (n, 0, 0, 0)),
                pl.BlockSpec((H * Wp, 1), lambda n: (0, 0)),
                pl.BlockSpec((9, Cin, Cmid), lambda n: (0, 0, 0)),
                pl.BlockSpec((1, Cmid), lambda n: (0, 0)),
                pl.BlockSpec((9, Cmid, Cin), lambda n: (0, 0, 0)),
                pl.BlockSpec((1, Cin), lambda n: (0, 0)),
                pl.BlockSpec((Cin, Cout_pad), lambda n: (0, 0)),
                pl.BlockSpec((1, Cout_pad), lambda n: (0, 0)),
            ],
            out_specs=pl.BlockSpec((1, H, Wp, Cout_pad), lambda n: (n, 0, 0, 0)),
            scratch_shapes=[pltpu.VMEM((Hp, Wp, Cmid), jnp.bfloat16)],
        ),
        compiler_params=pltpu.CompilerParams(
            dimension_semantics=("parallel",)),   # megacore-friendly on v7x
    )(x_pad, col_mask, w1_k, bias1_r, w2_k, bias2_r, w3_pad, b3_pad)

    # Slice off alignment/Cout padding; (N,H,W,A*(C+5)) -> (N,A,H,W,C+5).
    out_nhwc = out_pad[:, :, 1:W + 1, :Cout]
    out = out_nhwc.reshape(N, H, W, num_anchors, num_classes + 5)
    return jnp.transpose(out, (0, 3, 1, 2, 4))


# --------------------------- references (tests) ---------------------------

def _reference_f32(x_nchw, params, num_anchors, num_classes):
    """Pure-JAX NCHW f32 reference (matches the PyTorch forward, BN eval)."""
    eps = 1e-5

    def conv(x, w, b, pad):
        y = lax.conv_general_dilated(x, w, (1, 1), [(pad, pad), (pad, pad)],
                                     dimension_numbers=("NCHW", "OIHW", "NCHW"))
        return y + b[None, :, None, None]

    def bn(x, g, be, m, v):
        return ((x - m[None, :, None, None])
                / jnp.sqrt(v[None, :, None, None] + eps)
                * g[None, :, None, None] + be[None, :, None, None])

    def lrelu(x):
        return jnp.maximum(x, 0.1 * x)

    h = lrelu(bn(conv(x_nchw, params["w1"], params["b1"], 1),
                 params["g1"], params["be1"], params["m1"], params["v1"]))
    h = lrelu(bn(conv(h, params["w2"], params["b2"], 1),
                 params["g2"], params["be2"], params["m2"], params["v2"]))
    h = conv(h, params["w3"], params["b3"], 0)
    N, _, H, W = x_nchw.shape
    h = h.reshape(N, num_anchors, num_classes + 5, H, W)
    return jnp.transpose(h, (0, 1, 3, 4, 2))


def _reference_mixed(x_nchw, params, num_anchors, num_classes):
    """Pure-JAX mirror of the kernel numerics: folded BN, bf16 matmul inputs,
    f32 accumulation. Tight check of the Pallas implementation itself."""
    N, Cin, H, W = x_nchw.shape
    w1_hwio, bias1, w2_hwio, bias2, w3, b3 = _prepare_params(params)
    dn = ("NHWC", "HWIO", "NHWC")

    def conv(x_bf16, w_hwio, pad):
        return lax.conv_general_dilated(
            x_bf16, w_hwio, (1, 1), [(pad, pad), (pad, pad)],
            dimension_numbers=dn, preferred_element_type=jnp.float32)

    def lrelu(x):
        return jnp.maximum(x, 0.1 * x)

    x = jnp.transpose(x_nchw, (0, 2, 3, 1)).astype(jnp.bfloat16)
    h = lrelu(conv(x, w1_hwio, 1) + bias1[None, None, None, :])
    h = lrelu(conv(h.astype(jnp.bfloat16), w2_hwio, 1)
              + bias2[None, None, None, :])
    Cout = w3.shape[1]
    y = conv(h.astype(jnp.bfloat16), w3.reshape(1, 1, Cin, Cout), 0)
    y = y + b3[None, None, None, :]
    y = y.reshape(N, H, W, num_anchors, num_classes + 5)
    return jnp.transpose(y, (0, 3, 1, 2, 4))


if __name__ == "__main__":
    # Small deterministic config: in_channels=32, num_classes=3, num_anchors=3.
    N, Cin, H, W = 2, 32, 16, 16
    num_classes, num_anchors = 3, 3
    Cmid = Cin // 2
    Cout = num_anchors * (num_classes + 5)

    key = jax.random.PRNGKey(0)
    ks = jax.random.split(key, 17)

    def nrm(k, shape, scale):
        return scale * jax.random.normal(k, shape, jnp.float32)

    params = dict(
        # CNNBlock 1
        w1=nrm(ks[0], (Cmid, Cin, 3, 3), 0.1), b1=nrm(ks[1], (Cmid,), 0.1),
        g1=1.0 + nrm(ks[2], (Cmid,), 0.1), be1=nrm(ks[3], (Cmid,), 0.1),
        m1=nrm(ks[4], (Cmid,), 0.1), v1=0.5 + jnp.abs(nrm(ks[5], (Cmid,), 0.5)),
        # CNNBlock 2
        w2=nrm(ks[6], (Cin, Cmid, 3, 3), 0.1), b2=nrm(ks[7], (Cin,), 0.1),
        g2=1.0 + nrm(ks[8], (Cin,), 0.1), be2=nrm(ks[9], (Cin,), 0.1),
        m2=nrm(ks[10], (Cin,), 0.1), v2=0.5 + jnp.abs(nrm(ks[11], (Cin,), 0.5)),
        # CNNBlock 3 (1x1, no BN)
        w3=nrm(ks[12], (Cout, Cin, 1, 1), 0.1), b3=nrm(ks[13], (Cout,), 0.1),
    )
    x = nrm(ks[14], (N, Cin, H, W), 1.0)

    out = jax.block_until_ready(
        scale_prediction(x, params, num_anchors, num_classes))
    assert out.shape == (N, num_anchors, H, W, num_classes + 5), out.shape

    # Tight check vs. a pure-JAX mirror of the kernel numerics (same bf16
    # matmul inputs + f32 accumulation): validates tiling/roll/halo handling.
    ref_m = jax.block_until_ready(
        _reference_mixed(x, params, num_anchors, num_classes))
    assert jnp.allclose(out, ref_m, atol=2e-2, rtol=2e-2), (
        float(jnp.max(jnp.abs(out - ref_m))))

    # Looser check vs. the full-f32 reference (difference == bf16 matmul inputs).
    ref_f = jax.block_until_ready(
        _reference_f32(x, params, num_anchors, num_classes))
    assert jnp.allclose(out, ref_f, atol=2.5e-1, rtol=5e-2), (
        float(jnp.max(jnp.abs(out - ref_f))))

    print("KERNEL_OK")
</pallas_src>

<mosaic_0001>
module attributes {stable_mosaic.version = 11 : i64} {
  func.func @kernel(%arg0: i32, %arg1: memref<1x18x32x32xbf16, #tpu.memory_space<vmem>>, %arg2: memref<512x1xf32, #tpu.memory_space<vmem>>, %arg3: memref<9x32x16xbf16, #tpu.memory_space<vmem>>, %arg4: memref<1x16xf32, #tpu.memory_space<vmem>>, %arg5: memref<9x16x32xbf16, #tpu.memory_space<vmem>>, %arg6: memref<1x32xf32, #tpu.memory_space<vmem>>, %arg7: memref<32x128xbf16, #tpu.memory_space<vmem>>, %arg8: memref<1x128xf32, #tpu.memory_space<vmem>>, %arg9: memref<1x16x32x128xf32, #tpu.memory_space<vmem>>, %arg10: memref<18x32x16xbf16, #tpu.memory_space<vmem>>) attributes {dimension_semantics = [#tpu.dimension_semantics<parallel>], iteration_bounds = array<i64: 2>, scalar_prefetch = 0 : i64, scratch_operands = 1 : i64, tpu.core_type = #tpu.core_type<tc>, window_params = [{transform_indices = @transform_0, window_bounds = array<i64: 1, 18, 32, 32>}, {pipeline_mode = #tpu.pipeline_mode<synchronous>, transform_indices = @transform_1, window_bounds = array<i64: 512, 1>}, {pipeline_mode = #tpu.pipeline_mode<synchronous>, transform_indices = @transform_2, window_bounds = array<i64: 9, 32, 16>}, {pipeline_mode = #tpu.pipeline_mode<synchronous>, transform_indices = @transform_3, window_bounds = array<i64: 1, 16>}, {pipeline_mode = #tpu.pipeline_mode<synchronous>, transform_indices = @transform_4, window_bounds = array<i64: 9, 16, 32>}, {pipeline_mode = #tpu.pipeline_mode<synchronous>, transform_indices = @transform_5, window_bounds = array<i64: 1, 32>}, {pipeline_mode = #tpu.pipeline_mode<synchronous>, transform_indices = @transform_6, window_bounds = array<i64: 32, 128>}, {pipeline_mode = #tpu.pipeline_mode<synchronous>, transform_indices = @transform_7, window_bounds = array<i64: 1, 128>}, {transform_indices = @transform_8, window_bounds = array<i64: 1, 16, 32, 128>}]} {
    %cst = arith.constant 0.000000e+00 : f32
    %0 = vector.broadcast %cst : f32 to vector<512x16xf32>
    %cst_0 = arith.constant 0.000000e+00 : f32
    %1 = vector.broadcast %cst_0 : f32 to vector<512x16xf32>
    %cst_1 = arith.constant 0.000000e+00 : f32
    %2 = vector.broadcast %cst_1 : f32 to vector<512x16xf32>
    %c0 = arith.constant 0 : index
    %c0_2 = arith.constant 0 : index
    %c0_3 = arith.constant 0 : index
    %c0_4 = arith.constant 0 : index
    %3 = vector.load %arg1[%c0, %c0_2, %c0_3, %c0_4] : memref<1x18x32x32xbf16, #tpu.memory_space<vmem>>, vector<1x16x32x32xbf16>
    %4 = vector.shape_cast %3 : vector<1x16x32x32xbf16> to vector<16x32x32xbf16>
    %5 = vector.shape_cast %4 : vector<16x32x32xbf16> to vector<512x32xbf16>
    %c0_5 = arith.constant 0 : index
    %c0_6 = arith.constant 0 : index
    %c0_7 = arith.constant 0 : index
    %6 = vector.load %arg3[%c0_5, %c0_6, %c0_7] : memref<9x32x16xbf16, #tpu.memory_space<vmem>>, vector<1x32x16xbf16>
    %7 = vector.shape_cast %6 : vector<1x32x16xbf16> to vector<32x16xbf16>
    %cst_8 = arith.constant dense<0.000000e+00> : vector<512x16xf32>
    %8 = tpu.matmul %5, %7, %cst_8 {dimension_numbers = #tpu.dot_dimension_numbers<[1], [0], [0], [1], [0, 0, 1, 1], [], []>} : vector<512x32xbf16>, vector<32x16xbf16>, vector<512x16xf32> -> vector<512x16xf32>
    %9 = arith.addf %0, %8 : vector<512x16xf32>
    %c1 = arith.constant 1 : index
    %c0_9 = arith.constant 0 : index
    %c0_10 = arith.constant 0 : index
    %10 = vector.load %arg3[%c1, %c0_9, %c0_10] : memref<9x32x16xbf16, #tpu.memory_space<vmem>>, vector<1x32x16xbf16>
    %11 = vector.shape_cast %10 : vector<1x32x16xbf16> to vector<32x16xbf16>
    %cst_11 = arith.constant dense<0.000000e+00> : vector<512x16xf32>
    %12 = tpu.matmul %5, %11, %cst_11 {dimension_numbers = #tpu.dot_dimension_numbers<[1], [0], [0], [1], [0, 0, 1, 1], [], []>} : vector<512x32xbf16>, vector<32x16xbf16>, vector<512x16xf32> -> vector<512x16xf32>
    %13 = arith.addf %1, %12 : vector<512x16xf32>
    %c2 = arith.constant 2 : index
    %c0_12 = arith.constant 0 : index
    %c0_13 = arith.constant 0 : index
    %14 = vector.load %arg3[%c2, %c0_12, %c0_13] : memref<9x32x16xbf16, #tpu.memory_space<vmem>>, vector<1x32x16xbf16>
    %15 = vector.shape_cast %14 : vector<1x32x16xbf16> to vector<32x16xbf16>
    %cst_14 = arith.constant dense<0.000000e+00> : vector<512x16xf32>
    %16 = tpu.matmul %5, %15, %cst_14 {dimension_numbers = #tpu.dot_dimension_numbers<[1], [0], [0], [1], [0, 0, 1, 1], [], []>} : vector<512x32xbf16>, vector<32x16xbf16>, vector<512x16xf32> -> vector<512x16xf32>
    %17 = arith.addf %2, %16 : vector<512x16xf32>
    %c0_15 = arith.constant 0 : index
    %c1_16 = arith.constant 1 : index
    %c0_17 = arith.constant 0 : index
    %c0_18 = arith.constant 0 : index
    %18 = vector.load %arg1[%c0_15, %c1_16, %c0_17, %c0_18] : memref<1x18x32x32xbf16, #tpu.memory_space<vmem>>, vector<1x16x32x32xbf16>
    %19 = vector.shape_cast %18 : vector<1x16x32x32xbf16> to vector<16x32x32xbf16>
    %20 = vector.shape_cast %19 : vector<16x32x32xbf16> to vector<512x32xbf16>
    %c3 = arith.constant 3 : index
    %c0_19 = arith.constant 0 : index
    %c0_20 = arith.constant 0 : index
    %21 = vector.load %arg3[%c3, %c0_19, %c0_20] : memref<9x32x16xbf16, #tpu.memory_space<vmem>>, vector<1x32x16xbf16>
    %22 = vector.shape_cast %21 : vector<1x32x16xbf16> to vector<32x16xbf16>
    %cst_21 = arith.constant dense<0.000000e+00> : vector<512x16xf32>
    %23 = tpu.matmul %20, %22, %cst_21 {dimension_numbers = #tpu.dot_dimension_numbers<[1], [0], [0], [1], [0, 0, 1, 1], [], []>} : vector<512x32xbf16>, vector<32x16xbf16>, vector<512x16xf32> -> vector<512x16xf32>
    %24 = arith.addf %9, %23 : vector<512x16xf32>
    %c4 = arith.constant 4 : index
    %c0_22 = arith.constant 0 : index
    %c0_23 = arith.constant 0 : index
    %25 = vector.load %arg3[%c4, %c0_22, %c0_23] : memref<9x32x16xbf16, #tpu.memory_space<vmem>>, vector<1x32x16xbf16>
    %26 = vector.shape_cast %25 : vector<1x32x16xbf16> to vector<32x16xbf16>
    %cst_24 = arith.constant dense<0.000000e+00> : vector<512x16xf32>
    %27 = tpu.matmul %20, %26, %cst_24 {dimension_numbers = #tpu.dot_dimension_numbers<[1], [0], [0], [1], [0, 0, 1, 1], [], []>} : vector<512x32xbf16>, vector<32x16xbf16>, vector<512x16xf32> -> vector<512x16xf32>
    %28 = arith.addf %13, %27 : vector<512x16xf32>
    %c5 = arith.constant 5 : index
    %c0_25 = arith.constant 0 : index
    %c0_26 = arith.constant 0 : index
    %29 = vector.load %arg3[%c5, %c0_25, %c0_26] : memref<9x32x16xbf16, #tpu.memory_space<vmem>>, vector<1x32x16xbf16>
    %30 = vector.shape_cast %29 : vector<1x32x16xbf16> to vector<32x16xbf16>
    %cst_27 = arith.constant dense<0.000000e+00> : vector<512x16xf32>
    %31 = tpu.matmul %20, %30, %cst_27 {dimension_numbers = #tpu.dot_dimension_numbers<[1], [0], [0], [1], [0, 0, 1, 1], [], []>} : vector<512x32xbf16>, vector<32x16xbf16>, vector<512x16xf32> -> vector<512x16xf32>
    %32 = arith.addf %17, %31 : vector<512x16xf32>
    %c0_28 = arith.constant 0 : index
    %c2_29 = arith.constant 2 : index
    %c0_30 = arith.constant 0 : index
    %c0_31 = arith.constant 0 : index
    %33 = vector.load %arg1[%c0_28, %c2_29, %c0_30, %c0_31] : memref<1x18x32x32xbf16, #tpu.memory_space<vmem>>, vector<1x16x32x32xbf16>
    %34 = vector.shape_cast %33 : vector<1x16x32x32xbf16> to vector<16x32x32xbf16>
    %35 = vector.shape_cast %34 : vector<16x32x32xbf16> to vector<512x32xbf16>
    %c6 = arith.constant 6 : index
    %c0_32 = arith.constant 0 : index
    %c0_33 = arith.constant 0 : index
    %36 = vector.load %arg3[%c6, %c0_32, %c0_33] : memref<9x32x16xbf16, #tpu.memory_space<vmem>>, vector<1x32x16xbf16>
    %37 = vector.shape_cast %36 : vector<1x32x16xbf16> to vector<32x16xbf16>
    %cst_34 = arith.constant dense<0.000000e+00> : vector<512x16xf32>
    %38 = tpu.matmul %35, %37, %cst_34 {dimension_numbers = #tpu.dot_dimension_numbers<[1], [0], [0], [1], [0, 0, 1, 1], [], []>} : vector<512x32xbf16>, vector<32x16xbf16>, vector<512x16xf32> -> vector<512x16xf32>
    %39 = arith.addf %24, %38 : vector<512x16xf32>
    %c7 = arith.constant 7 : index
    %c0_35 = arith.constant 0 : index
    %c0_36 = arith.constant 0 : index
    %40 = vector.load %arg3[%c7, %c0_35, %c0_36] : memref<9x32x16xbf16, #tpu.memory_space<vmem>>, vector<1x32x16xbf16>
    %41 = vector.shape_cast %40 : vector<1x32x16xbf16> to vector<32x16xbf16>
    %cst_37 = arith.constant dense<0.000000e+00> : vector<512x16xf32>
    %42 = tpu.matmul %35, %41, %cst_37 {dimension_numbers = #tpu.dot_dimension_numbers<[1], [0], [0], [1], [0, 0, 1, 1], [], []>} : vector<512x32xbf16>, vector<32x16xbf16>, vector<512x16xf32> -> vector<512x16xf32>
    %43 = arith.addf %28, %42 : vector<512x16xf32>
    %c8 = arith.constant 8 : index
    %c0_38 = arith.constant 0 : index
    %c0_39 = arith.constant 0 : index
    %44 = vector.load %arg3[%c8, %c0_38, %c0_39] : memref<9x32x16xbf16, #tpu.memory_space<vmem>>, vector<1x32x16xbf16>
    %45 = vector.shape_cast %44 : vector<1x32x16xbf16> to vector<32x16xbf16>
    %cst_40 = arith.constant dense<0.000000e+00> : vector<512x16xf32>
    %46 = tpu.matmul %35, %45, %cst_40 {dimension_numbers = #tpu.dot_dimension_numbers<[1], [0], [0], [1], [0, 0, 1, 1], [], []>} : vector<512x32xbf16>, vector<32x16xbf16>, vector<512x16xf32> -> vector<512x16xf32>
    %47 = arith.addf %32, %46 : vector<512x16xf32>
    %c1_i32 = arith.constant 1 : i32
    %48 = tpu.dynamic_rotate %39 by %c1_i32 dim 0 : vector<512x16xf32>, i32 -> vector<512x16xf32>
    %49 = arith.addf %48, %43 : vector<512x16xf32>
    %c511_i32 = arith.constant 511 : i32
    %50 = tpu.dynamic_rotate %47 by %c511_i32 dim 0 : vector<512x16xf32>, i32 -> vector<512x16xf32>
    %51 = arith.addf %49, %50 : vector<512x16xf32>
    %c0_41 = arith.constant 0 : index
    %c0_42 = arith.constant 0 : index
    %52 = vector.load %arg4[%c0_41, %c0_42] : memref<1x16xf32, #tpu.memory_space<vmem>>, vector<1x16xf32>
    %53 = vector.broadcast %52 : vector<1x16xf32> to vector<512x16xf32>
    %54 = arith.addf %51, %53 : vector<512x16xf32>
    %cst_43 = arith.constant 1.000000e-01 : f32
    %55 = vector.broadcast %cst_43 : f32 to vector<512x16xf32>
    %56 = arith.mulf %55, %54 : vector<512x16xf32>
    %57 = arith.maximumf %54, %56 : vector<512x16xf32>
    %c0_44 = arith.constant 0 : index
    %c0_45 = arith.constant 0 : index
    %58 = vector.load %arg2[%c0_44, %c0_45] : memref<512x1xf32, #tpu.memory_space<vmem>>, vector<512x1xf32>
    %59 = vector.broadcast %58 : vector<512x1xf32> to vector<512x16xf32>
    %60 = arith.mulf %57, %59 : vector<512x16xf32>
    %cst_46 = arith.constant 0.000000e+00 : bf16
    %61 = vector.broadcast %cst_46 : bf16 to vector<32x16xbf16>
    %c0_47 = arith.constant 0 : index
    %c0_48 = arith.constant 0 : index
    %c0_49 = arith.constant 0 : index
    %62 = vector.load %arg10[%c0_47, %c0_48, %c0_49] : memref<18x32x16xbf16, #tpu.memory_space<vmem>>, vector<1x32x16xbf16>
    %63 = vector.shape_cast %62 : vector<1x32x16xbf16> to vector<32x16xbf16>
    %64 = vector.shape_cast %61 : vector<32x16xbf16> to vector<1x32x16xbf16>
    tpu.vector_store %arg10[%c0_47, %c0_48, %c0_49], %64 {strides = array<i32>} : memref<18x32x16xbf16, #tpu.memory_space<vmem>>, vector<1x32x16xbf16>,
    %c17 = arith.constant 17 : index
    %c0_50 = arith.constant 0 : index
    %c0_51 = arith.constant 0 : index
    %65 = vector.load %arg10[%c17, %c0_50, %c0_51] : memref<18x32x16xbf16, #tpu.memory_space<vmem>>, vector<1x32x16xbf16>
    %66 = vector.shape_cast %65 : vector<1x32x16xbf16> to vector<32x16xbf16>
    %67 = vector.shape_cast %61 : vector<32x16xbf16> to vector<1x32x16xbf16>
    tpu.vector_store %arg10[%c17, %c0_50, %c0_51], %67 {strides = array<i32>} : memref<18x32x16xbf16, #tpu.memory_space<vmem>>, vector<1x32x16xbf16>,
    %68 = arith.truncf %60 : vector<512x16xf32> to vector<512x16xbf16>
    %69 = vector.shape_cast %68 : vector<512x16xbf16> to vector<16x32x16xbf16>
    %c1_52 = arith.constant 1 : index
    %c0_53 = arith.constant 0 : index
    %c0_54 = arith.constant 0 : index
    %70 = vector.load %arg10[%c1_52, %c0_53, %c0_54] : memref<18x32x16xbf16, #tpu.memory_space<vmem>>, vector<16x32x16xbf16>
    tpu.vector_store %arg10[%c1_52, %c0_53, %c0_54], %69 {strides = array<i32>} : memref<18x32x16xbf16, #tpu.memory_space<vmem>>, vector<16x32x16xbf16>,
    %cst_55 = arith.constant 0.000000e+00 : f32
    %71 = vector.broadcast %cst_55 : f32 to vector<512x32xf32>
    %cst_56 = arith.constant 0.000000e+00 : f32
    %72 = vector.broadcast %cst_56 : f32 to vector<512x32xf32>
    %cst_57 = arith.constant 0.000000e+00 : f32
    %73 = vector.broadcast %cst_57 : f32 to vector<512x32xf32>
    %c0_58 = arith.constant 0 : index
    %c0_59 = arith.constant 0 : index
    %c0_60 = arith.constant 0 : index
    %74 = vector.load %arg10[%c0_58, %c0_59, %c0_60] : memref<18x32x16xbf16, #tpu.memory_space<vmem>>, vector<16x32x16xbf16>
    %75 = vector.shape_cast %74 : vector<16x32x16xbf16> to vector<512x16xbf16>
    %c0_61 = arith.constant 0 : index
    %c0_62 = arith.constant 0 : index
    %c0_63 = arith.constant 0 : index
    %76 = vector.load %arg5[%c0_61, %c0_62, %c0_63] : memref<9x16x32xbf16, #tpu.memory_space<vmem>>, vector<1x16x32xbf16>
    %77 = vector.shape_cast %76 : vector<1x16x32xbf16> to vector<16x32xbf16>
    %cst_64 = arith.constant dense<0.000000e+00> : vector<512x32xf32>
    %78 = tpu.matmul %75, %77, %cst_64 {dimension_numbers = #tpu.dot_dimension_numbers<[1], [0], [0], [1], [0, 0, 1, 1], [], []>} : vector<512x16xbf16>, vector<16x32xbf16>, vector<512x32xf32> -> vector<512x32xf32>
    %79 = arith.addf %71, %78 : vector<512x32xf32>
    %c1_65 = arith.constant 1 : index
    %c0_66 = arith.constant 0 : index
    %c0_67 = arith.constant 0 : index
    %80 = vector.load %arg5[%c1_65, %c0_66, %c0_67] : memref<9x16x32xbf16, #tpu.memory_space<vmem>>, vector<1x16x32xbf16>
    %81 = vector.shape_cast %80 : vector<1x16x32xbf16> to vector<16x32xbf16>
    %cst_68 = arith.constant dense<0.000000e+00> : vector<512x32xf32>
    %82 = tpu.matmul %75, %81, %cst_68 {dimension_numbers = #tpu.dot_dimension_numbers<[1], [0], [0], [1], [0, 0, 1, 1], [], []>} : vector<512x16xbf16>, vector<16x32xbf16>, vector<512x32xf32> -> vector<512x32xf32>
    %83 = arith.addf %72, %82 : vector<512x32xf32>
    %c2_69 = arith.constant 2 : index
    %c0_70 = arith.constant 0 : index
    %c0_71 = arith.constant 0 : index
    %84 = vector.load %arg5[%c2_69, %c0_70, %c0_71] : memref<9x16x32xbf16, #tpu.memory_space<vmem>>, vector<1x16x32xbf16>
    %85 = vector.shape_cast %84 : vector<1x16x32xbf16> to vector<16x32xbf16>
    %cst_72 = arith.constant dense<0.000000e+00> : vector<512x32xf32>
    %86 = tpu.matmul %75, %85, %cst_72 {dimension_numbers = #tpu.dot_dimension_numbers<[1], [0], [0], [1], [0, 0, 1, 1], [], []>} : vector<512x16xbf16>, vector<16x32xbf16>, vector<512x32xf32> -> vector<512x32xf32>
    %87 = arith.addf %73, %86 : vector<512x32xf32>
    %c1_73 = arith.constant 1 : index
    %c0_74 = arith.constant 0 : index
    %c0_75 = arith.constant 0 : index
    %88 = vector.load %arg10[%c1_73, %c0_74, %c0_75] : memref<18x32x16xbf16, #tpu.memory_space<vmem>>, vector<16x32x16xbf16>
    %89 = vector.shape_cast %88 : vector<16x32x16xbf16> to vector<512x16xbf16>
    %c3_76 = arith.constant 3 : index
    %c0_77 = arith.constant 0 : index
    %c0_78 = arith.constant 0 : index
    %90 = vector.load %arg5[%c3_76, %c0_77, %c0_78] : memref<9x16x32xbf16, #tpu.memory_space<vmem>>, vector<1x16x32xbf16>
    %91 = vector.shape_cast %90 : vector<1x16x32xbf16> to vector<16x32xbf16>
    %cst_79 = arith.constant dense<0.000000e+00> : vector<512x32xf32>
    %92 = tpu.matmul %89, %91, %cst_79 {dimension_numbers = #tpu.dot_dimension_numbers<[1], [0], [0], [1], [0, 0, 1, 1], [], []>} : vector<512x16xbf16>, vector<16x32xbf16>, vector<512x32xf32> -> vector<512x32xf32>
    %93 = arith.addf %79, %92 : vector<512x32xf32>
    %c4_80 = arith.constant 4 : index
    %c0_81 = arith.constant 0 : index
    %c0_82 = arith.constant 0 : index
    %94 = vector.load %arg5[%c4_80, %c0_81, %c0_82] : memref<9x16x32xbf16, #tpu.memory_space<vmem>>, vector<1x16x32xbf16>
    %95 = vector.shape_cast %94 : vector<1x16x32xbf16> to vector<16x32xbf16>
    %cst_83 = arith.constant dense<0.000000e+00> : vector<512x32xf32>
    %96 = tpu.matmul %89, %95, %cst_83 {dimension_numbers = #tpu.dot_dimension_numbers<[1], [0], [0], [1], [0, 0, 1, 1], [], []>} : vector<512x16xbf16>, vector<16x32xbf16>, vector<512x32xf32> -> vector<512x32xf32>
    %97 = arith.addf %83, %96 : vector<512x32xf32>
    %c5_84 = arith.constant 5 : index
    %c0_85 = arith.constant 0 : index
    %c0_86 = arith.constant 0 : index
    %98 = vector.load %arg5[%c5_84, %c0_85, %c0_86] : memref<9x16x32xbf16, #tpu.memory_space<vmem>>, vector<1x16x32xbf16>
    %99 = vector.shape_cast %98 : vector<1x16x32xbf16> to vector<16x32xbf16>
    %cst_87 = arith.constant dense<0.000000e+00> : vector<512x32xf32>
    %100 = tpu.matmul %89, %99, %cst_87 {dimension_numbers = #tpu.dot_dimension_numbers<[1], [0], [0], [1], [0, 0, 1, 1], [], []>} : vector<512x16xbf16>, vector<16x32xbf16>, vector<512x32xf32> -> vector<512x32xf32>
    %101 = arith.addf %87, %100 : vector<512x32xf32>
    %c2_88 = arith.constant 2 : index
    %c0_89 = arith.constant 0 : index
    %c0_90 = arith.constant 0 : index
    %102 = vector.load %arg10[%c2_88, %c0_89, %c0_90] : memref<18x32x16xbf16, #tpu.memory_space<vmem>>, vector<16x32x16xbf16>
    %103 = vector.shape_cast %102 : vector<16x32x16xbf16> to vector<512x16xbf16>
    %c6_91 = arith.constant 6 : index
    %c0_92 = arith.constant 0 : index
    %c0_93 = arith.constant 0 : index
    %104 = vector.load %arg5[%c6_91, %c0_92, %c0_93] : memref<9x16x32xbf16, #tpu.memory_space<vmem>>, vector<1x16x32xbf16>
    %105 = vector.shape_cast %104 : vector<1x16x32xbf16> to vector<16x32xbf16>
    %cst_94 = arith.constant dense<0.000000e+00> : vector<512x32xf32>
    %106 = tpu.matmul %103, %105, %cst_94 {dimension_numbers = #tpu.dot_dimension_numbers<[1], [0], [0], [1], [0, 0, 1, 1], [], []>} : vector<512x16xbf16>, vector<16x32xbf16>, vector<512x32xf32> -> vector<512x32xf32>
    %107 = arith.addf %93, %106 : vector<512x32xf32>
    %c7_95 = arith.constant 7 : index
    %c0_96 = arith.constant 0 : index
    %c0_97 = arith.constant 0 : index
    %108 = vector.load %arg5[%c7_95, %c0_96, %c0_97] : memref<9x16x32xbf16, #tpu.memory_space<vmem>>, vector<1x16x32xbf16>
    %109 = vector.shape_cast %108 : vector<1x16x32xbf16> to vector<16x32xbf16>
    %cst_98 = arith.constant dense<0.000000e+00> : vector<512x32xf32>
    %110 = tpu.matmul %103, %109, %cst_98 {dimension_numbers = #tpu.dot_dimension_numbers<[1], [0], [0], [1], [0, 0, 1, 1], [], []>} : vector<512x16xbf16>, vector<16x32xbf16>, vector<512x32xf32> -> vector<512x32xf32>
    %111 = arith.addf %97, %110 : vector<512x32xf32>
    %c8_99 = arith.constant 8 : index
    %c0_100 = arith.constant 0 : index
    %c0_101 = arith.constant 0 : index
    %112 = vector.load %arg5[%c8_99, %c0_100, %c0_101] : memref<9x16x32xbf16, #tpu.memory_space<vmem>>, vector<1x16x32xbf16>
    %113 = vector.shape_cast %112 : vector<1x16x32xbf16> to vector<16x32xbf16>
    %cst_102 = arith.constant dense<0.000000e+00> : vector<512x32xf32>
    %114 = tpu.matmul %103, %113, %cst_102 {dimension_numbers = #tpu.dot_dimension_numbers<[1], [0], [0], [1], [0, 0, 1, 1], [], []>} : vector<512x16xbf16>, vector<16x32xbf16>, vector<512x32xf32> -> vector<512x32xf32>
    %115 = arith.addf %101, %114 : vector<512x32xf32>
    %c1_i32_103 = arith.constant 1 : i32
    %116 = tpu.dynamic_rotate %107 by %c1_i32_103 dim 0 : vector<512x32xf32>, i32 -> vector<512x32xf32>
    %117 = arith.addf %116, %111 : vector<512x32xf32>
    %c511_i32_104 = arith.constant 511 : i32
    %118 = tpu.dynamic_rotate %115 by %c511_i32_104 dim 0 : vector<512x32xf32>, i32 -> vector<512x32xf32>
    %119 = arith.addf %117, %118 : vector<512x32xf32>
    %c0_105 = arith.constant 0 : index
    %c0_106 = arith.constant 0 : index
    %120 = vector.load %arg6[%c0_105, %c0_106] : memref<1x32xf32, #tpu.memory_space<vmem>>, vector<1x32xf32>
    %121 = vector.broadcast %120 : vector<1x32xf32> to vector<512x32xf32>
    %122 = arith.addf %119, %121 : vector<512x32xf32>
    %cst_107 = arith.constant 1.000000e-01 : f32
    %123 = vector.broadcast %cst_107 : f32 to vector<512x32xf32>
    %124 = arith.mulf %123, %122 : vector<512x32xf32>
    %125 = arith.maximumf %122, %124 : vector<512x32xf32>
    %126 = arith.truncf %125 : vector<512x32xf32> to vector<512x32xbf16>
    %c0_108 = arith.constant 0 : index
    %c0_109 = arith.constant 0 : index
    %127 = vector.load %arg7[%c0_108, %c0_109] : memref<32x128xbf16, #tpu.memory_space<vmem>>, vector<32x128xbf16>
    %cst_110 = arith.constant dense<0.000000e+00> : vector<512x128xf32>
    %128 = tpu.matmul %126, %127, %cst_110 {dimension_numbers = #tpu.dot_dimension_numbers<[1], [0], [0], [1], [0, 0, 1, 1], [], []>} : vector<512x32xbf16>, vector<32x128xbf16>, vector<512x128xf32> -> vector<512x128xf32>
    %c0_111 = arith.constant 0 : index
    %c0_112 = arith.constant 0 : index
    %129 = vector.load %arg8[%c0_111, %c0_112] : memref<1x128xf32, #tpu.memory_space<vmem>>, vector<1x128xf32>
    %130 = vector.broadcast %129 : vector<1x128xf32> to vector<512x128xf32>
    %131 = arith.addf %128, %130 : vector<512x128xf32>
    %132 = vector.shape_cast %131 : vector<512x128xf32> to vector<16x32x128xf32>
    %c0_113 = arith.constant 0 : index
    %c0_114 = arith.constant 0 : index
    %c0_115 = arith.constant 0 : index
    %c0_116 = arith.constant 0 : index
    %133 = vector.load %arg9[%c0_113, %c0_114, %c0_115, %c0_116] : memref<1x16x32x128xf32, #tpu.memory_space<vmem>>, vector<1x16x32x128xf32>
    %134 = vector.shape_cast %133 : vector<1x16x32x128xf32> to vector<16x32x128xf32>
    %135 = vector.shape_cast %132 : vector<16x32x128xf32> to vector<1x16x32x128xf32>
    tpu.vector_store %arg9[%c0_113, %c0_114, %c0_115, %c0_116], %135 {strides = array<i32>} : memref<1x16x32x128xf32, #tpu.memory_space<vmem>>, vector<1x16x32x128xf32>,
    return
  }
  func.func @transform_0(%arg0: i32) -> (i32, i32, i32, i32) {
    %c0_i32 = arith.constant 0 : i32
    %c0_i32_0 = arith.constant 0 : i32
    %c0_i32_1 = arith.constant 0 : i32
    %c0_i32_2 = arith.constant 0 : i32
    return %arg0, %c0_i32, %c0_i32_0, %c0_i32_1 : i32, i32, i32, i32
  }
  func.func @transform_1(%arg0: i32) -> (i32, i32) {
    %c0_i32 = arith.constant 0 : i32
    %c0_i32_0 = arith.constant 0 : i32
    %c0_i32_1 = arith.constant 0 : i32
    return %c0_i32, %c0_i32_0 : i32, i32
  }
  func.func @transform_2(%arg0: i32) -> (i32, i32, i32) {
    %c0_i32 = arith.constant 0 : i32
    %c0_i32_0 = arith.constant 0 : i32
    %c0_i32_1 = arith.constant 0 : i32
    %c0_i32_2 = arith.constant 0 : i32
    return %c0_i32, %c0_i32_0, %c0_i32_1 : i32, i32, i32
  }
  func.func @transform_3(%arg0: i32) -> (i32, i32) {
    %c0_i32 = arith.constant 0 : i32
    %c0_i32_0 = arith.constant 0 : i32
    %c0_i32_1 = arith.constant 0 : i32
    return %c0_i32, %c0_i32_0 : i32, i32
  }
  func.func @transform_4(%arg0: i32) -> (i32, i32, i32) {
    %c0_i32 = arith.constant 0 : i32
    %c0_i32_0 = arith.constant 0 : i32
    %c0_i32_1 = arith.constant 0 : i32
    %c0_i32_2 = arith.constant 0 : i32
    return %c0_i32, %c0_i32_0, %c0_i32_1 : i32, i32, i32
  }
  func.func @transform_5(%arg0: i32) -> (i32, i32) {
    %c0_i32 = arith.constant 0 : i32
    %c0_i32_0 = arith.constant 0 : i32
    %c0_i32_1 = arith.constant 0 : i32
    return %c0_i32, %c0_i32_0 : i32, i32
  }
  func.func @transform_6(%arg0: i32) -> (i32, i32) {
    %c0_i32 = arith.constant 0 : i32
    %c0_i32_0 = arith.constant 0 : i32
    %c0_i32_1 = arith.constant 0 : i32
    return %c0_i32, %c0_i32_0 : i32, i32
  }
  func.func @transform_7(%arg0: i32) -> (i32, i32) {
    %c0_i32 = arith.constant 0 : i32
    %c0_i32_0 = arith.constant 0 : i32
    %c0_i32_1 = arith.constant 0 : i32
    return %c0_i32, %c0_i32_0 : i32, i32
  }
  func.func @transform_8(%arg0: i32) -> (i32, i32, i32, i32) {
    %c0_i32 = arith.constant 0 : i32
    %c0_i32_0 = arith.constant 0 : i32
    %c0_i32_1 = arith.constant 0 : i32
    %c0_i32_2 = arith.constant 0 : i32
    return %arg0, %c0_i32, %c0_i32_0, %c0_i32_1 : i32, i32, i32, i32
  }
}

</mosaic_0001>

<llo_original>
// kernel: tpu_custom_call.1
$region0: #{tpu_custom_call.1}
  #allocation0 [shape = 'u32[]', space=smem, size = 0x4, offset = 0x4, fixed_abs, tag = 'smem constant byte address 0x4 - core index']
  #allocation1 [shape = 'u32[144,128]{1,0:T(1,128)}', space=vmem, size = 0x12000, scoped, tag = 'internal scratch']
  #allocation2 [shape = 'bf16[18,32,16]{2,1,0:T(8,128)(2,1)}', space=vmem, size = 0x24000, scoped, tag = 'scratch operand']
  %s0 = inlined_call_operand.vmem [shape: bf16[2,18,32,32], index: 0, kind: input, shape index: {}]
  %s1 = inlined_call_operand.vmem [shape: f32[512,1], index: 1, kind: input, shape index: {}]
  %s2 = inlined_call_operand.vmem [shape: bf16[9,32,16], index: 2, kind: input, shape index: {}]
  %s3 = inlined_call_operand.vmem [shape: f32[1,16], index: 3, kind: input, shape index: {}]
  %s4 = inlined_call_operand.vmem [shape: bf16[9,16,32], index: 4, kind: input, shape index: {}]
  %s5 = inlined_call_operand.vmem [shape: f32[1,32], index: 5, kind: input, shape index: {}]
  %s6 = inlined_call_operand.vmem [shape: bf16[32,128], index: 6, kind: input, shape index: {}]
  %s7 = inlined_call_operand.vmem [shape: f32[1,128], index: 7, kind: input, shape index: {}]
  %s8 = inlined_call_operand.hbm [shape: f32[2,16,32,128], index: 8, kind: output, shape index: {}]
  %s9 = sld [smem:[#allocation0]]
  $region65: #{tpu_custom_call.1} parent=0
    _
  %s11 = ssub.s32 1, %s9
  %s12 = scalar_select 0, %s11, %s9
  $region1: #{tpu_custom_call.1} parent=0
    #allocation3 [shape = 'u8[524288]{0}', space=vmem, size = 0x80000, scoped, tag = 'output window, operand 0']
    #allocation4 [shape = 's32[2]{0}', space=sflag, size = 0x8, scoped, tag = 'scoped memory for tpu_custom_call.1']
    %13 = vsyncpa [#allocation4], 0
    %s14 = scalar_lea.sflag [#allocation4], 1
    %15 = vsyncpa %s14, 0
    loop: start=0, step=1, limit=4
    $region2: #{tpu_custom_call.1} parent=1 // loop_pre_header
      _
    $region3: #{tpu_custom_call.1} parent=1 // loop_header
      %s17 = sphi 0, %s21
      %p18 = scmp.ge.s32.totalorder %s17, 4
      %s27 = sphi 0, %s29
      %s30 = sphi 0, %s27
      %s31 = sphi 0, %s30
      %s47 = sphi 0, %s31
      %s51 = sphi 0, %s51
      %s53 = sphi 0, %s51
      %s54 = sphi 0, %s53
      %s68 = sphi 0, %s54
      %s72 = sphi 0, %s72
      %s74 = sphi 0, %s72
      %s75 = sphi 0, %s74
      %s89 = sphi 0, %s75
      %s93 = sphi 0, %s93
      %s95 = sphi 0, %s93
      %s96 = sphi 0, %s95
      %s110 = sphi 0, %s96
      %s114 = sphi 0, %s114
      %s116 = sphi 0, %s114
      %s117 = sphi 0, %s116
      %s131 = sphi 0, %s117
      %s135 = sphi 0, %s135
      %s137 = sphi 0, %s135
      %s138 = sphi 0, %s137
      %s152 = sphi 0, %s138
      %s156 = sphi 0, %s156
      %s158 = sphi 0, %s156
      %s159 = sphi 0, %s158
      %s173 = sphi 0, %s159
      %s177 = sphi 0, %s177
      %s179 = sphi 0, %s177
      %s180 = sphi 0, %s179
      %s194 = sphi 0, %s180
      %s200 = sphi 0, %s202
      %s203 = sphi 0, %s200
      %s204 = sphi 0, %s203
      %s220 = sphi 0, %s204
    $region4: #{tpu_custom_call.1} parent=1 // loop_header_branch
      %20 = sbr.rel (%p18) target = $region8
    $region5: #{tpu_custom_call.1} parent=1 // loop_body
      %s22 = ssub.s32 %s17, 1
      %s23 = ssub.s32 %s17, 2
      %s24 = sadd.s32 %s17, 1
      %s25 = ssub.s32 %s17, %s24
      %p26 = scmp.eq.s32.totalorder %s25, 0
      %s28 = sadd.s32 %s27, 1
      %s29 = scalar_select %p26, %s27, %s28
      %p32 = pneg %p26
      %p33 = scmp.eq.s32.totalorder %s17, 1
      %p34 = por %p32, %p33
      %p35 = scmp.ne.s32.totalorder %s27, %s30
      %p36 = scmp.eq.s32.totalorder %s17, 0
      %p37 = por %p35, %p36
      %p38 = scmp.ne.s32.totalorder %s27, %s30
      %p39 = scmp.eq.s32.totalorder %s22, 1
      %p40 = por %p38, %p39
      %p41 = scmp.ne.s32.totalorder %s30, %s31
      %p42 = scmp.eq.s32.totalorder %s22, 0
      %p43 = por %p41, %p42
      %p44 = scmp.ne.s32.totalorder %s30, %s31
      %p45 = scmp.eq.s32.totalorder %s23, 1
      %p46 = por %p44, %p45
      %p48 = scmp.ne.s32.totalorder %s31, %s47
      %p49 = scmp.eq.s32.totalorder %s23, 0
      %p50 = por %p48, %p49
      %s52 = sadd.s32 %s51, 1
      %p55 = scmp.eq.s32.totalorder %s17, 1
      %p56 = scmp.ne.s32.totalorder %s51, %s53
      %p57 = scmp.eq.s32.totalorder %s17, 0
      %p58 = por %p56, %p57
      %p59 = scmp.ne.s32.totalorder %s51, %s53
      %p60 = scmp.eq.s32.totalorder %s22, 1
      %p61 = por %p59, %p60
      %p62 = scmp.ne.s32.totalorder %s53, %s54
      %p63 = scmp.eq.s32.totalorder %s22, 0
      %p64 = por %p62, %p63
      %p65 = scmp.ne.s32.totalorder %s53, %s54
      %p66 = scmp.eq.s32.totalorder %s23, 1
      %p67 = por %p65, %p66
      %p69 = scmp.ne.s32.totalorder %s54, %s68
      %p70 = scmp.eq.s32.totalorder %s23, 0
      %p71 = por %p69, %p70
      %s73 = sadd.s32 %s72, 1
      %p76 = scmp.eq.s32.totalorder %s17, 1
      %p77 = scmp.ne.s32.totalorder %s72, %s74
      %p78 = scmp.eq.s32.totalorder %s17, 0
      %p79 = por %p77, %p78
      %p80 = scmp.ne.s32.totalorder %s72, %s74
      %p81 = scmp.eq.s32.totalorder %s22, 1
      %p82 = por %p80, %p81
      %p83 = scmp.ne.s32.totalorder %s74, %s75
      %p84 = scmp.eq.s32.totalorder %s22, 0
      %p85 = por %p83, %p84
      %p86 = scmp.ne.s32.totalorder %s74, %s75
      %p87 = scmp.eq.s32.totalorder %s23, 1
      %p88 = por %p86, %p87
      %p90 = scmp.ne.s32.totalorder %s75, %s89
      %p91 = scmp.eq.s32.totalorder %s23, 0
      %p92 = por %p90, %p91
      %s94 = sadd.s32 %s93, 1
      %p97 = scmp.eq.s32.totalorder %s17, 1
      %p98 = scmp.ne.s32.totalorder %s93, %s95
      %p99 = scmp.eq.s32.totalorder %s17, 0
      %p100 = por %p98, %p99
      %p101 = scmp.ne.s32.totalorder %s93, %s95
      %p102 = scmp.eq.s32.totalorder %s22, 1
      %p103 = por %p101, %p102
      %p104 = scmp.ne.s32.totalorder %s95, %s96
      %p105 = scmp.eq.s32.totalorder %s22, 0
      %p106 = por %p104, %p105
      %p107 = scmp.ne.s32.totalorder %s95, %s96
      %p108 = scmp.eq.s32.totalorder %s23, 1
      %p109 = por %p107, %p108
      %p111 = scmp.ne.s32.totalorder %s96, %s110
      %p112 = scmp.eq.s32.totalorder %s23, 0
      %p113 = por %p111, %p112
      %s115 = sadd.s32 %s114, 1
      %p118 = scmp.eq.s32.totalorder %s17, 1
      %p119 = scmp.ne.s32.totalorder %s114, %s116
      %p120 = scmp.eq.s32.totalorder %s17, 0
      %p121 = por %p119, %p120
      %p122 = scmp.ne.s32.totalorder %s114, %s116
      %p123 = scmp.eq.s32.totalorder %s22, 1
      %p124 = por %p122, %p123
      %p125 = scmp.ne.s32.totalorder %s116, %s117
      %p126 = scmp.eq.s32.totalorder %s22, 0
      %p127 = por %p125, %p126
      %p128 = scmp.ne.s32.totalorder %s116, %s117
      %p129 = scmp.eq.s32.totalorder %s23, 1
      %p130 = por %p128, %p129
      %p132 = scmp.ne.s32.totalorder %s117, %s131
      %p133 = scmp.eq.s32.totalorder %s23, 0
      %p134 = por %p132, %p133
      %s136 = sadd.s32 %s135, 1
      %p139 = scmp.eq.s32.totalorder %s17, 1
      %p140 = scmp.ne.s32.totalorder %s135, %s137
      %p141 = scmp.eq.s32.totalorder %s17, 0
      %p142 = por %p140, %p141
      %p143 = scmp.ne.s32.totalorder %s135, %s137
      %p144 = scmp.eq.s32.totalorder %s22, 1
      %p145 = por %p143, %p144
      %p146 = scmp.ne.s32.totalorder %s137, %s138
      %p147 = scmp.eq.s32.totalorder %s22, 0
      %p148 = por %p146, %p147
      %p149 = scmp.ne.s32.totalorder %s137, %s138
      %p150 = scmp.eq.s32.totalorder %s23, 1
      %p151 = por %p149, %p150
      %p153 = scmp.ne.s32.totalorder %s138, %s152
      %p154 = scmp.eq.s32.totalorder %s23, 0
      %p155 = por %p153, %p154
      %s157 = sadd.s32 %s156, 1
      %p160 = scmp.eq.s32.totalorder %s17, 1
      %p161 = scmp.ne.s32.totalorder %s156, %s158
      %p162 = scmp.eq.s32.totalorder %s17, 0
      %p163 = por %p161, %p162
      %p164 = scmp.ne.s32.totalorder %s156, %s158
      %p165 = scmp.eq.s32.totalorder %s22, 1
      %p166 = por %p164, %p165
      %p167 = scmp.ne.s32.totalorder %s158, %s159
      %p168 = scmp.eq.s32.totalorder %s22, 0
      %p169 = por %p167, %p168
      %p170 = scmp.ne.s32.totalorder %s158, %s159
      %p171 = scmp.eq.s32.totalorder %s23, 1
      %p172 = por %p170, %p171
      %p174 = scmp.ne.s32.totalorder %s159, %s173
      %p175 = scmp.eq.s32.totalorder %s23, 0
      %p176 = por %p174, %p175
      %s178 = sadd.s32 %s177, 1
      %p181 = scmp.eq.s32.totalorder %s17, 1
      %p182 = scmp.ne.s32.totalorder %s177, %s179
      %p183 = scmp.eq.s32.totalorder %s17, 0
      %p184 = por %p182, %p183
      %p185 = scmp.ne.s32.totalorder %s177, %s179
      %p186 = scmp.eq.s32.totalorder %s22, 1
      %p187 = por %p185, %p186
      %p188 = scmp.ne.s32.totalorder %s179, %s180
      %p189 = scmp.eq.s32.totalorder %s22, 0
      %p190 = por %p188, %p189
      %p191 = scmp.ne.s32.totalorder %s179, %s180
      %p192 = scmp.eq.s32.totalorder %s23, 1
      %p193 = por %p191, %p192
      %p195 = scmp.ne.s32.totalorder %s180, %s194
      %p196 = scmp.eq.s32.totalorder %s23, 0
      %p197 = por %p195, %p196
      %s198 = ssub.s32 %s17, %s24
      %p199 = scmp.eq.s32.totalorder %s198, 0
      %s201 = sadd.s32 %s200, 1
      %s202 = scalar_select %p199, %s200, %s201
      %p205 = pneg %p199
      %p206 = scmp.eq.s32.totalorder %s17, 1
      %p207 = por %p205, %p206
      %p208 = scmp.ne.s32.totalorder %s200, %s203
      %p209 = scmp.eq.s32.totalorder %s17, 0
      %p210 = por %p208, %p209
      %p211 = scmp.ne.s32.totalorder %s200, %s203
      %p212 = scmp.eq.s32.totalorder %s22, 1
      %p213 = por %p211, %p212
      %p214 = scmp.ne.s32.totalorder %s203, %s204
      %p215 = scmp.eq.s32.totalorder %s22, 0
      %p216 = por %p214, %p215
      %p217 = scmp.ne.s32.totalorder %s203, %s204
      %p218 = scmp.eq.s32.totalorder %s23, 1
      %p219 = por %p217, %p218
      %p221 = scmp.ne.s32.totalorder %s204, %s220
      %p222 = scmp.eq.s32.totalorder %s23, 0
      %p223 = por %p221, %p222
      %p224 = scmp.le.s32.totalorder 1, %s17
      %p225 = scmp.lt.s32.totalorder %s17, 3
      %p226 = pnand %p224, %p225
      %p227 = pneg %p226
      // Predicated region
      $region9: #{tpu_custom_call.1} parent=5 // pred_check
        _
      $region10: #{tpu_custom_call.1} parent=5 // pred_check_branch
        %229 = sbr.rel (%p226) target = $region12
      $region11: #{tpu_custom_call.1} parent=5 // pred_region
        %s230 = ssub.s32 %s17, 1
        // Predicated region
        $region13: #{tpu_custom_call.1} parent=11 // pred_check
          %p231 = pneg %p64
        $region14: #{tpu_custom_call.1} parent=11 // pred_check_branch
          %233 = sbr.rel (%p231) target = $region16
        $region15: #{tpu_custom_call.1} parent=11 // pred_region
          _
        $region16: #{tpu_custom_call.1} parent=11 // pred_fallthru
          _
        // Predicated region
        $region17: #{tpu_custom_call.1} parent=11 // pred_check
          %p234 = pneg %p85
        $region18: #{tpu_custom_call.1} parent=11 // pred_check_branch
          %236 = sbr.rel (%p234) target = $region20
        $region19: #{tpu_custom_call.1} parent=11 // pred_region
          _
        $region20: #{tpu_custom_call.1} parent=11 // pred_fallthru
          _
        // Predicated region
        $region21: #{tpu_custom_call.1} parent=11 // pred_check
          %p237 = pneg %p106
        $region22: #{tpu_custom_call.1} parent=11 // pred_check_branch
          %239 = sbr.rel (%p237) target = $region24
        $region23: #{tpu_custom_call.1} parent=11 // pred_region
          _
        $region24: #{tpu_custom_call.1} parent=11 // pred_fallthru
          _
        // Predicated region
        $region25: #{tpu_custom_call.1} parent=11 // pred_check
          %p240 = pneg %p127
        $region26: #{tpu_custom_call.1} parent=11 // pred_check_branch
          %242 = sbr.rel (%p240) target = $region28
        $region27: #{tpu_custom_call.1} parent=11 // pred_region
          _
        $region28: #{tpu_custom_call.1} parent=11 // pred_fallthru
          _
        // Predicated region
        $region29: #{tpu_custom_call.1} parent=11 // pred_check
          %p243 = pneg %p148
        $region30: #{tpu_custom_call.1} parent=11 // pred_check_branch
          %245 = sbr.rel (%p243) target = $region32
        $region31: #{tpu_custom_call.1} parent=11 // pred_region
          _
        $region32: #{tpu_custom_call.1} parent=11 // pred_fallthru
          _
        // Predicated region
        $region33: #{tpu_custom_call.1} parent=11 // pred_check
          %p246 = pneg %p169
        $region34: #{tpu_custom_call.1} parent=11 // pred_check_branch
          %248 = sbr.rel (%p246) target = $region36
        $region35: #{tpu_custom_call.1} parent=11 // pred_region
          _
        $region36: #{tpu_custom_call.1} parent=11 // pred_fallthru
          _
        // Predicated region
        $region37: #{tpu_custom_call.1} parent=11 // pred_check
          %p249 = pneg %p190
        $region38: #{tpu_custom_call.1} parent=11 // pred_check_branch
          %251 = sbr.rel (%p249) target = $region40
        $region39: #{tpu_custom_call.1} parent=11 // pred_region
          _
        $region40: #{tpu_custom_call.1} parent=11 // pred_fallthru
          _
      $region12: #{tpu_custom_call.1} parent=5 // pred_fallthru
        _
      %p252 = scmp.lt.s32.totalorder %s17, 2
      // Predicated region
      $region41: #{tpu_custom_call.1} parent=5 // pred_check
        %p253 = pneg %p252
      $region42: #{tpu_custom_call.1} parent=5 // pred_check_branch
        %255 = sbr.rel (%p253) target = $region44
      $region43: #{tpu_custom_call.1} parent=5 // pred_region
        // Predicated region
        $region45: #{tpu_custom_call.1} parent=43 // pred_check
          %p256 = pneg %p37
        $region46: #{tpu_custom_call.1} parent=43 // pred_check_branch
          %258 = sbr.rel (%p256) target = $region48
        $region47: #{tpu_custom_call.1} parent=43 // pred_region
          %p259 = scmp.lt.s32.totalorder %s17, 1
          %s260 = scalar_select %p259, %s17, 1
          %s261 = smul.addr %s260, 72
          %s262 = smul.addr %s261, 4
          %s263 = scalar_lea.vmem %s0, %s262
        $region48: #{tpu_custom_call.1} parent=43 // pred_fallthru
          _
      $region44: #{tpu_custom_call.1} parent=5 // pred_fallthru
        _
      %p264 = scmp.le.s32.totalorder 1, %s17
      %p265 = scmp.lt.s32.totalorder %s17, 3
      %p266 = pnand %p264, %p265
      %p267 = pneg %p266
      // Predicated region
      $region49: #{tpu_custom_call.1} parent=5 // pred_check
        _
      $region50: #{tpu_custom_call.1} parent=5 // pred_check_branch
        %269 = sbr.rel (%p266) target = $region52
      $region51: #{tpu_custom_call.1} parent=5 // pred_region
        %s270 = ssub.s32 %s17, 1
        %p271 = scmp.lt.s32.totalorder %s22, 1
        %s272 = scalar_select %p271, %s22, 1
        %s273 = smul.addr %s272, 72
        %s274 = smul.addr %s273, 4
        %s275 = scalar_lea.vmem %s0, %s274
        %p276 = pneg %p43
        %p277 = pneg %p40
        %p278 = pneg %p64
        %p279 = pneg %p61
        %p280 = pneg %p85
        %p281 = pneg %p82
        %p282 = pneg %p106
        %p283 = pneg %p103
        %p284 = pneg %p127
        %p285 = pneg %p124
        %p286 = pneg %p148
        %p287 = pneg %p145
        %p288 = pneg %p169
        %p289 = pneg %p166
        %p290 = pneg %p190
        %p291 = pneg %p187
        %p292 = pneg %p216
        %p293 = pneg %p213
        %s294 = sand.u32 %s203, 1
        %s295 = scalar_lea.sflag [#allocation4], %s294
        %s296 = sand.u32 %s203, 1
        %s297 = smul.addr %s296, 512
        %s298 = scalar_lea.vmem [#allocation3], %s297
        %p299 = scmp.lt.s32.totalorder %s22, 1
        %s300 = scalar_select %p299, %s22, 1
        %s301 = smul.addr %s300, 72
        %s302 = smul.addr %s301, 4
        %s303 = scalar_lea.vmem %s0, %s302
        %v305 = vld [vmem:[%s303] sm:$0xf]
        %v306 = vld [vmem:[%s303 + $0x4] sm:$0xf]
        %v307 = vld [vmem:[%s303 + $0x8] sm:$0xf]
        %v308 = vld [vmem:[%s303 + $0xc] sm:$0xf]
        %v309 = vld [vmem:[%s303 + $0x10] sm:$0xf]
        %v310 = vld [vmem:[%s303 + $0x14] sm:$0xf]
        %v311 = vld [vmem:[%s303 + $0x18] sm:$0xf]
        %v312 = vld [vmem:[%s303 + $0x1c] sm:$0xf]
        %v313 = vld [vmem:[%s303 + $0x20] sm:$0xf]
        %v314 = vld [vmem:[%s303 + $0x24] sm:$0xf]
        %v315 = vld [vmem:[%s303 + $0x28] sm:$0xf]
        %v316 = vld [vmem:[%s303 + $0x2c] sm:$0xf]
        %v317 = vld [vmem:[%s303 + $0x30] sm:$0xf]
        %v318 = vld [vmem:[%s303 + $0x34] sm:$0xf]
        %v319 = vld [vmem:[%s303 + $0x38] sm:$0xf]
        %v320 = vld [vmem:[%s303 + $0x3c] sm:$0xf]
        %v321 = vld [vmem:[%s303 + $0x40] sm:$0xf]
        %v322 = vld [vmem:[%s303 + $0x44] sm:$0xf]
        %v323 = vld [vmem:[%s303 + $0x48] sm:$0xf]
        %v324 = vld [vmem:[%s303 + $0x4c] sm:$0xf]
        %v325 = vld [vmem:[%s303 + $0x50] sm:$0xf]
        %v326 = vld [vmem:[%s303 + $0x54] sm:$0xf]
        %v327 = vld [vmem:[%s303 + $0x58] sm:$0xf]
        %v328 = vld [vmem:[%s303 + $0x5c] sm:$0xf]
        %v329 = vld [vmem:[%s303 + $0x60] sm:$0xf]
        %v330 = vld [vmem:[%s303 + $0x64] sm:$0xf]
        %v331 = vld [vmem:[%s303 + $0x68] sm:$0xf]
        %v332 = vld [vmem:[%s303 + $0x6c] sm:$0xf]
        %v333 = vld [vmem:[%s303 + $0x70] sm:$0xf]
        %v334 = vld [vmem:[%s303 + $0x74] sm:$0xf]
        %v335 = vld [vmem:[%s303 + $0x78] sm:$0xf]
        %v336 = vld [vmem:[%s303 + $0x7c] sm:$0xf]
        %v337 = vld [vmem:[%s303 + $0x80] sm:$0xf]
        %v338 = vld [vmem:[%s303 + $0x84] sm:$0xf]
        %v339 = vld [vmem:[%s303 + $0x88] sm:$0xf]
        %v340 = vld [vmem:[%s303 + $0x8c] sm:$0xf]
        %v341 = vld [vmem:[%s303 + $0x90] sm:$0xf]
        %v342 = vld [vmem:[%s303 + $0x94] sm:$0xf]
        %v343 = vld [vmem:[%s303 + $0x98] sm:$0xf]
        %v344 = vld [vmem:[%s303 + $0x9c] sm:$0xf]
        %v345 = vld [vmem:[%s303 + $0xa0] sm:$0xf]
        %v346 = vld [vmem:[%s303 + $0xa4] sm:$0xf]
        %v347 = vld [vmem:[%s303 + $0xa8] sm:$0xf]
        %v348 = vld [vmem:[%s303 + $0xac] sm:$0xf]
        %v349 = vld [vmem:[%s303 + $0xb0] sm:$0xf]
        %v350 = vld [vmem:[%s303 + $0xb4] sm:$0xf]
        %v351 = vld [vmem:[%s303 + $0xb8] sm:$0xf]
        %v352 = vld [vmem:[%s303 + $0xbc] sm:$0xf]
        %v353 = vld [vmem:[%s303 + $0xc0] sm:$0xf]
        %v354 = vld [vmem:[%s303 + $0xc4] sm:$0xf]
        %v355 = vld [vmem:[%s303 + $0xc8] sm:$0xf]
        %v356 = vld [vmem:[%s303 + $0xcc] sm:$0xf]
        %v357 = vld [vmem:[%s303 + $0xd0] sm:$0xf]
        %v358 = vld [vmem:[%s303 + $0xd4] sm:$0xf]
        %v359 = vld [vmem:[%s303 + $0xd8] sm:$0xf]
        %v360 = vld [vmem:[%s303 + $0xdc] sm:$0xf]
        %v361 = vld [vmem:[%s303 + $0xe0] sm:$0xf]
        %v362 = vld [vmem:[%s303 + $0xe4] sm:$0xf]
        %v363 = vld [vmem:[%s303 + $0xe8] sm:$0xf]
        %v364 = vld [vmem:[%s303 + $0xec] sm:$0xf]
        %v365 = vld [vmem:[%s303 + $0xf0] sm:$0xf]
        %v366 = vld [vmem:[%s303 + $0xf4] sm:$0xf]
        %v367 = vld [vmem:[%s303 + $0xf8] sm:$0xf]
        %v368 = vld [vmem:[%s303 + $0xfc] sm:$0xf]
        %v369 = vld [vmem:[%s2] sm:$0xf]
        %v370 = vld [vmem:[%s2 + $0x4] sm:$0xf]
        %v371 = vld [vmem:[%s2 + $0x8] sm:$0xf]
        %v372 = vld [vmem:[%s2 + $0xc] sm:$0xf]
        %s373 = scalar_lea.vmem %s2, 16
        %v374 = vld [vmem:[%s373] sm:$0xf]
        %v375 = vld [vmem:[%s373 + $0x4] sm:$0xf]
        %v376 = vld [vmem:[%s373 + $0x8] sm:$0xf]
        %v377 = vld [vmem:[%s373 + $0xc] sm:$0xf]
        %s378 = scalar_lea.vmem %s2, 32
        %v379 = vld [vmem:[%s378] sm:$0xf]
        %v380 = vld [vmem:[%s378 + $0x4] sm:$0xf]
        %v381 = vld [vmem:[%s378 + $0x8] sm:$0xf]
        %v382 = vld [vmem:[%s378 + $0xc] sm:$0xf]
        %s383 = scalar_lea.vmem %s303, 16
        %v384 = vld [vmem:[%s383] sm:$0xf]
        %v385 = vld [vmem:[%s383 + $0x4] sm:$0xf]
        %v386 = vld [vmem:[%s383 + $0x8] sm:$0xf]
        %v387 = vld [vmem:[%s383 + $0xc] sm:$0xf]
        %v388 = vld [vmem:[%s383 + $0x10] sm:$0xf]
        %v389 = vld [vmem:[%s383 + $0x14] sm:$0xf]
        %v390 = vld [vmem:[%s383 + $0x18] sm:$0xf]
        %v391 = vld [vmem:[%s383 + $0x1c] sm:$0xf]
        %v392 = vld [vmem:[%s383 + $0x20] sm:$0xf]
        %v393 = vld [vmem:[%s383 + $0x24] sm:$0xf]
        %v394 = vld [vmem:[%s383 + $0x28] sm:$0xf]
        %v395 = vld [vmem:[%s383 + $0x2c] sm:$0xf]
        %v396 = vld [vmem:[%s383 + $0x30] sm:$0xf]
        %v397 = vld [vmem:[%s383 + $0x34] sm:$0xf]
        %v398 = vld [vmem:[%s383 + $0x38] sm:$0xf]
        %v399 = vld [vmem:[%s383 + $0x3c] sm:$0xf]
        %v400 = vld [vmem:[%s383 + $0x40] sm:$0xf]
        %v401 = vld [vmem:[%s383 + $0x44] sm:$0xf]
        %v402 = vld [vmem:[%s383 + $0x48] sm:$0xf]
        %v403 = vld [vmem:[%s383 + $0x4c] sm:$0xf]
        %v404 = vld [vmem:[%s383 + $0x50] sm:$0xf]
        %v405 = vld [vmem:[%s383 + $0x54] sm:$0xf]
        %v406 = vld [vmem:[%s383 + $0x58] sm:$0xf]
        %v407 = vld [vmem:[%s383 + $0x5c] sm:$0xf]
        %v408 = vld [vmem:[%s383 + $0x60] sm:$0xf]
        %v409 = vld [vmem:[%s383 + $0x64] sm:$0xf]
        %v410 = vld [vmem:[%s383 + $0x68] sm:$0xf]
        %v411 = vld [vmem:[%s383 + $0x6c] sm:$0xf]
        %v412 = vld [vmem:[%s383 + $0x70] sm:$0xf]
        %v413 = vld [vmem:[%s383 + $0x74] sm:$0xf]
        %v414 = vld [vmem:[%s383 + $0x78] sm:$0xf]
        %v415 = vld [vmem:[%s383 + $0x7c] sm:$0xf]
        %v416 = vld [vmem:[%s383 + $0x80] sm:$0xf]
        %v417 = vld [vmem:[%s383 + $0x84] sm:$0xf]
        %v418 = vld [vmem:[%s383 + $0x88] sm:$0xf]
        %v419 = vld [vmem:[%s383 + $0x8c] sm:$0xf]
        %v420 = vld [vmem:[%s383 + $0x90] sm:$0xf]
        %v421 = vld [vmem:[%s383 + $0x94] sm:$0xf]
        %v422 = vld [vmem:[%s383 + $0x98] sm:$0xf]
        %v423 = vld [vmem:[%s383 + $0x9c] sm:$0xf]
        %v424 = vld [vmem:[%s383 + $0xa0] sm:$0xf]
        %v425 = vld [vmem:[%s383 + $0xa4] sm:$0xf]
        %v426 = vld [vmem:[%s383 + $0xa8] sm:$0xf]
        %v427 = vld [vmem:[%s383 + $0xac] sm:$0xf]
        %v428 = vld [vmem:[%s383 + $0xb0] sm:$0xf]
        %v429 = vld [vmem:[%s383 + $0xb4] sm:$0xf]
        %v430 = vld [vmem:[%s383 + $0xb8] sm:$0xf]
        %v431 = vld [vmem:[%s383 + $0xbc] sm:$0xf]
        %v432 = vld [vmem:[%s383 + $0xc0] sm:$0xf]
        %v433 = vld [vmem:[%s383 + $0xc4] sm:$0xf]
        %v434 = vld [vmem:[%s383 + $0xc8] sm:$0xf]
        %v435 = vld [vmem:[%s383 + $0xcc] sm:$0xf]
        %v436 = vld [vmem:[%s383 + $0xd0] sm:$0xf]
        %v437 = vld [vmem:[%s383 + $0xd4] sm:$0xf]
        %v438 = vld [vmem:[%s383 + $0xd8] sm:$0xf]
        %v439 = vld [vmem:[%s383 + $0xdc] sm:$0xf]
        %v440 = vld [vmem:[%s383 + $0xe0] sm:$0xf]
        %v441 = vld [vmem:[%s383 + $0xe4] sm:$0xf]
        %v442 = vld [vmem:[%s383 + $0xe8] sm:$0xf]
        %v443 = vld [vmem:[%s383 + $0xec] sm:$0xf]
        %v444 = vld [vmem:[%s383 + $0xf0] sm:$0xf]
        %v445 = vld [vmem:[%s383 + $0xf4] sm:$0xf]
        %v446 = vld [vmem:[%s383 + $0xf8] sm:$0xf]
        %v447 = vld [vmem:[%s383 + $0xfc] sm:$0xf]
        %s448 = scalar_lea.vmem %s2, 48
        %v449 = vld [vmem:[%s448] sm:$0xf]
        %v450 = vld [vmem:[%s448 + $0x4] sm:$0xf]
        %v451 = vld [vmem:[%s448 + $0x8] sm:$0xf]
        %v452 = vld [vmem:[%s448 + $0xc] sm:$0xf]
        %v517 = vunpack.c.l.b16 %v384
        %v518 = vunpack.c.l.b16 %v385
        %v519 = vunpack.c.l.b16 %v386
        %v520 = vunpack.c.l.b16 %v387
        %v521 = vunpack.c.l.b16 %v388
        %v522 = vunpack.c.l.b16 %v389
        %v523 = vunpack.c.l.b16 %v390
        %v524 = vunpack.c.l.b16 %v391
        %v525 = vunpack.c.l.b16 %v392
        %v526 = vunpack.c.l.b16 %v393
        %v527 = vunpack.c.l.b16 %v394
        %v528 = vunpack.c.l.b16 %v395
        %v529 = vunpack.c.l.b16 %v396
        %v530 = vunpack.c.l.b16 %v397
        %v531 = vunpack.c.l.b16 %v398
        %v532 = vunpack.c.l.b16 %v399
        %v533 = vunpack.c.l.b16 %v400
        %v534 = vunpack.c.l.b16 %v401
        %v535 = vunpack.c.l.b16 %v402
        %v536 = vunpack.c.l.b16 %v403
        %v537 = vunpack.c.l.b16 %v404
        %v538 = vunpack.c.l.b16 %v405
        %v539 = vunpack.c.l.b16 %v406
        %v540 = vunpack.c.l.b16 %v407
        %v541 = vunpack.c.l.b16 %v408
        %v542 = vunpack.c.l.b16 %v409
        %v543 = vunpack.c.l.b16 %v410
        %v544 = vunpack.c.l.b16 %v411
        %v545 = vunpack.c.l.b16 %v412
        %v546 = vunpack.c.l.b16 %v413
        %v547 = vunpack.c.l.b16 %v414
        %v548 = vunpack.c.l.b16 %v415
        %v549 = vunpack.c.l.b16 %v416
        %v550 = vunpack.c.l.b16 %v417
        %v551 = vunpack.c.l.b16 %v418
        %v552 = vunpack.c.l.b16 %v419
        %v553 = vunpack.c.l.b16 %v420
        %v554 = vunpack.c.l.b16 %v421
        %v555 = vunpack.c.l.b16 %v422
        %v556 = vunpack.c.l.b16 %v423
        %v557 = vunpack.c.l.b16 %v424
        %v558 = vunpack.c.l.b16 %v425
        %v559 = vunpack.c.l.b16 %v426
        %v560 = vunpack.c.l.b16 %v427
        %v561 = vunpack.c.l.b16 %v428
        %v562 = vunpack.c.l.b16 %v429
        %v563 = vunpack.c.l.b16 %v430
        %v564 = vunpack.c.l.b16 %v431
        %v565 = vunpack.c.l.b16 %v432
        %v566 = vunpack.c.l.b16 %v433
        %v567 = vunpack.c.l.b16 %v434
        %v568 = vunpack.c.l.b16 %v435
        %v569 = vunpack.c.l.b16 %v436
        %v570 = vunpack.c.l.b16 %v437
        %v571 = vunpack.c.l.b16 %v438
        %v572 = vunpack.c.l.b16 %v439
        %v573 = vunpack.c.l.b16 %v440
        %v574 = vunpack.c.l.b16 %v441
        %v575 = vunpack.c.l.b16 %v442
        %v576 = vunpack.c.l.b16 %v443
        %v577 = vunpack.c.l.b16 %v444
        %v578 = vunpack.c.l.b16 %v445
        %v579 = vunpack.c.l.b16 %v446
        %v580 = vunpack.c.l.b16 %v447
        %v581 = vpack.c.b16 %v518, %v517
        %v582 = vpack.c.b16 %v520, %v519
        %v583 = vpack.c.b16 %v522, %v521
        %v584 = vpack.c.b16 %v524, %v523
        %v585 = vpack.c.b16 %v526, %v525
        %v586 = vpack.c.b16 %v528, %v527
        %v587 = vpack.c.b16 %v530, %v529
        %v588 = vpack.c.b16 %v532, %v531
        %v589 = vpack.c.b16 %v534, %v533
        %v590 = vpack.c.b16 %v536, %v535
        %v591 = vpack.c.b16 %v538, %v537
        %v592 = vpack.c.b16 %v540, %v539
        %v593 = vpack.c.b16 %v542, %v541
        %v594 = vpack.c.b16 %v544, %v543
        %v595 = vpack.c.b16 %v546, %v545
        %v596 = vpack.c.b16 %v548, %v547
        %v597 = vpack.c.b16 %v550, %v549
        %v598 = vpack.c.b16 %v552, %v551
        %v599 = vpack.c.b16 %v554, %v553
        %v600 = vpack.c.b16 %v556, %v555
        %v601 = vpack.c.b16 %v558, %v557
        %v602 = vpack.c.b16 %v560, %v559
        %v603 = vpack.c.b16 %v562, %v561
        %v604 = vpack.c.b16 %v564, %v563
        %v605 = vpack.c.b16 %v566, %v565
        %v606 = vpack.c.b16 %v568, %v567
        %v607 = vpack.c.b16 %v570, %v569
        %v608 = vpack.c.b16 %v572, %v571
        %v609 = vpack.c.b16 %v574, %v573
        %v610 = vpack.c.b16 %v576, %v575
        %v611 = vpack.c.b16 %v578, %v577
        %v612 = vpack.c.b16 %v580, %v579
        %v617 = vunpack.c.l.b16 %v449
        %v618 = vunpack.c.l.b16 %v450
        %v619 = vunpack.c.l.b16 %v451
        %v620 = vunpack.c.l.b16 %v452
        %v621 = vpack.c.b16 %v618, %v617
        %v622 = vpack.c.b16 %v620, %v619
        %vm625 = vcmask 261120
        %v627 = vsel %vm625, %v581, 0
        %v630 = vsel %vm625, %v582, 0
        %v633 = vsel %vm625, %v583, 0
        %v636 = vsel %vm625, %v584, 0
        %v639 = vsel %vm625, %v585, 0
        %v642 = vsel %vm625, %v586, 0
        %v645 = vsel %vm625, %v587, 0
        %v648 = vsel %vm625, %v588, 0
        %v651 = vsel %vm625, %v589, 0
        %v654 = vsel %vm625, %v590, 0
        %v657 = vsel %vm625, %v591, 0
        %v660 = vsel %vm625, %v592, 0
        %v663 = vsel %vm625, %v593, 0
        %v666 = vsel %vm625, %v594, 0
        %v669 = vsel %vm625, %v595, 0
        %v672 = vsel %vm625, %v596, 0
        %v675 = vsel %vm625, %v597, 0
        %v678 = vsel %vm625, %v598, 0
        %v681 = vsel %vm625, %v599, 0
        %v684 = vsel %vm625, %v600, 0
        %v687 = vsel %vm625, %v601, 0
        %v690 = vsel %vm625, %v602, 0
        %v693 = vsel %vm625, %v603, 0
        %v696 = vsel %vm625, %v604, 0
        %v699 = vsel %vm625, %v605, 0
        %v702 = vsel %vm625, %v606, 0
        %v705 = vsel %vm625, %v607, 0
        %v708 = vsel %vm625, %v608, 0
        %v711 = vsel %vm625, %v609, 0
        %v714 = vsel %vm625, %v610, 0
        %v717 = vsel %vm625, %v611, 0
        %v720 = vsel %vm625, %v612, 0
        %722 = vmatprep.subr.bf16.mxu0 0
        %723 = vmatpush1.bf16.msra.mxu0 0
        %724 = vmatprep.subr.bf16.mxu0 0
        %725 = vmatpush1.bf16.msra.mxu0 0
        %726 = vmatprep.subr.bf16.mxu0 0
        %727 = vmatpush1.bf16.msra.mxu0 0
        %728 = vmatprep.subr.bf16.mxu0 0
        %729 = vmatpush1.bf16.msra.mxu0 0
        %730 = vmatprep.subr.bf16.mxu0 0
        %731 = vmatpush1.bf16.msra.mxu0 0
        %732 = vmatprep.subr.bf16.mxu0 0
        %733 = vmatpush1.bf16.msra.mxu0 0
        %734 = vmatprep.subr.bf16.mxu0 0
        %735 = vmatpush1.bf16.msra.mxu0 %v622
        %736 = vmatprep.subr.bf16.mxu0 0
        %737 = vmatpush1.bf16.msra.mxu0 %v621
        %738 = vmatprep.subr.bf16.mxu0 0
        %739 = vmatpush2.bf16.msra.mxu0 0
        %740 = vmatprep.subr.bf16.mxu0 0
        %741 = vmatpush2.bf16.msra.mxu0 0
        %742 = vmatprep.subr.bf16.mxu0 0
        %743 = vmatpush2.bf16.msra.mxu0 0
        %744 = vmatprep.subr.bf16.mxu0 0
        %745 = vmatpush2.bf16.msra.mxu0 0
        %746 = vmatprep.subr.bf16.mxu0 0
        %747 = vmatpush2.bf16.msra.mxu0 0
        %748 = vmatprep.subr.bf16.mxu0 0
        %749 = vmatpush2.bf16.msra.mxu0 0
        %750 = vmatprep.subr.bf16.mxu0 0
        %751 = vmatpush2.bf16.msra.mxu0 0
        %752 = vmatprep.subr.bf16.mxu0 0
        %753 = vmatpush2.bf16.msra.mxu0 0
        %754 = vmatprep.mubr.bf16.mxu0 0
        %755 = vmatmul.mubr.bf16.gmra.mxu0 %v627
        %v756 = vpop.f32.mrf.mxu0
        %v757 = vadd.f32 0.0, %v756
        %v758 = vpop.f32.mrf.mxu0
        %v759 = vpop.f32.mrf.mxu0
        %v760 = vadd.f32 0.0, %v759
        %v761 = vpop.f32.mrf.mxu0
        %762 = vmatprep.mubr.bf16.mxu0 0
        %763 = vmatmul.mubr.bf16.gmra.mxu0 %v630
        %v764 = vpop.f32.mrf.mxu0
        %v765 = vadd.f32 0.0, %v764
        %v766 = vpop.f32.mrf.mxu0
        %v767 = vpop.f32.mrf.mxu0
        %v768 = vadd.f32 0.0, %v767
        %v769 = vpop.f32.mrf.mxu0
        %770 = vmatprep.mubr.bf16.mxu0 0
        %771 = vmatmul.mubr.bf16.gmra.mxu0 %v633
        %v772 = vpop.f32.mrf.mxu0
        %v773 = vadd.f32 0.0, %v772
        %v774 = vpop.f32.mrf.mxu0
        %v775 = vpop.f32.mrf.mxu0
        %v776 = vadd.f32 0.0, %v775
        %v777 = vpop.f32.mrf.mxu0
        %778 = vmatprep.mubr.bf16.mxu0 0
        %779 = vmatmul.mubr.bf16.gmra.mxu0 %v636
        %v780 = vpop.f32.mrf.mxu0
        %v781 = vadd.f32 0.0, %v780
        %v782 = vpop.f32.mrf.mxu0
        %v783 = vpop.f32.mrf.mxu0
        %v784 = vadd.f32 0.0, %v783
        %v785 = vpop.f32.mrf.mxu0
        %786 = vmatprep.mubr.bf16.mxu0 0
        %787 = vmatmul.mubr.bf16.gmra.mxu0 %v639
        %v788 = vpop.f32.mrf.mxu0
        %v789 = vadd.f32 0.0, %v788
        %v790 = vpop.f32.mrf.mxu0
        %v791 = vpop.f32.mrf.mxu0
        %v792 = vadd.f32 0.0, %v791
        %v793 = vpop.f32.mrf.mxu0
        %794 = vmatprep.mubr.bf16.mxu0 0
        %795 = vmatmul.mubr.bf16.gmra.mxu0 %v642
        %v796 = vpop.f32.mrf.mxu0
        %v797 = vadd.f32 0.0, %v796
        %v798 = vpop.f32.mrf.mxu0
        %v799 = vpop.f32.mrf.mxu0
        %v800 = vadd.f32 0.0, %v799
        %v801 = vpop.f32.mrf.mxu0
        %802 = vmatprep.mubr.bf16.mxu0 0
        %803 = vmatmul.mubr.bf16.gmra.mxu0 %v645
        %v804 = vpop.f32.mrf.mxu0
        %v805 = vadd.f32 0.0, %v804
        %v806 = vpop.f32.mrf.mxu0
        %v807 = vpop.f32.mrf.mxu0
        %v808 = vadd.f32 0.0, %v807
        %v809 = vpop.f32.mrf.mxu0
        %810 = vmatprep.mubr.bf16.mxu0 0
        %811 = vmatmul.mubr.bf16.gmra.mxu0 %v648
        %v812 = vpop.f32.mrf.mxu0
        %v813 = vadd.f32 0.0, %v812
        %v814 = vpop.f32.mrf.mxu0
        %v815 = vpop.f32.mrf.mxu0
        %v816 = vadd.f32 0.0, %v815
        %v817 = vpop.f32.mrf.mxu0
        %818 = vmatprep.mubr.bf16.mxu0 0
        %819 = vmatmul.mubr.bf16.gmra.mxu0 %v651
        %v820 = vpop.f32.mrf.mxu0
        %v821 = vadd.f32 0.0, %v820
        %v822 = vpop.f32.mrf.mxu0
        %v823 = vpop.f32.mrf.mxu0
        %v824 = vadd.f32 0.0, %v823
        %v825 = vpop.f32.mrf.mxu0
        %826 = vmatprep.mubr.bf16.mxu0 0
        %827 = vmatmul.mubr.bf16.gmra.mxu0 %v654
        %v828 = vpop.f32.mrf.mxu0
        %v829 = vadd.f32 0.0, %v828
        %v830 = vpop.f32.mrf.mxu0
        %v831 = vpop.f32.mrf.mxu0
        %v832 = vadd.f32 0.0, %v831
        %v833 = vpop.f32.mrf.mxu0
        %834 = vmatprep.mubr.bf16.mxu0 0
        %835 = vmatmul.mubr.bf16.gmra.mxu0 %v657
        %v836 = vpop.f32.mrf.mxu0
        %v837 = vadd.f32 0.0, %v836
        %v838 = vpop.f32.mrf.mxu0
        %v839 = vpop.f32.mrf.mxu0
        %v840 = vadd.f32 0.0, %v839
        %v841 = vpop.f32.mrf.mxu0
        %842 = vmatprep.mubr.bf16.mxu0 0
        %843 = vmatmul.mubr.bf16.gmra.mxu0 %v660
        %v844 = vpop.f32.mrf.mxu0
        %v845 = vadd.f32 0.0, %v844
        %v846 = vpop.f32.mrf.mxu0
        %v847 = vpop.f32.mrf.mxu0
        %v848 = vadd.f32 0.0, %v847
        %v849 = vpop.f32.mrf.mxu0
        %850 = vmatprep.mubr.bf16.mxu0 0
        %851 = vmatmul.mubr.bf16.gmra.mxu0 %v663
        %v852 = vpop.f32.mrf.mxu0
        %v853 = vadd.f32 0.0, %v852
        %v854 = vpop.f32.mrf.mxu0
        %v855 = vpop.f32.mrf.mxu0
        %v856 = vadd.f32 0.0, %v855
        %v857 = vpop.f32.mrf.mxu0
        %858 = vmatprep.mubr.bf16.mxu0 0
        %859 = vmatmul.mubr.bf16.gmra.mxu0 %v666
        %v860 = vpop.f32.mrf.mxu0
        %v861 = vadd.f32 0.0, %v860
        %v862 = vpop.f32.mrf.mxu0
        %v863 = vpop.f32.mrf.mxu0
        %v864 = vadd.f32 0.0, %v863
        %v865 = vpop.f32.mrf.mxu0
        %866 = vmatprep.mubr.bf16.mxu0 0
        %867 = vmatmul.mubr.bf16.gmra.mxu0 %v669
        %v868 = vpop.f32.mrf.mxu0
        %v869 = vadd.f32 0.0, %v868
        %v870 = vpop.f32.mrf.mxu0
        %v871 = vpop.f32.mrf.mxu0
        %v872 = vadd.f32 0.0, %v871
        %v873 = vpop.f32.mrf.mxu0
        %874 = vmatprep.mubr.bf16.mxu0 0
        %875 = vmatmul.mubr.bf16.gmra.mxu0 %v672
        %v876 = vpop.f32.mrf.mxu0
        %v877 = vadd.f32 0.0, %v876
        %v878 = vpop.f32.mrf.mxu0
        %v879 = vpop.f32.mrf.mxu0
        %v880 = vadd.f32 0.0, %v879
        %v881 = vpop.f32.mrf.mxu0
        %882 = vmatprep.mubr.bf16.mxu0 0
        %883 = vmatmul.mubr.bf16.gmra.mxu0 %v675
        %v884 = vpop.f32.mrf.mxu0
        %v885 = vadd.f32 0.0, %v884
        %v886 = vpop.f32.mrf.mxu0
        %v887 = vpop.f32.mrf.mxu0
        %v888 = vadd.f32 0.0, %v887
        %v889 = vpop.f32.mrf.mxu0
        %890 = vmatprep.mubr.bf16.mxu0 0
        %891 = vmatmul.mubr.bf16.gmra.mxu0 %v678
        %v892 = vpop.f32.mrf.mxu0
        %v893 = vadd.f32 0.0, %v892
        %v894 = vpop.f32.mrf.mxu0
        %v895 = vpop.f32.mrf.mxu0
        %v896 = vadd.f32 0.0, %v895
        %v897 = vpop.f32.mrf.mxu0
        %898 = vmatprep.mubr.bf16.mxu0 0
        %899 = vmatmul.mubr.bf16.gmra.mxu0 %v681
        %v900 = vpop.f32.mrf.mxu0
        %v901 = vadd.f32 0.0, %v900
        %v902 = vpop.f32.mrf.mxu0
        %v903 = vpop.f32.mrf.mxu0
        %v904 = vadd.f32 0.0, %v903
        %v905 = vpop.f32.mrf.mxu0
        %906 = vmatprep.mubr.bf16.mxu0 0
        %907 = vmatmul.mubr.bf16.gmra.mxu0 %v684
        %v908 = vpop.f32.mrf.mxu0
        %v909 = vadd.f32 0.0, %v908
        %v910 = vpop.f32.mrf.mxu0
        %v911 = vpop.f32.mrf.mxu0
        %v912 = vadd.f32 0.0, %v911
        %v913 = vpop.f32.mrf.mxu0
        %914 = vmatprep.mubr.bf16.mxu0 0
        %915 = vmatmul.mubr.bf16.gmra.mxu0 %v687
        %v916 = vpop.f32.mrf.mxu0
        %v917 = vadd.f32 0.0, %v916
        %v918 = vpop.f32.mrf.mxu0
        %v919 = vpop.f32.mrf.mxu0
        %v920 = vadd.f32 0.0, %v919
        %v921 = vpop.f32.mrf.mxu0
        %922 = vmatprep.mubr.bf16.mxu0 0
        %923 = vmatmul.mubr.bf16.gmra.mxu0 %v690
        %v924 = vpop.f32.mrf.mxu0
        %v925 = vadd.f32 0.0, %v924
        %v926 = vpop.f32.mrf.mxu0
        %v927 = vpop.f32.mrf.mxu0
        %v928 = vadd.f32 0.0, %v927
        %v929 = vpop.f32.mrf.mxu0
        %930 = vmatprep.mubr.bf16.mxu0 0
        %931 = vmatmul.mubr.bf16.gmra.mxu0 %v693
        %v932 = vpop.f32.mrf.mxu0
        %v933 = vadd.f32 0.0, %v932
        %v934 = vpop.f32.mrf.mxu0
        %v935 = vpop.f32.mrf.mxu0
        %v936 = vadd.f32 0.0, %v935
        %v937 = vpop.f32.mrf.mxu0
        %938 = vmatprep.mubr.bf16.mxu0 0
        %939 = vmatmul.mubr.bf16.gmra.mxu0 %v696
        %v940 = vpop.f32.mrf.mxu0
        %v941 = vadd.f32 0.0, %v940
        %v942 = vpop.f32.mrf.mxu0
        %v943 = vpop.f32.mrf.mxu0
        %v944 = vadd.f32 0.0, %v943
        %v945 = vpop.f32.mrf.mxu0
        %946 = vmatprep.mubr.bf16.mxu0 0
        %947 = vmatmul.mubr.bf16.gmra.mxu0 %v699
        %v948 = vpop.f32.mrf.mxu0
        %v949 = vadd.f32 0.0, %v948
        %v950 = vpop.f32.mrf.mxu0
        %v951 = vpop.f32.mrf.mxu0
        %v952 = vadd.f32 0.0, %v951
        %v953 = vpop.f32.mrf.mxu0
        %954 = vmatprep.mubr.bf16.mxu0 0
        %955 = vmatmul.mubr.bf16.gmra.mxu0 %v702
        %v956 = vpop.f32.mrf.mxu0
        %v957 = vadd.f32 0.0, %v956
        %v958 = vpop.f32.mrf.mxu0
        %v959 = vpop.f32.mrf.mxu0
        %v960 = vadd.f32 0.0, %v959
        %v961 = vpop.f32.mrf.mxu0
        %962 = vmatprep.mubr.bf16.mxu0 0
        %963 = vmatmul.mubr.bf16.gmra.mxu0 %v705
        %v964 = vpop.f32.mrf.mxu0
        %v965 = vadd.f32 0.0, %v964
        %v966 = vpop.f32.mrf.mxu0
        %v967 = vpop.f32.mrf.mxu0
        %v968 = vadd.f32 0.0, %v967
        %v969 = vpop.f32.mrf.mxu0
        %970 = vmatprep.mubr.bf16.mxu0 0
        %971 = vmatmul.mubr.bf16.gmra.mxu0 %v708
        %v972 = vpop.f32.mrf.mxu0
        %v973 = vadd.f32 0.0, %v972
        %v974 = vpop.f32.mrf.mxu0
        %v975 = vpop.f32.mrf.mxu0
        %v976 = vadd.f32 0.0, %v975
        %v977 = vpop.f32.mrf.mxu0
        %978 = vmatprep.mubr.bf16.mxu0 0
        %979 = vmatmul.mubr.bf16.gmra.mxu0 %v711
        %v980 = vpop.f32.mrf.mxu0
        %v981 = vadd.f32 0.0, %v980
        %v982 = vpop.f32.mrf.mxu0
        %v983 = vpop.f32.mrf.mxu0
        %v984 = vadd.f32 0.0, %v983
        %v985 = vpop.f32.mrf.mxu0
        %986 = vmatprep.mubr.bf16.mxu0 0
        %987 = vmatmul.mubr.bf16.gmra.mxu0 %v714
        %v988 = vpop.f32.mrf.mxu0
        %v989 = vadd.f32 0.0, %v988
        %v990 = vpop.f32.mrf.mxu0
        %v991 = vpop.f32.mrf.mxu0
        %v992 = vadd.f32 0.0, %v991
        %v993 = vpop.f32.mrf.mxu0
        %994 = vmatprep.mubr.bf16.mxu0 0
        %995 = vmatmul.mubr.bf16.gmra.mxu0 %v717
        %v996 = vpop.f32.mrf.mxu0
        %v997 = vadd.f32 0.0, %v996
        %v998 = vpop.f32.mrf.mxu0
        %v999 = vpop.f32.mrf.mxu0
        %v1000 = vadd.f32 0.0, %v999
        %v1001 = vpop.f32.mrf.mxu0
        %1002 = vmatprep.mubr.bf16.mxu0 0
        %1003 = vmatmul.mubr.bf16.gmra.mxu0 %v720
        %v1004 = vpop.f32.mrf.mxu0
        %v1005 = vadd.f32 0.0, %v1004
        %v1006 = vpop.f32.mrf.mxu0
        %v1007 = vpop.f32.mrf.mxu0
        %v1008 = vadd.f32 0.0, %v1007
        %v1009 = vpop.f32.mrf.mxu0
        %1010 = vdwg.mxu0
        %v1075 = vunpack.c.l.b16 %v305
        %v1076 = vunpack.c.l.b16 %v306
        %v1077 = vunpack.c.l.b16 %v307
        %v1078 = vunpack.c.l.b16 %v308
        %v1079 = vunpack.c.l.b16 %v309
        %v1080 = vunpack.c.l.b16 %v310
        %v1081 = vunpack.c.l.b16 %v311
        %v1082 = vunpack.c.l.b16 %v312
        %v1083 = vunpack.c.l.b16 %v313
        %v1084 = vunpack.c.l.b16 %v314
        %v1085 = vunpack.c.l.b16 %v315
        %v1086 = vunpack.c.l.b16 %v316
        %v1087 = vunpack.c.l.b16 %v317
        %v1088 = vunpack.c.l.b16 %v318
        %v1089 = vunpack.c.l.b16 %v319
        %v1090 = vunpack.c.l.b16 %v320
        %v1091 = vunpack.c.l.b16 %v321
        %v1092 = vunpack.c.l.b16 %v322
        %v1093 = vunpack.c.l.b16 %v323
        %v1094 = vunpack.c.l.b16 %v324
        %v1095 = vunpack.c.l.b16 %v325
        %v1096 = vunpack.c.l.b16 %v326
        %v1097 = vunpack.c.l.b16 %v327
        %v1098 = vunpack.c.l.b16 %v328
        %v1099 = vunpack.c.l.b16 %v329
        %v1100 = vunpack.c.l.b16 %v330
        %v1101 = vunpack.c.l.b16 %v331
        %v1102 = vunpack.c.l.b16 %v332
        %v1103 = vunpack.c.l.b16 %v333
        %v1104 = vunpack.c.l.b16 %v334
        %v1105 = vunpack.c.l.b16 %v335
        %v1106 = vunpack.c.l.b16 %v336
        %v1107 = vunpack.c.l.b16 %v337
        %v1108 = vunpack.c.l.b16 %v338
        %v1109 = vunpack.c.l.b16 %v339
        %v1110 = vunpack.c.l.b16 %v340
        %v1111 = vunpack.c.l.b16 %v341
        %v1112 = vunpack.c.l.b16 %v342
        %v1113 = vunpack.c.l.b16 %v343
        %v1114 = vunpack.c.l.b16 %v344
        %v1115 = vunpack.c.l.b16 %v345
        %v1116 = vunpack.c.l.b16 %v346
        %v1117 = vunpack.c.l.b16 %v347
        %v1118 = vunpack.c.l.b16 %v348
        %v1119 = vunpack.c.l.b16 %v349
        %v1120 = vunpack.c.l.b16 %v350
        %v1121 = vunpack.c.l.b16 %v351
        %v1122 = vunpack.c.l.b16 %v352
        %v1123 = vunpack.c.l.b16 %v353
        %v1124 = vunpack.c.l.b16 %v354
        %v1125 = vunpack.c.l.b16 %v355
        %v1126 = vunpack.c.l.b16 %v356
        %v1127 = vunpack.c.l.b16 %v357
        %v1128 = vunpack.c.l.b16 %v358
        %v1129 = vunpack.c.l.b16 %v359
        %v1130 = vunpack.c.l.b16 %v360
        %v1131 = vunpack.c.l.b16 %v361
        %v1132 = vunpack.c.l.b16 %v362
        %v1133 = vunpack.c.l.b16 %v363
        %v1134 = vunpack.c.l.b16 %v364
        %v1135 = vunpack.c.l.b16 %v365
        %v1136 = vunpack.c.l.b16 %v366
        %v1137 = vunpack.c.l.b16 %v367
        %v1138 = vunpack.c.l.b16 %v368
        %v1139 = vpack.c.b16 %v1076, %v1075
        %v1140 = vpack.c.b16 %v1078, %v1077
        %v1141 = vpack.c.b16 %v1080, %v1079
        %v1142 = vpack.c.b16 %v1082, %v1081
        %v1143 = vpack.c.b16 %v1084, %v1083
        %v1144 = vpack.c.b16 %v1086, %v1085
        %v1145 = vpack.c.b16 %v1088, %v1087
        %v1146 = vpack.c.b16 %v1090, %v1089
        %v1147 = vpack.c.b16 %v1092, %v1091
        %v1148 = vpack.c.b16 %v1094, %v1093
        %v1149 = vpack.c.b16 %v1096, %v1095
        %v1150 = vpack.c.b16 %v1098, %v1097
        %v1151 = vpack.c.b16 %v1100, %v1099
        %v1152 = vpack.c.b16 %v1102, %v1101
        %v1153 = vpack.c.b16 %v1104, %v1103
        %v1154 = vpack.c.b16 %v1106, %v1105
        %v1155 = vpack.c.b16 %v1108, %v1107
        %v1156 = vpack.c.b16 %v1110, %v1109
        %v1157 = vpack.c.b16 %v1112, %v1111
        %v1158 = vpack.c.b16 %v1114, %v1113
        %v1159 = vpack.c.b16 %v1116, %v1115
        %v1160 = vpack.c.b16 %v1118, %v1117
        %v1161 = vpack.c.b16 %v1120, %v1119
        %v1162 = vpack.c.b16 %v1122, %v1121
        %v1163 = vpack.c.b16 %v1124, %v1123
        %v1164 = vpack.c.b16 %v1126, %v1125
        %v1165 = vpack.c.b16 %v1128, %v1127
        %v1166 = vpack.c.b16 %v1130, %v1129
        %v1167 = vpack.c.b16 %v1132, %v1131
        %v1168 = vpack.c.b16 %v1134, %v1133
        %v1169 = vpack.c.b16 %v1136, %v1135
        %v1170 = vpack.c.b16 %v1138, %v1137
        %v1175 = vunpack.c.l.b16 %v369
        %v1176 = vunpack.c.l.b16 %v370
        %v1177 = vunpack.c.l.b16 %v371
        %v1178 = vunpack.c.l.b16 %v372
        %v1179 = vpack.c.b16 %v1176, %v1175
        %v1180 = vpack.c.b16 %v1178, %v1177
        %v1184 = vsel %vm625, %v1139, 0
        %v1187 = vsel %vm625, %v1140, 0
        %v1190 = vsel %vm625, %v1141, 0
        %v1193 = vsel %vm625, %v1142, 0
        %v1196 = vsel %vm625, %v1143, 0
        %v1199 = vsel %vm625, %v1144, 0
        %v1202 = vsel %vm625, %v1145, 0
        %v1205 = vsel %vm625, %v1146, 0
        %v1208 = vsel %vm625, %v1147, 0
        %v1211 = vsel %vm625, %v1148, 0
        %v1214 = vsel %vm625, %v1149, 0
        %v1217 = vsel %vm625, %v1150, 0
        %v1220 = vsel %vm625, %v1151, 0
        %v1223 = vsel %vm625, %v1152, 0
        %v1226 = vsel %vm625, %v1153, 0
        %v1229 = vsel %vm625, %v1154, 0
        %v1232 = vsel %vm625, %v1155, 0
        %v1235 = vsel %vm625, %v1156, 0
        %v1238 = vsel %vm625, %v1157, 0
        %v1241 = vsel %vm625, %v1158, 0
        %v1244 = vsel %vm625, %v1159, 0
        %v1247 = vsel %vm625, %v1160, 0
        %v1250 = vsel %vm625, %v1161, 0
        %v1253 = vsel %vm625, %v1162, 0
        %v1256 = vsel %vm625, %v1163, 0
        %v1259 = vsel %vm625, %v1164, 0
        %v1262 = vsel %vm625, %v1165, 0
        %v1265 = vsel %vm625, %v1166, 0
        %v1268 = vsel %vm625, %v1167, 0
        %v1271 = vsel %vm625, %v1168, 0
        %v1274 = vsel %vm625, %v1169, 0
        %v1277 = vsel %vm625, %v1170, 0
        %1279 = vmatprep.subr.bf16.mxu0 0
        %1280 = vmatpush1.bf16.msra.mxu0 0
        %1281 = vmatprep.subr.bf16.mxu0 0
        %1282 = vmatpush1.bf16.msra.mxu0 0
        %1283 = vmatprep.subr.bf16.mxu0 0
        %1284 = vmatpush1.bf16.msra.mxu0 0
        %1285 = vmatprep.subr.bf16.mxu0 0
        %1286 = vmatpush1.bf16.msra.mxu0 0
        %1287 = vmatprep.subr.bf16.mxu0 0
        %1288 = vmatpush1.bf16.msra.mxu0 0
        %1289 = vmatprep.subr.bf16.mxu0 0
        %1290 = vmatpush1.bf16.msra.mxu0 0
        %1291 = vmatprep.subr.bf16.mxu0 0
        %1292 = vmatpush1.bf16.msra.mxu0 %v1180
        %1293 = vmatprep.subr.bf16.mxu0 0
        %1294 = vmatpush1.bf16.msra.mxu0 %v1179
        %1295 = vmatprep.subr.bf16.mxu0 0
        %1296 = vmatpush2.bf16.msra.mxu0 0
        %1297 = vmatprep.subr.bf16.mxu0 0
        %1298 = vmatpush2.bf16.msra.mxu0 0
        %1299 = vmatprep.subr.bf16.mxu0 0
        %1300 = vmatpush2.bf16.msra.mxu0 0
        %1301 = vmatprep.subr.bf16.mxu0 0
        %1302 = vmatpush2.bf16.msra.mxu0 0
        %1303 = vmatprep.subr.bf16.mxu0 0
        %1304 = vmatpush2.bf16.msra.mxu0 0
        %1305 = vmatprep.subr.bf16.mxu0 0
        %1306 = vmatpush2.bf16.msra.mxu0 0
        %1307 = vmatprep.subr.bf16.mxu0 0
        %1308 = vmatpush2.bf16.msra.mxu0 0
        %1309 = vmatprep.subr.bf16.mxu0 0
        %1310 = vmatpush2.bf16.msra.mxu0 0
        %1311 = vmatprep.mubr.bf16.mxu0 0
        %1312 = vmatmul.mubr.bf16.gmra.mxu0 %v1184
        %v1313 = vpop.f32.mrf.mxu0
        %v1314 = vadd.f32 %v757, %v1313
        %v1315 = vpop.f32.mrf.mxu0
        %v1316 = vpop.f32.mrf.mxu0
        %v1317 = vadd.f32 %v760, %v1316
        %v1318 = vpop.f32.mrf.mxu0
        %1319 = vmatprep.mubr.bf16.mxu0 0
        %1320 = vmatmul.mubr.bf16.gmra.mxu0 %v1187
        %v1321 = vpop.f32.mrf.mxu0
        %v1322 = vadd.f32 %v765, %v1321
        %v1323 = vpop.f32.mrf.mxu0
        %v1324 = vpop.f32.mrf.mxu0
        %v1325 = vadd.f32 %v768, %v1324
        %v1326 = vpop.f32.mrf.mxu0
        %1327 = vmatprep.mubr.bf16.mxu0 0
        %1328 = vmatmul.mubr.bf16.gmra.mxu0 %v1190
        %v1329 = vpop.f32.mrf.mxu0
        %v1330 = vadd.f32 %v773, %v1329
        %v1331 = vpop.f32.mrf.mxu0
        %v1332 = vpop.f32.mrf.mxu0
        %v1333 = vadd.f32 %v776, %v1332
        %v1334 = vpop.f32.mrf.mxu0
        %1335 = vmatprep.mubr.bf16.mxu0 0
        %1336 = vmatmul.mubr.bf16.gmra.mxu0 %v1193
        %v1337 = vpop.f32.mrf.mxu0
        %v1338 = vadd.f32 %v781, %v1337
        %v1339 = vpop.f32.mrf.mxu0
        %v1340 = vpop.f32.mrf.mxu0
        %v1341 = vadd.f32 %v784, %v1340
        %v1342 = vpop.f32.mrf.mxu0
        %1343 = vmatprep.mubr.bf16.mxu0 0
        %1344 = vmatmul.mubr.bf16.gmra.mxu0 %v1196
        %v1345 = vpop.f32.mrf.mxu0
        %v1346 = vadd.f32 %v789, %v1345
        %v1347 = vpop.f32.mrf.mxu0
        %v1348 = vpop.f32.mrf.mxu0
        %v1349 = vadd.f32 %v792, %v1348
        %v1350 = vpop.f32.mrf.mxu0
        %1351 = vmatprep.mubr.bf16.mxu0 0
        %1352 = vmatmul.mubr.bf16.gmra.mxu0 %v1199
        %v1353 = vpop.f32.mrf.mxu0
        %v1354 = vadd.f32 %v797, %v1353
        %v1355 = vpop.f32.mrf.mxu0
        %v1356 = vpop.f32.mrf.mxu0
        %v1357 = vadd.f32 %v800, %v1356
        %v1358 = vpop.f32.mrf.mxu0
        %1359 = vmatprep.mubr.bf16.mxu0 0
        %1360 = vmatmul.mubr.bf16.gmra.mxu0 %v1202
        %v1361 = vpop.f32.mrf.mxu0
        %v1362 = vadd.f32 %v805, %v1361
        %v1363 = vpop.f32.mrf.mxu0
        %v1364 = vpop.f32.mrf.mxu0
        %v1365 = vadd.f32 %v808, %v1364
        %v1366 = vpop.f32.mrf.mxu0
        %1367 = vmatprep.mubr.bf16.mxu0 0
        %1368 = vmatmul.mubr.bf16.gmra.mxu0 %v1205
        %v1369 = vpop.f32.mrf.mxu0
        %v1370 = vadd.f32 %v813, %v1369
        %v1371 = vpop.f32.mrf.mxu0
        %v1372 = vpop.f32.mrf.mxu0
        %v1373 = vadd.f32 %v816, %v1372
        %v1374 = vpop.f32.mrf.mxu0
        %1375 = vmatprep.mubr.bf16.mxu0 0
        %1376 = vmatmul.mubr.bf16.gmra.mxu0 %v1208
        %v1377 = vpop.f32.mrf.mxu0
        %v1378 = vadd.f32 %v821, %v1377
        %v1379 = vpop.f32.mrf.mxu0
        %v1380 = vpop.f32.mrf.mxu0
        %v1381 = vadd.f32 %v824, %v1380
        %v1382 = vpop.f32.mrf.mxu0
        %1383 = vmatprep.mubr.bf16.mxu0 0
        %1384 = vmatmul.mubr.bf16.gmra.mxu0 %v1211
        %v1385 = vpop.f32.mrf.mxu0
        %v1386 = vadd.f32 %v829, %v1385
        %v1387 = vpop.f32.mrf.mxu0
        %v1388 = vpop.f32.mrf.mxu0
        %v1389 = vadd.f32 %v832, %v1388
        %v1390 = vpop.f32.mrf.mxu0
        %1391 = vmatprep.mubr.bf16.mxu0 0
        %1392 = vmatmul.mubr.bf16.gmra.mxu0 %v1214
        %v1393 = vpop.f32.mrf.mxu0
        %v1394 = vadd.f32 %v837, %v1393
        %v1395 = vpop.f32.mrf.mxu0
        %v1396 = vpop.f32.mrf.mxu0
        %v1397 = vadd.f32 %v840, %v1396
        %v1398 = vpop.f32.mrf.mxu0
        %1399 = vmatprep.mubr.bf16.mxu0 0
        %1400 = vmatmul.mubr.bf16.gmra.mxu0 %v1217
        %v1401 = vpop.f32.mrf.mxu0
        %v1402 = vadd.f32 %v845, %v1401
        %v1403 = vpop.f32.mrf.mxu0
        %v1404 = vpop.f32.mrf.mxu0
        %v1405 = vadd.f32 %v848, %v1404
        %v1406 = vpop.f32.mrf.mxu0
        %1407 = vmatprep.mubr.bf16.mxu0 0
        %1408 = vmatmul.mubr.bf16.gmra.mxu0 %v1220
        %v1409 = vpop.f32.mrf.mxu0
        %v1410 = vadd.f32 %v853, %v1409
        %v1411 = vpop.f32.mrf.mxu0
        %v1412 = vpop.f32.mrf.mxu0
        %v1413 = vadd.f32 %v856, %v1412
        %v1414 = vpop.f32.mrf.mxu0
        %1415 = vmatprep.mubr.bf16.mxu0 0
        %1416 = vmatmul.mubr.bf16.gmra.mxu0 %v1223
        %v1417 = vpop.f32.mrf.mxu0
        %v1418 = vadd.f32 %v861, %v1417
        %v1419 = vpop.f32.mrf.mxu0
        %v1420 = vpop.f32.mrf.mxu0
        %v1421 = vadd.f32 %v864, %v1420
        %v1422 = vpop.f32.mrf.mxu0
        %1423 = vmatprep.mubr.bf16.mxu0 0
        %1424 = vmatmul.mubr.bf16.gmra.mxu0 %v1226
        %v1425 = vpop.f32.mrf.mxu0
        %v1426 = vadd.f32 %v869, %v1425
        %v1427 = vpop.f32.mrf.mxu0
        %v1428 = vpop.f32.mrf.mxu0
        %v1429 = vadd.f32 %v872, %v1428
        %v1430 = vpop.f32.mrf.mxu0
        %1431 = vmatprep.mubr.bf16.mxu0 0
        %1432 = vmatmul.mubr.bf16.gmra.mxu0 %v1229
        %v1433 = vpop.f32.mrf.mxu0
        %v1434 = vadd.f32 %v877, %v1433
        %v1435 = vpop.f32.mrf.mxu0
        %v1436 = vpop.f32.mrf.mxu0
        %v1437 = vadd.f32 %v880, %v1436
        %v1438 = vpop.f32.mrf.mxu0
        %1439 = vmatprep.mubr.bf16.mxu0 0
        %1440 = vmatmul.mubr.bf16.gmra.mxu0 %v1232
        %v1441 = vpop.f32.mrf.mxu0
        %v1442 = vadd.f32 %v885, %v1441
        %v1443 = vpop.f32.mrf.mxu0
        %v1444 = vpop.f32.mrf.mxu0
        %v1445 = vadd.f32 %v888, %v1444
        %v1446 = vpop.f32.mrf.mxu0
        %1447 = vmatprep.mubr.bf16.mxu0 0
        %1448 = vmatmul.mubr.bf16.gmra.mxu0 %v1235
        %v1449 = vpop.f32.mrf.mxu0
        %v1450 = vadd.f32 %v893, %v1449
        %v1451 = vpop.f32.mrf.mxu0
        %v1452 = vpop.f32.mrf.mxu0
        %v1453 = vadd.f32 %v896, %v1452
        %v1454 = vpop.f32.mrf.mxu0
        %1455 = vmatprep.mubr.bf16.mxu0 0
        %1456 = vmatmul.mubr.bf16.gmra.mxu0 %v1238
        %v1457 = vpop.f32.mrf.mxu0
        %v1458 = vadd.f32 %v901, %v1457
        %v1459 = vpop.f32.mrf.mxu0
        %v1460 = vpop.f32.mrf.mxu0
        %v1461 = vadd.f32 %v904, %v1460
        %v1462 = vpop.f32.mrf.mxu0
        %1463 = vmatprep.mubr.bf16.mxu0 0
        %1464 = vmatmul.mubr.bf16.gmra.mxu0 %v1241
        %v1465 = vpop.f32.mrf.mxu0
        %v1466 = vadd.f32 %v909, %v1465
        %v1467 = vpop.f32.mrf.mxu0
        %v1468 = vpop.f32.mrf.mxu0
        %v1469 = vadd.f32 %v912, %v1468
        %v1470 = vpop.f32.mrf.mxu0
        %1471 = vmatprep.mubr.bf16.mxu0 0
        %1472 = vmatmul.mubr.bf16.gmra.mxu0 %v1244
        %v1473 = vpop.f32.mrf.mxu0
        %v1474 = vadd.f32 %v917, %v1473
        %v1475 = vpop.f32.mrf.mxu0
        %v1476 = vpop.f32.mrf.mxu0
        %v1477 = vadd.f32 %v920, %v1476
        %v1478 = vpop.f32.mrf.mxu0
        %1479 = vmatprep.mubr.bf16.mxu0 0
        %1480 = vmatmul.mubr.bf16.gmra.mxu0 %v1247
        %v1481 = vpop.f32.mrf.mxu0
        %v1482 = vadd.f32 %v925, %v1481
        %v1483 = vpop.f32.mrf.mxu0
        %v1484 = vpop.f32.mrf.mxu0
        %v1485 = vadd.f32 %v928, %v1484
        %v1486 = vpop.f32.mrf.mxu0
        %1487 = vmatprep.mubr.bf16.mxu0 0
        %1488 = vmatmul.mubr.bf16.gmra.mxu0 %v1250
        %v1489 = vpop.f32.mrf.mxu0
        %v1490 = vadd.f32 %v933, %v1489
        %v1491 = vpop.f32.mrf.mxu0
        %v1492 = vpop.f32.mrf.mxu0
        %v1493 = vadd.f32 %v936, %v1492
        %v1494 = vpop.f32.mrf.mxu0
        %1495 = vmatprep.mubr.bf16.mxu0 0
        %1496 = vmatmul.mubr.bf16.gmra.mxu0 %v1253
        %v1497 = vpop.f32.mrf.mxu0
        %v1498 = vadd.f32 %v941, %v1497
        %v1499 = vpop.f32.mrf.mxu0
        %v1500 = vpop.f32.mrf.mxu0
        %v1501 = vadd.f32 %v944, %v1500
        %v1502 = vpop.f32.mrf.mxu0
        %1503 = vmatprep.mubr.bf16.mxu0 0
        %1504 = vmatmul.mubr.bf16.gmra.mxu0 %v1256
        %v1505 = vpop.f32.mrf.mxu0
        %v1506 = vadd.f32 %v949, %v1505
        %v1507 = vpop.f32.mrf.mxu0
        %v1508 = vpop.f32.mrf.mxu0
        %v1509 = vadd.f32 %v952, %v1508
        %v1510 = vpop.f32.mrf.mxu0
        %1511 = vmatprep.mubr.bf16.mxu0 0
        %1512 = vmatmul.mubr.bf16.gmra.mxu0 %v1259
        %v1513 = vpop.f32.mrf.mxu0
        %v1514 = vadd.f32 %v957, %v1513
        %v1515 = vpop.f32.mrf.mxu0
        %v1516 = vpop.f32.mrf.mxu0
        %v1517 = vadd.f32 %v960, %v1516
        %v1518 = vpop.f32.mrf.mxu0
        %1519 = vmatprep.mubr.bf16.mxu0 0
        %1520 = vmatmul.mubr.bf16.gmra.mxu0 %v1262
        %v1521 = vpop.f32.mrf.mxu0
        %v1522 = vadd.f32 %v965, %v1521
        %v1523 = vpop.f32.mrf.mxu0
        %v1524 = vpop.f32.mrf.mxu0
        %v1525 = vadd.f32 %v968, %v1524
        %v1526 = vpop.f32.mrf.mxu0
        %1527 = vmatprep.mubr.bf16.mxu0 0
        %1528 = vmatmul.mubr.bf16.gmra.mxu0 %v1265
        %v1529 = vpop.f32.mrf.mxu0
        %v1530 = vadd.f32 %v973, %v1529
        %v1531 = vpop.f32.mrf.mxu0
        %v1532 = vpop.f32.mrf.mxu0
        %v1533 = vadd.f32 %v976, %v1532
        %v1534 = vpop.f32.mrf.mxu0
        %1535 = vmatprep.mubr.bf16.mxu0 0
        %1536 = vmatmul.mubr.bf16.gmra.mxu0 %v1268
        %v1537 = vpop.f32.mrf.mxu0
        %v1538 = vadd.f32 %v981, %v1537
        %v1539 = vpop.f32.mrf.mxu0
        %v1540 = vpop.f32.mrf.mxu0
        %v1541 = vadd.f32 %v984, %v1540
        %v1542 = vpop.f32.mrf.mxu0
        %1543 = vmatprep.mubr.bf16.mxu0 0
        %1544 = vmatmul.mubr.bf16.gmra.mxu0 %v1271
        %v1545 = vpop.f32.mrf.mxu0
        %v1546 = vadd.f32 %v989, %v1545
        %v1547 = vpop.f32.mrf.mxu0
        %v1548 = vpop.f32.mrf.mxu0
        %v1549 = vadd.f32 %v992, %v1548
        %v1550 = vpop.f32.mrf.mxu0
        %1551 = vmatprep.mubr.bf16.mxu0 0
        %1552 = vmatmul.mubr.bf16.gmra.mxu0 %v1274
        %v1553 = vpop.f32.mrf.mxu0
        %v1554 = vadd.f32 %v997, %v1553
        %v1555 = vpop.f32.mrf.mxu0
        %v1556 = vpop.f32.mrf.mxu0
        %v1557 = vadd.f32 %v1000, %v1556
        %v1558 = vpop.f32.mrf.mxu0
        %1559 = vmatprep.mubr.bf16.mxu0 0
        %1560 = vmatmul.mubr.bf16.gmra.mxu0 %v1277
        %v1561 = vpop.f32.mrf.mxu0
        %v1562 = vadd.f32 %v1005, %v1561
        %v1563 = vpop.f32.mrf.mxu0
        %v1564 = vpop.f32.mrf.mxu0
        %v1565 = vadd.f32 %v1008, %v1564
        %v1566 = vpop.f32.mrf.mxu0
        %1567 = vdwg.mxu0
        %s1568 = scalar_lea.vmem %s2, 64
        %v1569 = vld [vmem:[%s1568] sm:$0xf]
        %v1570 = vld [vmem:[%s1568 + $0x4] sm:$0xf]
        %v1571 = vld [vmem:[%s1568 + $0x8] sm:$0xf]
        %v1572 = vld [vmem:[%s1568 + $0xc] sm:$0xf]
        %v1577 = vunpack.c.l.b16 %v1569
        %v1578 = vunpack.c.l.b16 %v1570
        %v1579 = vunpack.c.l.b16 %v1571
        %v1580 = vunpack.c.l.b16 %v1572
        %v1581 = vpack.c.b16 %v1578, %v1577
        %v1582 = vpack.c.b16 %v1580, %v1579
        %1585 = vmatprep.subr.bf16.mxu0 0
        %1586 = vmatpush1.bf16.msra.mxu0 0
        %1587 = vmatprep.subr.bf16.mxu0 0
        %1588 = vmatpush1.bf16.msra.mxu0 0
        %1589 = vmatprep.subr.bf16.mxu0 0
        %1590 = vmatpush1.bf16.msra.mxu0 0
        %1591 = vmatprep.subr.bf16.mxu0 0
        %1592 = vmatpush1.bf16.msra.mxu0 0
        %1593 = vmatprep.subr.bf16.mxu0 0
        %1594 = vmatpush1.bf16.msra.mxu0 0
        %1595 = vmatprep.subr.bf16.mxu0 0
        %1596 = vmatpush1.bf16.msra.mxu0 0
        %1597 = vmatprep.subr.bf16.mxu0 0
        %1598 = vmatpush1.bf16.msra.mxu0 %v1582
        %1599 = vmatprep.subr.bf16.mxu0 0
        %1600 = vmatpush1.bf16.msra.mxu0 %v1581
        %1601 = vmatprep.subr.bf16.mxu0 0
        %1602 = vmatpush2.bf16.msra.mxu0 0
        %1603 = vmatprep.subr.bf16.mxu0 0
        %1604 = vmatpush2.bf16.msra.mxu0 0
        %1605 = vmatprep.subr.bf16.mxu0 0
        %1606 = vmatpush2.bf16.msra.mxu0 0
        %1607 = vmatprep.subr.bf16.mxu0 0
        %1608 = vmatpush2.bf16.msra.mxu0 0
        %1609 = vmatprep.subr.bf16.mxu0 0
        %1610 = vmatpush2.bf16.msra.mxu0 0
        %1611 = vmatprep.subr.bf16.mxu0 0
        %1612 = vmatpush2.bf16.msra.mxu0 0
        %1613 = vmatprep.subr.bf16.mxu0 0
        %1614 = vmatpush2.bf16.msra.mxu0 0
        %1615 = vmatprep.subr.bf16.mxu0 0
        %1616 = vmatpush2.bf16.msra.mxu0 0
        %1617 = vmatprep.mubr.bf16.mxu0 0
        %1618 = vmatmul.mubr.bf16.gmra.mxu0 %v627
        %v1619 = vpop.f32.mrf.mxu0
        %v1620 = vadd.f32 0.0, %v1619
        %v1621 = vpop.f32.mrf.mxu0
        %v1622 = vpop.f32.mrf.mxu0
        %v1623 = vadd.f32 0.0, %v1622
        %v1624 = vpop.f32.mrf.mxu0
        %1625 = vmatprep.mubr.bf16.mxu0 0
        %1626 = vmatmul.mubr.bf16.gmra.mxu0 %v630
        %v1627 = vpop.f32.mrf.mxu0
        %v1628 = vadd.f32 0.0, %v1627
        %v1629 = vpop.f32.mrf.mxu0
        %v1630 = vpop.f32.mrf.mxu0
        %v1631 = vadd.f32 0.0, %v1630
        %v1632 = vpop.f32.mrf.mxu0
        %1633 = vmatprep.mubr.bf16.mxu0 0
        %1634 = vmatmul.mubr.bf16.gmra.mxu0 %v633
        %v1635 = vpop.f32.mrf.mxu0
        %v1636 = vadd.f32 0.0, %v1635
        %v1637 = vpop.f32.mrf.mxu0
        %v1638 = vpop.f32.mrf.mxu0
        %v1639 = vadd.f32 0.0, %v1638
        %v1640 = vpop.f32.mrf.mxu0
        %1641 = vmatprep.mubr.bf16.mxu0 0
        %1642 = vmatmul.mubr.bf16.gmra.mxu0 %v636
        %v1643 = vpop.f32.mrf.mxu0
        %v1644 = vadd.f32 0.0, %v1643
        %v1645 = vpop.f32.mrf.mxu0
        %v1646 = vpop.f32.mrf.mxu0
        %v1647 = vadd.f32 0.0, %v1646
        %v1648 = vpop.f32.mrf.mxu0
        %1649 = vmatprep.mubr.bf16.mxu0 0
        %1650 = vmatmul.mubr.bf16.gmra.mxu0 %v639
        %v1651 = vpop.f32.mrf.mxu0
        %v1652 = vadd.f32 0.0, %v1651
        %v1653 = vpop.f32.mrf.mxu0
        %v1654 = vpop.f32.mrf.mxu0
        %v1655 = vadd.f32 0.0, %v1654
        %v1656 = vpop.f32.mrf.mxu0
        %1657 = vmatprep.mubr.bf16.mxu0 0
        %1658 = vmatmul.mubr.bf16.gmra.mxu0 %v642
        %v1659 = vpop.f32.mrf.mxu0
        %v1660 = vadd.f32 0.0, %v1659
        %v1661 = vpop.f32.mrf.mxu0
        %v1662 = vpop.f32.mrf.mxu0
        %v1663 = vadd.f32 0.0, %v1662
        %v1664 = vpop.f32.mrf.mxu0
        %1665 = vmatprep.mubr.bf16.mxu0 0
        %1666 = vmatmul.mubr.bf16.gmra.mxu0 %v645
        %v1667 = vpop.f32.mrf.mxu0
        %v1668 = vadd.f32 0.0, %v1667
        %v1669 = vpop.f32.mrf.mxu0
        %v1670 = vpop.f32.mrf.mxu0
        %v1671 = vadd.f32 0.0, %v1670
        %v1672 = vpop.f32.mrf.mxu0
        %1673 = vmatprep.mubr.bf16.mxu0 0
        %1674 = vmatmul.mubr.bf16.gmra.mxu0 %v648
        %v1675 = vpop.f32.mrf.mxu0
        %v1676 = vadd.f32 0.0, %v1675
        %v1677 = vpop.f32.mrf.mxu0
        %v1678 = vpop.f32.mrf.mxu0
        %v1679 = vadd.f32 0.0, %v1678
        %v1680 = vpop.f32.mrf.mxu0
        %1681 = vmatprep.mubr.bf16.mxu0 0
        %1682 = vmatmul.mubr.bf16.gmra.mxu0 %v651
        %v1683 = vpop.f32.mrf.mxu0
        %v1684 = vadd.f32 0.0, %v1683
        %v1685 = vpop.f32.mrf.mxu0
        %v1686 = vpop.f32.mrf.mxu0
        %v1687 = vadd.f32 0.0, %v1686
        %v1688 = vpop.f32.mrf.mxu0
        %1689 = vmatprep.mubr.bf16.mxu0 0
        %1690 = vmatmul.mubr.bf16.gmra.mxu0 %v654
        %v1691 = vpop.f32.mrf.mxu0
        %v1692 = vadd.f32 0.0, %v1691
        %v1693 = vpop.f32.mrf.mxu0
        %v1694 = vpop.f32.mrf.mxu0
        %v1695 = vadd.f32 0.0, %v1694
        %v1696 = vpop.f32.mrf.mxu0
        %1697 = vmatprep.mubr.bf16.mxu0 0
        %1698 = vmatmul.mubr.bf16.gmra.mxu0 %v657
        %v1699 = vpop.f32.mrf.mxu0
        %v1700 = vadd.f32 0.0, %v1699
        %v1701 = vpop.f32.mrf.mxu0
        %v1702 = vpop.f32.mrf.mxu0
        %v1703 = vadd.f32 0.0, %v1702
        %v1704 = vpop.f32.mrf.mxu0
        %1705 = vmatprep.mubr.bf16.mxu0 0
        %1706 = vmatmul.mubr.bf16.gmra.mxu0 %v660
        %v1707 = vpop.f32.mrf.mxu0
        %v1708 = vadd.f32 0.0, %v1707
        %v1709 = vpop.f32.mrf.mxu0
        %v1710 = vpop.f32.mrf.mxu0
        %v1711 = vadd.f32 0.0, %v1710
        %v1712 = vpop.f32.mrf.mxu0
        %1713 = vmatprep.mubr.bf16.mxu0 0
        %1714 = vmatmul.mubr.bf16.gmra.mxu0 %v663
        %v1715 = vpop.f32.mrf.mxu0
        %v1716 = vadd.f32 0.0, %v1715
        %v1717 = vpop.f32.mrf.mxu0
        %v1718 = vpop.f32.mrf.mxu0
        %v1719 = vadd.f32 0.0, %v1718
        %v1720 = vpop.f32.mrf.mxu0
        %1721 = vmatprep.mubr.bf16.mxu0 0
        %1722 = vmatmul.mubr.bf16.gmra.mxu0 %v666
        %v1723 = vpop.f32.mrf.mxu0
        %v1724 = vadd.f32 0.0, %v1723
        %v1725 = vpop.f32.mrf.mxu0
        %v1726 = vpop.f32.mrf.mxu0
        %v1727 = vadd.f32 0.0, %v1726
        %v1728 = vpop.f32.mrf.mxu0
        %1729 = vmatprep.mubr.bf16.mxu0 0
        %1730 = vmatmul.mubr.bf16.gmra.mxu0 %v669
        %v1731 = vpop.f32.mrf.mxu0
        %v1732 = vadd.f32 0.0, %v1731
        %v1733 = vpop.f32.mrf.mxu0
        %v1734 = vpop.f32.mrf.mxu0
        %v1735 = vadd.f32 0.0, %v1734
        %v1736 = vpop.f32.mrf.mxu0
        %1737 = vmatprep.mubr.bf16.mxu0 0
        %1738 = vmatmul.mubr.bf16.gmra.mxu0 %v672
        %v1739 = vpop.f32.mrf.mxu0
        %v1740 = vadd.f32 0.0, %v1739
        %v1741 = vpop.f32.mrf.mxu0
        %v1742 = vpop.f32.mrf.mxu0
        %v1743 = vadd.f32 0.0, %v1742
        %v1744 = vpop.f32.mrf.mxu0
        %1745 = vmatprep.mubr.bf16.mxu0 0
        %1746 = vmatmul.mubr.bf16.gmra.mxu0 %v675
        %v1747 = vpop.f32.mrf.mxu0
        %v1748 = vadd.f32 0.0, %v1747
        %v1749 = vpop.f32.mrf.mxu0
        %v1750 = vpop.f32.mrf.mxu0
        %v1751 = vadd.f32 0.0, %v1750
        %v1752 = vpop.f32.mrf.mxu0
        %1753 = vmatprep.mubr.bf16.mxu0 0
        %1754 = vmatmul.mubr.bf16.gmra.mxu0 %v678
        %v1755 = vpop.f32.mrf.mxu0
        %v1756 = vadd.f32 0.0, %v1755
        %v1757 = vpop.f32.mrf.mxu0
        %v1758 = vpop.f32.mrf.mxu0
        %v1759 = vadd.f32 0.0, %v1758
        %v1760 = vpop.f32.mrf.mxu0
        %1761 = vmatprep.mubr.bf16.mxu0 0
        %1762 = vmatmul.mubr.bf16.gmra.mxu0 %v681
        %v1763 = vpop.f32.mrf.mxu0
        %v1764 = vadd.f32 0.0, %v1763
        %v1765 = vpop.f32.mrf.mxu0
        %v1766 = vpop.f32.mrf.mxu0
        %v1767 = vadd.f32 0.0, %v1766
        %v1768 = vpop.f32.mrf.mxu0
        %1769 = vmatprep.mubr.bf16.mxu0 0
        %1770 = vmatmul.mubr.bf16.gmra.mxu0 %v684
        %v1771 = vpop.f32.mrf.mxu0
        %v1772 = vadd.f32 0.0, %v1771
        %v1773 = vpop.f32.mrf.mxu0
        %v1774 = vpop.f32.mrf.mxu0
        %v1775 = vadd.f32 0.0, %v1774
        %v1776 = vpop.f32.mrf.mxu0
        %1777 = vmatprep.mubr.bf16.mxu0 0
        %1778 = vmatmul.mubr.bf16.gmra.mxu0 %v687
        %v1779 = vpop.f32.mrf.mxu0
        %v1780 = vadd.f32 0.0, %v1779
        %v1781 = vpop.f32.mrf.mxu0
        %v1782 = vpop.f32.mrf.mxu0
        %v1783 = vadd.f32 0.0, %v1782
        %v1784 = vpop.f32.mrf.mxu0
        %1785 = vmatprep.mubr.bf16.mxu0 0
        %1786 = vmatmul.mubr.bf16.gmra.mxu0 %v690
        %v1787 = vpop.f32.mrf.mxu0
        %v1788 = vadd.f32 0.0, %v1787
        %v1789 = vpop.f32.mrf.mxu0
        %v1790 = vpop.f32.mrf.mxu0
        %v1791 = vadd.f32 0.0, %v1790
        %v1792 = vpop.f32.mrf.mxu0
        %1793 = vmatprep.mubr.bf16.mxu0 0
        %1794 = vmatmul.mubr.bf16.gmra.mxu0 %v693
        %v1795 = vpop.f32.mrf.mxu0
        %v1796 = vadd.f32 0.0, %v1795
        %v1797 = vpop.f32.mrf.mxu0
        %v1798 = vpop.f32.mrf.mxu0
        %v1799 = vadd.f32 0.0, %v1798
        %v1800 = vpop.f32.mrf.mxu0
        %1801 = vmatprep.mubr.bf16.mxu0 0
        %1802 = vmatmul.mubr.bf16.gmra.mxu0 %v696
        %v1803 = vpop.f32.mrf.mxu0
        %v1804 = vadd.f32 0.0, %v1803
        %v1805 = vpop.f32.mrf.mxu0
        %v1806 = vpop.f32.mrf.mxu0
        %v1807 = vadd.f32 0.0, %v1806
        %v1808 = vpop.f32.mrf.mxu0
        %1809 = vmatprep.mubr.bf16.mxu0 0
        %1810 = vmatmul.mubr.bf16.gmra.mxu0 %v699
        %v1811 = vpop.f32.mrf.mxu0
        %v1812 = vadd.f32 0.0, %v1811
        %v1813 = vpop.f32.mrf.mxu0
        %v1814 = vpop.f32.mrf.mxu0
        %v1815 = vadd.f32 0.0, %v1814
        %v1816 = vpop.f32.mrf.mxu0
        %1817 = vmatprep.mubr.bf16.mxu0 0
        %1818 = vmatmul.mubr.bf16.gmra.mxu0 %v702
        %v1819 = vpop.f32.mrf.mxu0
        %v1820 = vadd.f32 0.0, %v1819
        %v1821 = vpop.f32.mrf.mxu0
        %v1822 = vpop.f32.mrf.mxu0
        %v1823 = vadd.f32 0.0, %v1822
        %v1824 = vpop.f32.mrf.mxu0
        %1825 = vmatprep.mubr.bf16.mxu0 0
        %1826 = vmatmul.mubr.bf16.gmra.mxu0 %v705
        %v1827 = vpop.f32.mrf.mxu0
        %v1828 = vadd.f32 0.0, %v1827
        %v1829 = vpop.f32.mrf.mxu0
        %v1830 = vpop.f32.mrf.mxu0
        %v1831 = vadd.f32 0.0, %v1830
        %v1832 = vpop.f32.mrf.mxu0
        %1833 = vmatprep.mubr.bf16.mxu0 0
        %1834 = vmatmul.mubr.bf16.gmra.mxu0 %v708
        %v1835 = vpop.f32.mrf.mxu0
        %v1836 = vadd.f32 0.0, %v1835
        %v1837 = vpop.f32.mrf.mxu0
        %v1838 = vpop.f32.mrf.mxu0
        %v1839 = vadd.f32 0.0, %v1838
        %v1840 = vpop.f32.mrf.mxu0
        %1841 = vmatprep.mubr.bf16.mxu0 0
        %1842 = vmatmul.mubr.bf16.gmra.mxu0 %v711
        %v1843 = vpop.f32.mrf.mxu0
        %v1844 = vadd.f32 0.0, %v1843
        %v1845 = vpop.f32.mrf.mxu0
        %v1846 = vpop.f32.mrf.mxu0
        %v1847 = vadd.f32 0.0, %v1846
        %v1848 = vpop.f32.mrf.mxu0
        %1849 = vmatprep.mubr.bf16.mxu0 0
        %1850 = vmatmul.mubr.bf16.gmra.mxu0 %v714
        %v1851 = vpop.f32.mrf.mxu0
        %v1852 = vadd.f32 0.0, %v1851
        %v1853 = vpop.f32.mrf.mxu0
        %v1854 = vpop.f32.mrf.mxu0
        %v1855 = vadd.f32 0.0, %v1854
        %v1856 = vpop.f32.mrf.mxu0
        %1857 = vmatprep.mubr.bf16.mxu0 0
        %1858 = vmatmul.mubr.bf16.gmra.mxu0 %v717
        %v1859 = vpop.f32.mrf.mxu0
        %v1860 = vadd.f32 0.0, %v1859
        %v1861 = vpop.f32.mrf.mxu0
        %v1862 = vpop.f32.mrf.mxu0
        %v1863 = vadd.f32 0.0, %v1862
        %v1864 = vpop.f32.mrf.mxu0
        %1865 = vmatprep.mubr.bf16.mxu0 0
        %1866 = vmatmul.mubr.bf16.gmra.mxu0 %v720
        %v1867 = vpop.f32.mrf.mxu0
        %v1868 = vadd.f32 0.0, %v1867
        %v1869 = vpop.f32.mrf.mxu0
        %v1870 = vpop.f32.mrf.mxu0
        %v1871 = vadd.f32 0.0, %v1870
        %v1872 = vpop.f32.mrf.mxu0
        %1873 = vdwg.mxu0
        %v1878 = vunpack.c.l.b16 %v374
        %v1879 = vunpack.c.l.b16 %v375
        %v1880 = vunpack.c.l.b16 %v376
        %v1881 = vunpack.c.l.b16 %v377
        %v1882 = vpack.c.b16 %v1879, %v1878
        %v1883 = vpack.c.b16 %v1881, %v1880
        %1886 = vmatprep.subr.bf16.mxu0 0
        %1887 = vmatpush1.bf16.msra.mxu0 0
        %1888 = vmatprep.subr.bf16.mxu0 0
        %1889 = vmatpush1.bf16.msra.mxu0 0
        %1890 = vmatprep.subr.bf16.mxu0 0
        %1891 = vmatpush1.bf16.msra.mxu0 0
        %1892 = vmatprep.subr.bf16.mxu0 0
        %1893 = vmatpush1.bf16.msra.mxu0 0
        %1894 = vmatprep.subr.bf16.mxu0 0
        %1895 = vmatpush1.bf16.msra.mxu0 0
        %1896 = vmatprep.subr.bf16.mxu0 0
        %1897 = vmatpush1.bf16.msra.mxu0 0
        %1898 = vmatprep.subr.bf16.mxu0 0
        %1899 = vmatpush1.bf16.msra.mxu0 %v1883
        %1900 = vmatprep.subr.bf16.mxu0 0
        %1901 = vmatpush1.bf16.msra.mxu0 %v1882
        %1902 = vmatprep.subr.bf16.mxu0 0
        %1903 = vmatpush2.bf16.msra.mxu0 0
        %1904 = vmatprep.subr.bf16.mxu0 0
        %1905 = vmatpush2.bf16.msra.mxu0 0
        %1906 = vmatprep.subr.bf16.mxu0 0
        %1907 = vmatpush2.bf16.msra.mxu0 0
        %1908 = vmatprep.subr.bf16.mxu0 0
        %1909 = vmatpush2.bf16.msra.mxu0 0
        %1910 = vmatprep.subr.bf16.mxu0 0
        %1911 = vmatpush2.bf16.msra.mxu0 0
        %1912 = vmatprep.subr.bf16.mxu0 0
        %1913 = vmatpush2.bf16.msra.mxu0 0
        %1914 = vmatprep.subr.bf16.mxu0 0
        %1915 = vmatpush2.bf16.msra.mxu0 0
        %1916 = vmatprep.subr.bf16.mxu0 0
        %1917 = vmatpush2.bf16.msra.mxu0 0
        %1918 = vmatprep.mubr.bf16.mxu0 0
        %1919 = vmatmul.mubr.bf16.gmra.mxu0 %v1184
        %v1920 = vpop.f32.mrf.mxu0
        %v1921 = vadd.f32 %v1620, %v1920
        %v1922 = vpop.f32.mrf.mxu0
        %v1923 = vpop.f32.mrf.mxu0
        %v1924 = vadd.f32 %v1623, %v1923
        %v1925 = vpop.f32.mrf.mxu0
        %1926 = vmatprep.mubr.bf16.mxu0 0
        %1927 = vmatmul.mubr.bf16.gmra.mxu0 %v1187
        %v1928 = vpop.f32.mrf.mxu0
        %v1929 = vadd.f32 %v1628, %v1928
        %v1930 = vpop.f32.mrf.mxu0
        %v1931 = vpop.f32.mrf.mxu0
        %v1932 = vadd.f32 %v1631, %v1931
        %v1933 = vpop.f32.mrf.mxu0
        %1934 = vmatprep.mubr.bf16.mxu0 0
        %1935 = vmatmul.mubr.bf16.gmra.mxu0 %v1190
        %v1936 = vpop.f32.mrf.mxu0
        %v1937 = vadd.f32 %v1636, %v1936
        %v1938 = vpop.f32.mrf.mxu0
        %v1939 = vpop.f32.mrf.mxu0
        %v1940 = vadd.f32 %v1639, %v1939
        %v1941 = vpop.f32.mrf.mxu0
        %1942 = vmatprep.mubr.bf16.mxu0 0
        %1943 = vmatmul.mubr.bf16.gmra.mxu0 %v1193
        %v1944 = vpop.f32.mrf.mxu0
        %v1945 = vadd.f32 %v1644, %v1944
        %v1946 = vpop.f32.mrf.mxu0
        %v1947 = vpop.f32.mrf.mxu0
        %v1948 = vadd.f32 %v1647, %v1947
        %v1949 = vpop.f32.mrf.mxu0
        %1950 = vmatprep.mubr.bf16.mxu0 0
        %1951 = vmatmul.mubr.bf16.gmra.mxu0 %v1196
        %v1952 = vpop.f32.mrf.mxu0
        %v1953 = vadd.f32 %v1652, %v1952
        %v1954 = vpop.f32.mrf.mxu0
        %v1955 = vpop.f32.mrf.mxu0
        %v1956 = vadd.f32 %v1655, %v1955
        %v1957 = vpop.f32.mrf.mxu0
        %1958 = vmatprep.mubr.bf16.mxu0 0
        %1959 = vmatmul.mubr.bf16.gmra.mxu0 %v1199
        %v1960 = vpop.f32.mrf.mxu0
        %v1961 = vadd.f32 %v1660, %v1960
        %v1962 = vpop.f32.mrf.mxu0
        %v1963 = vpop.f32.mrf.mxu0
        %v1964 = vadd.f32 %v1663, %v1963
        %v1965 = vpop.f32.mrf.mxu0
        %1966 = vmatprep.mubr.bf16.mxu0 0
        %1967 = vmatmul.mubr.bf16.gmra.mxu0 %v1202
        %v1968 = vpop.f32.mrf.mxu0
        %v1969 = vadd.f32 %v1668, %v1968
        %v1970 = vpop.f32.mrf.mxu0
        %v1971 = vpop.f32.mrf.mxu0
        %v1972 = vadd.f32 %v1671, %v1971
        %v1973 = vpop.f32.mrf.mxu0
        %1974 = vmatprep.mubr.bf16.mxu0 0
        %1975 = vmatmul.mubr.bf16.gmra.mxu0 %v1205
        %v1976 = vpop.f32.mrf.mxu0
        %v1977 = vadd.f32 %v1676, %v1976
        %v1978 = vpop.f32.mrf.mxu0
        %v1979 = vpop.f32.mrf.mxu0
        %v1980 = vadd.f32 %v1679, %v1979
        %v1981 = vpop.f32.mrf.mxu0
        %1982 = vmatprep.mubr.bf16.mxu0 0
        %1983 = vmatmul.mubr.bf16.gmra.mxu0 %v1208
        %v1984 = vpop.f32.mrf.mxu0
        %v1985 = vadd.f32 %v1684, %v1984
        %v1986 = vpop.f32.mrf.mxu0
        %v1987 = vpop.f32.mrf.mxu0
        %v1988 = vadd.f32 %v1687, %v1987
        %v1989 = vpop.f32.mrf.mxu0
        %1990 = vmatprep.mubr.bf16.mxu0 0
        %1991 = vmatmul.mubr.bf16.gmra.mxu0 %v1211
        %v1992 = vpop.f32.mrf.mxu0
        %v1993 = vadd.f32 %v1692, %v1992
        %v1994 = vpop.f32.mrf.mxu0
        %v1995 = vpop.f32.mrf.mxu0
        %v1996 = vadd.f32 %v1695, %v1995
        %v1997 = vpop.f32.mrf.mxu0
        %1998 = vmatprep.mubr.bf16.mxu0 0
        %1999 = vmatmul.mubr.bf16.gmra.mxu0 %v1214
        %v2000 = vpop.f32.mrf.mxu0
        %v2001 = vadd.f32 %v1700, %v2000
        %v2002 = vpop.f32.mrf.mxu0
        %v2003 = vpop.f32.mrf.mxu0
        %v2004 = vadd.f32 %v1703, %v2003
        %v2005 = vpop.f32.mrf.mxu0
        %2006 = vmatprep.mubr.bf16.mxu0 0
        %2007 = vmatmul.mubr.bf16.gmra.mxu0 %v1217
        %v2008 = vpop.f32.mrf.mxu0
        %v2009 = vadd.f32 %v1708, %v2008
        %v2010 = vpop.f32.mrf.mxu0
        %v2011 = vpop.f32.mrf.mxu0
        %v2012 = vadd.f32 %v1711, %v2011
        %v2013 = vpop.f32.mrf.mxu0
        %2014 = vmatprep.mubr.bf16.mxu0 0
        %2015 = vmatmul.mubr.bf16.gmra.mxu0 %v1220
        %v2016 = vpop.f32.mrf.mxu0
        %v2017 = vadd.f32 %v1716, %v2016
        %v2018 = vpop.f32.mrf.mxu0
        %v2019 = vpop.f32.mrf.mxu0
        %v2020 = vadd.f32 %v1719, %v2019
        %v2021 = vpop.f32.mrf.mxu0
        %2022 = vmatprep.mubr.bf16.mxu0 0
        %2023 = vmatmul.mubr.bf16.gmra.mxu0 %v1223
        %v2024 = vpop.f32.mrf.mxu0
        %v2025 = vadd.f32 %v1724, %v2024
        %v2026 = vpop.f32.mrf.mxu0
        %v2027 = vpop.f32.mrf.mxu0
        %v2028 = vadd.f32 %v1727, %v2027
        %v2029 = vpop.f32.mrf.mxu0
        %2030 = vmatprep.mubr.bf16.mxu0 0
        %2031 = vmatmul.mubr.bf16.gmra.mxu0 %v1226
        %v2032 = vpop.f32.mrf.mxu0
        %v2033 = vadd.f32 %v1732, %v2032
        %v2034 = vpop.f32.mrf.mxu0
        %v2035 = vpop.f32.mrf.mxu0
        %v2036 = vadd.f32 %v1735, %v2035
        %v2037 = vpop.f32.mrf.mxu0
        %2038 = vmatprep.mubr.bf16.mxu0 0
        %2039 = vmatmul.mubr.bf16.gmra.mxu0 %v1229
        %v2040 = vpop.f32.mrf.mxu0
        %v2041 = vadd.f32 %v1740, %v2040
        %v2042 = vpop.f32.mrf.mxu0
        %v2043 = vpop.f32.mrf.mxu0
        %v2044 = vadd.f32 %v1743, %v2043
        %v2045 = vpop.f32.mrf.mxu0
        %2046 = vmatprep.mubr.bf16.mxu0 0
        %2047 = vmatmul.mubr.bf16.gmra.mxu0 %v1232
        %v2048 = vpop.f32.mrf.mxu0
        %v2049 = vadd.f32 %v1748, %v2048
        %v2050 = vpop.f32.mrf.mxu0
        %v2051 = vpop.f32.mrf.mxu0
        %v2052 = vadd.f32 %v1751, %v2051
        %v2053 = vpop.f32.mrf.mxu0
        %2054 = vmatprep.mubr.bf16.mxu0 0
        %2055 = vmatmul.mubr.bf16.gmra.mxu0 %v1235
        %v2056 = vpop.f32.mrf.mxu0
        %v2057 = vadd.f32 %v1756, %v2056
        %v2058 = vpop.f32.mrf.mxu0
        %v2059 = vpop.f32.mrf.mxu0
        %v2060 = vadd.f32 %v1759, %v2059
        %v2061 = vpop.f32.mrf.mxu0
        %2062 = vmatprep.mubr.bf16.mxu0 0
        %2063 = vmatmul.mubr.bf16.gmra.mxu0 %v1238
        %v2064 = vpop.f32.mrf.mxu0
        %v2065 = vadd.f32 %v1764, %v2064
        %v2066 = vpop.f32.mrf.mxu0
        %v2067 = vpop.f32.mrf.mxu0
        %v2068 = vadd.f32 %v1767, %v2067
        %v2069 = vpop.f32.mrf.mxu0
        %2070 = vmatprep.mubr.bf16.mxu0 0
        %2071 = vmatmul.mubr.bf16.gmra.mxu0 %v1241
        %v2072 = vpop.f32.mrf.mxu0
        %v2073 = vadd.f32 %v1772, %v2072
        %v2074 = vpop.f32.mrf.mxu0
        %v2075 = vpop.f32.mrf.mxu0
        %v2076 = vadd.f32 %v1775, %v2075
        %v2077 = vpop.f32.mrf.mxu0
        %2078 = vmatprep.mubr.bf16.mxu0 0
        %2079 = vmatmul.mubr.bf16.gmra.mxu0 %v1244
        %v2080 = vpop.f32.mrf.mxu0
        %v2081 = vadd.f32 %v1780, %v2080
        %v2082 = vpop.f32.mrf.mxu0
        %v2083 = vpop.f32.mrf.mxu0
        %v2084 = vadd.f32 %v1783, %v2083
        %v2085 = vpop.f32.mrf.mxu0
        %2086 = vmatprep.mubr.bf16.mxu0 0
        %2087 = vmatmul.mubr.bf16.gmra.mxu0 %v1247
        %v2088 = vpop.f32.mrf.mxu0
        %v2089 = vadd.f32 %v1788, %v2088
        %v2090 = vpop.f32.mrf.mxu0
        %v2091 = vpop.f32.mrf.mxu0
        %v2092 = vadd.f32 %v1791, %v2091
        %v2093 = vpop.f32.mrf.mxu0
        %2094 = vmatprep.mubr.bf16.mxu0 0
        %2095 = vmatmul.mubr.bf16.gmra.mxu0 %v1250
        %v2096 = vpop.f32.mrf.mxu0
        %v2097 = vadd.f32 %v1796, %v2096
        %v2098 = vpop.f32.mrf.mxu0
        %v2099 = vpop.f32.mrf.mxu0
        %v2100 = vadd.f32 %v1799, %v2099
        %v2101 = vpop.f32.mrf.mxu0
        %2102 = vmatprep.mubr.bf16.mxu0 0
        %2103 = vmatmul.mubr.bf16.gmra.mxu0 %v1253
        %v2104 = vpop.f32.mrf.mxu0
        %v2105 = vadd.f32 %v1804, %v2104
        %v2106 = vpop.f32.mrf.mxu0
        %v2107 = vpop.f32.mrf.mxu0
        %v2108 = vadd.f32 %v1807, %v2107
        %v2109 = vpop.f32.mrf.mxu0
        %2110 = vmatprep.mubr.bf16.mxu0 0
        %2111 = vmatmul.mubr.bf16.gmra.mxu0 %v1256
        %v2112 = vpop.f32.mrf.mxu0
        %v2113 = vadd.f32 %v1812, %v2112
        %v2114 = vpop.f32.mrf.mxu0
        %v2115 = vpop.f32.mrf.mxu0
        %v2116 = vadd.f32 %v1815, %v2115
        %v2117 = vpop.f32.mrf.mxu0
        %2118 = vmatprep.mubr.bf16.mxu0 0
        %2119 = vmatmul.mubr.bf16.gmra.mxu0 %v1259
        %v2120 = vpop.f32.mrf.mxu0
        %v2121 = vadd.f32 %v1820, %v2120
        %v2122 = vpop.f32.mrf.mxu0
        %v2123 = vpop.f32.mrf.mxu0
        %v2124 = vadd.f32 %v1823, %v2123
        %v2125 = vpop.f32.mrf.mxu0
        %2126 = vmatprep.mubr.bf16.mxu0 0
        %2127 = vmatmul.mubr.bf16.gmra.mxu0 %v1262
        %v2128 = vpop.f32.mrf.mxu0
        %v2129 = vadd.f32 %v1828, %v2128
        %v2130 = vpop.f32.mrf.mxu0
        %v2131 = vpop.f32.mrf.mxu0
        %v2132 = vadd.f32 %v1831, %v2131
        %v2133 = vpop.f32.mrf.mxu0
        %2134 = vmatprep.mubr.bf16.mxu0 0
        %2135 = vmatmul.mubr.bf16.gmra.mxu0 %v1265
        %v2136 = vpop.f32.mrf.mxu0
        %v2137 = vadd.f32 %v1836, %v2136
        %v2138 = vpop.f32.mrf.mxu0
        %v2139 = vpop.f32.mrf.mxu0
        %v2140 = vadd.f32 %v1839, %v2139
        %v2141 = vpop.f32.mrf.mxu0
        %2142 = vmatprep.mubr.bf16.mxu0 0
        %2143 = vmatmul.mubr.bf16.gmra.mxu0 %v1268
        %v2144 = vpop.f32.mrf.mxu0
        %v2145 = vadd.f32 %v1844, %v2144
        %v2146 = vpop.f32.mrf.mxu0
        %v2147 = vpop.f32.mrf.mxu0
        %v2148 = vadd.f32 %v1847, %v2147
        %v2149 = vpop.f32.mrf.mxu0
        %2150 = vmatprep.mubr.bf16.mxu0 0
        %2151 = vmatmul.mubr.bf16.gmra.mxu0 %v1271
        %v2152 = vpop.f32.mrf.mxu0
        %v2153 = vadd.f32 %v1852, %v2152
        %v2154 = vpop.f32.mrf.mxu0
        %v2155 = vpop.f32.mrf.mxu0
        %v2156 = vadd.f32 %v1855, %v2155
        %v2157 = vpop.f32.mrf.mxu0
        %2158 = vmatprep.mubr.bf16.mxu0 0
        %2159 = vmatmul.mubr.bf16.gmra.mxu0 %v1274
        %v2160 = vpop.f32.mrf.mxu0
        %v2161 = vadd.f32 %v1860, %v2160
        %v2162 = vpop.f32.mrf.mxu0
        %v2163 = vpop.f32.mrf.mxu0
        %v2164 = vadd.f32 %v1863, %v2163
        %v2165 = vpop.f32.mrf.mxu0
        %2166 = vmatprep.mubr.bf16.mxu0 0
        %2167 = vmatmul.mubr.bf16.gmra.mxu0 %v1277
        %v2168 = vpop.f32.mrf.mxu0
        %v2169 = vadd.f32 %v1868, %v2168
        %v2170 = vpop.f32.mrf.mxu0
        %v2171 = vpop.f32.mrf.mxu0
        %v2172 = vadd.f32 %v1871, %v2171
        %v2173 = vpop.f32.mrf.mxu0
        %2174 = vdwg.mxu0
        %s2175 = scalar_lea.vmem %s2, 80
        %v2176 = vld [vmem:[%s2175] sm:$0xf]
        %v2177 = vld [vmem:[%s2175 + $0x4] sm:$0xf]
        %v2178 = vld [vmem:[%s2175 + $0x8] sm:$0xf]
        %v2179 = vld [vmem:[%s2175 + $0xc] sm:$0xf]
        %v2184 = vunpack.c.l.b16 %v2176
        %v2185 = vunpack.c.l.b16 %v2177
        %v2186 = vunpack.c.l.b16 %v2178
        %v2187 = vunpack.c.l.b16 %v2179
        %v2188 = vpack.c.b16 %v2185, %v2184
        %v2189 = vpack.c.b16 %v2187, %v2186
        %2192 = vmatprep.subr.bf16.mxu0 0
        %2193 = vmatpush1.bf16.msra.mxu0 0
        %2194 = vmatprep.subr.bf16.mxu0 0
        %2195 = vmatpush1.bf16.msra.mxu0 0
        %2196 = vmatprep.subr.bf16.mxu0 0
        %2197 = vmatpush1.bf16.msra.mxu0 0
        %2198 = vmatprep.subr.bf16.mxu0 0
        %2199 = vmatpush1.bf16.msra.mxu0 0
        %2200 = vmatprep.subr.bf16.mxu0 0
        %2201 = vmatpush1.bf16.msra.mxu0 0
        %2202 = vmatprep.subr.bf16.mxu0 0
        %2203 = vmatpush1.bf16.msra.mxu0 0
        %2204 = vmatprep.subr.bf16.mxu0 0
        %2205 = vmatpush1.bf16.msra.mxu0 %v2189
        %2206 = vmatprep.subr.bf16.mxu0 0
        %2207 = vmatpush1.bf16.msra.mxu0 %v2188
        %2208 = vmatprep.subr.bf16.mxu0 0
        %2209 = vmatpush2.bf16.msra.mxu0 0
        %2210 = vmatprep.subr.bf16.mxu0 0
        %2211 = vmatpush2.bf16.msra.mxu0 0
        %2212 = vmatprep.subr.bf16.mxu0 0
        %2213 = vmatpush2.bf16.msra.mxu0 0
        %2214 = vmatprep.subr.bf16.mxu0 0
        %2215 = vmatpush2.bf16.msra.mxu0 0
        %2216 = vmatprep.subr.bf16.mxu0 0
        %2217 = vmatpush2.bf16.msra.mxu0 0
        %2218 = vmatprep.subr.bf16.mxu0 0
        %2219 = vmatpush2.bf16.msra.mxu0 0
        %2220 = vmatprep.subr.bf16.mxu0 0
        %2221 = vmatpush2.bf16.msra.mxu0 0
        %2222 = vmatprep.subr.bf16.mxu0 0
        %2223 = vmatpush2.bf16.msra.mxu0 0
        %2224 = vmatprep.mubr.bf16.mxu0 0
        %2225 = vmatmul.mubr.bf16.gmra.mxu0 %v627
        %v2226 = vpop.f32.mrf.mxu0
        %v2227 = vadd.f32 0.0, %v2226
        %v2228 = vpop.f32.mrf.mxu0
        %v2229 = vpop.f32.mrf.mxu0
        %v2230 = vadd.f32 0.0, %v2229
        %v2231 = vpop.f32.mrf.mxu0
        %2232 = vmatprep.mubr.bf16.mxu0 0
        %2233 = vmatmul.mubr.bf16.gmra.mxu0 %v630
        %v2234 = vpop.f32.mrf.mxu0
        %v2235 = vadd.f32 0.0, %v2234
        %v2236 = vpop.f32.mrf.mxu0
        %v2237 = vpop.f32.mrf.mxu0
        %v2238 = vadd.f32 0.0, %v2237
        %v2239 = vpop.f32.mrf.mxu0
        %2240 = vmatprep.mubr.bf16.mxu0 0
        %2241 = vmatmul.mubr.bf16.gmra.mxu0 %v633
        %v2242 = vpop.f32.mrf.mxu0
        %v2243 = vadd.f32 0.0, %v2242
        %v2244 = vpop.f32.mrf.mxu0
        %v2245 = vpop.f32.mrf.mxu0
        %v2246 = vadd.f32 0.0, %v2245
        %v2247 = vpop.f32.mrf.mxu0
        %2248 = vmatprep.mubr.bf16.mxu0 0
        %2249 = vmatmul.mubr.bf16.gmra.mxu0 %v636
        %v2250 = vpop.f32.mrf.mxu0
        %v2251 = vadd.f32 0.0, %v2250
        %v2252 = vpop.f32.mrf.mxu0
        %v2253 = vpop.f32.mrf.mxu0
        %v2254 = vadd.f32 0.0, %v2253
        %v2255 = vpop.f32.mrf.mxu0
        %2256 = vmatprep.mubr.bf16.mxu0 0
        %2257 = vmatmul.mubr.bf16.gmra.mxu0 %v639
        %v2258 = vpop.f32.mrf.mxu0
        %v2259 = vadd.f32 0.0, %v2258
        %v2260 = vpop.f32.mrf.mxu0
        %v2261 = vpop.f32.mrf.mxu0
        %v2262 = vadd.f32 0.0, %v2261
        %v2263 = vpop.f32.mrf.mxu0
        %2264 = vmatprep.mubr.bf16.mxu0 0
        %2265 = vmatmul.mubr.bf16.gmra.mxu0 %v642
        %v2266 = vpop.f32.mrf.mxu0
        %v2267 = vadd.f32 0.0, %v2266
        %v2268 = vpop.f32.mrf.mxu0
        %v2269 = vpop.f32.mrf.mxu0
        %v2270 = vadd.f32 0.0, %v2269
        %v2271 = vpop.f32.mrf.mxu0
        %2272 = vmatprep.mubr.bf16.mxu0 0
        %2273 = vmatmul.mubr.bf16.gmra.mxu0 %v645
        %v2274 = vpop.f32.mrf.mxu0
        %v2275 = vadd.f32 0.0, %v2274
        %v2276 = vpop.f32.mrf.mxu0
        %v2277 = vpop.f32.mrf.mxu0
        %v2278 = vadd.f32 0.0, %v2277
        %v2279 = vpop.f32.mrf.mxu0
        %2280 = vmatprep.mubr.bf16.mxu0 0
        %2281 = vmatmul.mubr.bf16.gmra.mxu0 %v648
        %v2282 = vpop.f32.mrf.mxu0
        %v2283 = vadd.f32 0.0, %v2282
        %v2284 = vpop.f32.mrf.mxu0
        %v2285 = vpop.f32.mrf.mxu0
        %v2286 = vadd.f32 0.0, %v2285
        %v2287 = vpop.f32.mrf.mxu0
        %2288 = vmatprep.mubr.bf16.mxu0 0
        %2289 = vmatmul.mubr.bf16.gmra.mxu0 %v651
        %v2290 = vpop.f32.mrf.mxu0
        %v2291 = vadd.f32 0.0, %v2290
        %v2292 = vpop.f32.mrf.mxu0
        %v2293 = vpop.f32.mrf.mxu0
        %v2294 = vadd.f32 0.0, %v2293
        %v2295 = vpop.f32.mrf.mxu0
        %2296 = vmatprep.mubr.bf16.mxu0 0
        %2297 = vmatmul.mubr.bf16.gmra.mxu0 %v654
        %v2298 = vpop.f32.mrf.mxu0
        %v2299 = vadd.f32 0.0, %v2298
        %v2300 = vpop.f32.mrf.mxu0
        %v2301 = vpop.f32.mrf.mxu0
        %v2302 = vadd.f32 0.0, %v2301
        %v2303 = vpop.f32.mrf.mxu0
        %2304 = vmatprep.mubr.bf16.mxu0 0
        %2305 = vmatmul.mubr.bf16.gmra.mxu0 %v657
        %v2306 = vpop.f32.mrf.mxu0
        %v2307 = vadd.f32 0.0, %v2306
        %v2308 = vpop.f32.mrf.mxu0
        %v2309 = vpop.f32.mrf.mxu0
        %v2310 = vadd.f32 0.0, %v2309
        %v2311 = vpop.f32.mrf.mxu0
        %2312 = vmatprep.mubr.bf16.mxu0 0
        %2313 = vmatmul.mubr.bf16.gmra.mxu0 %v660
        %v2314 = vpop.f32.mrf.mxu0
        %v2315 = vadd.f32 0.0, %v2314
        %v2316 = vpop.f32.mrf.mxu0
        %v2317 = vpop.f32.mrf.mxu0
        %v2318 = vadd.f32 0.0, %v2317
        %v2319 = vpop.f32.mrf.mxu0
        %2320 = vmatprep.mubr.bf16.mxu0 0
        %2321 = vmatmul.mubr.bf16.gmra.mxu0 %v663
        %v2322 = vpop.f32.mrf.mxu0
        %v2323 = vadd.f32 0.0, %v2322
        %v2324 = vpop.f32.mrf.mxu0
        %v2325 = vpop.f32.mrf.mxu0
        %v2326 = vadd.f32 0.0, %v2325
        %v2327 = vpop.f32.mrf.mxu0
        %2328 = vmatprep.mubr.bf16.mxu0 0
        %2329 = vmatmul.mubr.bf16.gmra.mxu0 %v666
        %v2330 = vpop.f32.mrf.mxu0
        %v2331 = vadd.f32 0.0, %v2330
        %v2332 = vpop.f32.mrf.mxu0
        %v2333 = vpop.f32.mrf.mxu0
        %v2334 = vadd.f32 0.0, %v2333
        %v2335 = vpop.f32.mrf.mxu0
        %2336 = vmatprep.mubr.bf16.mxu0 0
        %2337 = vmatmul.mubr.bf16.gmra.mxu0 %v669
        %v2338 = vpop.f32.mrf.mxu0
        %v2339 = vadd.f32 0.0, %v2338
        %v2340 = vpop.f32.mrf.mxu0
        %v2341 = vpop.f32.mrf.mxu0
        %v2342 = vadd.f32 0.0, %v2341
        %v2343 = vpop.f32.mrf.mxu0
        %2344 = vmatprep.mubr.bf16.mxu0 0
        %2345 = vmatmul.mubr.bf16.gmra.mxu0 %v672
        %v2346 = vpop.f32.mrf.mxu0
        %v2347 = vadd.f32 0.0, %v2346
        %v2348 = vpop.f32.mrf.mxu0
        %v2349 = vpop.f32.mrf.mxu0
        %v2350 = vadd.f32 0.0, %v2349
        %v2351 = vpop.f32.mrf.mxu0
        %2352 = vmatprep.mubr.bf16.mxu0 0
        %2353 = vmatmul.mubr.bf16.gmra.mxu0 %v675
        %v2354 = vpop.f32.mrf.mxu0
        %v2355 = vadd.f32 0.0, %v2354
        %v2356 = vpop.f32.mrf.mxu0
        %v2357 = vpop.f32.mrf.mxu0
        %v2358 = vadd.f32 0.0, %v2357
        %v2359 = vpop.f32.mrf.mxu0
        %2360 = vmatprep.mubr.bf16.mxu0 0
        %2361 = vmatmul.mubr.bf16.gmra.mxu0 %v678
        %v2362 = vpop.f32.mrf.mxu0
        %v2363 = vadd.f32 0.0, %v2362
        %v2364 = vpop.f32.mrf.mxu0
        %v2365 = vpop.f32.mrf.mxu0
        %v2366 = vadd.f32 0.0, %v2365
        %v2367 = vpop.f32.mrf.mxu0
        %2368 = vmatprep.mubr.bf16.mxu0 0
        %2369 = vmatmul.mubr.bf16.gmra.mxu0 %v681
        %v2370 = vpop.f32.mrf.mxu0
        %v2371 = vadd.f32 0.0, %v2370
        %v2372 = vpop.f32.mrf.mxu0
        %v2373 = vpop.f32.mrf.mxu0
        %v2374 = vadd.f32 0.0, %v2373
        %v2375 = vpop.f32.mrf.mxu0
        %2376 = vmatprep.mubr.bf16.mxu0 0
        %2377 = vmatmul.mubr.bf16.gmra.mxu0 %v684
        %v2378 = vpop.f32.mrf.mxu0
        %v2379 = vadd.f32 0.0, %v2378
        %v2380 = vpop.f32.mrf.mxu0
        %v2381 = vpop.f32.mrf.mxu0
        %v2382 = vadd.f32 0.0, %v2381
        %v2383 = vpop.f32.mrf.mxu0
        %2384 = vmatprep.mubr.bf16.mxu0 0
        %2385 = vmatmul.mubr.bf16.gmra.mxu0 %v687
        %v2386 = vpop.f32.mrf.mxu0
        %v2387 = vadd.f32 0.0, %v2386
        %v2388 = vpop.f32.mrf.mxu0
        %v2389 = vpop.f32.mrf.mxu0
        %v2390 = vadd.f32 0.0, %v2389
        %v2391 = vpop.f32.mrf.mxu0
        %2392 = vmatprep.mubr.bf16.mxu0 0
        %2393 = vmatmul.mubr.bf16.gmra.mxu0 %v690
        %v2394 = vpop.f32.mrf.mxu0
        %v2395 = vadd.f32 0.0, %v2394
        %v2396 = vpop.f32.mrf.mxu0
        %v2397 = vpop.f32.mrf.mxu0
        %v2398 = vadd.f32 0.0, %v2397
        %v2399 = vpop.f32.mrf.mxu0
        %2400 = vmatprep.mubr.bf16.mxu0 0
        %2401 = vmatmul.mubr.bf16.gmra.mxu0 %v693
        %v2402 = vpop.f32.mrf.mxu0
        %v2403 = vadd.f32 0.0, %v2402
        %v2404 = vpop.f32.mrf.mxu0
        %v2405 = vpop.f32.mrf.mxu0
        %v2406 = vadd.f32 0.0, %v2405
        %v2407 = vpop.f32.mrf.mxu0
        %2408 = vmatprep.mubr.bf16.mxu0 0
        %2409 = vmatmul.mubr.bf16.gmra.mxu0 %v696
        %v2410 = vpop.f32.mrf.mxu0
        %v2411 = vadd.f32 0.0, %v2410
        %v2412 = vpop.f32.mrf.mxu0
        %v2413 = vpop.f32.mrf.mxu0
        %v2414 = vadd.f32 0.0, %v2413
        %v2415 = vpop.f32.mrf.mxu0
        %2416 = vmatprep.mubr.bf16.mxu0 0
        %2417 = vmatmul.mubr.bf16.gmra.mxu0 %v699
        %v2418 = vpop.f32.mrf.mxu0
        %v2419 = vadd.f32 0.0, %v2418
        %v2420 = vpop.f32.mrf.mxu0
        %v2421 = vpop.f32.mrf.mxu0
        %v2422 = vadd.f32 0.0, %v2421
        %v2423 = vpop.f32.mrf.mxu0
        %2424 = vmatprep.mubr.bf16.mxu0 0
        %2425 = vmatmul.mubr.bf16.gmra.mxu0 %v702
        %v2426 = vpop.f32.mrf.mxu0
        %v2427 = vadd.f32 0.0, %v2426
        %v2428 = vpop.f32.mrf.mxu0
        %v2429 = vpop.f32.mrf.mxu0
        %v2430 = vadd.f32 0.0, %v2429
        %v2431 = vpop.f32.mrf.mxu0
        %2432 = vmatprep.mubr.bf16.mxu0 0
        %2433 = vmatmul.mubr.bf16.gmra.mxu0 %v705
        %v2434 = vpop.f32.mrf.mxu0
        %v2435 = vadd.f32 0.0, %v2434
        %v2436 = vpop.f32.mrf.mxu0
        %v2437 = vpop.f32.mrf.mxu0
        %v2438 = vadd.f32 0.0, %v2437
        %v2439 = vpop.f32.mrf.mxu0
        %2440 = vmatprep.mubr.bf16.mxu0 0
        %2441 = vmatmul.mubr.bf16.gmra.mxu0 %v708
        %v2442 = vpop.f32.mrf.mxu0
        %v2443 = vadd.f32 0.0, %v2442
        %v2444 = vpop.f32.mrf.mxu0
        %v2445 = vpop.f32.mrf.mxu0
        %v2446 = vadd.f32 0.0, %v2445
        %v2447 = vpop.f32.mrf.mxu0
        %2448 = vmatprep.mubr.bf16.mxu0 0
        %2449 = vmatmul.mubr.bf16.gmra.mxu0 %v711
        %v2450 = vpop.f32.mrf.mxu0
        %v2451 = vadd.f32 0.0, %v2450
        %v2452 = vpop.f32.mrf.mxu0
        %v2453 = vpop.f32.mrf.mxu0
        %v2454 = vadd.f32 0.0, %v2453
        %v2455 = vpop.f32.mrf.mxu0
        %2456 = vmatprep.mubr.bf16.mxu0 0
        %2457 = vmatmul.mubr.bf16.gmra.mxu0 %v714
        %v2458 = vpop.f32.mrf.mxu0
        %v2459 = vadd.f32 0.0, %v2458
        %v2460 = vpop.f32.mrf.mxu0
        %v2461 = vpop.f32.mrf.mxu0
        %v2462 = vadd.f32 0.0, %v2461
        %v2463 = vpop.f32.mrf.mxu0
        %2464 = vmatprep.mubr.bf16.mxu0 0
        %2465 = vmatmul.mubr.bf16.gmra.mxu0 %v717
        %v2466 = vpop.f32.mrf.mxu0
        %v2467 = vadd.f32 0.0, %v2466
        %v2468 = vpop.f32.mrf.mxu0
        %v2469 = vpop.f32.mrf.mxu0
        %v2470 = vadd.f32 0.0, %v2469
        %v2471 = vpop.f32.mrf.mxu0
        %2472 = vmatprep.mubr.bf16.mxu0 0
        %2473 = vmatmul.mubr.bf16.gmra.mxu0 %v720
        %v2474 = vpop.f32.mrf.mxu0
        %v2475 = vadd.f32 0.0, %v2474
        %v2476 = vpop.f32.mrf.mxu0
        %v2477 = vpop.f32.mrf.mxu0
        %v2478 = vadd.f32 0.0, %v2477
        %v2479 = vpop.f32.mrf.mxu0
        %2480 = vdwg.mxu0
        %v2485 = vunpack.c.l.b16 %v379
        %v2486 = vunpack.c.l.b16 %v380
        %v2487 = vunpack.c.l.b16 %v381
        %v2488 = vunpack.c.l.b16 %v382
        %v2489 = vpack.c.b16 %v2486, %v2485
        %v2490 = vpack.c.b16 %v2488, %v2487
        %2493 = vmatprep.subr.bf16.mxu0 0
        %2494 = vmatpush1.bf16.msra.mxu0 0
        %2495 = vmatprep.subr.bf16.mxu0 0
        %2496 = vmatpush1.bf16.msra.mxu0 0
        %2497 = vmatprep.subr.bf16.mxu0 0
        %2498 = vmatpush1.bf16.msra.mxu0 0
        %2499 = vmatprep.subr.bf16.mxu0 0
        %2500 = vmatpush1.bf16.msra.mxu0 0
        %2501 = vmatprep.subr.bf16.mxu0 0
        %2502 = vmatpush1.bf16.msra.mxu0 0
        %2503 = vmatprep.subr.bf16.mxu0 0
        %2504 = vmatpush1.bf16.msra.mxu0 0
        %2505 = vmatprep.subr.bf16.mxu0 0
        %2506 = vmatpush1.bf16.msra.mxu0 %v2490
        %2507 = vmatprep.subr.bf16.mxu0 0
        %2508 = vmatpush1.bf16.msra.mxu0 %v2489
        %2509 = vmatprep.subr.bf16.mxu0 0
        %2510 = vmatpush2.bf16.msra.mxu0 0
        %2511 = vmatprep.subr.bf16.mxu0 0
        %2512 = vmatpush2.bf16.msra.mxu0 0
        %2513 = vmatprep.subr.bf16.mxu0 0
        %2514 = vmatpush2.bf16.msra.mxu0 0
        %2515 = vmatprep.subr.bf16.mxu0 0
        %2516 = vmatpush2.bf16.msra.mxu0 0
        %2517 = vmatprep.subr.bf16.mxu0 0
        %2518 = vmatpush2.bf16.msra.mxu0 0
        %2519 = vmatprep.subr.bf16.mxu0 0
        %2520 = vmatpush2.bf16.msra.mxu0 0
        %2521 = vmatprep.subr.bf16.mxu0 0
        %2522 = vmatpush2.bf16.msra.mxu0 0
        %2523 = vmatprep.subr.bf16.mxu0 0
        %2524 = vmatpush2.bf16.msra.mxu0 0
        %2525 = vmatprep.mubr.bf16.mxu0 0
        %2526 = vmatmul.mubr.bf16.gmra.mxu0 %v1184
        %v2527 = vpop.f32.mrf.mxu0
        %v2528 = vadd.f32 %v2227, %v2527
        %v2529 = vpop.f32.mrf.mxu0
        %v2530 = vpop.f32.mrf.mxu0
        %v2531 = vadd.f32 %v2230, %v2530
        %v2532 = vpop.f32.mrf.mxu0
        %2533 = vmatprep.mubr.bf16.mxu0 0
        %2534 = vmatmul.mubr.bf16.gmra.mxu0 %v1187
        %v2535 = vpop.f32.mrf.mxu0
        %v2536 = vadd.f32 %v2235, %v2535
        %v2537 = vpop.f32.mrf.mxu0
        %v2538 = vpop.f32.mrf.mxu0
        %v2539 = vadd.f32 %v2238, %v2538
        %v2540 = vpop.f32.mrf.mxu0
        %2541 = vmatprep.mubr.bf16.mxu0 0
        %2542 = vmatmul.mubr.bf16.gmra.mxu0 %v1190
        %v2543 = vpop.f32.mrf.mxu0
        %v2544 = vadd.f32 %v2243, %v2543
        %v2545 = vpop.f32.mrf.mxu0
        %v2546 = vpop.f32.mrf.mxu0
        %v2547 = vadd.f32 %v2246, %v2546
        %v2548 = vpop.f32.mrf.mxu0
        %2549 = vmatprep.mubr.bf16.mxu0 0
        %2550 = vmatmul.mubr.bf16.gmra.mxu0 %v1193
        %v2551 = vpop.f32.mrf.mxu0
        %v2552 = vadd.f32 %v2251, %v2551
        %v2553 = vpop.f32.mrf.mxu0
        %v2554 = vpop.f32.mrf.mxu0
        %v2555 = vadd.f32 %v2254, %v2554
        %v2556 = vpop.f32.mrf.mxu0
        %2557 = vmatprep.mubr.bf16.mxu0 0
        %2558 = vmatmul.mubr.bf16.gmra.mxu0 %v1196
        %v2559 = vpop.f32.mrf.mxu0
        %v2560 = vadd.f32 %v2259, %v2559
        %v2561 = vpop.f32.mrf.mxu0
        %v2562 = vpop.f32.mrf.mxu0
        %v2563 = vadd.f32 %v2262, %v2562
        %v2564 = vpop.f32.mrf.mxu0
        %2565 = vmatprep.mubr.bf16.mxu0 0
        %2566 = vmatmul.mubr.bf16.gmra.mxu0 %v1199
        %v2567 = vpop.f32.mrf.mxu0
        %v2568 = vadd.f32 %v2267, %v2567
        %v2569 = vpop.f32.mrf.mxu0
        %v2570 = vpop.f32.mrf.mxu0
        %v2571 = vadd.f32 %v2270, %v2570
        %v2572 = vpop.f32.mrf.mxu0
        %2573 = vmatprep.mubr.bf16.mxu0 0
        %2574 = vmatmul.mubr.bf16.gmra.mxu0 %v1202
        %v2575 = vpop.f32.mrf.mxu0
        %v2576 = vadd.f32 %v2275, %v2575
        %v2577 = vpop.f32.mrf.mxu0
        %v2578 = vpop.f32.mrf.mxu0
        %v2579 = vadd.f32 %v2278, %v2578
        %v2580 = vpop.f32.mrf.mxu0
        %2581 = vmatprep.mubr.bf16.mxu0 0
        %2582 = vmatmul.mubr.bf16.gmra.mxu0 %v1205
        %v2583 = vpop.f32.mrf.mxu0
        %v2584 = vadd.f32 %v2283, %v2583
        %v2585 = vpop.f32.mrf.mxu0
        %v2586 = vpop.f32.mrf.mxu0
        %v2587 = vadd.f32 %v2286, %v2586
        %v2588 = vpop.f32.mrf.mxu0
        %2589 = vmatprep.mubr.bf16.mxu0 0
        %2590 = vmatmul.mubr.bf16.gmra.mxu0 %v1208
        %v2591 = vpop.f32.mrf.mxu0
        %v2592 = vadd.f32 %v2291, %v2591
        %v2593 = vpop.f32.mrf.mxu0
        %v2594 = vpop.f32.mrf.mxu0
        %v2595 = vadd.f32 %v2294, %v2594
        %v2596 = vpop.f32.mrf.mxu0
        %2597 = vmatprep.mubr.bf16.mxu0 0
        %2598 = vmatmul.mubr.bf16.gmra.mxu0 %v1211
        %v2599 = vpop.f32.mrf.mxu0
        %v2600 = vadd.f32 %v2299, %v2599
        %v2601 = vpop.f32.mrf.mxu0
        %v2602 = vpop.f32.mrf.mxu0
        %v2603 = vadd.f32 %v2302, %v2602
        %v2604 = vpop.f32.mrf.mxu0
        %2605 = vmatprep.mubr.bf16.mxu0 0
        %2606 = vmatmul.mubr.bf16.gmra.mxu0 %v1214
        %v2607 = vpop.f32.mrf.mxu0
        %v2608 = vadd.f32 %v2307, %v2607
        %v2609 = vpop.f32.mrf.mxu0
        %v2610 = vpop.f32.mrf.mxu0
        %v2611 = vadd.f32 %v2310, %v2610
        %v2612 = vpop.f32.mrf.mxu0
        %2613 = vmatprep.mubr.bf16.mxu0 0
        %2614 = vmatmul.mubr.bf16.gmra.mxu0 %v1217
        %v2615 = vpop.f32.mrf.mxu0
        %v2616 = vadd.f32 %v2315, %v2615
        %v2617 = vpop.f32.mrf.mxu0
        %v2618 = vpop.f32.mrf.mxu0
        %v2619 = vadd.f32 %v2318, %v2618
        %v2620 = vpop.f32.mrf.mxu0
        %2621 = vmatprep.mubr.bf16.mxu0 0
        %2622 = vmatmul.mubr.bf16.gmra.mxu0 %v1220
        %v2623 = vpop.f32.mrf.mxu0
        %v2624 = vadd.f32 %v2323, %v2623
        %v2625 = vpop.f32.mrf.mxu0
        %v2626 = vpop.f32.mrf.mxu0
        %v2627 = vadd.f32 %v2326, %v2626
        %v2628 = vpop.f32.mrf.mxu0
        %2629 = vmatprep.mubr.bf16.mxu0 0
        %2630 = vmatmul.mubr.bf16.gmra.mxu0 %v1223
        %v2631 = vpop.f32.mrf.mxu0
        %v2632 = vadd.f32 %v2331, %v2631
        %v2633 = vpop.f32.mrf.mxu0
        %v2634 = vpop.f32.mrf.mxu0
        %v2635 = vadd.f32 %v2334, %v2634
        %v2636 = vpop.f32.mrf.mxu0
        %2637 = vmatprep.mubr.bf16.mxu0 0
        %2638 = vmatmul.mubr.bf16.gmra.mxu0 %v1226
        %v2639 = vpop.f32.mrf.mxu0
        %v2640 = vadd.f32 %v2339, %v2639
        %v2641 = vpop.f32.mrf.mxu0
        %v2642 = vpop.f32.mrf.mxu0
        %v2643 = vadd.f32 %v2342, %v2642
        %v2644 = vpop.f32.mrf.mxu0
        %2645 = vmatprep.mubr.bf16.mxu0 0
        %2646 = vmatmul.mubr.bf16.gmra.mxu0 %v1229
        %v2647 = vpop.f32.mrf.mxu0
        %v2648 = vadd.f32 %v2347, %v2647
        %v2649 = vpop.f32.mrf.mxu0
        %v2650 = vpop.f32.mrf.mxu0
        %v2651 = vadd.f32 %v2350, %v2650
        %v2652 = vpop.f32.mrf.mxu0
        %2653 = vmatprep.mubr.bf16.mxu0 0
        %2654 = vmatmul.mubr.bf16.gmra.mxu0 %v1232
        %v2655 = vpop.f32.mrf.mxu0
        %v2656 = vadd.f32 %v2355, %v2655
        %v2657 = vpop.f32.mrf.mxu0
        %v2658 = vpop.f32.mrf.mxu0
        %v2659 = vadd.f32 %v2358, %v2658
        %v2660 = vpop.f32.mrf.mxu0
        %2661 = vmatprep.mubr.bf16.mxu0 0
        %2662 = vmatmul.mubr.bf16.gmra.mxu0 %v1235
        %v2663 = vpop.f32.mrf.mxu0
        %v2664 = vadd.f32 %v2363, %v2663
        %v2665 = vpop.f32.mrf.mxu0
        %v2666 = vpop.f32.mrf.mxu0
        %v2667 = vadd.f32 %v2366, %v2666
        %v2668 = vpop.f32.mrf.mxu0
        %2669 = vmatprep.mubr.bf16.mxu0 0
        %2670 = vmatmul.mubr.bf16.gmra.mxu0 %v1238
        %v2671 = vpop.f32.mrf.mxu0
        %v2672 = vadd.f32 %v2371, %v2671
        %v2673 = vpop.f32.mrf.mxu0
        %v2674 = vpop.f32.mrf.mxu0
        %v2675 = vadd.f32 %v2374, %v2674
        %v2676 = vpop.f32.mrf.mxu0
        %2677 = vmatprep.mubr.bf16.mxu0 0
        %2678 = vmatmul.mubr.bf16.gmra.mxu0 %v1241
        %v2679 = vpop.f32.mrf.mxu0
        %v2680 = vadd.f32 %v2379, %v2679
        %v2681 = vpop.f32.mrf.mxu0
        %v2682 = vpop.f32.mrf.mxu0
        %v2683 = vadd.f32 %v2382, %v2682
        %v2684 = vpop.f32.mrf.mxu0
        %2685 = vmatprep.mubr.bf16.mxu0 0
        %2686 = vmatmul.mubr.bf16.gmra.mxu0 %v1244
        %v2687 = vpop.f32.mrf.mxu0
        %v2688 = vadd.f32 %v2387, %v2687
        %v2689 = vpop.f32.mrf.mxu0
        %v2690 = vpop.f32.mrf.mxu0
        %v2691 = vadd.f32 %v2390, %v2690
        %v2692 = vpop.f32.mrf.mxu0
        %2693 = vmatprep.mubr.bf16.mxu0 0
        %2694 = vmatmul.mubr.bf16.gmra.mxu0 %v1247
        %v2695 = vpop.f32.mrf.mxu0
        %v2696 = vadd.f32 %v2395, %v2695
        %v2697 = vpop.f32.mrf.mxu0
        %v2698 = vpop.f32.mrf.mxu0
        %v2699 = vadd.f32 %v2398, %v2698
        %v2700 = vpop.f32.mrf.mxu0
        %2701 = vmatprep.mubr.bf16.mxu0 0
        %2702 = vmatmul.mubr.bf16.gmra.mxu0 %v1250
        %v2703 = vpop.f32.mrf.mxu0
        %v2704 = vadd.f32 %v2403, %v2703
        %v2705 = vpop.f32.mrf.mxu0
        %v2706 = vpop.f32.mrf.mxu0
        %v2707 = vadd.f32 %v2406, %v2706
        %v2708 = vpop.f32.mrf.mxu0
        %2709 = vmatprep.mubr.bf16.mxu0 0
        %2710 = vmatmul.mubr.bf16.gmra.mxu0 %v1253
        %v2711 = vpop.f32.mrf.mxu0
        %v2712 = vadd.f32 %v2411, %v2711
        %v2713 = vpop.f32.mrf.mxu0
        %v2714 = vpop.f32.mrf.mxu0
        %v2715 = vadd.f32 %v2414, %v2714
        %v2716 = vpop.f32.mrf.mxu0
        %2717 = vmatprep.mubr.bf16.mxu0 0
        %2718 = vmatmul.mubr.bf16.gmra.mxu0 %v1256
        %v2719 = vpop.f32.mrf.mxu0
        %v2720 = vadd.f32 %v2419, %v2719
        %v2721 = vpop.f32.mrf.mxu0
        %v2722 = vpop.f32.mrf.mxu0
        %v2723 = vadd.f32 %v2422, %v2722
        %v2724 = vpop.f32.mrf.mxu0
        %2725 = vmatprep.mubr.bf16.mxu0 0
        %2726 = vmatmul.mubr.bf16.gmra.mxu0 %v1259
        %v2727 = vpop.f32.mrf.mxu0
        %v2728 = vadd.f32 %v2427, %v2727
        %v2729 = vpop.f32.mrf.mxu0
        %v2730 = vpop.f32.mrf.mxu0
        %v2731 = vadd.f32 %v2430, %v2730
        %v2732 = vpop.f32.mrf.mxu0
        %2733 = vmatprep.mubr.bf16.mxu0 0
        %2734 = vmatmul.mubr.bf16.gmra.mxu0 %v1262
        %v2735 = vpop.f32.mrf.mxu0
        %v2736 = vadd.f32 %v2435, %v2735
        %v2737 = vpop.f32.mrf.mxu0
        %v2738 = vpop.f32.mrf.mxu0
        %v2739 = vadd.f32 %v2438, %v2738
        %v2740 = vpop.f32.mrf.mxu0
        %2741 = vmatprep.mubr.bf16.mxu0 0
        %2742 = vmatmul.mubr.bf16.gmra.mxu0 %v1265
        %v2743 = vpop.f32.mrf.mxu0
        %v2744 = vadd.f32 %v2443, %v2743
        %v2745 = vpop.f32.mrf.mxu0
        %v2746 = vpop.f32.mrf.mxu0
        %v2747 = vadd.f32 %v2446, %v2746
        %v2748 = vpop.f32.mrf.mxu0
        %2749 = vmatprep.mubr.bf16.mxu0 0
        %2750 = vmatmul.mubr.bf16.gmra.mxu0 %v1268
        %v2751 = vpop.f32.mrf.mxu0
        %v2752 = vadd.f32 %v2451, %v2751
        %v2753 = vpop.f32.mrf.mxu0
        %v2754 = vpop.f32.mrf.mxu0
        %v2755 = vadd.f32 %v2454, %v2754
        %v2756 = vpop.f32.mrf.mxu0
        %2757 = vmatprep.mubr.bf16.mxu0 0
        %2758 = vmatmul.mubr.bf16.gmra.mxu0 %v1271
        %v2759 = vpop.f32.mrf.mxu0
        %v2760 = vadd.f32 %v2459, %v2759
        %v2761 = vpop.f32.mrf.mxu0
        %v2762 = vpop.f32.mrf.mxu0
        %v2763 = vadd.f32 %v2462, %v2762
        %v2764 = vpop.f32.mrf.mxu0
        %2765 = vmatprep.mubr.bf16.mxu0 0
        %2766 = vmatmul.mubr.bf16.gmra.mxu0 %v1274
        %v2767 = vpop.f32.mrf.mxu0
        %v2768 = vadd.f32 %v2467, %v2767
        %v2769 = vpop.f32.mrf.mxu0
        %v2770 = vpop.f32.mrf.mxu0
        %v2771 = vadd.f32 %v2470, %v2770
        %v2772 = vpop.f32.mrf.mxu0
        %2773 = vmatprep.mubr.bf16.mxu0 0
        %2774 = vmatmul.mubr.bf16.gmra.mxu0 %v1277
        %v2775 = vpop.f32.mrf.mxu0
        %v2776 = vadd.f32 %v2475, %v2775
        %v2777 = vpop.f32.mrf.mxu0
        %v2778 = vpop.f32.mrf.mxu0
        %v2779 = vadd.f32 %v2478, %v2778
        %v2780 = vpop.f32.mrf.mxu0
        %2781 = vdwg.mxu0
        %s2782 = scalar_lea.vmem %s303, 32
        %v2783 = vld [vmem:[%s2782] sm:$0xf]
        %v2784 = vld [vmem:[%s2782 + $0x4] sm:$0xf]
        %v2785 = vld [vmem:[%s2782 + $0x8] sm:$0xf]
        %v2786 = vld [vmem:[%s2782 + $0xc] sm:$0xf]
        %v2787 = vld [vmem:[%s2782 + $0x10] sm:$0xf]
        %v2788 = vld [vmem:[%s2782 + $0x14] sm:$0xf]
        %v2789 = vld [vmem:[%s2782 + $0x18] sm:$0xf]
        %v2790 = vld [vmem:[%s2782 + $0x1c] sm:$0xf]
        %v2791 = vld [vmem:[%s2782 + $0x20] sm:$0xf]
        %v2792 = vld [vmem:[%s2782 + $0x24] sm:$0xf]
        %v2793 = vld [vmem:[%s2782 + $0x28] sm:$0xf]
        %v2794 = vld [vmem:[%s2782 + $0x2c] sm:$0xf]
        %v2795 = vld [vmem:[%s2782 + $0x30] sm:$0xf]
        %v2796 = vld [vmem:[%s2782 + $0x34] sm:$0xf]
        %v2797 = vld [vmem:[%s2782 + $0x38] sm:$0xf]
        %v2798 = vld [vmem:[%s2782 + $0x3c] sm:$0xf]
        %v2799 = vld [vmem:[%s2782 + $0x40] sm:$0xf]
        %v2800 = vld [vmem:[%s2782 + $0x44] sm:$0xf]
        %v2801 = vld [vmem:[%s2782 + $0x48] sm:$0xf]
        %v2802 = vld [vmem:[%s2782 + $0x4c] sm:$0xf]
        %v2803 = vld [vmem:[%s2782 + $0x50] sm:$0xf]
        %v2804 = vld [vmem:[%s2782 + $0x54] sm:$0xf]
        %v2805 = vld [vmem:[%s2782 + $0x58] sm:$0xf]
        %v2806 = vld [vmem:[%s2782 + $0x5c] sm:$0xf]
        %v2807 = vld [vmem:[%s2782 + $0x60] sm:$0xf]
        %v2808 = vld [vmem:[%s2782 + $0x64] sm:$0xf]
        %v2809 = vld [vmem:[%s2782 + $0x68] sm:$0xf]
        %v2810 = vld [vmem:[%s2782 + $0x6c] sm:$0xf]
        %v2811 = vld [vmem:[%s2782 + $0x70] sm:$0xf]
        %v2812 = vld [vmem:[%s2782 + $0x74] sm:$0xf]
        %v2813 = vld [vmem:[%s2782 + $0x78] sm:$0xf]
        %v2814 = vld [vmem:[%s2782 + $0x7c] sm:$0xf]
        %v2815 = vld [vmem:[%s2782 + $0x80] sm:$0xf]
        %v2816 = vld [vmem:[%s2782 + $0x84] sm:$0xf]
        %v2817 = vld [vmem:[%s2782 + $0x88] sm:$0xf]
        %v2818 = vld [vmem:[%s2782 + $0x8c] sm:$0xf]
        %v2819 = vld [vmem:[%s2782 + $0x90] sm:$0xf]
        %v2820 = vld [vmem:[%s2782 + $0x94] sm:$0xf]
        %v2821 = vld [vmem:[%s2782 + $0x98] sm:$0xf]
        %v2822 = vld [vmem:[%s2782 + $0x9c] sm:$0xf]
        %v2823 = vld [vmem:[%s2782 + $0xa0] sm:$0xf]
        %v2824 = vld [vmem:[%s2782 + $0xa4] sm:$0xf]
        %v2825 = vld [vmem:[%s2782 + $0xa8] sm:$0xf]
        %v2826 = vld [vmem:[%s2782 + $0xac] sm:$0xf]
        %v2827 = vld [vmem:[%s2782 + $0xb0] sm:$0xf]
        %v2828 = vld [vmem:[%s2782 + $0xb4] sm:$0xf]
        %v2829 = vld [vmem:[%s2782 + $0xb8] sm:$0xf]
        %v2830 = vld [vmem:[%s2782 + $0xbc] sm:$0xf]
        %v2831 = vld [vmem:[%s2782 + $0xc0] sm:$0xf]
        %v2832 = vld [vmem:[%s2782 + $0xc4] sm:$0xf]
        %v2833 = vld [vmem:[%s2782 + $0xc8] sm:$0xf]
        %v2834 = vld [vmem:[%s2782 + $0xcc] sm:$0xf]
        %v2835 = vld [vmem:[%s2782 + $0xd0] sm:$0xf]
        %v2836 = vld [vmem:[%s2782 + $0xd4] sm:$0xf]
        %v2837 = vld [vmem:[%s2782 + $0xd8] sm:$0xf]
        %v2838 = vld [vmem:[%s2782 + $0xdc] sm:$0xf]
        %v2839 = vld [vmem:[%s2782 + $0xe0] sm:$0xf]
        %v2840 = vld [vmem:[%s2782 + $0xe4] sm:$0xf]
        %v2841 = vld [vmem:[%s2782 + $0xe8] sm:$0xf]
        %v2842 = vld [vmem:[%s2782 + $0xec] sm:$0xf]
        %v2843 = vld [vmem:[%s2782 + $0xf0] sm:$0xf]
        %v2844 = vld [vmem:[%s2782 + $0xf4] sm:$0xf]
        %v2845 = vld [vmem:[%s2782 + $0xf8] sm:$0xf]
        %v2846 = vld [vmem:[%s2782 + $0xfc] sm:$0xf]
        %s2847 = scalar_lea.vmem %s2, 96
        %v2848 = vld [vmem:[%s2847] sm:$0xf]
        %v2849 = vld [vmem:[%s2847 + $0x4] sm:$0xf]
        %v2850 = vld [vmem:[%s2847 + $0x8] sm:$0xf]
        %v2851 = vld [vmem:[%s2847 + $0xc] sm:$0xf]
        %v2916 = vunpack.c.l.b16 %v2783
        %v2917 = vunpack.c.l.b16 %v2784
        %v2918 = vunpack.c.l.b16 %v2785
        %v2919 = vunpack.c.l.b16 %v2786
        %v2920 = vunpack.c.l.b16 %v2787
        %v2921 = vunpack.c.l.b16 %v2788
        %v2922 = vunpack.c.l.b16 %v2789
        %v2923 = vunpack.c.l.b16 %v2790
        %v2924 = vunpack.c.l.b16 %v2791
        %v2925 = vunpack.c.l.b16 %v2792
        %v2926 = vunpack.c.l.b16 %v2793
        %v2927 = vunpack.c.l.b16 %v2794
        %v2928 = vunpack.c.l.b16 %v2795
        %v2929 = vunpack.c.l.b16 %v2796
        %v2930 = vunpack.c.l.b16 %v2797
        %v2931 = vunpack.c.l.b16 %v2798
        %v2932 = vunpack.c.l.b16 %v2799
        %v2933 = vunpack.c.l.b16 %v2800
        %v2934 = vunpack.c.l.b16 %v2801
        %v2935 = vunpack.c.l.b16 %v2802
        %v2936 = vunpack.c.l.b16 %v2803
        %v2937 = vunpack.c.l.b16 %v2804
        %v2938 = vunpack.c.l.b16 %v2805
        %v2939 = vunpack.c.l.b16 %v2806
        %v2940 = vunpack.c.l.b16 %v2807
        %v2941 = vunpack.c.l.b16 %v2808
        %v2942 = vunpack.c.l.b16 %v2809
        %v2943 = vunpack.c.l.b16 %v2810
        %v2944 = vunpack.c.l.b16 %v2811
        %v2945 = vunpack.c.l.b16 %v2812
        %v2946 = vunpack.c.l.b16 %v2813
        %v2947 = vunpack.c.l.b16 %v2814
        %v2948 = vunpack.c.l.b16 %v2815
        %v2949 = vunpack.c.l.b16 %v2816
        %v2950 = vunpack.c.l.b16 %v2817
        %v2951 = vunpack.c.l.b16 %v2818
        %v2952 = vunpack.c.l.b16 %v2819
        %v2953 = vunpack.c.l.b16 %v2820
        %v2954 = vunpack.c.l.b16 %v2821
        %v2955 = vunpack.c.l.b16 %v2822
        %v2956 = vunpack.c.l.b16 %v2823
        %v2957 = vunpack.c.l.b16 %v2824
        %v2958 = vunpack.c.l.b16 %v2825
        %v2959 = vunpack.c.l.b16 %v2826
        %v2960 = vunpack.c.l.b16 %v2827
        %v2961 = vunpack.c.l.b16 %v2828
        %v2962 = vunpack.c.l.b16 %v2829
        %v2963 = vunpack.c.l.b16 %v2830
        %v2964 = vunpack.c.l.b16 %v2831
        %v2965 = vunpack.c.l.b16 %v2832
        %v2966 = vunpack.c.l.b16 %v2833
        %v2967 = vunpack.c.l.b16 %v2834
        %v2968 = vunpack.c.l.b16 %v2835
        %v2969 = vunpack.c.l.b16 %v2836
        %v2970 = vunpack.c.l.b16 %v2837
        %v2971 = vunpack.c.l.b16 %v2838
        %v2972 = vunpack.c.l.b16 %v2839
        %v2973 = vunpack.c.l.b16 %v2840
        %v2974 = vunpack.c.l.b16 %v2841
        %v2975 = vunpack.c.l.b16 %v2842
        %v2976 = vunpack.c.l.b16 %v2843
        %v2977 = vunpack.c.l.b16 %v2844
        %v2978 = vunpack.c.l.b16 %v2845
        %v2979 = vunpack.c.l.b16 %v2846
        %v2980 = vpack.c.b16 %v2917, %v2916
        %v2981 = vpack.c.b16 %v2919, %v2918
        %v2982 = vpack.c.b16 %v2921, %v2920
        %v2983 = vpack.c.b16 %v2923, %v2922
        %v2984 = vpack.c.b16 %v2925, %v2924
        %v2985 = vpack.c.b16 %v2927, %v2926
        %v2986 = vpack.c.b16 %v2929, %v2928
        %v2987 = vpack.c.b16 %v2931, %v2930
        %v2988 = vpack.c.b16 %v2933, %v2932
        %v2989 = vpack.c.b16 %v2935, %v2934
        %v2990 = vpack.c.b16 %v2937, %v2936
        %v2991 = vpack.c.b16 %v2939, %v2938
        %v2992 = vpack.c.b16 %v2941, %v2940
        %v2993 = vpack.c.b16 %v2943, %v2942
        %v2994 = vpack.c.b16 %v2945, %v2944
        %v2995 = vpack.c.b16 %v2947, %v2946
        %v2996 = vpack.c.b16 %v2949, %v2948
        %v2997 = vpack.c.b16 %v2951, %v2950
        %v2998 = vpack.c.b16 %v2953, %v2952
        %v2999 = vpack.c.b16 %v2955, %v2954
        %v3000 = vpack.c.b16 %v2957, %v2956
        %v3001 = vpack.c.b16 %v2959, %v2958
        %v3002 = vpack.c.b16 %v2961, %v2960
        %v3003 = vpack.c.b16 %v2963, %v2962
        %v3004 = vpack.c.b16 %v2965, %v2964
        %v3005 = vpack.c.b16 %v2967, %v2966
        %v3006 = vpack.c.b16 %v2969, %v2968
        %v3007 = vpack.c.b16 %v2971, %v2970
        %v3008 = vpack.c.b16 %v2973, %v2972
        %v3009 = vpack.c.b16 %v2975, %v2974
        %v3010 = vpack.c.b16 %v2977, %v2976
        %v3011 = vpack.c.b16 %v2979, %v2978
        %v3016 = vunpack.c.l.b16 %v2848
        %v3017 = vunpack.c.l.b16 %v2849
        %v3018 = vunpack.c.l.b16 %v2850
        %v3019 = vunpack.c.l.b16 %v2851
        %v3020 = vpack.c.b16 %v3017, %v3016
        %v3021 = vpack.c.b16 %v3019, %v3018
        %v3025 = vsel %vm625, %v2980, 0
        %v3028 = vsel %vm625, %v2981, 0
        %v3031 = vsel %vm625, %v2982, 0
        %v3034 = vsel %vm625, %v2983, 0
        %v3037 = vsel %vm625, %v2984, 0
        %v3040 = vsel %vm625, %v2985, 0
        %v3043 = vsel %vm625, %v2986, 0
        %v3046 = vsel %vm625, %v2987, 0
        %v3049 = vsel %vm625, %v2988, 0
        %v3052 = vsel %vm625, %v2989, 0
        %v3055 = vsel %vm625, %v2990, 0
        %v3058 = vsel %vm625, %v2991, 0
        %v3061 = vsel %vm625, %v2992, 0
        %v3064 = vsel %vm625, %v2993, 0
        %v3067 = vsel %vm625, %v2994, 0
        %v3070 = vsel %vm625, %v2995, 0
        %v3073 = vsel %vm625, %v2996, 0
        %v3076 = vsel %vm625, %v2997, 0
        %v3079 = vsel %vm625, %v2998, 0
        %v3082 = vsel %vm625, %v2999, 0
        %v3085 = vsel %vm625, %v3000, 0
        %v3088 = vsel %vm625, %v3001, 0
        %v3091 = vsel %vm625, %v3002, 0
        %v3094 = vsel %vm625, %v3003, 0
        %v3097 = vsel %vm625, %v3004, 0
        %v3100 = vsel %vm625, %v3005, 0
        %v3103 = vsel %vm625, %v3006, 0
        %v3106 = vsel %vm625, %v3007, 0
        %v3109 = vsel %vm625, %v3008, 0
        %v3112 = vsel %vm625, %v3009, 0
        %v3115 = vsel %vm625, %v3010, 0
        %v3118 = vsel %vm625, %v3011, 0
        %3120 = vmatprep.subr.bf16.mxu0 0
        %3121 = vmatpush1.bf16.msra.mxu0 0
        %3122 = vmatprep.subr.bf16.mxu0 0
        %3123 = vmatpush1.bf16.msra.mxu0 0
        %3124 = vmatprep.subr.bf16.mxu0 0
        %3125 = vmatpush1.bf16.msra.mxu0 0
        %3126 = vmatprep.subr.bf16.mxu0 0
        %3127 = vmatpush1.bf16.msra.mxu0 0
        %3128 = vmatprep.subr.bf16.mxu0 0
        %3129 = vmatpush1.bf16.msra.mxu0 0
        %3130 = vmatprep.subr.bf16.mxu0 0
        %3131 = vmatpush1.bf16.msra.mxu0 0
        %3132 = vmatprep.subr.bf16.mxu0 0
        %3133 = vmatpush1.bf16.msra.mxu0 %v3021
        %3134 = vmatprep.subr.bf16.mxu0 0
        %3135 = vmatpush1.bf16.msra.mxu0 %v3020
        %3136 = vmatprep.subr.bf16.mxu0 0
        %3137 = vmatpush2.bf16.msra.mxu0 0
        %3138 = vmatprep.subr.bf16.mxu0 0
        %3139 = vmatpush2.bf16.msra.mxu0 0
        %3140 = vmatprep.subr.bf16.mxu0 0
        %3141 = vmatpush2.bf16.msra.mxu0 0
        %3142 = vmatprep.subr.bf16.mxu0 0
        %3143 = vmatpush2.bf16.msra.mxu0 0
        %3144 = vmatprep.subr.bf16.mxu0 0
        %3145 = vmatpush2.bf16.msra.mxu0 0
        %3146 = vmatprep.subr.bf16.mxu0 0
        %3147 = vmatpush2.bf16.msra.mxu0 0
        %3148 = vmatprep.subr.bf16.mxu0 0
        %3149 = vmatpush2.bf16.msra.mxu0 0
        %3150 = vmatprep.subr.bf16.mxu0 0
        %3151 = vmatpush2.bf16.msra.mxu0 0
        %3152 = vmatprep.mubr.bf16.mxu0 0
        %3153 = vmatmul.mubr.bf16.gmra.mxu0 %v3025
        %v3154 = vpop.f32.mrf.mxu0
        %v3155 = vadd.f32 0.0, %v3154
        %v3156 = vpop.f32.mrf.mxu0
        %v3157 = vpop.f32.mrf.mxu0
        %v3158 = vadd.f32 0.0, %v3157
        %v3159 = vpop.f32.mrf.mxu0
        %3160 = vmatprep.mubr.bf16.mxu0 0
        %3161 = vmatmul.mubr.bf16.gmra.mxu0 %v3028
        %v3162 = vpop.f32.mrf.mxu0
        %v3163 = vadd.f32 0.0, %v3162
        %v3164 = vpop.f32.mrf.mxu0
        %v3165 = vpop.f32.mrf.mxu0
        %v3166 = vadd.f32 0.0, %v3165
        %v3167 = vpop.f32.mrf.mxu0
        %3168 = vmatprep.mubr.bf16.mxu0 0
        %3169 = vmatmul.mubr.bf16.gmra.mxu0 %v3031
        %v3170 = vpop.f32.mrf.mxu0
        %v3171 = vadd.f32 0.0, %v3170
        %v3172 = vpop.f32.mrf.mxu0
        %v3173 = vpop.f32.mrf.mxu0
        %v3174 = vadd.f32 0.0, %v3173
        %v3175 = vpop.f32.mrf.mxu0
        %3176 = vmatprep.mubr.bf16.mxu0 0
        %3177 = vmatmul.mubr.bf16.gmra.mxu0 %v3034
        %v3178 = vpop.f32.mrf.mxu0
        %v3179 = vadd.f32 0.0, %v3178
        %v3180 = vpop.f32.mrf.mxu0
        %v3181 = vpop.f32.mrf.mxu0
        %v3182 = vadd.f32 0.0, %v3181
        %v3183 = vpop.f32.mrf.mxu0
        %3184 = vmatprep.mubr.bf16.mxu0 0
        %3185 = vmatmul.mubr.bf16.gmra.mxu0 %v3037
        %v3186 = vpop.f32.mrf.mxu0
        %v3187 = vadd.f32 0.0, %v3186
        %v3188 = vpop.f32.mrf.mxu0
        %v3189 = vpop.f32.mrf.mxu0
        %v3190 = vadd.f32 0.0, %v3189
        %v3191 = vpop.f32.mrf.mxu0
        %3192 = vmatprep.mubr.bf16.mxu0 0
        %3193 = vmatmul.mubr.bf16.gmra.mxu0 %v3040
        %v3194 = vpop.f32.mrf.mxu0
        %v3195 = vadd.f32 0.0, %v3194
        %v3196 = vpop.f32.mrf.mxu0
        %v3197 = vpop.f32.mrf.mxu0
        %v3198 = vadd.f32 0.0, %v3197
        %v3199 = vpop.f32.mrf.mxu0
        %3200 = vmatprep.mubr.bf16.mxu0 0
        %3201 = vmatmul.mubr.bf16.gmra.mxu0 %v3043
        %v3202 = vpop.f32.mrf.mxu0
        %v3203 = vadd.f32 0.0, %v3202
        %v3204 = vpop.f32.mrf.mxu0
        %v3205 = vpop.f32.mrf.mxu0
        %v3206 = vadd.f32 0.0, %v3205
        %v3207 = vpop.f32.mrf.mxu0
        %3208 = vmatprep.mubr.bf16.mxu0 0
        %3209 = vmatmul.mubr.bf16.gmra.mxu0 %v3046
        %v3210 = vpop.f32.mrf.mxu0
        %v3211 = vadd.f32 0.0, %v3210
        %v3212 = vpop.f32.mrf.mxu0
        %v3213 = vpop.f32.mrf.mxu0
        %v3214 = vadd.f32 0.0, %v3213
        %v3215 = vpop.f32.mrf.mxu0
        %3216 = vmatprep.mubr.bf16.mxu0 0
        %3217 = vmatmul.mubr.bf16.gmra.mxu0 %v3049
        %v3218 = vpop.f32.mrf.mxu0
        %v3219 = vadd.f32 0.0, %v3218
        %v3220 = vpop.f32.mrf.mxu0
        %v3221 = vpop.f32.mrf.mxu0
        %v3222 = vadd.f32 0.0, %v3221
        %v3223 = vpop.f32.mrf.mxu0
        %3224 = vmatprep.mubr.bf16.mxu0 0
        %3225 = vmatmul.mubr.bf16.gmra.mxu0 %v3052
        %v3226 = vpop.f32.mrf.mxu0
        %v3227 = vadd.f32 0.0, %v3226
        %v3228 = vpop.f32.mrf.mxu0
        %v3229 = vpop.f32.mrf.mxu0
        %v3230 = vadd.f32 0.0, %v3229
        %v3231 = vpop.f32.mrf.mxu0
        %3232 = vmatprep.mubr.bf16.mxu0 0
        %3233 = vmatmul.mubr.bf16.gmra.mxu0 %v3055
        %v3234 = vpop.f32.mrf.mxu0
        %v3235 = vadd.f32 0.0, %v3234
        %v3236 = vpop.f32.mrf.mxu0
        %v3237 = vpop.f32.mrf.mxu0
        %v3238 = vadd.f32 0.0, %v3237
        %v3239 = vpop.f32.mrf.mxu0
        %3240 = vmatprep.mubr.bf16.mxu0 0
        %3241 = vmatmul.mubr.bf16.gmra.mxu0 %v3058
        %v3242 = vpop.f32.mrf.mxu0
        %v3243 = vadd.f32 0.0, %v3242
        %v3244 = vpop.f32.mrf.mxu0
        %v3245 = vpop.f32.mrf.mxu0
        %v3246 = vadd.f32 0.0, %v3245
        %v3247 = vpop.f32.mrf.mxu0
        %3248 = vmatprep.mubr.bf16.mxu0 0
        %3249 = vmatmul.mubr.bf16.gmra.mxu0 %v3061
        %v3250 = vpop.f32.mrf.mxu0
        %v3251 = vadd.f32 0.0, %v3250
        %v3252 = vpop.f32.mrf.mxu0
        %v3253 = vpop.f32.mrf.mxu0
        %v3254 = vadd.f32 0.0, %v3253
        %v3255 = vpop.f32.mrf.mxu0
        %3256 = vmatprep.mubr.bf16.mxu0 0
        %3257 = vmatmul.mubr.bf16.gmra.mxu0 %v3064
        %v3258 = vpop.f32.mrf.mxu0
        %v3259 = vadd.f32 0.0, %v3258
        %v3260 = vpop.f32.mrf.mxu0
        %v3261 = vpop.f32.mrf.mxu0
        %v3262 = vadd.f32 0.0, %v3261
        %v3263 = vpop.f32.mrf.mxu0
        %3264 = vmatprep.mubr.bf16.mxu0 0
        %3265 = vmatmul.mubr.bf16.gmra.mxu0 %v3067
        %v3266 = vpop.f32.mrf.mxu0
        %v3267 = vadd.f32 0.0, %v3266
        %v3268 = vpop.f32.mrf.mxu0
        %v3269 = vpop.f32.mrf.mxu0
        %v3270 = vadd.f32 0.0, %v3269
        %v3271 = vpop.f32.mrf.mxu0
        %3272 = vmatprep.mubr.bf16.mxu0 0
        %3273 = vmatmul.mubr.bf16.gmra.mxu0 %v3070
        %v3274 = vpop.f32.mrf.mxu0
        %v3275 = vadd.f32 0.0, %v3274
        %v3276 = vpop.f32.mrf.mxu0
        %v3277 = vpop.f32.mrf.mxu0
        %v3278 = vadd.f32 0.0, %v3277
        %v3279 = vpop.f32.mrf.mxu0
        %3280 = vmatprep.mubr.bf16.mxu0 0
        %3281 = vmatmul.mubr.bf16.gmra.mxu0 %v3073
        %v3282 = vpop.f32.mrf.mxu0
        %v3283 = vadd.f32 0.0, %v3282
        %v3284 = vpop.f32.mrf.mxu0
        %v3285 = vpop.f32.mrf.mxu0
        %v3286 = vadd.f32 0.0, %v3285
        %v3287 = vpop.f32.mrf.mxu0
        %3288 = vmatprep.mubr.bf16.mxu0 0
        %3289 = vmatmul.mubr.bf16.gmra.mxu0 %v3076
        %v3290 = vpop.f32.mrf.mxu0
        %v3291 = vadd.f32 0.0, %v3290
        %v3292 = vpop.f32.mrf.mxu0
        %v3293 = vpop.f32.mrf.mxu0
        %v3294 = vadd.f32 0.0, %v3293
        %v3295 = vpop.f32.mrf.mxu0
        %3296 = vmatprep.mubr.bf16.mxu0 0
        %3297 = vmatmul.mubr.bf16.gmra.mxu0 %v3079
        %v3298 = vpop.f32.mrf.mxu0
        %v3299 = vadd.f32 0.0, %v3298
        %v3300 = vpop.f32.mrf.mxu0
        %v3301 = vpop.f32.mrf.mxu0
        %v3302 = vadd.f32 0.0, %v3301
        %v3303 = vpop.f32.mrf.mxu0
        %3304 = vmatprep.mubr.bf16.mxu0 0
        %3305 = vmatmul.mubr.bf16.gmra.mxu0 %v3082
        %v3306 = vpop.f32.mrf.mxu0
        %v3307 = vadd.f32 0.0, %v3306
        %v3308 = vpop.f32.mrf.mxu0
        %v3309 = vpop.f32.mrf.mxu0
        %v3310 = vadd.f32 0.0, %v3309
        %v3311 = vpop.f32.mrf.mxu0
        %3312 = vmatprep.mubr.bf16.mxu0 0
        %3313 = vmatmul.mubr.bf16.gmra.mxu0 %v3085
        %v3314 = vpop.f32.mrf.mxu0
        %v3315 = vadd.f32 0.0, %v3314
        %v3316 = vpop.f32.mrf.mxu0
        %v3317 = vpop.f32.mrf.mxu0
        %v3318 = vadd.f32 0.0, %v3317
        %v3319 = vpop.f32.mrf.mxu0
        %3320 = vmatprep.mubr.bf16.mxu0 0
        %3321 = vmatmul.mubr.bf16.gmra.mxu0 %v3088
        %v3322 = vpop.f32.mrf.mxu0
        %v3323 = vadd.f32 0.0, %v3322
        %v3324 = vpop.f32.mrf.mxu0
        %v3325 = vpop.f32.mrf.mxu0
        %v3326 = vadd.f32 0.0, %v3325
        %v3327 = vpop.f32.mrf.mxu0
        %3328 = vmatprep.mubr.bf16.mxu0 0
        %3329 = vmatmul.mubr.bf16.gmra.mxu0 %v3091
        %v3330 = vpop.f32.mrf.mxu0
        %v3331 = vadd.f32 0.0, %v3330
        %v3332 = vpop.f32.mrf.mxu0
        %v3333 = vpop.f32.mrf.mxu0
        %v3334 = vadd.f32 0.0, %v3333
        %v3335 = vpop.f32.mrf.mxu0
        %3336 = vmatprep.mubr.bf16.mxu0 0
        %3337 = vmatmul.mubr.bf16.gmra.mxu0 %v3094
        %v3338 = vpop.f32.mrf.mxu0
        %v3339 = vadd.f32 0.0, %v3338
        %v3340 = vpop.f32.mrf.mxu0
        %v3341 = vpop.f32.mrf.mxu0
        %v3342 = vadd.f32 0.0, %v3341
        %v3343 = vpop.f32.mrf.mxu0
        %3344 = vmatprep.mubr.bf16.mxu0 0
        %3345 = vmatmul.mubr.bf16.gmra.mxu0 %v3097
        %v3346 = vpop.f32.mrf.mxu0
        %v3347 = vadd.f32 0.0, %v3346
        %v3348 = vpop.f32.mrf.mxu0
        %v3349 = vpop.f32.mrf.mxu0
        %v3350 = vadd.f32 0.0, %v3349
        %v3351 = vpop.f32.mrf.mxu0
        %3352 = vmatprep.mubr.bf16.mxu0 0
        %3353 = vmatmul.mubr.bf16.gmra.mxu0 %v3100
        %v3354 = vpop.f32.mrf.mxu0
        %v3355 = vadd.f32 0.0, %v3354
        %v3356 = vpop.f32.mrf.mxu0
        %v3357 = vpop.f32.mrf.mxu0
        %v3358 = vadd.f32 0.0, %v3357
        %v3359 = vpop.f32.mrf.mxu0
        %3360 = vmatprep.mubr.bf16.mxu0 0
        %3361 = vmatmul.mubr.bf16.gmra.mxu0 %v3103
        %v3362 = vpop.f32.mrf.mxu0
        %v3363 = vadd.f32 0.0, %v3362
        %v3364 = vpop.f32.mrf.mxu0
        %v3365 = vpop.f32.mrf.mxu0
        %v3366 = vadd.f32 0.0, %v3365
        %v3367 = vpop.f32.mrf.mxu0
        %3368 = vmatprep.mubr.bf16.mxu0 0
        %3369 = vmatmul.mubr.bf16.gmra.mxu0 %v3106
        %v3370 = vpop.f32.mrf.mxu0
        %v3371 = vadd.f32 0.0, %v3370
        %v3372 = vpop.f32.mrf.mxu0
        %v3373 = vpop.f32.mrf.mxu0
        %v3374 = vadd.f32 0.0, %v3373
        %v3375 = vpop.f32.mrf.mxu0
        %3376 = vmatprep.mubr.bf16.mxu0 0
        %3377 = vmatmul.mubr.bf16.gmra.mxu0 %v3109
        %v3378 = vpop.f32.mrf.mxu0
        %v3379 = vadd.f32 0.0, %v3378
        %v3380 = vpop.f32.mrf.mxu0
        %v3381 = vpop.f32.mrf.mxu0
        %v3382 = vadd.f32 0.0, %v3381
        %v3383 = vpop.f32.mrf.mxu0
        %3384 = vmatprep.mubr.bf16.mxu0 0
        %3385 = vmatmul.mubr.bf16.gmra.mxu0 %v3112
        %v3386 = vpop.f32.mrf.mxu0
        %v3387 = vadd.f32 0.0, %v3386
        %v3388 = vpop.f32.mrf.mxu0
        %v3389 = vpop.f32.mrf.mxu0
        %v3390 = vadd.f32 0.0, %v3389
        %v3391 = vpop.f32.mrf.mxu0
        %3392 = vmatprep.mubr.bf16.mxu0 0
        %3393 = vmatmul.mubr.bf16.gmra.mxu0 %v3115
        %v3394 = vpop.f32.mrf.mxu0
        %v3395 = vadd.f32 0.0, %v3394
        %v3396 = vpop.f32.mrf.mxu0
        %v3397 = vpop.f32.mrf.mxu0
        %v3398 = vadd.f32 0.0, %v3397
        %v3399 = vpop.f32.mrf.mxu0
        %3400 = vmatprep.mubr.bf16.mxu0 0
        %3401 = vmatmul.mubr.bf16.gmra.mxu0 %v3118
        %v3402 = vpop.f32.mrf.mxu0
        %v3403 = vadd.f32 0.0, %v3402
        %v3404 = vpop.f32.mrf.mxu0
        %v3405 = vpop.f32.mrf.mxu0
        %v3406 = vadd.f32 0.0, %v3405
        %v3407 = vpop.f32.mrf.mxu0
        %3408 = vdwg.mxu0
        %v3409 = vadd.f32 %v1314, %v3155
        %v3410 = vadd.f32 %v1317, %v3158
        %v3411 = vadd.f32 %v1322, %v3163
        %v3412 = vadd.f32 %v1325, %v3166
        %v3413 = vadd.f32 %v1330, %v3171
        %v3414 = vadd.f32 %v1333, %v3174
        %v3415 = vadd.f32 %v1338, %v3179
        %v3416 = vadd.f32 %v1341, %v3182
        %v3417 = vadd.f32 %v1346, %v3187
        %v3418 = vadd.f32 %v1349, %v3190
        %v3419 = vadd.f32 %v1354, %v3195
        %v3420 = vadd.f32 %v1357, %v3198
        %v3421 = vadd.f32 %v1362, %v3203
        %v3422 = vadd.f32 %v1365, %v3206
        %v3423 = vadd.f32 %v1370, %v3211
        %v3424 = vadd.f32 %v1373, %v3214
        %v3425 = vadd.f32 %v1378, %v3219
        %v3426 = vadd.f32 %v1381, %v3222
        %v3427 = vadd.f32 %v1386, %v3227
        %v3428 = vadd.f32 %v1389, %v3230
        %v3429 = vadd.f32 %v1394, %v3235
        %v3430 = vadd.f32 %v1397, %v3238
        %v3431 = vadd.f32 %v1402, %v3243
        %v3432 = vadd.f32 %v1405, %v3246
        %v3433 = vadd.f32 %v1410, %v3251
        %v3434 = vadd.f32 %v1413, %v3254
        %v3435 = vadd.f32 %v1418, %v3259
        %v3436 = vadd.f32 %v1421, %v3262
        %v3437 = vadd.f32 %v1426, %v3267
        %v3438 = vadd.f32 %v1429, %v3270
        %v3439 = vadd.f32 %v1434, %v3275
        %v3440 = vadd.f32 %v1437, %v3278
        %v3441 = vadd.f32 %v1442, %v3283
        %v3442 = vadd.f32 %v1445, %v3286
        %v3443 = vadd.f32 %v1450, %v3291
        %v3444 = vadd.f32 %v1453, %v3294
        %v3445 = vadd.f32 %v1458, %v3299
        %v3446 = vadd.f32 %v1461, %v3302
        %v3447 = vadd.f32 %v1466, %v3307
        %v3448 = vadd.f32 %v1469, %v3310
        %v3449 = vadd.f32 %v1474, %v3315
        %v3450 = vadd.f32 %v1477, %v3318
        %v3451 = vadd.f32 %v1482, %v3323
        %v3452 = vadd.f32 %v1485, %v3326
        %v3453 = vadd.f32 %v1490, %v3331
        %v3454 = vadd.f32 %v1493, %v3334
        %v3455 = vadd.f32 %v1498, %v3339
        %v3456 = vadd.f32 %v1501, %v3342
        %v3457 = vadd.f32 %v1506, %v3347
        %v3458 = vadd.f32 %v1509, %v3350
        %v3459 = vadd.f32 %v1514, %v3355
        %v3460 = vadd.f32 %v1517, %v3358
        %v3461 = vadd.f32 %v1522, %v3363
        %v3462 = vadd.f32 %v1525, %v3366
        %v3463 = vadd.f32 %v1530, %v3371
        %v3464 = vadd.f32 %v1533, %v3374
        %v3465 = vadd.f32 %v1538, %v3379
        %v3466 = vadd.f32 %v1541, %v3382
        %v3467 = vadd.f32 %v1546, %v3387
        %v3468 = vadd.f32 %v1549, %v3390
        %v3469 = vadd.f32 %v1554, %v3395
        %v3470 = vadd.f32 %v1557, %v3398
        %v3471 = vadd.f32 %v1562, %v3403
        %v3472 = vadd.f32 %v1565, %v3406
        %s3473 = scalar_lea.vmem %s2, 112
        %v3474 = vld [vmem:[%s3473] sm:$0xf]
        %v3475 = vld [vmem:[%s3473 + $0x4] sm:$0xf]
        %v3476 = vld [vmem:[%s3473 + $0x8] sm:$0xf]
        %v3477 = vld [vmem:[%s3473 + $0xc] sm:$0xf]
        %v3482 = vunpack.c.l.b16 %v3474
        %v3483 = vunpack.c.l.b16 %v3475
        %v3484 = vunpack.c.l.b16 %v3476
        %v3485 = vunpack.c.l.b16 %v3477
        %v3486 = vpack.c.b16 %v3483, %v3482
        %v3487 = vpack.c.b16 %v3485, %v3484
        %3490 = vmatprep.subr.bf16.mxu0 0
        %3491 = vmatpush1.bf16.msra.mxu0 0
        %3492 = vmatprep.subr.bf16.mxu0 0
        %3493 = vmatpush1.bf16.msra.mxu0 0
        %3494 = vmatprep.subr.bf16.mxu0 0
        %3495 = vmatpush1.bf16.msra.mxu0 0
        %3496 = vmatprep.subr.bf16.mxu0 0
        %3497 = vmatpush1.bf16.msra.mxu0 0
        %3498 = vmatprep.subr.bf16.mxu0 0
        %3499 = vmatpush1.bf16.msra.mxu0 0
        %3500 = vmatprep.subr.bf16.mxu0 0
        %3501 = vmatpush1.bf16.msra.mxu0 0
        %3502 = vmatprep.subr.bf16.mxu0 0
        %3503 = vmatpush1.bf16.msra.mxu0 %v3487
        %3504 = vmatprep.subr.bf16.mxu0 0
        %3505 = vmatpush1.bf16.msra.mxu0 %v3486
        %3506 = vmatprep.subr.bf16.mxu0 0
        %3507 = vmatpush2.bf16.msra.mxu0 0
        %3508 = vmatprep.subr.bf16.mxu0 0
        %3509 = vmatpush2.bf16.msra.mxu0 0
        %3510 = vmatprep.subr.bf16.mxu0 0
        %3511 = vmatpush2.bf16.msra.mxu0 0
        %3512 = vmatprep.subr.bf16.mxu0 0
        %3513 = vmatpush2.bf16.msra.mxu0 0
        %3514 = vmatprep.subr.bf16.mxu0 0
        %3515 = vmatpush2.bf16.msra.mxu0 0
        %3516 = vmatprep.subr.bf16.mxu0 0
        %3517 = vmatpush2.bf16.msra.mxu0 0
        %3518 = vmatprep.subr.bf16.mxu0 0
        %3519 = vmatpush2.bf16.msra.mxu0 0
        %3520 = vmatprep.subr.bf16.mxu0 0
        %3521 = vmatpush2.bf16.msra.mxu0 0
        %3522 = vmatprep.mubr.bf16.mxu0 0
        %3523 = vmatmul.mubr.bf16.gmra.mxu0 %v3025
        %v3524 = vpop.f32.mrf.mxu0
        %v3525 = vadd.f32 0.0, %v3524
        %v3526 = vpop.f32.mrf.mxu0
        %v3527 = vpop.f32.mrf.mxu0
        %v3528 = vadd.f32 0.0, %v3527
        %v3529 = vpop.f32.mrf.mxu0
        %3530 = vmatprep.mubr.bf16.mxu0 0
        %3531 = vmatmul.mubr.bf16.gmra.mxu0 %v3028
        %v3532 = vpop.f32.mrf.mxu0
        %v3533 = vadd.f32 0.0, %v3532
        %v3534 = vpop.f32.mrf.mxu0
        %v3535 = vpop.f32.mrf.mxu0
        %v3536 = vadd.f32 0.0, %v3535
        %v3537 = vpop.f32.mrf.mxu0
        %3538 = vmatprep.mubr.bf16.mxu0 0
        %3539 = vmatmul.mubr.bf16.gmra.mxu0 %v3031
        %v3540 = vpop.f32.mrf.mxu0
        %v3541 = vadd.f32 0.0, %v3540
        %v3542 = vpop.f32.mrf.mxu0
        %v3543 = vpop.f32.mrf.mxu0
        %v3544 = vadd.f32 0.0, %v3543
        %v3545 = vpop.f32.mrf.mxu0
        %3546 = vmatprep.mubr.bf16.mxu0 0
        %3547 = vmatmul.mubr.bf16.gmra.mxu0 %v3034
        %v3548 = vpop.f32.mrf.mxu0
        %v3549 = vadd.f32 0.0, %v3548
        %v3550 = vpop.f32.mrf.mxu0
        %v3551 = vpop.f32.mrf.mxu0
        %v3552 = vadd.f32 0.0, %v3551
        %v3553 = vpop.f32.mrf.mxu0
        %3554 = vmatprep.mubr.bf16.mxu0 0
        %3555 = vmatmul.mubr.bf16.gmra.mxu0 %v3037
        %v3556 = vpop.f32.mrf.mxu0
        %v3557 = vadd.f32 0.0, %v3556
        %v3558 = vpop.f32.mrf.mxu0
        %v3559 = vpop.f32.mrf.mxu0
        %v3560 = vadd.f32 0.0, %v3559
        %v3561 = vpop.f32.mrf.mxu0
        %3562 = vmatprep.mubr.bf16.mxu0 0
        %3563 = vmatmul.mubr.bf16.gmra.mxu0 %v3040
        %v3564 = vpop.f32.mrf.mxu0
        %v3565 = vadd.f32 0.0, %v3564
        %v3566 = vpop.f32.mrf.mxu0
        %v3567 = vpop.f32.mrf.mxu0
        %v3568 = vadd.f32 0.0, %v3567
        %v3569 = vpop.f32.mrf.mxu0
        %3570 = vmatprep.mubr.bf16.mxu0 0
        %3571 = vmatmul.mubr.bf16.gmra.mxu0 %v3043
        %v3572 = vpop.f32.mrf.mxu0
        %v3573 = vadd.f32 0.0, %v3572
        %v3574 = vpop.f32.mrf.mxu0
        %v3575 = vpop.f32.mrf.mxu0
        %v3576 = vadd.f32 0.0, %v3575
        %v3577 = vpop.f32.mrf.mxu0
        %3578 = vmatprep.mubr.bf16.mxu0 0
        %3579 = vmatmul.mubr.bf16.gmra.mxu0 %v3046
        %v3580 = vpop.f32.mrf.mxu0
        %v3581 = vadd.f32 0.0, %v3580
        %v3582 = vpop.f32.mrf.mxu0
        %v3583 = vpop.f32.mrf.mxu0
        %v3584 = vadd.f32 0.0, %v3583
        %v3585 = vpop.f32.mrf.mxu0
        %3586 = vmatprep.mubr.bf16.mxu0 0
        %3587 = vmatmul.mubr.bf16.gmra.mxu0 %v3049
        %v3588 = vpop.f32.mrf.mxu0
        %v3589 = vadd.f32 0.0, %v3588
        %v3590 = vpop.f32.mrf.mxu0
        %v3591 = vpop.f32.mrf.mxu0
        %v3592 = vadd.f32 0.0, %v3591
        %v3593 = vpop.f32.mrf.mxu0
        %3594 = vmatprep.mubr.bf16.mxu0 0
        %3595 = vmatmul.mubr.bf16.gmra.mxu0 %v3052
        %v3596 = vpop.f32.mrf.mxu0
        %v3597 = vadd.f32 0.0, %v3596
        %v3598 = vpop.f32.mrf.mxu0
        %v3599 = vpop.f32.mrf.mxu0
        %v3600 = vadd.f32 0.0, %v3599
        %v3601 = vpop.f32.mrf.mxu0
        %3602 = vmatprep.mubr.bf16.mxu0 0
        %3603 = vmatmul.mubr.bf16.gmra.mxu0 %v3055
        %v3604 = vpop.f32.mrf.mxu0
        %v3605 = vadd.f32 0.0, %v3604
        %v3606 = vpop.f32.mrf.mxu0
        %v3607 = vpop.f32.mrf.mxu0
        %v3608 = vadd.f32 0.0, %v3607
        %v3609 = vpop.f32.mrf.mxu0
        %3610 = vmatprep.mubr.bf16.mxu0 0
        %3611 = vmatmul.mubr.bf16.gmra.mxu0 %v3058
        %v3612 = vpop.f32.mrf.mxu0
        %v3613 = vadd.f32 0.0, %v3612
        %v3614 = vpop.f32.mrf.mxu0
        %v3615 = vpop.f32.mrf.mxu0
        %v3616 = vadd.f32 0.0, %v3615
        %v3617 = vpop.f32.mrf.mxu0
        %3618 = vmatprep.mubr.bf16.mxu0 0
        %3619 = vmatmul.mubr.bf16.gmra.mxu0 %v3061
        %v3620 = vpop.f32.mrf.mxu0
        %v3621 = vadd.f32 0.0, %v3620
        %v3622 = vpop.f32.mrf.mxu0
        %v3623 = vpop.f32.mrf.mxu0
        %v3624 = vadd.f32 0.0, %v3623
        %v3625 = vpop.f32.mrf.mxu0
        %3626 = vmatprep.mubr.bf16.mxu0 0
        %3627 = vmatmul.mubr.bf16.gmra.mxu0 %v3064
        %v3628 = vpop.f32.mrf.mxu0
        %v3629 = vadd.f32 0.0, %v3628
        %v3630 = vpop.f32.mrf.mxu0
        %v3631 = vpop.f32.mrf.mxu0
        %v3632 = vadd.f32 0.0, %v3631
        %v3633 = vpop.f32.mrf.mxu0
        %3634 = vmatprep.mubr.bf16.mxu0 0
        %3635 = vmatmul.mubr.bf16.gmra.mxu0 %v3067
        %v3636 = vpop.f32.mrf.mxu0
        %v3637 = vadd.f32 0.0, %v3636
        %v3638 = vpop.f32.mrf.mxu0
        %v3639 = vpop.f32.mrf.mxu0
        %v3640 = vadd.f32 0.0, %v3639
        %v3641 = vpop.f32.mrf.mxu0
        %3642 = vmatprep.mubr.bf16.mxu0 0
        %3643 = vmatmul.mubr.bf16.gmra.mxu0 %v3070
        %v3644 = vpop.f32.mrf.mxu0
        %v3645 = vadd.f32 0.0, %v3644
        %v3646 = vpop.f32.mrf.mxu0
        %v3647 = vpop.f32.mrf.mxu0
        %v3648 = vadd.f32 0.0, %v3647
        %v3649 = vpop.f32.mrf.mxu0
        %3650 = vmatprep.mubr.bf16.mxu0 0
        %3651 = vmatmul.mubr.bf16.gmra.mxu0 %v3073
        %v3652 = vpop.f32.mrf.mxu0
        %v3653 = vadd.f32 0.0, %v3652
        %v3654 = vpop.f32.mrf.mxu0
        %v3655 = vpop.f32.mrf.mxu0
        %v3656 = vadd.f32 0.0, %v3655
        %v3657 = vpop.f32.mrf.mxu0
        %3658 = vmatprep.mubr.bf16.mxu0 0
        %3659 = vmatmul.mubr.bf16.gmra.mxu0 %v3076
        %v3660 = vpop.f32.mrf.mxu0
        %v3661 = vadd.f32 0.0, %v3660
        %v3662 = vpop.f32.mrf.mxu0
        %v3663 = vpop.f32.mrf.mxu0
        %v3664 = vadd.f32 0.0, %v3663
        %v3665 = vpop.f32.mrf.mxu0
        %3666 = vmatprep.mubr.bf16.mxu0 0
        %3667 = vmatmul.mubr.bf16.gmra.mxu0 %v3079
        %v3668 = vpop.f32.mrf.mxu0
        %v3669 = vadd.f32 0.0, %v3668
        %v3670 = vpop.f32.mrf.mxu0
        %v3671 = vpop.f32.mrf.mxu0
        %v3672 = vadd.f32 0.0, %v3671
        %v3673 = vpop.f32.mrf.mxu0
        %3674 = vmatprep.mubr.bf16.mxu0 0
        %3675 = vmatmul.mubr.bf16.gmra.mxu0 %v3082
        %v3676 = vpop.f32.mrf.mxu0
        %v3677 = vadd.f32 0.0, %v3676
        %v3678 = vpop.f32.mrf.mxu0
        %v3679 = vpop.f32.mrf.mxu0
        %v3680 = vadd.f32 0.0, %v3679
        %v3681 = vpop.f32.mrf.mxu0
        %3682 = vmatprep.mubr.bf16.mxu0 0
        %3683 = vmatmul.mubr.bf16.gmra.mxu0 %v3085
        %v3684 = vpop.f32.mrf.mxu0
        %v3685 = vadd.f32 0.0, %v3684
        %v3686 = vpop.f32.mrf.mxu0
        %v3687 = vpop.f32.mrf.mxu0
        %v3688 = vadd.f32 0.0, %v3687
        %v3689 = vpop.f32.mrf.mxu0
        %3690 = vmatprep.mubr.bf16.mxu0 0
        %3691 = vmatmul.mubr.bf16.gmra.mxu0 %v3088
        %v3692 = vpop.f32.mrf.mxu0
        %v3693 = vadd.f32 0.0, %v3692
        %v3694 = vpop.f32.mrf.mxu0
        %v3695 = vpop.f32.mrf.mxu0
        %v3696 = vadd.f32 0.0, %v3695
        %v3697 = vpop.f32.mrf.mxu0
        %3698 = vmatprep.mubr.bf16.mxu0 0
        %3699 = vmatmul.mubr.bf16.gmra.mxu0 %v3091
        %v3700 = vpop.f32.mrf.mxu0
        %v3701 = vadd.f32 0.0, %v3700
        %v3702 = vpop.f32.mrf.mxu0
        %v3703 = vpop.f32.mrf.mxu0
        %v3704 = vadd.f32 0.0, %v3703
        %v3705 = vpop.f32.mrf.mxu0
        %3706 = vmatprep.mubr.bf16.mxu0 0
        %3707 = vmatmul.mubr.bf16.gmra.mxu0 %v3094
        %v3708 = vpop.f32.mrf.mxu0
        %v3709 = vadd.f32 0.0, %v3708
        %v3710 = vpop.f32.mrf.mxu0
        %v3711 = vpop.f32.mrf.mxu0
        %v3712 = vadd.f32 0.0, %v3711
        %v3713 = vpop.f32.mrf.mxu0
        %3714 = vmatprep.mubr.bf16.mxu0 0
        %3715 = vmatmul.mubr.bf16.gmra.mxu0 %v3097
        %v3716 = vpop.f32.mrf.mxu0
        %v3717 = vadd.f32 0.0, %v3716
        %v3718 = vpop.f32.mrf.mxu0
        %v3719 = vpop.f32.mrf.mxu0
        %v3720 = vadd.f32 0.0, %v3719
        %v3721 = vpop.f32.mrf.mxu0
        %3722 = vmatprep.mubr.bf16.mxu0 0
        %3723 = vmatmul.mubr.bf16.gmra.mxu0 %v3100
        %v3724 = vpop.f32.mrf.mxu0
        %v3725 = vadd.f32 0.0, %v3724
        %v3726 = vpop.f32.mrf.mxu0
        %v3727 = vpop.f32.mrf.mxu0
        %v3728 = vadd.f32 0.0, %v3727
        %v3729 = vpop.f32.mrf.mxu0
        %3730 = vmatprep.mubr.bf16.mxu0 0
        %3731 = vmatmul.mubr.bf16.gmra.mxu0 %v3103
        %v3732 = vpop.f32.mrf.mxu0
        %v3733 = vadd.f32 0.0, %v3732
        %v3734 = vpop.f32.mrf.mxu0
        %v3735 = vpop.f32.mrf.mxu0
        %v3736 = vadd.f32 0.0, %v3735
        %v3737 = vpop.f32.mrf.mxu0
        %3738 = vmatprep.mubr.bf16.mxu0 0
        %3739 = vmatmul.mubr.bf16.gmra.mxu0 %v3106
        %v3740 = vpop.f32.mrf.mxu0
        %v3741 = vadd.f32 0.0, %v3740
        %v3742 = vpop.f32.mrf.mxu0
        %v3743 = vpop.f32.mrf.mxu0
        %v3744 = vadd.f32 0.0, %v3743
        %v3745 = vpop.f32.mrf.mxu0
        %3746 = vmatprep.mubr.bf16.mxu0 0
        %3747 = vmatmul.mubr.bf16.gmra.mxu0 %v3109
        %v3748 = vpop.f32.mrf.mxu0
        %v3749 = vadd.f32 0.0, %v3748
        %v3750 = vpop.f32.mrf.mxu0
        %v3751 = vpop.f32.mrf.mxu0
        %v3752 = vadd.f32 0.0, %v3751
        %v3753 = vpop.f32.mrf.mxu0
        %3754 = vmatprep.mubr.bf16.mxu0 0
        %3755 = vmatmul.mubr.bf16.gmra.mxu0 %v3112
        %v3756 = vpop.f32.mrf.mxu0
        %v3757 = vadd.f32 0.0, %v3756
        %v3758 = vpop.f32.mrf.mxu0
        %v3759 = vpop.f32.mrf.mxu0
        %v3760 = vadd.f32 0.0, %v3759
        %v3761 = vpop.f32.mrf.mxu0
        %3762 = vmatprep.mubr.bf16.mxu0 0
        %3763 = vmatmul.mubr.bf16.gmra.mxu0 %v3115
        %v3764 = vpop.f32.mrf.mxu0
        %v3765 = vadd.f32 0.0, %v3764
        %v3766 = vpop.f32.mrf.mxu0
        %v3767 = vpop.f32.mrf.mxu0
        %v3768 = vadd.f32 0.0, %v3767
        %v3769 = vpop.f32.mrf.mxu0
        %3770 = vmatprep.mubr.bf16.mxu0 0
        %3771 = vmatmul.mubr.bf16.gmra.mxu0 %v3118
        %v3772 = vpop.f32.mrf.mxu0
        %v3773 = vadd.f32 0.0, %v3772
        %v3774 = vpop.f32.mrf.mxu0
        %v3775 = vpop.f32.mrf.mxu0
        %v3776 = vadd.f32 0.0, %v3775
        %v3777 = vpop.f32.mrf.mxu0
        %3778 = vdwg.mxu0
        %v3779 = vadd.f32 %v1921, %v3525
        %v3780 = vadd.f32 %v1924, %v3528
        %v3781 = vadd.f32 %v1929, %v3533
        %v3782 = vadd.f32 %v1932, %v3536
        %v3783 = vadd.f32 %v1937, %v3541
        %v3784 = vadd.f32 %v1940, %v3544
        %v3785 = vadd.f32 %v1945, %v3549
        %v3786 = vadd.f32 %v1948, %v3552
        %v3787 = vadd.f32 %v1953, %v3557
        %v3788 = vadd.f32 %v1956, %v3560
        %v3789 = vadd.f32 %v1961, %v3565
        %v3790 = vadd.f32 %v1964, %v3568
        %v3791 = vadd.f32 %v1969, %v3573
        %v3792 = vadd.f32 %v1972, %v3576
        %v3793 = vadd.f32 %v1977, %v3581
        %v3794 = vadd.f32 %v1980, %v3584
        %v3795 = vadd.f32 %v1985, %v3589
        %v3796 = vadd.f32 %v1988, %v3592
        %v3797 = vadd.f32 %v1993, %v3597
        %v3798 = vadd.f32 %v1996, %v3600
        %v3799 = vadd.f32 %v2001, %v3605
        %v3800 = vadd.f32 %v2004, %v3608
        %v3801 = vadd.f32 %v2009, %v3613
        %v3802 = vadd.f32 %v2012, %v3616
        %v3803 = vadd.f32 %v2017, %v3621
        %v3804 = vadd.f32 %v2020, %v3624
        %v3805 = vadd.f32 %v2025, %v3629
        %v3806 = vadd.f32 %v2028, %v3632
        %v3807 = vadd.f32 %v2033, %v3637
        %v3808 = vadd.f32 %v2036, %v3640
        %v3809 = vadd.f32 %v2041, %v3645
        %v3810 = vadd.f32 %v2044, %v3648
        %v3811 = vadd.f32 %v2049, %v3653
        %v3812 = vadd.f32 %v2052, %v3656
        %v3813 = vadd.f32 %v2057, %v3661
        %v3814 = vadd.f32 %v2060, %v3664
        %v3815 = vadd.f32 %v2065, %v3669
        %v3816 = vadd.f32 %v2068, %v3672
        %v3817 = vadd.f32 %v2073, %v3677
        %v3818 = vadd.f32 %v2076, %v3680
        %v3819 = vadd.f32 %v2081, %v3685
        %v3820 = vadd.f32 %v2084, %v3688
        %v3821 = vadd.f32 %v2089, %v3693
        %v3822 = vadd.f32 %v2092, %v3696
        %v3823 = vadd.f32 %v2097, %v3701
        %v3824 = vadd.f32 %v2100, %v3704
        %v3825 = vadd.f32 %v2105, %v3709
        %v3826 = vadd.f32 %v2108, %v3712
        %v3827 = vadd.f32 %v2113, %v3717
        %v3828 = vadd.f32 %v2116, %v3720
        %v3829 = vadd.f32 %v2121, %v3725
        %v3830 = vadd.f32 %v2124, %v3728
        %v3831 = vadd.f32 %v2129, %v3733
        %v3832 = vadd.f32 %v2132, %v3736
        %v3833 = vadd.f32 %v2137, %v3741
        %v3834 = vadd.f32 %v2140, %v3744
        %v3835 = vadd.f32 %v2145, %v3749
        %v3836 = vadd.f32 %v2148, %v3752
        %v3837 = vadd.f32 %v2153, %v3757
        %v3838 = vadd.f32 %v2156, %v3760
        %v3839 = vadd.f32 %v2161, %v3765
        %v3840 = vadd.f32 %v2164, %v3768
        %v3841 = vadd.f32 %v2169, %v3773
        %v3842 = vadd.f32 %v2172, %v3776
        %s3843 = scalar_lea.vmem %s2, 128
        %v3844 = vld [vmem:[%s3843] sm:$0xf]
        %v3845 = vld [vmem:[%s3843 + $0x4] sm:$0xf]
        %v3846 = vld [vmem:[%s3843 + $0x8] sm:$0xf]
        %v3847 = vld [vmem:[%s3843 + $0xc] sm:$0xf]
        %v3852 = vunpack.c.l.b16 %v3844
        %v3853 = vunpack.c.l.b16 %v3845
        %v3854 = vunpack.c.l.b16 %v3846
        %v3855 = vunpack.c.l.b16 %v3847
        %v3856 = vpack.c.b16 %v3853, %v3852
        %v3857 = vpack.c.b16 %v3855, %v3854
        %3860 = vmatprep.subr.bf16.mxu0 0
        %3861 = vmatpush1.bf16.msra.mxu0 0
        %3862 = vmatprep.subr.bf16.mxu0 0
        %3863 = vmatpush1.bf16.msra.mxu0 0
        %3864 = vmatprep.subr.bf16.mxu0 0
        %3865 = vmatpush1.bf16.msra.mxu0 0
        %3866 = vmatprep.subr.bf16.mxu0 0
        %3867 = vmatpush1.bf16.msra.mxu0 0
        %3868 = vmatprep.subr.bf16.mxu0 0
        %3869 = vmatpush1.bf16.msra.mxu0 0
        %3870 = vmatprep.subr.bf16.mxu0 0
        %3871 = vmatpush1.bf16.msra.mxu0 0
        %3872 = vmatprep.subr.bf16.mxu0 0
        %3873 = vmatpush1.bf16.msra.mxu0 %v3857
        %3874 = vmatprep.subr.bf16.mxu0 0
        %3875 = vmatpush1.bf16.msra.mxu0 %v3856
        %3876 = vmatprep.subr.bf16.mxu0 0
        %3877 = vmatpush2.bf16.msra.mxu0 0
        %3878 = vmatprep.subr.bf16.mxu0 0
        %3879 = vmatpush2.bf16.msra.mxu0 0
        %3880 = vmatprep.subr.bf16.mxu0 0
        %3881 = vmatpush2.bf16.msra.mxu0 0
        %3882 = vmatprep.subr.bf16.mxu0 0
        %3883 = vmatpush2.bf16.msra.mxu0 0
        %3884 = vmatprep.subr.bf16.mxu0 0
        %3885 = vmatpush2.bf16.msra.mxu0 0
        %3886 = vmatprep.subr.bf16.mxu0 0
        %3887 = vmatpush2.bf16.msra.mxu0 0
        %3888 = vmatprep.subr.bf16.mxu0 0
        %3889 = vmatpush2.bf16.msra.mxu0 0
        %3890 = vmatprep.subr.bf16.mxu0 0
        %3891 = vmatpush2.bf16.msra.mxu0 0
        %3892 = vmatprep.mubr.bf16.mxu0 0
        %3893 = vmatmul.mubr.bf16.gmra.mxu0 %v3025
        %v3894 = vpop.f32.mrf.mxu0
        %v3895 = vadd.f32 0.0, %v3894
        %v3896 = vpop.f32.mrf.mxu0
        %v3897 = vpop.f32.mrf.mxu0
        %v3898 = vadd.f32 0.0, %v3897
        %v3899 = vpop.f32.mrf.mxu0
        %3900 = vmatprep.mubr.bf16.mxu0 0
        %3901 = vmatmul.mubr.bf16.gmra.mxu0 %v3028
        %v3902 = vpop.f32.mrf.mxu0
        %v3903 = vadd.f32 0.0, %v3902
        %v3904 = vpop.f32.mrf.mxu0
        %v3905 = vpop.f32.mrf.mxu0
        %v3906 = vadd.f32 0.0, %v3905
        %v3907 = vpop.f32.mrf.mxu0
        %3908 = vmatprep.mubr.bf16.mxu0 0
        %3909 = vmatmul.mubr.bf16.gmra.mxu0 %v3031
        %v3910 = vpop.f32.mrf.mxu0
        %v3911 = vadd.f32 0.0, %v3910
        %v3912 = vpop.f32.mrf.mxu0
        %v3913 = vpop.f32.mrf.mxu0
        %v3914 = vadd.f32 0.0, %v3913
        %v3915 = vpop.f32.mrf.mxu0
        %3916 = vmatprep.mubr.bf16.mxu0 0
        %3917 = vmatmul.mubr.bf16.gmra.mxu0 %v3034
        %v3918 = vpop.f32.mrf.mxu0
        %v3919 = vadd.f32 0.0, %v3918
        %v3920 = vpop.f32.mrf.mxu0
        %v3921 = vpop.f32.mrf.mxu0
        %v3922 = vadd.f32 0.0, %v3921
        %v3923 = vpop.f32.mrf.mxu0
        %3924 = vmatprep.mubr.bf16.mxu0 0
        %3925 = vmatmul.mubr.bf16.gmra.mxu0 %v3037
        %v3926 = vpop.f32.mrf.mxu0
        %v3927 = vadd.f32 0.0, %v3926
        %v3928 = vpop.f32.mrf.mxu0
        %v3929 = vpop.f32.mrf.mxu0
        %v3930 = vadd.f32 0.0, %v3929
        %v3931 = vpop.f32.mrf.mxu0
        %3932 = vmatprep.mubr.bf16.mxu0 0
        %3933 = vmatmul.mubr.bf16.gmra.mxu0 %v3040
        %v3934 = vpop.f32.mrf.mxu0
        %v3935 = vadd.f32 0.0, %v3934
        %v3936 = vpop.f32.mrf.mxu0
        %v3937 = vpop.f32.mrf.mxu0
        %v3938 = vadd.f32 0.0, %v3937
        %v3939 = vpop.f32.mrf.mxu0
        %3940 = vmatprep.mubr.bf16.mxu0 0
        %3941 = vmatmul.mubr.bf16.gmra.mxu0 %v3043
        %v3942 = vpop.f32.mrf.mxu0
        %v3943 = vadd.f32 0.0, %v3942
        %v3944 = vpop.f32.mrf.mxu0
        %v3945 = vpop.f32.mrf.mxu0
        %v3946 = vadd.f32 0.0, %v3945
        %v3947 = vpop.f32.mrf.mxu0
        %3948 = vmatprep.mubr.bf16.mxu0 0
        %3949 = vmatmul.mubr.bf16.gmra.mxu0 %v3046
        %v3950 = vpop.f32.mrf.mxu0
        %v3951 = vadd.f32 0.0, %v3950
        %v3952 = vpop.f32.mrf.mxu0
        %v3953 = vpop.f32.mrf.mxu0
        %v3954 = vadd.f32 0.0, %v3953
        %v3955 = vpop.f32.mrf.mxu0
        %3956 = vmatprep.mubr.bf16.mxu0 0
        %3957 = vmatmul.mubr.bf16.gmra.mxu0 %v3049
        %v3958 = vpop.f32.mrf.mxu0
        %v3959 = vadd.f32 0.0, %v3958
        %v3960 = vpop.f32.mrf.mxu0
        %v3961 = vpop.f32.mrf.mxu0
        %v3962 = vadd.f32 0.0, %v3961
        %v3963 = vpop.f32.mrf.mxu0
        %3964 = vmatprep.mubr.bf16.mxu0 0
        %3965 = vmatmul.mubr.bf16.gmra.mxu0 %v3052
        %v3966 = vpop.f32.mrf.mxu0
        %v3967 = vadd.f32 0.0, %v3966
        %v3968 = vpop.f32.mrf.mxu0
        %v3969 = vpop.f32.mrf.mxu0
        %v3970 = vadd.f32 0.0, %v3969
        %v3971 = vpop.f32.mrf.mxu0
        %3972 = vmatprep.mubr.bf16.mxu0 0
        %3973 = vmatmul.mubr.bf16.gmra.mxu0 %v3055
        %v3974 = vpop.f32.mrf.mxu0
        %v3975 = vadd.f32 0.0, %v3974
        %v3976 = vpop.f32.mrf.mxu0
        %v3977 = vpop.f32.mrf.mxu0
        %v3978 = vadd.f32 0.0, %v3977
        %v3979 = vpop.f32.mrf.mxu0
        %3980 = vmatprep.mubr.bf16.mxu0 0
        %3981 = vmatmul.mubr.bf16.gmra.mxu0 %v3058
        %v3982 = vpop.f32.mrf.mxu0
        %v3983 = vadd.f32 0.0, %v3982
        %v3984 = vpop.f32.mrf.mxu0
        %v3985 = vpop.f32.mrf.mxu0
        %v3986 = vadd.f32 0.0, %v3985
        %v3987 = vpop.f32.mrf.mxu0
        %3988 = vmatprep.mubr.bf16.mxu0 0
        %3989 = vmatmul.mubr.bf16.gmra.mxu0 %v3061
        %v3990 = vpop.f32.mrf.mxu0
        %v3991 = vadd.f32 0.0, %v3990
        %v3992 = vpop.f32.mrf.mxu0
        %v3993 = vpop.f32.mrf.mxu0
        %v3994 = vadd.f32 0.0, %v3993
        %v3995 = vpop.f32.mrf.mxu0
        %3996 = vmatprep.mubr.bf16.mxu0 0
        %3997 = vmatmul.mubr.bf16.gmra.mxu0 %v3064
        %v3998 = vpop.f32.mrf.mxu0
        %v3999 = vadd.f32 0.0, %v3998
        %v4000 = vpop.f32.mrf.mxu0
        %v4001 = vpop.f32.mrf.mxu0
        %v4002 = vadd.f32 0.0, %v4001
        %v4003 = vpop.f32.mrf.mxu0
        %4004 = vmatprep.mubr.bf16.mxu0 0
        %4005 = vmatmul.mubr.bf16.gmra.mxu0 %v3067
        %v4006 = vpop.f32.mrf.mxu0
        %v4007 = vadd.f32 0.0, %v4006
        %v4008 = vpop.f32.mrf.mxu0
        %v4009 = vpop.f32.mrf.mxu0
        %v4010 = vadd.f32 0.0, %v4009
        %v4011 = vpop.f32.mrf.mxu0
        %4012 = vmatprep.mubr.bf16.mxu0 0
        %4013 = vmatmul.mubr.bf16.gmra.mxu0 %v3070
        %v4014 = vpop.f32.mrf.mxu0
        %v4015 = vadd.f32 0.0, %v4014
        %v4016 = vpop.f32.mrf.mxu0
        %v4017 = vpop.f32.mrf.mxu0
        %v4018 = vadd.f32 0.0, %v4017
        %v4019 = vpop.f32.mrf.mxu0
        %4020 = vmatprep.mubr.bf16.mxu0 0
        %4021 = vmatmul.mubr.bf16.gmra.mxu0 %v3073
        %v4022 = vpop.f32.mrf.mxu0
        %v4023 = vadd.f32 0.0, %v4022
        %v4024 = vpop.f32.mrf.mxu0
        %v4025 = vpop.f32.mrf.mxu0
        %v4026 = vadd.f32 0.0, %v4025
        %v4027 = vpop.f32.mrf.mxu0
        %4028 = vmatprep.mubr.bf16.mxu0 0
        %4029 = vmatmul.mubr.bf16.gmra.mxu0 %v3076
        %v4030 = vpop.f32.mrf.mxu0
        %v4031 = vadd.f32 0.0, %v4030
        %v4032 = vpop.f32.mrf.mxu0
        %v4033 = vpop.f32.mrf.mxu0
        %v4034 = vadd.f32 0.0, %v4033
        %v4035 = vpop.f32.mrf.mxu0
        %4036 = vmatprep.mubr.bf16.mxu0 0
        %4037 = vmatmul.mubr.bf16.gmra.mxu0 %v3079
        %v4038 = vpop.f32.mrf.mxu0
        %v4039 = vadd.f32 0.0, %v4038
        %v4040 = vpop.f32.mrf.mxu0
        %v4041 = vpop.f32.mrf.mxu0
        %v4042 = vadd.f32 0.0, %v4041
        %v4043 = vpop.f32.mrf.mxu0
        %4044 = vmatprep.mubr.bf16.mxu0 0
        %4045 = vmatmul.mubr.bf16.gmra.mxu0 %v3082
        %v4046 = vpop.f32.mrf.mxu0
        %v4047 = vadd.f32 0.0, %v4046
        %v4048 = vpop.f32.mrf.mxu0
        %v4049 = vpop.f32.mrf.mxu0
        %v4050 = vadd.f32 0.0, %v4049
        %v4051 = vpop.f32.mrf.mxu0
        %4052 = vmatprep.mubr.bf16.mxu0 0
        %4053 = vmatmul.mubr.bf16.gmra.mxu0 %v3085
        %v4054 = vpop.f32.mrf.mxu0
        %v4055 = vadd.f32 0.0, %v4054
        %v4056 = vpop.f32.mrf.mxu0
        %v4057 = vpop.f32.mrf.mxu0
        %v4058 = vadd.f32 0.0, %v4057
        %v4059 = vpop.f32.mrf.mxu0
        %4060 = vmatprep.mubr.bf16.mxu0 0
        %4061 = vmatmul.mubr.bf16.gmra.mxu0 %v3088
        %v4062 = vpop.f32.mrf.mxu0
        %v4063 = vadd.f32 0.0, %v4062
        %v4064 = vpop.f32.mrf.mxu0
        %v4065 = vpop.f32.mrf.mxu0
        %v4066 = vadd.f32 0.0, %v4065
        %v4067 = vpop.f32.mrf.mxu0
        %4068 = vmatprep.mubr.bf16.mxu0 0
        %4069 = vmatmul.mubr.bf16.gmra.mxu0 %v3091
        %v4070 = vpop.f32.mrf.mxu0
        %v4071 = vadd.f32 0.0, %v4070
        %v4072 = vpop.f32.mrf.mxu0
        %v4073 = vpop.f32.mrf.mxu0
        %v4074 = vadd.f32 0.0, %v4073
        %v4075 = vpop.f32.mrf.mxu0
        %4076 = vmatprep.mubr.bf16.mxu0 0
        %4077 = vmatmul.mubr.bf16.gmra.mxu0 %v3094
        %v4078 = vpop.f32.mrf.mxu0
        %v4079 = vadd.f32 0.0, %v4078
        %v4080 = vpop.f32.mrf.mxu0
        %v4081 = vpop.f32.mrf.mxu0
        %v4082 = vadd.f32 0.0, %v4081
        %v4083 = vpop.f32.mrf.mxu0
        %4084 = vmatprep.mubr.bf16.mxu0 0
        %4085 = vmatmul.mubr.bf16.gmra.mxu0 %v3097
        %v4086 = vpop.f32.mrf.mxu0
        %v4087 = vadd.f32 0.0, %v4086
        %v4088 = vpop.f32.mrf.mxu0
        %v4089 = vpop.f32.mrf.mxu0
        %v4090 = vadd.f32 0.0, %v4089
        %v4091 = vpop.f32.mrf.mxu0
        %4092 = vmatprep.mubr.bf16.mxu0 0
        %4093 = vmatmul.mubr.bf16.gmra.mxu0 %v3100
        %v4094 = vpop.f32.mrf.mxu0
        %v4095 = vadd.f32 0.0, %v4094
        %v4096 = vpop.f32.mrf.mxu0
        %v4097 = vpop.f32.mrf.mxu0
        %v4098 = vadd.f32 0.0, %v4097
        %v4099 = vpop.f32.mrf.mxu0
        %4100 = vmatprep.mubr.bf16.mxu0 0
        %4101 = vmatmul.mubr.bf16.gmra.mxu0 %v3103
        %v4102 = vpop.f32.mrf.mxu0
        %v4103 = vadd.f32 0.0, %v4102
        %v4104 = vpop.f32.mrf.mxu0
        %v4105 = vpop.f32.mrf.mxu0
        %v4106 = vadd.f32 0.0, %v4105
        %v4107 = vpop.f32.mrf.mxu0
        %4108 = vmatprep.mubr.bf16.mxu0 0
        %4109 = vmatmul.mubr.bf16.gmra.mxu0 %v3106
        %v4110 = vpop.f32.mrf.mxu0
        %v4111 = vadd.f32 0.0, %v4110
        %v4112 = vpop.f32.mrf.mxu0
        %v4113 = vpop.f32.mrf.mxu0
        %v4114 = vadd.f32 0.0, %v4113
        %v4115 = vpop.f32.mrf.mxu0
        %4116 = vmatprep.mubr.bf16.mxu0 0
        %4117 = vmatmul.mubr.bf16.gmra.mxu0 %v3109
        %v4118 = vpop.f32.mrf.mxu0
        %v4119 = vadd.f32 0.0, %v4118
        %v4120 = vpop.f32.mrf.mxu0
        %v4121 = vpop.f32.mrf.mxu0
        %v4122 = vadd.f32 0.0, %v4121
        %v4123 = vpop.f32.mrf.mxu0
        %4124 = vmatprep.mubr.bf16.mxu0 0
        %4125 = vmatmul.mubr.bf16.gmra.mxu0 %v3112
        %v4126 = vpop.f32.mrf.mxu0
        %v4127 = vadd.f32 0.0, %v4126
        %v4128 = vpop.f32.mrf.mxu0
        %v4129 = vpop.f32.mrf.mxu0
        %v4130 = vadd.f32 0.0, %v4129
        %v4131 = vpop.f32.mrf.mxu0
        %4132 = vmatprep.mubr.bf16.mxu0 0
        %4133 = vmatmul.mubr.bf16.gmra.mxu0 %v3115
        %v4134 = vpop.f32.mrf.mxu0
        %v4135 = vadd.f32 0.0, %v4134
        %v4136 = vpop.f32.mrf.mxu0
        %v4137 = vpop.f32.mrf.mxu0
        %v4138 = vadd.f32 0.0, %v4137
        %v4139 = vpop.f32.mrf.mxu0
        %4140 = vmatprep.mubr.bf16.mxu0 0
        %4141 = vmatmul.mubr.bf16.gmra.mxu0 %v3118
        %v4142 = vpop.f32.mrf.mxu0
        %v4143 = vadd.f32 0.0, %v4142
        %v4144 = vpop.f32.mrf.mxu0
        %v4145 = vpop.f32.mrf.mxu0
        %v4146 = vadd.f32 0.0, %v4145
        %v4147 = vpop.f32.mrf.mxu0
        %4148 = vdwg.mxu0
        %v4149 = vadd.f32 %v2528, %v3895
        %v4150 = vadd.f32 %v2531, %v3898
        %v4151 = vadd.f32 %v2536, %v3903
        %v4152 = vadd.f32 %v2539, %v3906
        %v4153 = vadd.f32 %v2544, %v3911
        %v4154 = vadd.f32 %v2547, %v3914
        %v4155 = vadd.f32 %v2552, %v3919
        %v4156 = vadd.f32 %v2555, %v3922
        %v4157 = vadd.f32 %v2560, %v3927
        %v4158 = vadd.f32 %v2563, %v3930
        %v4159 = vadd.f32 %v2568, %v3935
        %v4160 = vadd.f32 %v2571, %v3938
        %v4161 = vadd.f32 %v2576, %v3943
        %v4162 = vadd.f32 %v2579, %v3946
        %v4163 = vadd.f32 %v2584, %v3951
        %v4164 = vadd.f32 %v2587, %v3954
        %v4165 = vadd.f32 %v2592, %v3959
        %v4166 = vadd.f32 %v2595, %v3962
        %v4167 = vadd.f32 %v2600, %v3967
        %v4168 = vadd.f32 %v2603, %v3970
        %v4169 = vadd.f32 %v2608, %v3975
        %v4170 = vadd.f32 %v2611, %v3978
        %v4171 = vadd.f32 %v2616, %v3983
        %v4172 = vadd.f32 %v2619, %v3986
        %v4173 = vadd.f32 %v2624, %v3991
        %v4174 = vadd.f32 %v2627, %v3994
        %v4175 = vadd.f32 %v2632, %v3999
        %v4176 = vadd.f32 %v2635, %v4002
        %v4177 = vadd.f32 %v2640, %v4007
        %v4178 = vadd.f32 %v2643, %v4010
        %v4179 = vadd.f32 %v2648, %v4015
        %v4180 = vadd.f32 %v2651, %v4018
        %v4181 = vadd.f32 %v2656, %v4023
        %v4182 = vadd.f32 %v2659, %v4026
        %v4183 = vadd.f32 %v2664, %v4031
        %v4184 = vadd.f32 %v2667, %v4034
        %v4185 = vadd.f32 %v2672, %v4039
        %v4186 = vadd.f32 %v2675, %v4042
        %v4187 = vadd.f32 %v2680, %v4047
        %v4188 = vadd.f32 %v2683, %v4050
        %v4189 = vadd.f32 %v2688, %v4055
        %v4190 = vadd.f32 %v2691, %v4058
        %v4191 = vadd.f32 %v2696, %v4063
        %v4192 = vadd.f32 %v2699, %v4066
        %v4193 = vadd.f32 %v2704, %v4071
        %v4194 = vadd.f32 %v2707, %v4074
        %v4195 = vadd.f32 %v2712, %v4079
        %v4196 = vadd.f32 %v2715, %v4082
        %v4197 = vadd.f32 %v2720, %v4087
        %v4198 = vadd.f32 %v2723, %v4090
        %v4199 = vadd.f32 %v2728, %v4095
        %v4200 = vadd.f32 %v2731, %v4098
        %v4201 = vadd.f32 %v2736, %v4103
        %v4202 = vadd.f32 %v2739, %v4106
        %v4203 = vadd.f32 %v2744, %v4111
        %v4204 = vadd.f32 %v2747, %v4114
        %v4205 = vadd.f32 %v2752, %v4119
        %v4206 = vadd.f32 %v2755, %v4122
        %v4207 = vadd.f32 %v2760, %v4127
        %v4208 = vadd.f32 %v2763, %v4130
        %v4209 = vadd.f32 %v2768, %v4135
        %v4210 = vadd.f32 %v2771, %v4138
        %v4211 = vadd.f32 %v2776, %v4143
        %v4212 = vadd.f32 %v2779, %v4146
        %v4213 = vrot.slane %v3409, 7
        %v4214 = vrot.slane %v3410, 7
        %v4215 = vrot.slane %v3411, 7
        %v4216 = vrot.slane %v3412, 7
        %v4217 = vrot.slane %v3413, 7
        %v4218 = vrot.slane %v3414, 7
        %v4219 = vrot.slane %v3415, 7
        %v4220 = vrot.slane %v3416, 7
        %v4221 = vrot.slane %v3417, 7
        %v4222 = vrot.slane %v3418, 7
        %v4223 = vrot.slane %v3419, 7
        %v4224 = vrot.slane %v3420, 7
        %v4225 = vrot.slane %v3421, 7
        %v4226 = vrot.slane %v3422, 7
        %v4227 = vrot.slane %v3423, 7
        %v4228 = vrot.slane %v3424, 7
        %v4229 = vrot.slane %v3425, 7
        %v4230 = vrot.slane %v3426, 7
        %v4231 = vrot.slane %v3427, 7
        %v4232 = vrot.slane %v3428, 7
        %v4233 = vrot.slane %v3429, 7
        %v4234 = vrot.slane %v3430, 7
        %v4235 = vrot.slane %v3431, 7
        %v4236 = vrot.slane %v3432, 7
        %v4237 = vrot.slane %v3433, 7
        %v4238 = vrot.slane %v3434, 7
        %v4239 = vrot.slane %v3435, 7
        %v4240 = vrot.slane %v3436, 7
        %v4241 = vrot.slane %v3437, 7
        %v4242 = vrot.slane %v3438, 7
        %v4243 = vrot.slane %v3439, 7
        %v4244 = vrot.slane %v3440, 7
        %v4245 = vrot.slane %v3441, 7
        %v4246 = vrot.slane %v3442, 7
        %v4247 = vrot.slane %v3443, 7
        %v4248 = vrot.slane %v3444, 7
        %v4249 = vrot.slane %v3445, 7
        %v4250 = vrot.slane %v3446, 7
        %v4251 = vrot.slane %v3447, 7
        %v4252 = vrot.slane %v3448, 7
        %v4253 = vrot.slane %v3449, 7
        %v4254 = vrot.slane %v3450, 7
        %v4255 = vrot.slane %v3451, 7
        %v4256 = vrot.slane %v3452, 7
        %v4257 = vrot.slane %v3453, 7
        %v4258 = vrot.slane %v3454, 7
        %v4259 = vrot.slane %v3455, 7
        %v4260 = vrot.slane %v3456, 7
        %v4261 = vrot.slane %v3457, 7
        %v4262 = vrot.slane %v3458, 7
        %v4263 = vrot.slane %v3459, 7
        %v4264 = vrot.slane %v3460, 7
        %v4265 = vrot.slane %v3461, 7
        %v4266 = vrot.slane %v3462, 7
        %v4267 = vrot.slane %v3463, 7
        %v4268 = vrot.slane %v3464, 7
        %v4269 = vrot.slane %v3465, 7
        %v4270 = vrot.slane %v3466, 7
        %v4271 = vrot.slane %v3467, 7
        %v4272 = vrot.slane %v3468, 7
        %v4273 = vrot.slane %v3469, 7
        %v4274 = vrot.slane %v3470, 7
        %v4275 = vrot.slane %v3471, 7
        %v4276 = vrot.slane %v3472, 7
        %v4277 = vlaneseq
        %v4278 = vshrl.u32 %v4277, 7
        %vm4279 = vcmp.lt.s32.totalorder %v4278, 1
        %v4280 = vsel %vm4279, %v4275, %v4276
        %v4281 = vsel %vm4279, %v4274, %v4275
        %v4282 = vsel %vm4279, %v4273, %v4274
        %v4283 = vsel %vm4279, %v4272, %v4273
        %v4284 = vsel %vm4279, %v4271, %v4272
        %v4285 = vsel %vm4279, %v4270, %v4271
        %v4286 = vsel %vm4279, %v4269, %v4270
        %v4287 = vsel %vm4279, %v4268, %v4269
        %v4288 = vsel %vm4279, %v4267, %v4268
        %v4289 = vsel %vm4279, %v4266, %v4267
        %v4290 = vsel %vm4279, %v4265, %v4266
        %v4291 = vsel %vm4279, %v4264, %v4265
        %v4292 = vsel %vm4279, %v4263, %v4264
        %v4293 = vsel %vm4279, %v4262, %v4263
        %v4294 = vsel %vm4279, %v4261, %v4262
        %v4295 = vsel %vm4279, %v4260, %v4261
        %v4296 = vsel %vm4279, %v4259, %v4260
        %v4297 = vsel %vm4279, %v4258, %v4259
        %v4298 = vsel %vm4279, %v4257, %v4258
        %v4299 = vsel %vm4279, %v4256, %v4257
        %v4300 = vsel %vm4279, %v4255, %v4256
        %v4301 = vsel %vm4279, %v4254, %v4255
        %v4302 = vsel %vm4279, %v4253, %v4254
        %v4303 = vsel %vm4279, %v4252, %v4253
        %v4304 = vsel %vm4279, %v4251, %v4252
        %v4305 = vsel %vm4279, %v4250, %v4251
        %v4306 = vsel %vm4279, %v4249, %v4250
        %v4307 = vsel %vm4279, %v4248, %v4249
        %v4308 = vsel %vm4279, %v4247, %v4248
        %v4309 = vsel %vm4279, %v4246, %v4247
        %v4310 = vsel %vm4279, %v4245, %v4246
        %v4311 = vsel %vm4279, %v4244, %v4245
        %v4312 = vsel %vm4279, %v4243, %v4244
        %v4313 = vsel %vm4279, %v4242, %v4243
        %v4314 = vsel %vm4279, %v4241, %v4242
        %v4315 = vsel %vm4279, %v4240, %v4241
        %v4316 = vsel %vm4279, %v4239, %v4240
        %v4317 = vsel %vm4279, %v4238, %v4239
        %v4318 = vsel %vm4279, %v4237, %v4238
        %v4319 = vsel %vm4279, %v4236, %v4237
        %v4320 = vsel %vm4279, %v4235, %v4236
        %v4321 = vsel %vm4279, %v4234, %v4235
        %v4322 = vsel %vm4279, %v4233, %v4234
        %v4323 = vsel %vm4279, %v4232, %v4233
        %v4324 = vsel %vm4279, %v4231, %v4232
        %v4325 = vsel %vm4279, %v4230, %v4231
        %v4326 = vsel %vm4279, %v4229, %v4230
        %v4327 = vsel %vm4279, %v4228, %v4229
        %v4328 = vsel %vm4279, %v4227, %v4228
        %v4329 = vsel %vm4279, %v4226, %v4227
        %v4330 = vsel %vm4279, %v4225, %v4226
        %v4331 = vsel %vm4279, %v4224, %v4225
        %v4332 = vsel %vm4279, %v4223, %v4224
        %v4333 = vsel %vm4279, %v4222, %v4223
        %v4334 = vsel %vm4279, %v4221, %v4222
        %v4335 = vsel %vm4279, %v4220, %v4221
        %v4336 = vsel %vm4279, %v4219, %v4220
        %v4337 = vsel %vm4279, %v4218, %v4219
        %v4338 = vsel %vm4279, %v4217, %v4218
        %v4339 = vsel %vm4279, %v4216, %v4217
        %v4340 = vsel %vm4279, %v4215, %v4216
        %v4341 = vsel %vm4279, %v4214, %v4215
        %v4342 = vsel %vm4279, %v4213, %v4214
        %v4343 = vsel %vm4279, %v4276, %v4213
        %v4344 = vadd.f32 %v4343, %v3779
        %v4345 = vadd.f32 %v4342, %v3780
        %v4346 = vadd.f32 %v4341, %v3781
        %v4347 = vadd.f32 %v4340, %v3782
        %v4348 = vadd.f32 %v4339, %v3783
        %v4349 = vadd.f32 %v4338, %v3784
        %v4350 = vadd.f32 %v4337, %v3785
        %v4351 = vadd.f32 %v4336, %v3786
        %v4352 = vadd.f32 %v4335, %v3787
        %v4353 = vadd.f32 %v4334, %v3788
        %v4354 = vadd.f32 %v4333, %v3789
        %v4355 = vadd.f32 %v4332, %v3790
        %v4356 = vadd.f32 %v4331, %v3791
        %v4357 = vadd.f32 %v4330, %v3792
        %v4358 = vadd.f32 %v4329, %v3793
        %v4359 = vadd.f32 %v4328, %v3794
        %v4360 = vadd.f32 %v4327, %v3795
        %v4361 = vadd.f32 %v4326, %v3796
        %v4362 = vadd.f32 %v4325, %v3797
        %v4363 = vadd.f32 %v4324, %v3798
        %v4364 = vadd.f32 %v4323, %v3799
        %v4365 = vadd.f32 %v4322, %v3800
        %v4366 = vadd.f32 %v4321, %v3801
        %v4367 = vadd.f32 %v4320, %v3802
        %v4368 = vadd.f32 %v4319, %v3803
        %v4369 = vadd.f32 %v4318, %v3804
        %v4370 = vadd.f32 %v4317, %v3805
        %v4371 = vadd.f32 %v4316, %v3806
        %v4372 = vadd.f32 %v4315, %v3807
        %v4373 = vadd.f32 %v4314, %v3808
        %v4374 = vadd.f32 %v4313, %v3809
        %v4375 = vadd.f32 %v4312, %v3810
        %v4376 = vadd.f32 %v4311, %v3811
        %v4377 = vadd.f32 %v4310, %v3812
        %v4378 = vadd.f32 %v4309, %v3813
        %v4379 = vadd.f32 %v4308, %v3814
        %v4380 = vadd.f32 %v4307, %v3815
        %v4381 = vadd.f32 %v4306, %v3816
        %v4382 = vadd.f32 %v4305, %v3817
        %v4383 = vadd.f32 %v4304, %v3818
        %v4384 = vadd.f32 %v4303, %v3819
        %v4385 = vadd.f32 %v4302, %v3820
        %v4386 = vadd.f32 %v4301, %v3821
        %v4387 = vadd.f32 %v4300, %v3822
        %v4388 = vadd.f32 %v4299, %v3823
        %v4389 = vadd.f32 %v4298, %v3824
        %v4390 = vadd.f32 %v4297, %v3825
        %v4391 = vadd.f32 %v4296, %v3826
        %v4392 = vadd.f32 %v4295, %v3827
        %v4393 = vadd.f32 %v4294, %v3828
        %v4394 = vadd.f32 %v4293, %v3829
        %v4395 = vadd.f32 %v4292, %v3830
        %v4396 = vadd.f32 %v4291, %v3831
        %v4397 = vadd.f32 %v4290, %v3832
        %v4398 = vadd.f32 %v4289, %v3833
        %v4399 = vadd.f32 %v4288, %v3834
        %v4400 = vadd.f32 %v4287, %v3835
        %v4401 = vadd.f32 %v4286, %v3836
        %v4402 = vadd.f32 %v4285, %v3837
        %v4403 = vadd.f32 %v4284, %v3838
        %v4404 = vadd.f32 %v4283, %v3839
        %v4405 = vadd.f32 %v4282, %v3840
        %v4406 = vadd.f32 %v4281, %v3841
        %v4407 = vadd.f32 %v4280, %v3842
        %v4408 = vrot.slane %v4149, 1
        %v4409 = vrot.slane %v4150, 1
        %v4410 = vrot.slane %v4151, 1
        %v4411 = vrot.slane %v4152, 1
        %v4412 = vrot.slane %v4153, 1
        %v4413 = vrot.slane %v4154, 1
        %v4414 = vrot.slane %v4155, 1
        %v4415 = vrot.slane %v4156, 1
        %v4416 = vrot.slane %v4157, 1
        %v4417 = vrot.slane %v4158, 1
        %v4418 = vrot.slane %v4159, 1
        %v4419 = vrot.slane %v4160, 1
        %v4420 = vrot.slane %v4161, 1
        %v4421 = vrot.slane %v4162, 1
        %v4422 = vrot.slane %v4163, 1
        %v4423 = vrot.slane %v4164, 1
        %v4424 = vrot.slane %v4165, 1
        %v4425 = vrot.slane %v4166, 1
        %v4426 = vrot.slane %v4167, 1
        %v4427 = vrot.slane %v4168, 1
        %v4428 = vrot.slane %v4169, 1
        %v4429 = vrot.slane %v4170, 1
        %v4430 = vrot.slane %v4171, 1
        %v4431 = vrot.slane %v4172, 1
        %v4432 = vrot.slane %v4173, 1
        %v4433 = vrot.slane %v4174, 1
        %v4434 = vrot.slane %v4175, 1
        %v4435 = vrot.slane %v4176, 1
        %v4436 = vrot.slane %v4177, 1
        %v4437 = vrot.slane %v4178, 1
        %v4438 = vrot.slane %v4179, 1
        %v4439 = vrot.slane %v4180, 1
        %v4440 = vrot.slane %v4181, 1
        %v4441 = vrot.slane %v4182, 1
        %v4442 = vrot.slane %v4183, 1
        %v4443 = vrot.slane %v4184, 1
        %v4444 = vrot.slane %v4185, 1
        %v4445 = vrot.slane %v4186, 1
        %v4446 = vrot.slane %v4187, 1
        %v4447 = vrot.slane %v4188, 1
        %v4448 = vrot.slane %v4189, 1
        %v4449 = vrot.slane %v4190, 1
        %v4450 = vrot.slane %v4191, 1
        %v4451 = vrot.slane %v4192, 1
        %v4452 = vrot.slane %v4193, 1
        %v4453 = vrot.slane %v4194, 1
        %v4454 = vrot.slane %v4195, 1
        %v4455 = vrot.slane %v4196, 1
        %v4456 = vrot.slane %v4197, 1
        %v4457 = vrot.slane %v4198, 1
        %v4458 = vrot.slane %v4199, 1
        %v4459 = vrot.slane %v4200, 1
        %v4460 = vrot.slane %v4201, 1
        %v4461 = vrot.slane %v4202, 1
        %v4462 = vrot.slane %v4203, 1
        %v4463 = vrot.slane %v4204, 1
        %v4464 = vrot.slane %v4205, 1
        %v4465 = vrot.slane %v4206, 1
        %v4466 = vrot.slane %v4207, 1
        %v4467 = vrot.slane %v4208, 1
        %v4468 = vrot.slane %v4209, 1
        %v4469 = vrot.slane %v4210, 1
        %v4470 = vrot.slane %v4211, 1
        %v4471 = vrot.slane %v4212, 1
        %vm4472 = vcmp.lt.s32.totalorder %v4278, 7
        %v4473 = vsel %vm4472, %v4470, %v4471
        %v4474 = vsel %vm4472, %v4469, %v4470
        %v4475 = vsel %vm4472, %v4468, %v4469
        %v4476 = vsel %vm4472, %v4467, %v4468
        %v4477 = vsel %vm4472, %v4466, %v4467
        %v4478 = vsel %vm4472, %v4465, %v4466
        %v4479 = vsel %vm4472, %v4464, %v4465
        %v4480 = vsel %vm4472, %v4463, %v4464
        %v4481 = vsel %vm4472, %v4462, %v4463
        %v4482 = vsel %vm4472, %v4461, %v4462
        %v4483 = vsel %vm4472, %v4460, %v4461
        %v4484 = vsel %vm4472, %v4459, %v4460
        %v4485 = vsel %vm4472, %v4458, %v4459
        %v4486 = vsel %vm4472, %v4457, %v4458
        %v4487 = vsel %vm4472, %v4456, %v4457
        %v4488 = vsel %vm4472, %v4455, %v4456
        %v4489 = vsel %vm4472, %v4454, %v4455
        %v4490 = vsel %vm4472, %v4453, %v4454
        %v4491 = vsel %vm4472, %v4452, %v4453
        %v4492 = vsel %vm4472, %v4451, %v4452
        %v4493 = vsel %vm4472, %v4450, %v4451
        %v4494 = vsel %vm4472, %v4449, %v4450
        %v4495 = vsel %vm4472, %v4448, %v4449
        %v4496 = vsel %vm4472, %v4447, %v4448
        %v4497 = vsel %vm4472, %v4446, %v4447
        %v4498 = vsel %vm4472, %v4445, %v4446
        %v4499 = vsel %vm4472, %v4444, %v4445
        %v4500 = vsel %vm4472, %v4443, %v4444
        %v4501 = vsel %vm4472, %v4442, %v4443
        %v4502 = vsel %vm4472, %v4441, %v4442
        %v4503 = vsel %vm4472, %v4440, %v4441
        %v4504 = vsel %vm4472, %v4439, %v4440
        %v4505 = vsel %vm4472, %v4438, %v4439
        %v4506 = vsel %vm4472, %v4437, %v4438
        %v4507 = vsel %vm4472, %v4436, %v4437
        %v4508 = vsel %vm4472, %v4435, %v4436
        %v4509 = vsel %vm4472, %v4434, %v4435
        %v4510 = vsel %vm4472, %v4433, %v4434
        %v4511 = vsel %vm4472, %v4432, %v4433
        %v4512 = vsel %vm4472, %v4431, %v4432
        %v4513 = vsel %vm4472, %v4430, %v4431
        %v4514 = vsel %vm4472, %v4429, %v4430
        %v4515 = vsel %vm4472, %v4428, %v4429
        %v4516 = vsel %vm4472, %v4427, %v4428
        %v4517 = vsel %vm4472, %v4426, %v4427
        %v4518 = vsel %vm4472, %v4425, %v4426
        %v4519 = vsel %vm4472, %v4424, %v4425
        %v4520 = vsel %vm4472, %v4423, %v4424
        %v4521 = vsel %vm4472, %v4422, %v4423
        %v4522 = vsel %vm4472, %v4421, %v4422
        %v4523 = vsel %vm4472, %v4420, %v4421
        %v4524 = vsel %vm4472, %v4419, %v4420
        %v4525 = vsel %vm4472, %v4418, %v4419
        %v4526 = vsel %vm4472, %v4417, %v4418
        %v4527 = vsel %vm4472, %v4416, %v4417
        %v4528 = vsel %vm4472, %v4415, %v4416
        %v4529 = vsel %vm4472, %v4414, %v4415
        %v4530 = vsel %vm4472, %v4413, %v4414
        %v4531 = vsel %vm4472, %v4412, %v4413
        %v4532 = vsel %vm4472, %v4411, %v4412
        %v4533 = vsel %vm4472, %v4410, %v4411
        %v4534 = vsel %vm4472, %v4409, %v4410
        %v4535 = vsel %vm4472, %v4408, %v4409
        %v4536 = vsel %vm4472, %v4471, %v4408
        %v4537 = vadd.f32 %v4344, %v4535
        %v4538 = vadd.f32 %v4345, %v4534
        %v4539 = vadd.f32 %v4346, %v4533
        %v4540 = vadd.f32 %v4347, %v4532
        %v4541 = vadd.f32 %v4348, %v4531
        %v4542 = vadd.f32 %v4349, %v4530
        %v4543 = vadd.f32 %v4350, %v4529
        %v4544 = vadd.f32 %v4351, %v4528
        %v4545 = vadd.f32 %v4352, %v4527
        %v4546 = vadd.f32 %v4353, %v4526
        %v4547 = vadd.f32 %v4354, %v4525
        %v4548 = vadd.f32 %v4355, %v4524
        %v4549 = vadd.f32 %v4356, %v4523
        %v4550 = vadd.f32 %v4357, %v4522
        %v4551 = vadd.f32 %v4358, %v4521
        %v4552 = vadd.f32 %v4359, %v4520
        %v4553 = vadd.f32 %v4360, %v4519
        %v4554 = vadd.f32 %v4361, %v4518
        %v4555 = vadd.f32 %v4362, %v4517
        %v4556 = vadd.f32 %v4363, %v4516
        %v4557 = vadd.f32 %v4364, %v4515
        %v4558 = vadd.f32 %v4365, %v4514
        %v4559 = vadd.f32 %v4366, %v4513
        %v4560 = vadd.f32 %v4367, %v4512
        %v4561 = vadd.f32 %v4368, %v4511
        %v4562 = vadd.f32 %v4369, %v4510
        %v4563 = vadd.f32 %v4370, %v4509
        %v4564 = vadd.f32 %v4371, %v4508
        %v4565 = vadd.f32 %v4372, %v4507
        %v4566 = vadd.f32 %v4373, %v4506
        %v4567 = vadd.f32 %v4374, %v4505
        %v4568 = vadd.f32 %v4375, %v4504
        %v4569 = vadd.f32 %v4376, %v4503
        %v4570 = vadd.f32 %v4377, %v4502
        %v4571 = vadd.f32 %v4378, %v4501
        %v4572 = vadd.f32 %v4379, %v4500
        %v4573 = vadd.f32 %v4380, %v4499
        %v4574 = vadd.f32 %v4381, %v4498
        %v4575 = vadd.f32 %v4382, %v4497
        %v4576 = vadd.f32 %v4383, %v4496
        %v4577 = vadd.f32 %v4384, %v4495
        %v4578 = vadd.f32 %v4385, %v4494
        %v4579 = vadd.f32 %v4386, %v4493
        %v4580 = vadd.f32 %v4387, %v4492
        %v4581 = vadd.f32 %v4388, %v4491
        %v4582 = vadd.f32 %v4389, %v4490
        %v4583 = vadd.f32 %v4390, %v4489
        %v4584 = vadd.f32 %v4391, %v4488
        %v4585 = vadd.f32 %v4392, %v4487
        %v4586 = vadd.f32 %v4393, %v4486
        %v4587 = vadd.f32 %v4394, %v4485
        %v4588 = vadd.f32 %v4395, %v4484
        %v4589 = vadd.f32 %v4396, %v4483
        %v4590 = vadd.f32 %v4397, %v4482
        %v4591 = vadd.f32 %v4398, %v4481
        %v4592 = vadd.f32 %v4399, %v4480
        %v4593 = vadd.f32 %v4400, %v4479
        %v4594 = vadd.f32 %v4401, %v4478
        %v4595 = vadd.f32 %v4402, %v4477
        %v4596 = vadd.f32 %v4403, %v4476
        %v4597 = vadd.f32 %v4404, %v4475
        %v4598 = vadd.f32 %v4405, %v4474
        %v4599 = vadd.f32 %v4406, %v4473
        %v4600 = vadd.f32 %v4407, %v4536
        %v4601 = vld [vmem:[%s3] sm:$0x1]
        %v4603 = vlaneseq
        %v4604 = vshrl.u32 %v4603, 7
        %v4605 = vsub.s32 0, %v4604
        %v4606 = vrot.slane %v4601, %v4605
        %v4608 = vadd.f32 %v4537, %v4606
        %v4609 = vadd.f32 %v4538, %v4606
        %v4610 = vadd.f32 %v4539, %v4606
        %v4611 = vadd.f32 %v4540, %v4606
        %v4612 = vadd.f32 %v4541, %v4606
        %v4613 = vadd.f32 %v4542, %v4606
        %v4614 = vadd.f32 %v4543, %v4606
        %v4615 = vadd.f32 %v4544, %v4606
        %v4616 = vadd.f32 %v4545, %v4606
        %v4617 = vadd.f32 %v4546, %v4606
        %v4618 = vadd.f32 %v4547, %v4606
        %v4619 = vadd.f32 %v4548, %v4606
        %v4620 = vadd.f32 %v4549, %v4606
        %v4621 = vadd.f32 %v4550, %v4606
        %v4622 = vadd.f32 %v4551, %v4606
        %v4623 = vadd.f32 %v4552, %v4606
        %v4624 = vadd.f32 %v4553, %v4606
        %v4625 = vadd.f32 %v4554, %v4606
        %v4626 = vadd.f32 %v4555, %v4606
        %v4627 = vadd.f32 %v4556, %v4606
        %v4628 = vadd.f32 %v4557, %v4606
        %v4629 = vadd.f32 %v4558, %v4606
        %v4630 = vadd.f32 %v4559, %v4606
        %v4631 = vadd.f32 %v4560, %v4606
        %v4632 = vadd.f32 %v4561, %v4606
        %v4633 = vadd.f32 %v4562, %v4606
        %v4634 = vadd.f32 %v4563, %v4606
        %v4635 = vadd.f32 %v4564, %v4606
        %v4636 = vadd.f32 %v4565, %v4606
        %v4637 = vadd.f32 %v4566, %v4606
        %v4638 = vadd.f32 %v4567, %v4606
        %v4639 = vadd.f32 %v4568, %v4606
        %v4640 = vadd.f32 %v4569, %v4606
        %v4641 = vadd.f32 %v4570, %v4606
        %v4642 = vadd.f32 %v4571, %v4606
        %v4643 = vadd.f32 %v4572, %v4606
        %v4644 = vadd.f32 %v4573, %v4606
        %v4645 = vadd.f32 %v4574, %v4606
        %v4646 = vadd.f32 %v4575, %v4606
        %v4647 = vadd.f32 %v4576, %v4606
        %v4648 = vadd.f32 %v4577, %v4606
        %v4649 = vadd.f32 %v4578, %v4606
        %v4650 = vadd.f32 %v4579, %v4606
        %v4651 = vadd.f32 %v4580, %v4606
        %v4652 = vadd.f32 %v4581, %v4606
        %v4653 = vadd.f32 %v4582, %v4606
        %v4654 = vadd.f32 %v4583, %v4606
        %v4655 = vadd.f32 %v4584, %v4606
        %v4656 = vadd.f32 %v4585, %v4606
        %v4657 = vadd.f32 %v4586, %v4606
        %v4658 = vadd.f32 %v4587, %v4606
        %v4659 = vadd.f32 %v4588, %v4606
        %v4660 = vadd.f32 %v4589, %v4606
        %v4661 = vadd.f32 %v4590, %v4606
        %v4662 = vadd.f32 %v4591, %v4606
        %v4663 = vadd.f32 %v4592, %v4606
        %v4664 = vadd.f32 %v4593, %v4606
        %v4665 = vadd.f32 %v4594, %v4606
        %v4666 = vadd.f32 %v4595, %v4606
        %v4667 = vadd.f32 %v4596, %v4606
        %v4668 = vadd.f32 %v4597, %v4606
        %v4669 = vadd.f32 %v4598, %v4606
        %v4670 = vadd.f32 %v4599, %v4606
        %v4671 = vadd.f32 %v4600, %v4606
        %v4672 = vmul.f32 %v4608, 0.1
        %v4673 = vmul.f32 %v4609, 0.1
        %v4674 = vmul.f32 %v4610, 0.1
        %v4675 = vmul.f32 %v4611, 0.1
        %v4676 = vmul.f32 %v4612, 0.1
        %v4677 = vmul.f32 %v4613, 0.1
        %v4678 = vmul.f32 %v4614, 0.1
        %v4679 = vmul.f32 %v4615, 0.1
        %v4680 = vmul.f32 %v4616, 0.1
        %v4681 = vmul.f32 %v4617, 0.1
        %v4682 = vmul.f32 %v4618, 0.1
        %v4683 = vmul.f32 %v4619, 0.1
        %v4684 = vmul.f32 %v4620, 0.1
        %v4685 = vmul.f32 %v4621, 0.1
        %v4686 = vmul.f32 %v4622, 0.1
        %v4687 = vmul.f32 %v4623, 0.1
        %v4688 = vmul.f32 %v4624, 0.1
        %v4689 = vmul.f32 %v4625, 0.1
        %v4690 = vmul.f32 %v4626, 0.1
        %v4691 = vmul.f32 %v4627, 0.1
        %v4692 = vmul.f32 %v4628, 0.1
        %v4693 = vmul.f32 %v4629, 0.1
        %v4694 = vmul.f32 %v4630, 0.1
        %v4695 = vmul.f32 %v4631, 0.1
        %v4696 = vmul.f32 %v4632, 0.1
        %v4697 = vmul.f32 %v4633, 0.1
        %v4698 = vmul.f32 %v4634, 0.1
        %v4699 = vmul.f32 %v4635, 0.1
        %v4700 = vmul.f32 %v4636, 0.1
        %v4701 = vmul.f32 %v4637, 0.1
        %v4702 = vmul.f32 %v4638, 0.1
        %v4703 = vmul.f32 %v4639, 0.1
        %v4704 = vmul.f32 %v4640, 0.1
        %v4705 = vmul.f32 %v4641, 0.1
        %v4706 = vmul.f32 %v4642, 0.1
        %v4707 = vmul.f32 %v4643, 0.1
        %v4708 = vmul.f32 %v4644, 0.1
        %v4709 = vmul.f32 %v4645, 0.1
        %v4710 = vmul.f32 %v4646, 0.1
        %v4711 = vmul.f32 %v4647, 0.1
        %v4712 = vmul.f32 %v4648, 0.1
        %v4713 = vmul.f32 %v4649, 0.1
        %v4714 = vmul.f32 %v4650, 0.1
        %v4715 = vmul.f32 %v4651, 0.1
        %v4716 = vmul.f32 %v4652, 0.1
        %v4717 = vmul.f32 %v4653, 0.1
        %v4718 = vmul.f32 %v4654, 0.1
        %v4719 = vmul.f32 %v4655, 0.1
        %v4720 = vmul.f32 %v4656, 0.1
        %v4721 = vmul.f32 %v4657, 0.1
        %v4722 = vmul.f32 %v4658, 0.1
        %v4723 = vmul.f32 %v4659, 0.1
        %v4724 = vmul.f32 %v4660, 0.1
        %v4725 = vmul.f32 %v4661, 0.1
        %v4726 = vmul.f32 %v4662, 0.1
        %v4727 = vmul.f32 %v4663, 0.1
        %v4728 = vmul.f32 %v4664, 0.1
        %v4729 = vmul.f32 %v4665, 0.1
        %v4730 = vmul.f32 %v4666, 0.1
        %v4731 = vmul.f32 %v4667, 0.1
        %v4732 = vmul.f32 %v4668, 0.1
        %v4733 = vmul.f32 %v4669, 0.1
        %v4734 = vmul.f32 %v4670, 0.1
        %v4735 = vmul.f32 %v4671, 0.1
        %v4736 = vmax.f32 %v4608, %v4672
        %v4737 = vmax.f32 %v4609, %v4673
        %v4738 = vmax.f32 %v4610, %v4674
        %v4739 = vmax.f32 %v4611, %v4675
        %v4740 = vmax.f32 %v4612, %v4676
        %v4741 = vmax.f32 %v4613, %v4677
        %v4742 = vmax.f32 %v4614, %v4678
        %v4743 = vmax.f32 %v4615, %v4679
        %v4744 = vmax.f32 %v4616, %v4680
        %v4745 = vmax.f32 %v4617, %v4681
        %v4746 = vmax.f32 %v4618, %v4682
        %v4747 = vmax.f32 %v4619, %v4683
        %v4748 = vmax.f32 %v4620, %v4684
        %v4749 = vmax.f32 %v4621, %v4685
        %v4750 = vmax.f32 %v4622, %v4686
        %v4751 = vmax.f32 %v4623, %v4687
        %v4752 = vmax.f32 %v4624, %v4688
        %v4753 = vmax.f32 %v4625, %v4689
        %v4754 = vmax.f32 %v4626, %v4690
        %v4755 = vmax.f32 %v4627, %v4691
        %v4756 = vmax.f32 %v4628, %v4692
        %v4757 = vmax.f32 %v4629, %v4693
        %v4758 = vmax.f32 %v4630, %v4694
        %v4759 = vmax.f32 %v4631, %v4695
        %v4760 = vmax.f32 %v4632, %v4696
        %v4761 = vmax.f32 %v4633, %v4697
        %v4762 = vmax.f32 %v4634, %v4698
        %v4763 = vmax.f32 %v4635, %v4699
        %v4764 = vmax.f32 %v4636, %v4700
        %v4765 = vmax.f32 %v4637, %v4701
        %v4766 = vmax.f32 %v4638, %v4702
        %v4767 = vmax.f32 %v4639, %v4703
        %v4768 = vmax.f32 %v4640, %v4704
        %v4769 = vmax.f32 %v4641, %v4705
        %v4770 = vmax.f32 %v4642, %v4706
        %v4771 = vmax.f32 %v4643, %v4707
        %v4772 = vmax.f32 %v4644, %v4708
        %v4773 = vmax.f32 %v4645, %v4709
        %v4774 = vmax.f32 %v4646, %v4710
        %v4775 = vmax.f32 %v4647, %v4711
        %v4776 = vmax.f32 %v4648, %v4712
        %v4777 = vmax.f32 %v4649, %v4713
        %v4778 = vmax.f32 %v4650, %v4714
        %v4779 = vmax.f32 %v4651, %v4715
        %v4780 = vmax.f32 %v4652, %v4716
        %v4781 = vmax.f32 %v4653, %v4717
        %v4782 = vmax.f32 %v4654, %v4718
        %v4783 = vmax.f32 %v4655, %v4719
        %v4784 = vmax.f32 %v4656, %v4720
        %v4785 = vmax.f32 %v4657, %v4721
        %v4786 = vmax.f32 %v4658, %v4722
        %v4787 = vmax.f32 %v4659, %v4723
        %v4788 = vmax.f32 %v4660, %v4724
        %v4789 = vmax.f32 %v4661, %v4725
        %v4790 = vmax.f32 %v4662, %v4726
        %v4791 = vmax.f32 %v4663, %v4727
        %v4792 = vmax.f32 %v4664, %v4728
        %v4793 = vmax.f32 %v4665, %v4729
        %v4794 = vmax.f32 %v4666, %v4730
        %v4795 = vmax.f32 %v4667, %v4731
        %v4796 = vmax.f32 %v4668, %v4732
        %v4797 = vmax.f32 %v4669, %v4733
        %v4798 = vmax.f32 %v4670, %v4734
        %v4799 = vmax.f32 %v4671, %v4735
        %v4800 = vld [vmem:[%s1] sm:$0xff]
        %v4801 = vld [vmem:[%s1 + $0x8] sm:$0xff]
        %v4802 = vld [vmem:[%s1 + $0x10] sm:$0xff]
        %v4803 = vld [vmem:[%s1 + $0x18] sm:$0xff]
        %v4804 = vld [vmem:[%s1 + $0x20] sm:$0xff]
        %v4805 = vld [vmem:[%s1 + $0x28] sm:$0xff]
        %v4806 = vld [vmem:[%s1 + $0x30] sm:$0xff]
        %v4807 = vld [vmem:[%s1 + $0x38] sm:$0xff]
        %v4808 = vld [vmem:[%s1 + $0x40] sm:$0xff]
        %v4809 = vld [vmem:[%s1 + $0x48] sm:$0xff]
        %v4810 = vld [vmem:[%s1 + $0x50] sm:$0xff]
        %v4811 = vld [vmem:[%s1 + $0x58] sm:$0xff]
        %v4812 = vld [vmem:[%s1 + $0x60] sm:$0xff]
        %v4813 = vld [vmem:[%s1 + $0x68] sm:$0xff]
        %v4814 = vld [vmem:[%s1 + $0x70] sm:$0xff]
        %v4815 = vld [vmem:[%s1 + $0x78] sm:$0xff]
        %v4816 = vld [vmem:[%s1 + $0x80] sm:$0xff]
        %v4817 = vld [vmem:[%s1 + $0x88] sm:$0xff]
        %v4818 = vld [vmem:[%s1 + $0x90] sm:$0xff]
        %v4819 = vld [vmem:[%s1 + $0x98] sm:$0xff]
        %v4820 = vld [vmem:[%s1 + $0xa0] sm:$0xff]
        %v4821 = vld [vmem:[%s1 + $0xa8] sm:$0xff]
        %v4822 = vld [vmem:[%s1 + $0xb0] sm:$0xff]
        %v4823 = vld [vmem:[%s1 + $0xb8] sm:$0xff]
        %v4824 = vld [vmem:[%s1 + $0xc0] sm:$0xff]
        %v4825 = vld [vmem:[%s1 + $0xc8] sm:$0xff]
        %v4826 = vld [vmem:[%s1 + $0xd0] sm:$0xff]
        %v4827 = vld [vmem:[%s1 + $0xd8] sm:$0xff]
        %v4828 = vld [vmem:[%s1 + $0xe0] sm:$0xff]
        %v4829 = vld [vmem:[%s1 + $0xe8] sm:$0xff]
        %v4830 = vld [vmem:[%s1 + $0xf0] sm:$0xff]
        %v4831 = vld [vmem:[%s1 + $0xf8] sm:$0xff]
        %v4832 = vld [vmem:[%s1 + $0x100] sm:$0xff]
        %v4833 = vld [vmem:[%s1 + $0x108] sm:$0xff]
        %v4834 = vld [vmem:[%s1 + $0x110] sm:$0xff]
        %v4835 = vld [vmem:[%s1 + $0x118] sm:$0xff]
        %v4836 = vld [vmem:[%s1 + $0x120] sm:$0xff]
        %v4837 = vld [vmem:[%s1 + $0x128] sm:$0xff]
        %v4838 = vld [vmem:[%s1 + $0x130] sm:$0xff]
        %v4839 = vld [vmem:[%s1 + $0x138] sm:$0xff]
        %v4840 = vld [vmem:[%s1 + $0x140] sm:$0xff]
        %v4841 = vld [vmem:[%s1 + $0x148] sm:$0xff]
        %v4842 = vld [vmem:[%s1 + $0x150] sm:$0xff]
        %v4843 = vld [vmem:[%s1 + $0x158] sm:$0xff]
        %v4844 = vld [vmem:[%s1 + $0x160] sm:$0xff]
        %v4845 = vld [vmem:[%s1 + $0x168] sm:$0xff]
        %v4846 = vld [vmem:[%s1 + $0x170] sm:$0xff]
        %v4847 = vld [vmem:[%s1 + $0x178] sm:$0xff]
        %v4848 = vld [vmem:[%s1 + $0x180] sm:$0xff]
        %v4849 = vld [vmem:[%s1 + $0x188] sm:$0xff]
        %v4850 = vld [vmem:[%s1 + $0x190] sm:$0xff]
        %v4851 = vld [vmem:[%s1 + $0x198] sm:$0xff]
        %v4852 = vld [vmem:[%s1 + $0x1a0] sm:$0xff]
        %v4853 = vld [vmem:[%s1 + $0x1a8] sm:$0xff]
        %v4854 = vld [vmem:[%s1 + $0x1b0] sm:$0xff]
        %v4855 = vld [vmem:[%s1 + $0x1b8] sm:$0xff]
        %v4856 = vld [vmem:[%s1 + $0x1c0] sm:$0xff]
        %v4857 = vld [vmem:[%s1 + $0x1c8] sm:$0xff]
        %v4858 = vld [vmem:[%s1 + $0x1d0] sm:$0xff]
        %v4859 = vld [vmem:[%s1 + $0x1d8] sm:$0xff]
        %v4860 = vld [vmem:[%s1 + $0x1e0] sm:$0xff]
        %v4861 = vld [vmem:[%s1 + $0x1e8] sm:$0xff]
        %v4862 = vld [vmem:[%s1 + $0x1f0] sm:$0xff]
        %v4863 = vld [vmem:[%s1 + $0x1f8] sm:$0xff]
        %4865 = vset.pattern.permute.xlu0 0
        %4866 = vperm.xlu0 %4865, %v4800
        %v4867 = vpop.permute.xlu0 %4866
        %4870 = vset.pattern.permute.xlu0 0
        %4871 = vperm.xlu0 %4870, %v4801
        %v4872 = vpop.permute.xlu0 %4871
        %4875 = vset.pattern.permute.xlu0 0
        %4876 = vperm.xlu0 %4875, %v4802
        %v4877 = vpop.permute.xlu0 %4876
        %4880 = vset.pattern.permute.xlu0 0
        %4881 = vperm.xlu0 %4880, %v4803
        %v4882 = vpop.permute.xlu0 %4881
        %4885 = vset.pattern.permute.xlu0 0
        %4886 = vperm.xlu0 %4885, %v4804
        %v4887 = vpop.permute.xlu0 %4886
        %4890 = vset.pattern.permute.xlu0 0
        %4891 = vperm.xlu0 %4890, %v4805
        %v4892 = vpop.permute.xlu0 %4891
        %4895 = vset.pattern.permute.xlu0 0
        %4896 = vperm.xlu0 %4895, %v4806
        %v4897 = vpop.permute.xlu0 %4896
        %4900 = vset.pattern.permute.xlu0 0
        %4901 = vperm.xlu0 %4900, %v4807
        %v4902 = vpop.permute.xlu0 %4901
        %4905 = vset.pattern.permute.xlu0 0
        %4906 = vperm.xlu0 %4905, %v4808
        %v4907 = vpop.permute.xlu0 %4906
        %4910 = vset.pattern.permute.xlu0 0
        %4911 = vperm.xlu0 %4910, %v4809
        %v4912 = vpop.permute.xlu0 %4911
        %4915 = vset.pattern.permute.xlu0 0
        %4916 = vperm.xlu0 %4915, %v4810
        %v4917 = vpop.permute.xlu0 %4916
        %4920 = vset.pattern.permute.xlu0 0
        %4921 = vperm.xlu0 %4920, %v4811
        %v4922 = vpop.permute.xlu0 %4921
        %4925 = vset.pattern.permute.xlu0 0
        %4926 = vperm.xlu0 %4925, %v4812
        %v4927 = vpop.permute.xlu0 %4926
        %4930 = vset.pattern.permute.xlu0 0
        %4931 = vperm.xlu0 %4930, %v4813
        %v4932 = vpop.permute.xlu0 %4931
        %4935 = vset.pattern.permute.xlu0 0
        %4936 = vperm.xlu0 %4935, %v4814
        %v4937 = vpop.permute.xlu0 %4936
        %4940 = vset.pattern.permute.xlu0 0
        %4941 = vperm.xlu0 %4940, %v4815
        %v4942 = vpop.permute.xlu0 %4941
        %4945 = vset.pattern.permute.xlu0 0
        %4946 = vperm.xlu0 %4945, %v4816
        %v4947 = vpop.permute.xlu0 %4946
        %4950 = vset.pattern.permute.xlu0 0
        %4951 = vperm.xlu0 %4950, %v4817
        %v4952 = vpop.permute.xlu0 %4951
        %4955 = vset.pattern.permute.xlu0 0
        %4956 = vperm.xlu0 %4955, %v4818
        %v4957 = vpop.permute.xlu0 %4956
        %4960 = vset.pattern.permute.xlu0 0
        %4961 = vperm.xlu0 %4960, %v4819
        %v4962 = vpop.permute.xlu0 %4961
        %4965 = vset.pattern.permute.xlu0 0
        %4966 = vperm.xlu0 %4965, %v4820
        %v4967 = vpop.permute.xlu0 %4966
        %4970 = vset.pattern.permute.xlu0 0
        %4971 = vperm.xlu0 %4970, %v4821
        %v4972 = vpop.permute.xlu0 %4971
        %4975 = vset.pattern.permute.xlu0 0
        %4976 = vperm.xlu0 %4975, %v4822
        %v4977 = vpop.permute.xlu0 %4976
        %4980 = vset.pattern.permute.xlu0 0
        %4981 = vperm.xlu0 %4980, %v4823
        %v4982 = vpop.permute.xlu0 %4981
        %4985 = vset.pattern.permute.xlu0 0
        %4986 = vperm.xlu0 %4985, %v4824
        %v4987 = vpop.permute.xlu0 %4986
        %4990 = vset.pattern.permute.xlu0 0
        %4991 = vperm.xlu0 %4990, %v4825
        %v4992 = vpop.permute.xlu0 %4991
        %4995 = vset.pattern.permute.xlu0 0
        %4996 = vperm.xlu0 %4995, %v4826
        %v4997 = vpop.permute.xlu0 %4996
        %5000 = vset.pattern.permute.xlu0 0
        %5001 = vperm.xlu0 %5000, %v4827
        %v5002 = vpop.permute.xlu0 %5001
        %5005 = vset.pattern.permute.xlu0 0
        %5006 = vperm.xlu0 %5005, %v4828
        %v5007 = vpop.permute.xlu0 %5006
        %5010 = vset.pattern.permute.xlu0 0
        %5011 = vperm.xlu0 %5010, %v4829
        %v5012 = vpop.permute.xlu0 %5011
        %5015 = vset.pattern.permute.xlu0 0
        %5016 = vperm.xlu0 %5015, %v4830
        %v5017 = vpop.permute.xlu0 %5016
        %5020 = vset.pattern.permute.xlu0 0
        %5021 = vperm.xlu0 %5020, %v4831
        %v5022 = vpop.permute.xlu0 %5021
        %5025 = vset.pattern.permute.xlu0 0
        %5026 = vperm.xlu0 %5025, %v4832
        %v5027 = vpop.permute.xlu0 %5026
        %5030 = vset.pattern.permute.xlu0 0
        %5031 = vperm.xlu0 %5030, %v4833
        %v5032 = vpop.permute.xlu0 %5031
        %5035 = vset.pattern.permute.xlu0 0
        %5036 = vperm.xlu0 %5035, %v4834
        %v5037 = vpop.permute.xlu0 %5036
        %5040 = vset.pattern.permute.xlu0 0
        %5041 = vperm.xlu0 %5040, %v4835
        %v5042 = vpop.permute.xlu0 %5041
        %5045 = vset.pattern.permute.xlu0 0
        %5046 = vperm.xlu0 %5045, %v4836
        %v5047 = vpop.permute.xlu0 %5046
        %5050 = vset.pattern.permute.xlu0 0
        %5051 = vperm.xlu0 %5050, %v4837
        %v5052 = vpop.permute.xlu0 %5051
        %5055 = vset.pattern.permute.xlu0 0
        %5056 = vperm.xlu0 %5055, %v4838
        %v5057 = vpop.permute.xlu0 %5056
        %5060 = vset.pattern.permute.xlu0 0
        %5061 = vperm.xlu0 %5060, %v4839
        %v5062 = vpop.permute.xlu0 %5061
        %5065 = vset.pattern.permute.xlu0 0
        %5066 = vperm.xlu0 %5065, %v4840
        %v5067 = vpop.permute.xlu0 %5066
        %5070 = vset.pattern.permute.xlu0 0
        %5071 = vperm.xlu0 %5070, %v4841
        %v5072 = vpop.permute.xlu0 %5071
        %5075 = vset.pattern.permute.xlu0 0
        %5076 = vperm.xlu0 %5075, %v4842
        %v5077 = vpop.permute.xlu0 %5076
        %5080 = vset.pattern.permute.xlu0 0
        %5081 = vperm.xlu0 %5080, %v4843
        %v5082 = vpop.permute.xlu0 %5081
        %5085 = vset.pattern.permute.xlu0 0
        %5086 = vperm.xlu0 %5085, %v4844
        %v5087 = vpop.permute.xlu0 %5086
        %5090 = vset.pattern.permute.xlu0 0
        %5091 = vperm.xlu0 %5090, %v4845
        %v5092 = vpop.permute.xlu0 %5091
        %5095 = vset.pattern.permute.xlu0 0
        %5096 = vperm.xlu0 %5095, %v4846
        %v5097 = vpop.permute.xlu0 %5096
        %5100 = vset.pattern.permute.xlu0 0
        %5101 = vperm.xlu0 %5100, %v4847
        %v5102 = vpop.permute.xlu0 %5101
        %5105 = vset.pattern.permute.xlu0 0
        %5106 = vperm.xlu0 %5105, %v4848
        %v5107 = vpop.permute.xlu0 %5106
        %5110 = vset.pattern.permute.xlu0 0
        %5111 = vperm.xlu0 %5110, %v4849
        %v5112 = vpop.permute.xlu0 %5111
        %5115 = vset.pattern.permute.xlu0 0
        %5116 = vperm.xlu0 %5115, %v4850
        %v5117 = vpop.permute.xlu0 %5116
        %5120 = vset.pattern.permute.xlu0 0
        %5121 = vperm.xlu0 %5120, %v4851
        %v5122 = vpop.permute.xlu0 %5121
        %5125 = vset.pattern.permute.xlu0 0
        %5126 = vperm.xlu0 %5125, %v4852
        %v5127 = vpop.permute.xlu0 %5126
        %5130 = vset.pattern.permute.xlu0 0
        %5131 = vperm.xlu0 %5130, %v4853
        %v5132 = vpop.permute.xlu0 %5131
        %5135 = vset.pattern.permute.xlu0 0
        %5136 = vperm.xlu0 %5135, %v4854
        %v5137 = vpop.permute.xlu0 %5136
        %5140 = vset.pattern.permute.xlu0 0
        %5141 = vperm.xlu0 %5140, %v4855
        %v5142 = vpop.permute.xlu0 %5141
        %5145 = vset.pattern.permute.xlu0 0
        %5146 = vperm.xlu0 %5145, %v4856
        %v5147 = vpop.permute.xlu0 %5146
        %5150 = vset.pattern.permute.xlu0 0
        %5151 = vperm.xlu0 %5150, %v4857
        %v5152 = vpop.permute.xlu0 %5151
        %5155 = vset.pattern.permute.xlu0 0
        %5156 = vperm.xlu0 %5155, %v4858
        %v5157 = vpop.permute.xlu0 %5156
        %5160 = vset.pattern.permute.xlu0 0
        %5161 = vperm.xlu0 %5160, %v4859
        %v5162 = vpop.permute.xlu0 %5161
        %5165 = vset.pattern.permute.xlu0 0
        %5166 = vperm.xlu0 %5165, %v4860
        %v5167 = vpop.permute.xlu0 %5166
        %5170 = vset.pattern.permute.xlu0 0
        %5171 = vperm.xlu0 %5170, %v4861
        %v5172 = vpop.permute.xlu0 %5171
        %5175 = vset.pattern.permute.xlu0 0
        %5176 = vperm.xlu0 %5175, %v4862
        %v5177 = vpop.permute.xlu0 %5176
        %5180 = vset.pattern.permute.xlu0 0
        %5181 = vperm.xlu0 %5180, %v4863
        %v5182 = vpop.permute.xlu0 %5181
        %v5184 = vmul.f32 %v4736, %v4867
        %v5185 = vmul.f32 %v4737, %v4872
        %v5186 = vmul.f32 %v4738, %v4877
        %v5187 = vmul.f32 %v4739, %v4882
        %v5188 = vmul.f32 %v4740, %v4887
        %v5189 = vmul.f32 %v4741, %v4892
        %v5190 = vmul.f32 %v4742, %v4897
        %v5191 = vmul.f32 %v4743, %v4902
        %v5192 = vmul.f32 %v4744, %v4907
        %v5193 = vmul.f32 %v4745, %v4912
        %v5194 = vmul.f32 %v4746, %v4917
        %v5195 = vmul.f32 %v4747, %v4922
        %v5196 = vmul.f32 %v4748, %v4927
        %v5197 = vmul.f32 %v4749, %v4932
        %v5198 = vmul.f32 %v4750, %v4937
        %v5199 = vmul.f32 %v4751, %v4942
        %v5200 = vmul.f32 %v4752, %v4947
        %v5201 = vmul.f32 %v4753, %v4952
        %v5202 = vmul.f32 %v4754, %v4957
        %v5203 = vmul.f32 %v4755, %v4962
        %v5204 = vmul.f32 %v4756, %v4967
        %v5205 = vmul.f32 %v4757, %v4972
        %v5206 = vmul.f32 %v4758, %v4977
        %v5207 = vmul.f32 %v4759, %v4982
        %v5208 = vmul.f32 %v4760, %v4987
        %v5209 = vmul.f32 %v4761, %v4992
        %v5210 = vmul.f32 %v4762, %v4997
        %v5211 = vmul.f32 %v4763, %v5002
        %v5212 = vmul.f32 %v4764, %v5007
        %v5213 = vmul.f32 %v4765, %v5012
        %v5214 = vmul.f32 %v4766, %v5017
        %v5215 = vmul.f32 %v4767, %v5022
        %v5216 = vmul.f32 %v4768, %v5027
        %v5217 = vmul.f32 %v4769, %v5032
        %v5218 = vmul.f32 %v4770, %v5037
        %v5219 = vmul.f32 %v4771, %v5042
        %v5220 = vmul.f32 %v4772, %v5047
        %v5221 = vmul.f32 %v4773, %v5052
        %v5222 = vmul.f32 %v4774, %v5057
        %v5223 = vmul.f32 %v4775, %v5062
        %v5224 = vmul.f32 %v4776, %v5067
        %v5225 = vmul.f32 %v4777, %v5072
        %v5226 = vmul.f32 %v4778, %v5077
        %v5227 = vmul.f32 %v4779, %v5082
        %v5228 = vmul.f32 %v4780, %v5087
        %v5229 = vmul.f32 %v4781, %v5092
        %v5230 = vmul.f32 %v4782, %v5097
        %v5231 = vmul.f32 %v4783, %v5102
        %v5232 = vmul.f32 %v4784, %v5107
        %v5233 = vmul.f32 %v4785, %v5112
        %v5234 = vmul.f32 %v4786, %v5117
        %v5235 = vmul.f32 %v4787, %v5122
        %v5236 = vmul.f32 %v4788, %v5127
        %v5237 = vmul.f32 %v4789, %v5132
        %v5238 = vmul.f32 %v4790, %v5137
        %v5239 = vmul.f32 %v4791, %v5142
        %v5240 = vmul.f32 %v4792, %v5147
        %v5241 = vmul.f32 %v4793, %v5152
        %v5242 = vmul.f32 %v4794, %v5157
        %v5243 = vmul.f32 %v4795, %v5162
        %v5244 = vmul.f32 %v4796, %v5167
        %v5245 = vmul.f32 %v4797, %v5172
        %v5246 = vmul.f32 %v4798, %v5177
        %v5247 = vmul.f32 %v4799, %v5182
        %vm5248 = vcmask 125952
        %5249 = vst.msk [vmem:[#allocation2] sm:$0xf] %vm5248, 0
        %5250 = vst.msk [vmem:[#allocation2 + $0x4] sm:$0xf] %vm5248, 0
        %5251 = vst.msk [vmem:[#allocation2 + $0x8] sm:$0xf] %vm5248, 0
        %5252 = vst.msk [vmem:[#allocation2 + $0xc] sm:$0xf] %vm5248, 0
        %s5253 = scalar_lea.vmem [#allocation2], 272
        %5254 = vst.msk [vmem:[%s5253] sm:$0xf] %vm5248, 0
        %5255 = vst.msk [vmem:[%s5253 + $0x4] sm:$0xf] %vm5248, 0
        %5256 = vst.msk [vmem:[%s5253 + $0x8] sm:$0xf] %vm5248, 0
        %5257 = vst.msk [vmem:[%s5253 + $0xc] sm:$0xf] %vm5248, 0
        %v5258 = vpack.c.bf16 %v5185, %v5184
        %v5259 = vpack.c.bf16 %v5187, %v5186
        %v5260 = vpack.c.bf16 %v5189, %v5188
        %v5261 = vpack.c.bf16 %v5191, %v5190
        %v5262 = vpack.c.bf16 %v5193, %v5192
        %v5263 = vpack.c.bf16 %v5195, %v5194
        %v5264 = vpack.c.bf16 %v5197, %v5196
        %v5265 = vpack.c.bf16 %v5199, %v5198
        %v5266 = vpack.c.bf16 %v5201, %v5200
        %v5267 = vpack.c.bf16 %v5203, %v5202
        %v5268 = vpack.c.bf16 %v5205, %v5204
        %v5269 = vpack.c.bf16 %v5207, %v5206
        %v5270 = vpack.c.bf16 %v5209, %v5208
        %v5271 = vpack.c.bf16 %v5211, %v5210
        %v5272 = vpack.c.bf16 %v5213, %v5212
        %v5273 = vpack.c.bf16 %v5215, %v5214
        %v5274 = vpack.c.bf16 %v5217, %v5216
        %v5275 = vpack.c.bf16 %v5219, %v5218
        %v5276 = vpack.c.bf16 %v5221, %v5220
        %v5277 = vpack.c.bf16 %v5223, %v5222
        %v5278 = vpack.c.bf16 %v5225, %v5224
        %v5279 = vpack.c.bf16 %v5227, %v5226
        %v5280 = vpack.c.bf16 %v5229, %v5228
        %v5281 = vpack.c.bf16 %v5231, %v5230
        %v5282 = vpack.c.bf16 %v5233, %v5232
        %v5283 = vpack.c.bf16 %v5235, %v5234
        %v5284 = vpack.c.bf16 %v5237, %v5236
        %v5285 = vpack.c.bf16 %v5239, %v5238
        %v5286 = vpack.c.bf16 %v5241, %v5240
        %v5287 = vpack.c.bf16 %v5243, %v5242
        %v5288 = vpack.c.bf16 %v5245, %v5244
        %v5289 = vpack.c.bf16 %v5247, %v5246
        %v5322 = vunpack.c.l.b16 %v5258
        %v5323 = vunpack.c.h.b16 %v5258
        %v5324 = vunpack.c.l.b16 %v5259
        %v5325 = vunpack.c.h.b16 %v5259
        %v5326 = vunpack.c.l.b16 %v5260
        %v5327 = vunpack.c.h.b16 %v5260
        %v5328 = vunpack.c.l.b16 %v5261
        %v5329 = vunpack.c.h.b16 %v5261
        %v5330 = vunpack.c.l.b16 %v5262
        %v5331 = vunpack.c.h.b16 %v5262
        %v5332 = vunpack.c.l.b16 %v5263
        %v5333 = vunpack.c.h.b16 %v5263
        %v5334 = vunpack.c.l.b16 %v5264
        %v5335 = vunpack.c.h.b16 %v5264
        %v5336 = vunpack.c.l.b16 %v5265
        %v5337 = vunpack.c.h.b16 %v5265
        %v5338 = vunpack.c.l.b16 %v5266
        %v5339 = vunpack.c.h.b16 %v5266
        %v5340 = vunpack.c.l.b16 %v5267
        %v5341 = vunpack.c.h.b16 %v5267
        %v5342 = vunpack.c.l.b16 %v5268
        %v5343 = vunpack.c.h.b16 %v5268
        %v5344 = vunpack.c.l.b16 %v5269
        %v5345 = vunpack.c.h.b16 %v5269
        %v5346 = vunpack.c.l.b16 %v5270
        %v5347 = vunpack.c.h.b16 %v5270
        %v5348 = vunpack.c.l.b16 %v5271
        %v5349 = vunpack.c.h.b16 %v5271
        %v5350 = vunpack.c.l.b16 %v5272
        %v5351 = vunpack.c.h.b16 %v5272
        %v5352 = vunpack.c.l.b16 %v5273
        %v5353 = vunpack.c.h.b16 %v5273
        %v5354 = vunpack.c.l.b16 %v5274
        %v5355 = vunpack.c.h.b16 %v5274
        %v5356 = vunpack.c.l.b16 %v5275
        %v5357 = vunpack.c.h.b16 %v5275
        %v5358 = vunpack.c.l.b16 %v5276
        %v5359 = vunpack.c.h.b16 %v5276
        %v5360 = vunpack.c.l.b16 %v5277
        %v5361 = vunpack.c.h.b16 %v5277
        %v5362 = vunpack.c.l.b16 %v5278
        %v5363 = vunpack.c.h.b16 %v5278
        %v5364 = vunpack.c.l.b16 %v5279
        %v5365 = vunpack.c.h.b16 %v5279
        %v5366 = vunpack.c.l.b16 %v5280
        %v5367 = vunpack.c.h.b16 %v5280
        %v5368 = vunpack.c.l.b16 %v5281
        %v5369 = vunpack.c.h.b16 %v5281
        %v5370 = vunpack.c.l.b16 %v5282
        %v5371 = vunpack.c.h.b16 %v5282
        %v5372 = vunpack.c.l.b16 %v5283
        %v5373 = vunpack.c.h.b16 %v5283
        %v5374 = vunpack.c.l.b16 %v5284
        %v5375 = vunpack.c.h.b16 %v5284
        %v5376 = vunpack.c.l.b16 %v5285
        %v5377 = vunpack.c.h.b16 %v5285
        %v5378 = vunpack.c.l.b16 %v5286
        %v5379 = vunpack.c.h.b16 %v5286
        %v5380 = vunpack.c.l.b16 %v5287
        %v5381 = vunpack.c.h.b16 %v5287
        %v5382 = vunpack.c.l.b16 %v5288
        %v5383 = vunpack.c.h.b16 %v5288
        %v5384 = vunpack.c.l.b16 %v5289
        %v5385 = vunpack.c.h.b16 %v5289
        %v5386 = vpack.c.b16 %v5322, %v5322
        %v5387 = vpack.c.b16 %v5323, %v5323
        %v5388 = vpack.c.b16 %v5324, %v5324
        %v5389 = vpack.c.b16 %v5325, %v5325
        %v5390 = vpack.c.b16 %v5326, %v5326
        %v5391 = vpack.c.b16 %v5327, %v5327
        %v5392 = vpack.c.b16 %v5328, %v5328
        %v5393 = vpack.c.b16 %v5329, %v5329
        %v5394 = vpack.c.b16 %v5330, %v5330
        %v5395 = vpack.c.b16 %v5331, %v5331
        %v5396 = vpack.c.b16 %v5332, %v5332
        %v5397 = vpack.c.b16 %v5333, %v5333
        %v5398 = vpack.c.b16 %v5334, %v5334
        %v5399 = vpack.c.b16 %v5335, %v5335
        %v5400 = vpack.c.b16 %v5336, %v5336
        %v5401 = vpack.c.b16 %v5337, %v5337
        %v5402 = vpack.c.b16 %v5338, %v5338
        %v5403 = vpack.c.b16 %v5339, %v5339
        %v5404 = vpack.c.b16 %v5340, %v5340
        %v5405 = vpack.c.b16 %v5341, %v5341
        %v5406 = vpack.c.b16 %v5342, %v5342
        %v5407 = vpack.c.b16 %v5343, %v5343
        %v5408 = vpack.c.b16 %v5344, %v5344
        %v5409 = vpack.c.b16 %v5345, %v5345
        %v5410 = vpack.c.b16 %v5346, %v5346
        %v5411 = vpack.c.b16 %v5347, %v5347
        %v5412 = vpack.c.b16 %v5348, %v5348
        %v5413 = vpack.c.b16 %v5349, %v5349
        %v5414 = vpack.c.b16 %v5350, %v5350
        %v5415 = vpack.c.b16 %v5351, %v5351
        %v5416 = vpack.c.b16 %v5352, %v5352
        %v5417 = vpack.c.b16 %v5353, %v5353
        %v5418 = vpack.c.b16 %v5354, %v5354
        %v5419 = vpack.c.b16 %v5355, %v5355
        %v5420 = vpack.c.b16 %v5356, %v5356
        %v5421 = vpack.c.b16 %v5357, %v5357
        %v5422 = vpack.c.b16 %v5358, %v5358
        %v5423 = vpack.c.b16 %v5359, %v5359
        %v5424 = vpack.c.b16 %v5360, %v5360
        %v5425 = vpack.c.b16 %v5361, %v5361
        %v5426 = vpack.c.b16 %v5362, %v5362
        %v5427 = vpack.c.b16 %v5363, %v5363
        %v5428 = vpack.c.b16 %v5364, %v5364
        %v5429 = vpack.c.b16 %v5365, %v5365
        %v5430 = vpack.c.b16 %v5366, %v5366
        %v5431 = vpack.c.b16 %v5367, %v5367
        %v5432 = vpack.c.b16 %v5368, %v5368
        %v5433 = vpack.c.b16 %v5369, %v5369
        %v5434 = vpack.c.b16 %v5370, %v5370
        %v5435 = vpack.c.b16 %v5371, %v5371
        %v5436 = vpack.c.b16 %v5372, %v5372
        %v5437 = vpack.c.b16 %v5373, %v5373
        %v5438 = vpack.c.b16 %v5374, %v5374
        %v5439 = vpack.c.b16 %v5375, %v5375
        %v5440 = vpack.c.b16 %v5376, %v5376
        %v5441 = vpack.c.b16 %v5377, %v5377
        %v5442 = vpack.c.b16 %v5378, %v5378
        %v5443 = vpack.c.b16 %v5379, %v5379
        %v5444 = vpack.c.b16 %v5380, %v5380
        %v5445 = vpack.c.b16 %v5381, %v5381
        %v5446 = vpack.c.b16 %v5382, %v5382
        %v5447 = vpack.c.b16 %v5383, %v5383
        %v5448 = vpack.c.b16 %v5384, %v5384
        %v5449 = vpack.c.b16 %v5385, %v5385
        %s5514 = scalar_lea.vmem [#allocation2], 16
        %5515 = vst.msk [vmem:[%s5514] sm:$0xf] %vm5248, %v5386
        %5516 = vst.msk [vmem:[%s5514 + $0x4] sm:$0xf] %vm5248, %v5387
        %5517 = vst.msk [vmem:[%s5514 + $0x8] sm:$0xf] %vm5248, %v5388
        %5518 = vst.msk [vmem:[%s5514 + $0xc] sm:$0xf] %vm5248, %v5389
        %5519 = vst.msk [vmem:[%s5514 + $0x10] sm:$0xf] %vm5248, %v5390
        %5520 = vst.msk [vmem:[%s5514 + $0x14] sm:$0xf] %vm5248, %v5391
        %5521 = vst.msk [vmem:[%s5514 + $0x18] sm:$0xf] %vm5248, %v5392
        %5522 = vst.msk [vmem:[%s5514 + $0x1c] sm:$0xf] %vm5248, %v5393
        %5523 = vst.msk [vmem:[%s5514 + $0x20] sm:$0xf] %vm5248, %v5394
        %5524 = vst.msk [vmem:[%s5514 + $0x24] sm:$0xf] %vm5248, %v5395
        %5525 = vst.msk [vmem:[%s5514 + $0x28] sm:$0xf] %vm5248, %v5396
        %5526 = vst.msk [vmem:[%s5514 + $0x2c] sm:$0xf] %vm5248, %v5397
        %5527 = vst.msk [vmem:[%s5514 + $0x30] sm:$0xf] %vm5248, %v5398
        %5528 = vst.msk [vmem:[%s5514 + $0x34] sm:$0xf] %vm5248, %v5399
        %5529 = vst.msk [vmem:[%s5514 + $0x38] sm:$0xf] %vm5248, %v5400
        %5530 = vst.msk [vmem:[%s5514 + $0x3c] sm:$0xf] %vm5248, %v5401
        %5531 = vst.msk [vmem:[%s5514 + $0x40] sm:$0xf] %vm5248, %v5402
        %5532 = vst.msk [vmem:[%s5514 + $0x44] sm:$0xf] %vm5248, %v5403
        %5533 = vst.msk [vmem:[%s5514 + $0x48] sm:$0xf] %vm5248, %v5404
        %5534 = vst.msk [vmem:[%s5514 + $0x4c] sm:$0xf] %vm5248, %v5405
        %5535 = vst.msk [vmem:[%s5514 + $0x50] sm:$0xf] %vm5248, %v5406
        %5536 = vst.msk [vmem:[%s5514 + $0x54] sm:$0xf] %vm5248, %v5407
        %5537 = vst.msk [vmem:[%s5514 + $0x58] sm:$0xf] %vm5248, %v5408
        %5538 = vst.msk [vmem:[%s5514 + $0x5c] sm:$0xf] %vm5248, %v5409
        %5539 = vst.msk [vmem:[%s5514 + $0x60] sm:$0xf] %vm5248, %v5410
        %5540 = vst.msk [vmem:[%s5514 + $0x64] sm:$0xf] %vm5248, %v5411
        %5541 = vst.msk [vmem:[%s5514 + $0x68] sm:$0xf] %vm5248, %v5412
        %5542 = vst.msk [vmem:[%s5514 + $0x6c] sm:$0xf] %vm5248, %v5413
        %5543 = vst.msk [vmem:[%s5514 + $0x70] sm:$0xf] %vm5248, %v5414
        %5544 = vst.msk [vmem:[%s5514 + $0x74] sm:$0xf] %vm5248, %v5415
        %5545 = vst.msk [vmem:[%s5514 + $0x78] sm:$0xf] %vm5248, %v5416
        %5546 = vst.msk [vmem:[%s5514 + $0x7c] sm:$0xf] %vm5248, %v5417
        %5547 = vst.msk [vmem:[%s5514 + $0x80] sm:$0xf] %vm5248, %v5418
        %5548 = vst.msk [vmem:[%s5514 + $0x84] sm:$0xf] %vm5248, %v5419
        %5549 = vst.msk [vmem:[%s5514 + $0x88] sm:$0xf] %vm5248, %v5420
        %5550 = vst.msk [vmem:[%s5514 + $0x8c] sm:$0xf] %vm5248, %v5421
        %5551 = vst.msk [vmem:[%s5514 + $0x90] sm:$0xf] %vm5248, %v5422
        %5552 = vst.msk [vmem:[%s5514 + $0x94] sm:$0xf] %vm5248, %v5423
        %5553 = vst.msk [vmem:[%s5514 + $0x98] sm:$0xf] %vm5248, %v5424
        %5554 = vst.msk [vmem:[%s5514 + $0x9c] sm:$0xf] %vm5248, %v5425
        %5555 = vst.msk [vmem:[%s5514 + $0xa0] sm:$0xf] %vm5248, %v5426
        %5556 = vst.msk [vmem:[%s5514 + $0xa4] sm:$0xf] %vm5248, %v5427
        %5557 = vst.msk [vmem:[%s5514 + $0xa8] sm:$0xf] %vm5248, %v5428
        %5558 = vst.msk [vmem:[%s5514 + $0xac] sm:$0xf] %vm5248, %v5429
        %5559 = vst.msk [vmem:[%s5514 + $0xb0] sm:$0xf] %vm5248, %v5430
        %5560 = vst.msk [vmem:[%s5514 + $0xb4] sm:$0xf] %vm5248, %v5431
        %5561 = vst.msk [vmem:[%s5514 + $0xb8] sm:$0xf] %vm5248, %v5432
        %5562 = vst.msk [vmem:[%s5514 + $0xbc] sm:$0xf] %vm5248, %v5433
        %5563 = vst.msk [vmem:[%s5514 + $0xc0] sm:$0xf] %vm5248, %v5434
        %5564 = vst.msk [vmem:[%s5514 + $0xc4] sm:$0xf] %vm5248, %v5435
        %5565 = vst.msk [vmem:[%s5514 + $0xc8] sm:$0xf] %vm5248, %v5436
        %5566 = vst.msk [vmem:[%s5514 + $0xcc] sm:$0xf] %vm5248, %v5437
        %5567 = vst.msk [vmem:[%s5514 + $0xd0] sm:$0xf] %vm5248, %v5438
        %5568 = vst.msk [vmem:[%s5514 + $0xd4] sm:$0xf] %vm5248, %v5439
        %5569 = vst.msk [vmem:[%s5514 + $0xd8] sm:$0xf] %vm5248, %v5440
        %5570 = vst.msk [vmem:[%s5514 + $0xdc] sm:$0xf] %vm5248, %v5441
        %5571 = vst.msk [vmem:[%s5514 + $0xe0] sm:$0xf] %vm5248, %v5442
        %5572 = vst.msk [vmem:[%s5514 + $0xe4] sm:$0xf] %vm5248, %v5443
        %5573 = vst.msk [vmem:[%s5514 + $0xe8] sm:$0xf] %vm5248, %v5444
        %5574 = vst.msk [vmem:[%s5514 + $0xec] sm:$0xf] %vm5248, %v5445
        %5575 = vst.msk [vmem:[%s5514 + $0xf0] sm:$0xf] %vm5248, %v5446
        %5576 = vst.msk [vmem:[%s5514 + $0xf4] sm:$0xf] %vm5248, %v5447
        %5577 = vst.msk [vmem:[%s5514 + $0xf8] sm:$0xf] %vm5248, %v5448
        %5578 = vst.msk [vmem:[%s5514 + $0xfc] sm:$0xf] %vm5248, %v5449
        %v5579 = vld [vmem:[#allocation2] sm:$0xf]
        %v5580 = vld [vmem:[#allocation2 + $0x4] sm:$0xf]
        %v5581 = vld [vmem:[#allocation2 + $0x8] sm:$0xf]
        %v5582 = vld [vmem:[#allocation2 + $0xc] sm:$0xf]
        %v5583 = vld [vmem:[#allocation2 + $0x10] sm:$0xf]
        %v5584 = vld [vmem:[#allocation2 + $0x14] sm:$0xf]
        %v5585 = vld [vmem:[#allocation2 + $0x18] sm:$0xf]
        %v5586 = vld [vmem:[#allocation2 + $0x1c] sm:$0xf]
        %v5587 = vld [vmem:[#allocation2 + $0x20] sm:$0xf]
        %v5588 = vld [vmem:[#allocation2 + $0x24] sm:$0xf]
        %v5589 = vld [vmem:[#allocation2 + $0x28] sm:$0xf]
        %v5590 = vld [vmem:[#allocation2 + $0x2c] sm:$0xf]
        %v5591 = vld [vmem:[#allocation2 + $0x30] sm:$0xf]
        %v5592 = vld [vmem:[#allocation2 + $0x34] sm:$0xf]
        %v5593 = vld [vmem:[#allocation2 + $0x38] sm:$0xf]
        %v5594 = vld [vmem:[#allocation2 + $0x3c] sm:$0xf]
        %v5595 = vld [vmem:[#allocation2 + $0x40] sm:$0xf]
        %v5596 = vld [vmem:[#allocation2 + $0x44] sm:$0xf]
        %v5597 = vld [vmem:[#allocation2 + $0x48] sm:$0xf]
        %v5598 = vld [vmem:[#allocation2 + $0x4c] sm:$0xf]
        %v5599 = vld [vmem:[#allocation2 + $0x50] sm:$0xf]
        %v5600 = vld [vmem:[#allocation2 + $0x54] sm:$0xf]
        %v5601 = vld [vmem:[#allocation2 + $0x58] sm:$0xf]
        %v5602 = vld [vmem:[#allocation2 + $0x5c] sm:$0xf]
        %v5603 = vld [vmem:[#allocation2 + $0x60] sm:$0xf]
        %v5604 = vld [vmem:[#allocation2 + $0x64] sm:$0xf]
        %v5605 = vld [vmem:[#allocation2 + $0x68] sm:$0xf]
        %v5606 = vld [vmem:[#allocation2 + $0x6c] sm:$0xf]
        %v5607 = vld [vmem:[#allocation2 + $0x70] sm:$0xf]
        %v5608 = vld [vmem:[#allocation2 + $0x74] sm:$0xf]
        %v5609 = vld [vmem:[#allocation2 + $0x78] sm:$0xf]
        %v5610 = vld [vmem:[#allocation2 + $0x7c] sm:$0xf]
        %v5611 = vld [vmem:[#allocation2 + $0x80] sm:$0xf]
        %v5612 = vld [vmem:[#allocation2 + $0x84] sm:$0xf]
        %v5613 = vld [vmem:[#allocation2 + $0x88] sm:$0xf]
        %v5614 = vld [vmem:[#allocation2 + $0x8c] sm:$0xf]
        %v5615 = vld [vmem:[#allocation2 + $0x90] sm:$0xf]
        %v5616 = vld [vmem:[#allocation2 + $0x94] sm:$0xf]
        %v5617 = vld [vmem:[#allocation2 + $0x98] sm:$0xf]
        %v5618 = vld [vmem:[#allocation2 + $0x9c] sm:$0xf]
        %v5619 = vld [vmem:[#allocation2 + $0xa0] sm:$0xf]
        %v5620 = vld [vmem:[#allocation2 + $0xa4] sm:$0xf]
        %v5621 = vld [vmem:[#allocation2 + $0xa8] sm:$0xf]
        %v5622 = vld [vmem:[#allocation2 + $0xac] sm:$0xf]
        %v5623 = vld [vmem:[#allocation2 + $0xb0] sm:$0xf]
        %v5624 = vld [vmem:[#allocation2 + $0xb4] sm:$0xf]
        %v5625 = vld [vmem:[#allocation2 + $0xb8] sm:$0xf]
        %v5626 = vld [vmem:[#allocation2 + $0xbc] sm:$0xf]
        %v5627 = vld [vmem:[#allocation2 + $0xc0] sm:$0xf]
        %v5628 = vld [vmem:[#allocation2 + $0xc4] sm:$0xf]
        %v5629 = vld [vmem:[#allocation2 + $0xc8] sm:$0xf]
        %v5630 = vld [vmem:[#allocation2 + $0xcc] sm:$0xf]
        %v5631 = vld [vmem:[#allocation2 + $0xd0] sm:$0xf]
        %v5632 = vld [vmem:[#allocation2 + $0xd4] sm:$0xf]
        %v5633 = vld [vmem:[#allocation2 + $0xd8] sm:$0xf]
        %v5634 = vld [vmem:[#allocation2 + $0xdc] sm:$0xf]
        %v5635 = vld [vmem:[#allocation2 + $0xe0] sm:$0xf]
        %v5636 = vld [vmem:[#allocation2 + $0xe4] sm:$0xf]
        %v5637 = vld [vmem:[#allocation2 + $0xe8] sm:$0xf]
        %v5638 = vld [vmem:[#allocation2 + $0xec] sm:$0xf]
        %v5639 = vld [vmem:[#allocation2 + $0xf0] sm:$0xf]
        %v5640 = vld [vmem:[#allocation2 + $0xf4] sm:$0xf]
        %v5641 = vld [vmem:[#allocation2 + $0xf8] sm:$0xf]
        %v5642 = vld [vmem:[#allocation2 + $0xfc] sm:$0xf]
        %v5643 = vld [vmem:[%s4] sm:$0xf]
        %v5644 = vld [vmem:[%s4 + $0x4] sm:$0xf]
        %s5645 = scalar_lea.vmem %s4, 8
        %v5646 = vld [vmem:[%s5645] sm:$0xf]
        %v5647 = vld [vmem:[%s5645 + $0x4] sm:$0xf]
        %s5648 = scalar_lea.vmem %s4, 16
        %v5649 = vld [vmem:[%s5648] sm:$0xf]
        %v5650 = vld [vmem:[%s5648 + $0x4] sm:$0xf]
        %v5651 = vld [vmem:[%s5514] sm:$0xf]
        %v5652 = vld [vmem:[%s5514 + $0x4] sm:$0xf]
        %v5653 = vld [vmem:[%s5514 + $0x8] sm:$0xf]
        %v5654 = vld [vmem:[%s5514 + $0xc] sm:$0xf]
        %v5655 = vld [vmem:[%s5514 + $0x10] sm:$0xf]
        %v5656 = vld [vmem:[%s5514 + $0x14] sm:$0xf]
        %v5657 = vld [vmem:[%s5514 + $0x18] sm:$0xf]
        %v5658 = vld [vmem:[%s5514 + $0x1c] sm:$0xf]
        %v5659 = vld [vmem:[%s5514 + $0x20] sm:$0xf]
        %v5660 = vld [vmem:[%s5514 + $0x24] sm:$0xf]
        %v5661 = vld [vmem:[%s5514 + $0x28] sm:$0xf]
        %v5662 = vld [vmem:[%s5514 + $0x2c] sm:$0xf]
        %v5663 = vld [vmem:[%s5514 + $0x30] sm:$0xf]
        %v5664 = vld [vmem:[%s5514 + $0x34] sm:$0xf]
        %v5665 = vld [vmem:[%s5514 + $0x38] sm:$0xf]
        %v5666 = vld [vmem:[%s5514 + $0x3c] sm:$0xf]
        %v5667 = vld [vmem:[%s5514 + $0x40] sm:$0xf]
        %v5668 = vld [vmem:[%s5514 + $0x44] sm:$0xf]
        %v5669 = vld [vmem:[%s5514 + $0x48] sm:$0xf]
        %v5670 = vld [vmem:[%s5514 + $0x4c] sm:$0xf]
        %v5671 = vld [vmem:[%s5514 + $0x50] sm:$0xf]
        %v5672 = vld [vmem:[%s5514 + $0x54] sm:$0xf]
        %v5673 = vld [vmem:[%s5514 + $0x58] sm:$0xf]
        %v5674 = vld [vmem:[%s5514 + $0x5c] sm:$0xf]
        %v5675 = vld [vmem:[%s5514 + $0x60] sm:$0xf]
        %v5676 = vld [vmem:[%s5514 + $0x64] sm:$0xf]
        %v5677 = vld [vmem:[%s5514 + $0x68] sm:$0xf]
        %v5678 = vld [vmem:[%s5514 + $0x6c] sm:$0xf]
        %v5679 = vld [vmem:[%s5514 + $0x70] sm:$0xf]
        %v5680 = vld [vmem:[%s5514 + $0x74] sm:$0xf]
        %v5681 = vld [vmem:[%s5514 + $0x78] sm:$0xf]
        %v5682 = vld [vmem:[%s5514 + $0x7c] sm:$0xf]
        %v5683 = vld [vmem:[%s5514 + $0x80] sm:$0xf]
        %v5684 = vld [vmem:[%s5514 + $0x84] sm:$0xf]
        %v5685 = vld [vmem:[%s5514 + $0x88] sm:$0xf]
        %v5686 = vld [vmem:[%s5514 + $0x8c] sm:$0xf]
        %v5687 = vld [vmem:[%s5514 + $0x90] sm:$0xf]
        %v5688 = vld [vmem:[%s5514 + $0x94] sm:$0xf]
        %v5689 = vld [vmem:[%s5514 + $0x98] sm:$0xf]
        %v5690 = vld [vmem:[%s5514 + $0x9c] sm:$0xf]
        %v5691 = vld [vmem:[%s5514 + $0xa0] sm:$0xf]
        %v5692 = vld [vmem:[%s5514 + $0xa4] sm:$0xf]
        %v5693 = vld [vmem:[%s5514 + $0xa8] sm:$0xf]
        %v5694 = vld [vmem:[%s5514 + $0xac] sm:$0xf]
        %v5695 = vld [vmem:[%s5514 + $0xb0] sm:$0xf]
        %v5696 = vld [vmem:[%s5514 + $0xb4] sm:$0xf]
        %v5697 = vld [vmem:[%s5514 + $0xb8] sm:$0xf]
        %v5698 = vld [vmem:[%s5514 + $0xbc] sm:$0xf]
        %v5699 = vld [vmem:[%s5514 + $0xc0] sm:$0xf]
        %v5700 = vld [vmem:[%s5514 + $0xc4] sm:$0xf]
        %v5701 = vld [vmem:[%s5514 + $0xc8] sm:$0xf]
        %v5702 = vld [vmem:[%s5514 + $0xcc] sm:$0xf]
        %v5703 = vld [vmem:[%s5514 + $0xd0] sm:$0xf]
        %v5704 = vld [vmem:[%s5514 + $0xd4] sm:$0xf]
        %v5705 = vld [vmem:[%s5514 + $0xd8] sm:$0xf]
        %v5706 = vld [vmem:[%s5514 + $0xdc] sm:$0xf]
        %v5707 = vld [vmem:[%s5514 + $0xe0] sm:$0xf]
        %v5708 = vld [vmem:[%s5514 + $0xe4] sm:$0xf]
        %v5709 = vld [vmem:[%s5514 + $0xe8] sm:$0xf]
        %v5710 = vld [vmem:[%s5514 + $0xec] sm:$0xf]
        %v5711 = vld [vmem:[%s5514 + $0xf0] sm:$0xf]
        %v5712 = vld [vmem:[%s5514 + $0xf4] sm:$0xf]
        %v5713 = vld [vmem:[%s5514 + $0xf8] sm:$0xf]
        %v5714 = vld [vmem:[%s5514 + $0xfc] sm:$0xf]
        %s5715 = scalar_lea.vmem %s4, 24
        %v5716 = vld [vmem:[%s5715] sm:$0xf]
        %v5717 = vld [vmem:[%s5715 + $0x4] sm:$0xf]
        %v5782 = vunpack.c.l.b16 %v5651
        %v5783 = vunpack.c.l.b16 %v5652
        %v5784 = vunpack.c.l.b16 %v5653
        %v5785 = vunpack.c.l.b16 %v5654
        %v5786 = vunpack.c.l.b16 %v5655
        %v5787 = vunpack.c.l.b16 %v5656
        %v5788 = vunpack.c.l.b16 %v5657
        %v5789 = vunpack.c.l.b16 %v5658
        %v5790 = vunpack.c.l.b16 %v5659
        %v5791 = vunpack.c.l.b16 %v5660
        %v5792 = vunpack.c.l.b16 %v5661
        %v5793 = vunpack.c.l.b16 %v5662
        %v5794 = vunpack.c.l.b16 %v5663
        %v5795 = vunpack.c.l.b16 %v5664
        %v5796 = vunpack.c.l.b16 %v5665
        %v5797 = vunpack.c.l.b16 %v5666
        %v5798 = vunpack.c.l.b16 %v5667
        %v5799 = vunpack.c.l.b16 %v5668
        %v5800 = vunpack.c.l.b16 %v5669
        %v5801 = vunpack.c.l.b16 %v5670
        %v5802 = vunpack.c.l.b16 %v5671
        %v5803 = vunpack.c.l.b16 %v5672
        %v5804 = vunpack.c.l.b16 %v5673
        %v5805 = vunpack.c.l.b16 %v5674
        %v5806 = vunpack.c.l.b16 %v5675
        %v5807 = vunpack.c.l.b16 %v5676
        %v5808 = vunpack.c.l.b16 %v5677
        %v5809 = vunpack.c.l.b16 %v5678
        %v5810 = vunpack.c.l.b16 %v5679
        %v5811 = vunpack.c.l.b16 %v5680
        %v5812 = vunpack.c.l.b16 %v5681
        %v5813 = vunpack.c.l.b16 %v5682
        %v5814 = vunpack.c.l.b16 %v5683
        %v5815 = vunpack.c.l.b16 %v5684
        %v5816 = vunpack.c.l.b16 %v5685
        %v5817 = vunpack.c.l.b16 %v5686
        %v5818 = vunpack.c.l.b16 %v5687
        %v5819 = vunpack.c.l.b16 %v5688
        %v5820 = vunpack.c.l.b16 %v5689
        %v5821 = vunpack.c.l.b16 %v5690
        %v5822 = vunpack.c.l.b16 %v5691
        %v5823 = vunpack.c.l.b16 %v5692
        %v5824 = vunpack.c.l.b16 %v5693
        %v5825 = vunpack.c.l.b16 %v5694
        %v5826 = vunpack.c.l.b16 %v5695
        %v5827 = vunpack.c.l.b16 %v5696
        %v5828 = vunpack.c.l.b16 %v5697
        %v5829 = vunpack.c.l.b16 %v5698
        %v5830 = vunpack.c.l.b16 %v5699
        %v5831 = vunpack.c.l.b16 %v5700
        %v5832 = vunpack.c.l.b16 %v5701
        %v5833 = vunpack.c.l.b16 %v5702
        %v5834 = vunpack.c.l.b16 %v5703
        %v5835 = vunpack.c.l.b16 %v5704
        %v5836 = vunpack.c.l.b16 %v5705
        %v5837 = vunpack.c.l.b16 %v5706
        %v5838 = vunpack.c.l.b16 %v5707
        %v5839 = vunpack.c.l.b16 %v5708
        %v5840 = vunpack.c.l.b16 %v5709
        %v5841 = vunpack.c.l.b16 %v5710
        %v5842 = vunpack.c.l.b16 %v5711
        %v5843 = vunpack.c.l.b16 %v5712
        %v5844 = vunpack.c.l.b16 %v5713
        %v5845 = vunpack.c.l.b16 %v5714
        %v5846 = vpack.c.b16 %v5783, %v5782
        %v5847 = vpack.c.b16 %v5785, %v5784
        %v5848 = vpack.c.b16 %v5787, %v5786
        %v5849 = vpack.c.b16 %v5789, %v5788
        %v5850 = vpack.c.b16 %v5791, %v5790
        %v5851 = vpack.c.b16 %v5793, %v5792
        %v5852 = vpack.c.b16 %v5795, %v5794
        %v5853 = vpack.c.b16 %v5797, %v5796
        %v5854 = vpack.c.b16 %v5799, %v5798
        %v5855 = vpack.c.b16 %v5801, %v5800
        %v5856 = vpack.c.b16 %v5803, %v5802
        %v5857 = vpack.c.b16 %v5805, %v5804
        %v5858 = vpack.c.b16 %v5807, %v5806
        %v5859 = vpack.c.b16 %v5809, %v5808
        %v5860 = vpack.c.b16 %v5811, %v5810
        %v5861 = vpack.c.b16 %v5813, %v5812
        %v5862 = vpack.c.b16 %v5815, %v5814
        %v5863 = vpack.c.b16 %v5817, %v5816
        %v5864 = vpack.c.b16 %v5819, %v5818
        %v5865 = vpack.c.b16 %v5821, %v5820
        %v5866 = vpack.c.b16 %v5823, %v5822
        %v5867 = vpack.c.b16 %v5825, %v5824
        %v5868 = vpack.c.b16 %v5827, %v5826
        %v5869 = vpack.c.b16 %v5829, %v5828
        %v5870 = vpack.c.b16 %v5831, %v5830
        %v5871 = vpack.c.b16 %v5833, %v5832
        %v5872 = vpack.c.b16 %v5835, %v5834
        %v5873 = vpack.c.b16 %v5837, %v5836
        %v5874 = vpack.c.b16 %v5839, %v5838
        %v5875 = vpack.c.b16 %v5841, %v5840
        %v5876 = vpack.c.b16 %v5843, %v5842
        %v5877 = vpack.c.b16 %v5845, %v5844
        %v5880 = vunpack.c.l.b16 %v5716
        %v5881 = vunpack.c.l.b16 %v5717
        %v5882 = vpack.c.b16 %v5881, %v5880
        %vm5884 = vcmask 130048
        %v5886 = vsel %vm5884, %v5846, 0
        %v5889 = vsel %vm5884, %v5847, 0
        %v5892 = vsel %vm5884, %v5848, 0
        %v5895 = vsel %vm5884, %v5849, 0
        %v5898 = vsel %vm5884, %v5850, 0
        %v5901 = vsel %vm5884, %v5851, 0
        %v5904 = vsel %vm5884, %v5852, 0
        %v5907 = vsel %vm5884, %v5853, 0
        %v5910 = vsel %vm5884, %v5854, 0
        %v5913 = vsel %vm5884, %v5855, 0
        %v5916 = vsel %vm5884, %v5856, 0
        %v5919 = vsel %vm5884, %v5857, 0
        %v5922 = vsel %vm5884, %v5858, 0
        %v5925 = vsel %vm5884, %v5859, 0
        %v5928 = vsel %vm5884, %v5860, 0
        %v5931 = vsel %vm5884, %v5861, 0
        %v5934 = vsel %vm5884, %v5862, 0
        %v5937 = vsel %vm5884, %v5863, 0
        %v5940 = vsel %vm5884, %v5864, 0
        %v5943 = vsel %vm5884, %v5865, 0
        %v5946 = vsel %vm5884, %v5866, 0
        %v5949 = vsel %vm5884, %v5867, 0
        %v5952 = vsel %vm5884, %v5868, 0
        %v5955 = vsel %vm5884, %v5869, 0
        %v5958 = vsel %vm5884, %v5870, 0
        %v5961 = vsel %vm5884, %v5871, 0
        %v5964 = vsel %vm5884, %v5872, 0
        %v5967 = vsel %vm5884, %v5873, 0
        %v5970 = vsel %vm5884, %v5874, 0
        %v5973 = vsel %vm5884, %v5875, 0
        %v5976 = vsel %vm5884, %v5876, 0
        %v5979 = vsel %vm5884, %v5877, 0
        %5981 = vmatprep.subr.bf16.mxu0 0
        %5982 = vmatpush1.bf16.msra.mxu0 0
        %5983 = vmatprep.subr.bf16.mxu0 0
        %5984 = vmatpush1.bf16.msra.mxu0 0
        %5985 = vmatprep.subr.bf16.mxu0 0
        %5986 = vmatpush1.bf16.msra.mxu0 0
        %5987 = vmatprep.subr.bf16.mxu0 0
        %5988 = vmatpush1.bf16.msra.mxu0 0
        %5989 = vmatprep.subr.bf16.mxu0 0
        %5990 = vmatpush1.bf16.msra.mxu0 0
        %5991 = vmatprep.subr.bf16.mxu0 0
        %5992 = vmatpush1.bf16.msra.mxu0 0
        %5993 = vmatprep.subr.bf16.mxu0 0
        %5994 = vmatpush1.bf16.msra.mxu0 0
        %5995 = vmatprep.subr.bf16.mxu0 0
        %5996 = vmatpush1.bf16.msra.mxu0 %v5882
        %5997 = vmatprep.subr.bf16.mxu0 0
        %5998 = vmatpush2.bf16.msra.mxu0 0
        %5999 = vmatprep.subr.bf16.mxu0 0
        %6000 = vmatpush2.bf16.msra.mxu0 0
        %6001 = vmatprep.subr.bf16.mxu0 0
        %6002 = vmatpush2.bf16.msra.mxu0 0
        %6003 = vmatprep.subr.bf16.mxu0 0
        %6004 = vmatpush2.bf16.msra.mxu0 0
        %6005 = vmatprep.subr.bf16.mxu0 0
        %6006 = vmatpush2.bf16.msra.mxu0 0
        %6007 = vmatprep.subr.bf16.mxu0 0
        %6008 = vmatpush2.bf16.msra.mxu0 0
        %6009 = vmatprep.subr.bf16.mxu0 0
        %6010 = vmatpush2.bf16.msra.mxu0 0
        %6011 = vmatprep.subr.bf16.mxu0 0
        %6012 = vmatpush2.bf16.msra.mxu0 0
        %6013 = vmatprep.mubr.bf16.mxu0 0
        %6014 = vmatmul.mubr.bf16.gmra.mxu0 %v5886
        %v6015 = vpop.f32.mrf.mxu0
        %v6016 = vadd.f32 0.0, %v6015
        %v6017 = vpop.f32.mrf.mxu0
        %v6018 = vpop.f32.mrf.mxu0
        %v6019 = vadd.f32 0.0, %v6018
        %v6020 = vpop.f32.mrf.mxu0
        %6021 = vmatprep.mubr.bf16.mxu0 0
        %6022 = vmatmul.mubr.bf16.gmra.mxu0 %v5889
        %v6023 = vpop.f32.mrf.mxu0
        %v6024 = vadd.f32 0.0, %v6023
        %v6025 = vpop.f32.mrf.mxu0
        %v6026 = vpop.f32.mrf.mxu0
        %v6027 = vadd.f32 0.0, %v6026
        %v6028 = vpop.f32.mrf.mxu0
        %6029 = vmatprep.mubr.bf16.mxu0 0
        %6030 = vmatmul.mubr.bf16.gmra.mxu0 %v5892
        %v6031 = vpop.f32.mrf.mxu0
        %v6032 = vadd.f32 0.0, %v6031
        %v6033 = vpop.f32.mrf.mxu0
        %v6034 = vpop.f32.mrf.mxu0
        %v6035 = vadd.f32 0.0, %v6034
        %v6036 = vpop.f32.mrf.mxu0
        %6037 = vmatprep.mubr.bf16.mxu0 0
        %6038 = vmatmul.mubr.bf16.gmra.mxu0 %v5895
        %v6039 = vpop.f32.mrf.mxu0
        %v6040 = vadd.f32 0.0, %v6039
        %v6041 = vpop.f32.mrf.mxu0
        %v6042 = vpop.f32.mrf.mxu0
        %v6043 = vadd.f32 0.0, %v6042
        %v6044 = vpop.f32.mrf.mxu0
        %6045 = vmatprep.mubr.bf16.mxu0 0
        %6046 = vmatmul.mubr.bf16.gmra.mxu0 %v5898
        %v6047 = vpop.f32.mrf.mxu0
        %v6048 = vadd.f32 0.0, %v6047
        %v6049 = vpop.f32.mrf.mxu0
        %v6050 = vpop.f32.mrf.mxu0
        %v6051 = vadd.f32 0.0, %v6050
        %v6052 = vpop.f32.mrf.mxu0
        %6053 = vmatprep.mubr.bf16.mxu0 0
        %6054 = vmatmul.mubr.bf16.gmra.mxu0 %v5901
        %v6055 = vpop.f32.mrf.mxu0
        %v6056 = vadd.f32 0.0, %v6055
        %v6057 = vpop.f32.mrf.mxu0
        %v6058 = vpop.f32.mrf.mxu0
        %v6059 = vadd.f32 0.0, %v6058
        %v6060 = vpop.f32.mrf.mxu0
        %6061 = vmatprep.mubr.bf16.mxu0 0
        %6062 = vmatmul.mubr.bf16.gmra.mxu0 %v5904
        %v6063 = vpop.f32.mrf.mxu0
        %v6064 = vadd.f32 0.0, %v6063
        %v6065 = vpop.f32.mrf.mxu0
        %v6066 = vpop.f32.mrf.mxu0
        %v6067 = vadd.f32 0.0, %v6066
        %v6068 = vpop.f32.mrf.mxu0
        %6069 = vmatprep.mubr.bf16.mxu0 0
        %6070 = vmatmul.mubr.bf16.gmra.mxu0 %v5907
        %v6071 = vpop.f32.mrf.mxu0
        %v6072 = vadd.f32 0.0, %v6071
        %v6073 = vpop.f32.mrf.mxu0
        %v6074 = vpop.f32.mrf.mxu0
        %v6075 = vadd.f32 0.0, %v6074
        %v6076 = vpop.f32.mrf.mxu0
        %6077 = vmatprep.mubr.bf16.mxu0 0
        %6078 = vmatmul.mubr.bf16.gmra.mxu0 %v5910
        %v6079 = vpop.f32.mrf.mxu0
        %v6080 = vadd.f32 0.0, %v6079
        %v6081 = vpop.f32.mrf.mxu0
        %v6082 = vpop.f32.mrf.mxu0
        %v6083 = vadd.f32 0.0, %v6082
        %v6084 = vpop.f32.mrf.mxu0
        %6085 = vmatprep.mubr.bf16.mxu0 0
        %6086 = vmatmul.mubr.bf16.gmra.mxu0 %v5913
        %v6087 = vpop.f32.mrf.mxu0
        %v6088 = vadd.f32 0.0, %v6087
        %v6089 = vpop.f32.mrf.mxu0
        %v6090 = vpop.f32.mrf.mxu0
        %v6091 = vadd.f32 0.0, %v6090
        %v6092 = vpop.f32.mrf.mxu0
        %6093 = vmatprep.mubr.bf16.mxu0 0
        %6094 = vmatmul.mubr.bf16.gmra.mxu0 %v5916
        %v6095 = vpop.f32.mrf.mxu0
        %v6096 = vadd.f32 0.0, %v6095
        %v6097 = vpop.f32.mrf.mxu0
        %v6098 = vpop.f32.mrf.mxu0
        %v6099 = vadd.f32 0.0, %v6098
        %v6100 = vpop.f32.mrf.mxu0
        %6101 = vmatprep.mubr.bf16.mxu0 0
        %6102 = vmatmul.mubr.bf16.gmra.mxu0 %v5919
        %v6103 = vpop.f32.mrf.mxu0
        %v6104 = vadd.f32 0.0, %v6103
        %v6105 = vpop.f32.mrf.mxu0
        %v6106 = vpop.f32.mrf.mxu0
        %v6107 = vadd.f32 0.0, %v6106
        %v6108 = vpop.f32.mrf.mxu0
        %6109 = vmatprep.mubr.bf16.mxu0 0
        %6110 = vmatmul.mubr.bf16.gmra.mxu0 %v5922
        %v6111 = vpop.f32.mrf.mxu0
        %v6112 = vadd.f32 0.0, %v6111
        %v6113 = vpop.f32.mrf.mxu0
        %v6114 = vpop.f32.mrf.mxu0
        %v6115 = vadd.f32 0.0, %v6114
        %v6116 = vpop.f32.mrf.mxu0
        %6117 = vmatprep.mubr.bf16.mxu0 0
        %6118 = vmatmul.mubr.bf16.gmra.mxu0 %v5925
        %v6119 = vpop.f32.mrf.mxu0
        %v6120 = vadd.f32 0.0, %v6119
        %v6121 = vpop.f32.mrf.mxu0
        %v6122 = vpop.f32.mrf.mxu0
        %v6123 = vadd.f32 0.0, %v6122
        %v6124 = vpop.f32.mrf.mxu0
        %6125 = vmatprep.mubr.bf16.mxu0 0
        %6126 = vmatmul.mubr.bf16.gmra.mxu0 %v5928
        %v6127 = vpop.f32.mrf.mxu0
        %v6128 = vadd.f32 0.0, %v6127
        %v6129 = vpop.f32.mrf.mxu0
        %v6130 = vpop.f32.mrf.mxu0
        %v6131 = vadd.f32 0.0, %v6130
        %v6132 = vpop.f32.mrf.mxu0
        %6133 = vmatprep.mubr.bf16.mxu0 0
        %6134 = vmatmul.mubr.bf16.gmra.mxu0 %v5931
        %v6135 = vpop.f32.mrf.mxu0
        %v6136 = vadd.f32 0.0, %v6135
        %v6137 = vpop.f32.mrf.mxu0
        %v6138 = vpop.f32.mrf.mxu0
        %v6139 = vadd.f32 0.0, %v6138
        %v6140 = vpop.f32.mrf.mxu0
        %6141 = vmatprep.mubr.bf16.mxu0 0
        %6142 = vmatmul.mubr.bf16.gmra.mxu0 %v5934
        %v6143 = vpop.f32.mrf.mxu0
        %v6144 = vadd.f32 0.0, %v6143
        %v6145 = vpop.f32.mrf.mxu0
        %v6146 = vpop.f32.mrf.mxu0
        %v6147 = vadd.f32 0.0, %v6146
        %v6148 = vpop.f32.mrf.mxu0
        %6149 = vmatprep.mubr.bf16.mxu0 0
        %6150 = vmatmul.mubr.bf16.gmra.mxu0 %v5937
        %v6151 = vpop.f32.mrf.mxu0
        %v6152 = vadd.f32 0.0, %v6151
        %v6153 = vpop.f32.mrf.mxu0
        %v6154 = vpop.f32.mrf.mxu0
        %v6155 = vadd.f32 0.0, %v6154
        %v6156 = vpop.f32.mrf.mxu0
        %6157 = vmatprep.mubr.bf16.mxu0 0
        %6158 = vmatmul.mubr.bf16.gmra.mxu0 %v5940
        %v6159 = vpop.f32.mrf.mxu0
        %v6160 = vadd.f32 0.0, %v6159
        %v6161 = vpop.f32.mrf.mxu0
        %v6162 = vpop.f32.mrf.mxu0
        %v6163 = vadd.f32 0.0, %v6162
        %v6164 = vpop.f32.mrf.mxu0
        %6165 = vmatprep.mubr.bf16.mxu0 0
        %6166 = vmatmul.mubr.bf16.gmra.mxu0 %v5943
        %v6167 = vpop.f32.mrf.mxu0
        %v6168 = vadd.f32 0.0, %v6167
        %v6169 = vpop.f32.mrf.mxu0
        %v6170 = vpop.f32.mrf.mxu0
        %v6171 = vadd.f32 0.0, %v6170
        %v6172 = vpop.f32.mrf.mxu0
        %6173 = vmatprep.mubr.bf16.mxu0 0
        %6174 = vmatmul.mubr.bf16.gmra.mxu0 %v5946
        %v6175 = vpop.f32.mrf.mxu0
        %v6176 = vadd.f32 0.0, %v6175
        %v6177 = vpop.f32.mrf.mxu0
        %v6178 = vpop.f32.mrf.mxu0
        %v6179 = vadd.f32 0.0, %v6178
        %v6180 = vpop.f32.mrf.mxu0
        %6181 = vmatprep.mubr.bf16.mxu0 0
        %6182 = vmatmul.mubr.bf16.gmra.mxu0 %v5949
        %v6183 = vpop.f32.mrf.mxu0
        %v6184 = vadd.f32 0.0, %v6183
        %v6185 = vpop.f32.mrf.mxu0
        %v6186 = vpop.f32.mrf.mxu0
        %v6187 = vadd.f32 0.0, %v6186
        %v6188 = vpop.f32.mrf.mxu0
        %6189 = vmatprep.mubr.bf16.mxu0 0
        %6190 = vmatmul.mubr.bf16.gmra.mxu0 %v5952
        %v6191 = vpop.f32.mrf.mxu0
        %v6192 = vadd.f32 0.0, %v6191
        %v6193 = vpop.f32.mrf.mxu0
        %v6194 = vpop.f32.mrf.mxu0
        %v6195 = vadd.f32 0.0, %v6194
        %v6196 = vpop.f32.mrf.mxu0
        %6197 = vmatprep.mubr.bf16.mxu0 0
        %6198 = vmatmul.mubr.bf16.gmra.mxu0 %v5955
        %v6199 = vpop.f32.mrf.mxu0
        %v6200 = vadd.f32 0.0, %v6199
        %v6201 = vpop.f32.mrf.mxu0
        %v6202 = vpop.f32.mrf.mxu0
        %v6203 = vadd.f32 0.0, %v6202
        %v6204 = vpop.f32.mrf.mxu0
        %6205 = vmatprep.mubr.bf16.mxu0 0
        %6206 = vmatmul.mubr.bf16.gmra.mxu0 %v5958
        %v6207 = vpop.f32.mrf.mxu0
        %v6208 = vadd.f32 0.0, %v6207
        %v6209 = vpop.f32.mrf.mxu0
        %v6210 = vpop.f32.mrf.mxu0
        %v6211 = vadd.f32 0.0, %v6210
        %v6212 = vpop.f32.mrf.mxu0
        %6213 = vmatprep.mubr.bf16.mxu0 0
        %6214 = vmatmul.mubr.bf16.gmra.mxu0 %v5961
        %v6215 = vpop.f32.mrf.mxu0
        %v6216 = vadd.f32 0.0, %v6215
        %v6217 = vpop.f32.mrf.mxu0
        %v6218 = vpop.f32.mrf.mxu0
        %v6219 = vadd.f32 0.0, %v6218
        %v6220 = vpop.f32.mrf.mxu0
        %6221 = vmatprep.mubr.bf16.mxu0 0
        %6222 = vmatmul.mubr.bf16.gmra.mxu0 %v5964
        %v6223 = vpop.f32.mrf.mxu0
        %v6224 = vadd.f32 0.0, %v6223
        %v6225 = vpop.f32.mrf.mxu0
        %v6226 = vpop.f32.mrf.mxu0
        %v6227 = vadd.f32 0.0, %v6226
        %v6228 = vpop.f32.mrf.mxu0
        %6229 = vmatprep.mubr.bf16.mxu0 0
        %6230 = vmatmul.mubr.bf16.gmra.mxu0 %v5967
        %v6231 = vpop.f32.mrf.mxu0
        %v6232 = vadd.f32 0.0, %v6231
        %v6233 = vpop.f32.mrf.mxu0
        %v6234 = vpop.f32.mrf.mxu0
        %v6235 = vadd.f32 0.0, %v6234
        %v6236 = vpop.f32.mrf.mxu0
        %6237 = vmatprep.mubr.bf16.mxu0 0
        %6238 = vmatmul.mubr.bf16.gmra.mxu0 %v5970
        %v6239 = vpop.f32.mrf.mxu0
        %v6240 = vadd.f32 0.0, %v6239
        %v6241 = vpop.f32.mrf.mxu0
        %v6242 = vpop.f32.mrf.mxu0
        %v6243 = vadd.f32 0.0, %v6242
        %v6244 = vpop.f32.mrf.mxu0
        %6245 = vmatprep.mubr.bf16.mxu0 0
        %6246 = vmatmul.mubr.bf16.gmra.mxu0 %v5973
        %v6247 = vpop.f32.mrf.mxu0
        %v6248 = vadd.f32 0.0, %v6247
        %v6249 = vpop.f32.mrf.mxu0
        %v6250 = vpop.f32.mrf.mxu0
        %v6251 = vadd.f32 0.0, %v6250
        %v6252 = vpop.f32.mrf.mxu0
        %6253 = vmatprep.mubr.bf16.mxu0 0
        %6254 = vmatmul.mubr.bf16.gmra.mxu0 %v5976
        %v6255 = vpop.f32.mrf.mxu0
        %v6256 = vadd.f32 0.0, %v6255
        %v6257 = vpop.f32.mrf.mxu0
        %v6258 = vpop.f32.mrf.mxu0
        %v6259 = vadd.f32 0.0, %v6258
        %v6260 = vpop.f32.mrf.mxu0
        %6261 = vmatprep.mubr.bf16.mxu0 0
        %6262 = vmatmul.mubr.bf16.gmra.mxu0 %v5979
        %v6263 = vpop.f32.mrf.mxu0
        %v6264 = vadd.f32 0.0, %v6263
        %v6265 = vpop.f32.mrf.mxu0
        %v6266 = vpop.f32.mrf.mxu0
        %v6267 = vadd.f32 0.0, %v6266
        %v6268 = vpop.f32.mrf.mxu0
        %6269 = vdwg.mxu0
        %v6334 = vunpack.c.l.b16 %v5579
        %v6335 = vunpack.c.l.b16 %v5580
        %v6336 = vunpack.c.l.b16 %v5581
        %v6337 = vunpack.c.l.b16 %v5582
        %v6338 = vunpack.c.l.b16 %v5583
        %v6339 = vunpack.c.l.b16 %v5584
        %v6340 = vunpack.c.l.b16 %v5585
        %v6341 = vunpack.c.l.b16 %v5586
        %v6342 = vunpack.c.l.b16 %v5587
        %v6343 = vunpack.c.l.b16 %v5588
        %v6344 = vunpack.c.l.b16 %v5589
        %v6345 = vunpack.c.l.b16 %v5590
        %v6346 = vunpack.c.l.b16 %v5591
        %v6347 = vunpack.c.l.b16 %v5592
        %v6348 = vunpack.c.l.b16 %v5593
        %v6349 = vunpack.c.l.b16 %v5594
        %v6350 = vunpack.c.l.b16 %v5595
        %v6351 = vunpack.c.l.b16 %v5596
        %v6352 = vunpack.c.l.b16 %v5597
        %v6353 = vunpack.c.l.b16 %v5598
        %v6354 = vunpack.c.l.b16 %v5599
        %v6355 = vunpack.c.l.b16 %v5600
        %v6356 = vunpack.c.l.b16 %v5601
        %v6357 = vunpack.c.l.b16 %v5602
        %v6358 = vunpack.c.l.b16 %v5603
        %v6359 = vunpack.c.l.b16 %v5604
        %v6360 = vunpack.c.l.b16 %v5605
        %v6361 = vunpack.c.l.b16 %v5606
        %v6362 = vunpack.c.l.b16 %v5607
        %v6363 = vunpack.c.l.b16 %v5608
        %v6364 = vunpack.c.l.b16 %v5609
        %v6365 = vunpack.c.l.b16 %v5610
        %v6366 = vunpack.c.l.b16 %v5611
        %v6367 = vunpack.c.l.b16 %v5612
        %v6368 = vunpack.c.l.b16 %v5613
        %v6369 = vunpack.c.l.b16 %v5614
        %v6370 = vunpack.c.l.b16 %v5615
        %v6371 = vunpack.c.l.b16 %v5616
        %v6372 = vunpack.c.l.b16 %v5617
        %v6373 = vunpack.c.l.b16 %v5618
        %v6374 = vunpack.c.l.b16 %v5619
        %v6375 = vunpack.c.l.b16 %v5620
        %v6376 = vunpack.c.l.b16 %v5621
        %v6377 = vunpack.c.l.b16 %v5622
        %v6378 = vunpack.c.l.b16 %v5623
        %v6379 = vunpack.c.l.b16 %v5624
        %v6380 = vunpack.c.l.b16 %v5625
        %v6381 = vunpack.c.l.b16 %v5626
        %v6382 = vunpack.c.l.b16 %v5627
        %v6383 = vunpack.c.l.b16 %v5628
        %v6384 = vunpack.c.l.b16 %v5629
        %v6385 = vunpack.c.l.b16 %v5630
        %v6386 = vunpack.c.l.b16 %v5631
        %v6387 = vunpack.c.l.b16 %v5632
        %v6388 = vunpack.c.l.b16 %v5633
        %v6389 = vunpack.c.l.b16 %v5634
        %v6390 = vunpack.c.l.b16 %v5635
        %v6391 = vunpack.c.l.b16 %v5636
        %v6392 = vunpack.c.l.b16 %v5637
        %v6393 = vunpack.c.l.b16 %v5638
        %v6394 = vunpack.c.l.b16 %v5639
        %v6395 = vunpack.c.l.b16 %v5640
        %v6396 = vunpack.c.l.b16 %v5641
        %v6397 = vunpack.c.l.b16 %v5642
        %v6398 = vpack.c.b16 %v6335, %v6334
        %v6399 = vpack.c.b16 %v6337, %v6336
        %v6400 = vpack.c.b16 %v6339, %v6338
        %v6401 = vpack.c.b16 %v6341, %v6340
        %v6402 = vpack.c.b16 %v6343, %v6342
        %v6403 = vpack.c.b16 %v6345, %v6344
        %v6404 = vpack.c.b16 %v6347, %v6346
        %v6405 = vpack.c.b16 %v6349, %v6348
        %v6406 = vpack.c.b16 %v6351, %v6350
        %v6407 = vpack.c.b16 %v6353, %v6352
        %v6408 = vpack.c.b16 %v6355, %v6354
        %v6409 = vpack.c.b16 %v6357, %v6356
        %v6410 = vpack.c.b16 %v6359, %v6358
        %v6411 = vpack.c.b16 %v6361, %v6360
        %v6412 = vpack.c.b16 %v6363, %v6362
        %v6413 = vpack.c.b16 %v6365, %v6364
        %v6414 = vpack.c.b16 %v6367, %v6366
        %v6415 = vpack.c.b16 %v6369, %v6368
        %v6416 = vpack.c.b16 %v6371, %v6370
        %v6417 = vpack.c.b16 %v6373, %v6372
        %v6418 = vpack.c.b16 %v6375, %v6374
        %v6419 = vpack.c.b16 %v6377, %v6376
        %v6420 = vpack.c.b16 %v6379, %v6378
        %v6421 = vpack.c.b16 %v6381, %v6380
        %v6422 = vpack.c.b16 %v6383, %v6382
        %v6423 = vpack.c.b16 %v6385, %v6384
        %v6424 = vpack.c.b16 %v6387, %v6386
        %v6425 = vpack.c.b16 %v6389, %v6388
        %v6426 = vpack.c.b16 %v6391, %v6390
        %v6427 = vpack.c.b16 %v6393, %v6392
        %v6428 = vpack.c.b16 %v6395, %v6394
        %v6429 = vpack.c.b16 %v6397, %v6396
        %v6432 = vunpack.c.l.b16 %v5643
        %v6433 = vunpack.c.l.b16 %v5644
        %v6434 = vpack.c.b16 %v6433, %v6432
        %v6437 = vsel %vm5884, %v6398, 0
        %v6440 = vsel %vm5884, %v6399, 0
        %v6443 = vsel %vm5884, %v6400, 0
        %v6446 = vsel %vm5884, %v6401, 0
        %v6449 = vsel %vm5884, %v6402, 0
        %v6452 = vsel %vm5884, %v6403, 0
        %v6455 = vsel %vm5884, %v6404, 0
        %v6458 = vsel %vm5884, %v6405, 0
        %v6461 = vsel %vm5884, %v6406, 0
        %v6464 = vsel %vm5884, %v6407, 0
        %v6467 = vsel %vm5884, %v6408, 0
        %v6470 = vsel %vm5884, %v6409, 0
        %v6473 = vsel %vm5884, %v6410, 0
        %v6476 = vsel %vm5884, %v6411, 0
        %v6479 = vsel %vm5884, %v6412, 0
        %v6482 = vsel %vm5884, %v6413, 0
        %v6485 = vsel %vm5884, %v6414, 0
        %v6488 = vsel %vm5884, %v6415, 0
        %v6491 = vsel %vm5884, %v6416, 0
        %v6494 = vsel %vm5884, %v6417, 0
        %v6497 = vsel %vm5884, %v6418, 0
        %v6500 = vsel %vm5884, %v6419, 0
        %v6503 = vsel %vm5884, %v6420, 0
        %v6506 = vsel %vm5884, %v6421, 0
        %v6509 = vsel %vm5884, %v6422, 0
        %v6512 = vsel %vm5884, %v6423, 0
        %v6515 = vsel %vm5884, %v6424, 0
        %v6518 = vsel %vm5884, %v6425, 0
        %v6521 = vsel %vm5884, %v6426, 0
        %v6524 = vsel %vm5884, %v6427, 0
        %v6527 = vsel %vm5884, %v6428, 0
        %v6530 = vsel %vm5884, %v6429, 0
        %6532 = vmatprep.subr.bf16.mxu0 0
        %6533 = vmatpush1.bf16.msra.mxu0 0
        %6534 = vmatprep.subr.bf16.mxu0 0
        %6535 = vmatpush1.bf16.msra.mxu0 0
        %6536 = vmatprep.subr.bf16.mxu0 0
        %6537 = vmatpush1.bf16.msra.mxu0 0
        %6538 = vmatprep.subr.bf16.mxu0 0
        %6539 = vmatpush1.bf16.msra.mxu0 0
        %6540 = vmatprep.subr.bf16.mxu0 0
        %6541 = vmatpush1.bf16.msra.mxu0 0
        %6542 = vmatprep.subr.bf16.mxu0 0
        %6543 = vmatpush1.bf16.msra.mxu0 0
        %6544 = vmatprep.subr.bf16.mxu0 0
        %6545 = vmatpush1.bf16.msra.mxu0 0
        %6546 = vmatprep.subr.bf16.mxu0 0
        %6547 = vmatpush1.bf16.msra.mxu0 %v6434
        %6548 = vmatprep.subr.bf16.mxu0 0
        %6549 = vmatpush2.bf16.msra.mxu0 0
        %6550 = vmatprep.subr.bf16.mxu0 0
        %6551 = vmatpush2.bf16.msra.mxu0 0
        %6552 = vmatprep.subr.bf16.mxu0 0
        %6553 = vmatpush2.bf16.msra.mxu0 0
        %6554 = vmatprep.subr.bf16.mxu0 0
        %6555 = vmatpush2.bf16.msra.mxu0 0
        %6556 = vmatprep.subr.bf16.mxu0 0
        %6557 = vmatpush2.bf16.msra.mxu0 0
        %6558 = vmatprep.subr.bf16.mxu0 0
        %6559 = vmatpush2.bf16.msra.mxu0 0
        %6560 = vmatprep.subr.bf16.mxu0 0
        %6561 = vmatpush2.bf16.msra.mxu0 0
        %6562 = vmatprep.subr.bf16.mxu0 0
        %6563 = vmatpush2.bf16.msra.mxu0 0
        %6564 = vmatprep.mubr.bf16.mxu0 0
        %6565 = vmatmul.mubr.bf16.gmra.mxu0 %v6437
        %v6566 = vpop.f32.mrf.mxu0
        %v6567 = vadd.f32 %v6016, %v6566
        %v6568 = vpop.f32.mrf.mxu0
        %v6569 = vpop.f32.mrf.mxu0
        %v6570 = vadd.f32 %v6019, %v6569
        %v6571 = vpop.f32.mrf.mxu0
        %6572 = vmatprep.mubr.bf16.mxu0 0
        %6573 = vmatmul.mubr.bf16.gmra.mxu0 %v6440
        %v6574 = vpop.f32.mrf.mxu0
        %v6575 = vadd.f32 %v6024, %v6574
        %v6576 = vpop.f32.mrf.mxu0
        %v6577 = vpop.f32.mrf.mxu0
        %v6578 = vadd.f32 %v6027, %v6577
        %v6579 = vpop.f32.mrf.mxu0
        %6580 = vmatprep.mubr.bf16.mxu0 0
        %6581 = vmatmul.mubr.bf16.gmra.mxu0 %v6443
        %v6582 = vpop.f32.mrf.mxu0
        %v6583 = vadd.f32 %v6032, %v6582
        %v6584 = vpop.f32.mrf.mxu0
        %v6585 = vpop.f32.mrf.mxu0
        %v6586 = vadd.f32 %v6035, %v6585
        %v6587 = vpop.f32.mrf.mxu0
        %6588 = vmatprep.mubr.bf16.mxu0 0
        %6589 = vmatmul.mubr.bf16.gmra.mxu0 %v6446
        %v6590 = vpop.f32.mrf.mxu0
        %v6591 = vadd.f32 %v6040, %v6590
        %v6592 = vpop.f32.mrf.mxu0
        %v6593 = vpop.f32.mrf.mxu0
        %v6594 = vadd.f32 %v6043, %v6593
        %v6595 = vpop.f32.mrf.mxu0
        %6596 = vmatprep.mubr.bf16.mxu0 0
        %6597 = vmatmul.mubr.bf16.gmra.mxu0 %v6449
        %v6598 = vpop.f32.mrf.mxu0
        %v6599 = vadd.f32 %v6048, %v6598
        %v6600 = vpop.f32.mrf.mxu0
        %v6601 = vpop.f32.mrf.mxu0
        %v6602 = vadd.f32 %v6051, %v6601
        %v6603 = vpop.f32.mrf.mxu0
        %6604 = vmatprep.mubr.bf16.mxu0 0
        %6605 = vmatmul.mubr.bf16.gmra.mxu0 %v6452
        %v6606 = vpop.f32.mrf.mxu0
        %v6607 = vadd.f32 %v6056, %v6606
        %v6608 = vpop.f32.mrf.mxu0
        %v6609 = vpop.f32.mrf.mxu0
        %v6610 = vadd.f32 %v6059, %v6609
        %v6611 = vpop.f32.mrf.mxu0
        %6612 = vmatprep.mubr.bf16.mxu0 0
        %6613 = vmatmul.mubr.bf16.gmra.mxu0 %v6455
        %v6614 = vpop.f32.mrf.mxu0
        %v6615 = vadd.f32 %v6064, %v6614
        %v6616 = vpop.f32.mrf.mxu0
        %v6617 = vpop.f32.mrf.mxu0
        %v6618 = vadd.f32 %v6067, %v6617
        %v6619 = vpop.f32.mrf.mxu0
        %6620 = vmatprep.mubr.bf16.mxu0 0
        %6621 = vmatmul.mubr.bf16.gmra.mxu0 %v6458
        %v6622 = vpop.f32.mrf.mxu0
        %v6623 = vadd.f32 %v6072, %v6622
        %v6624 = vpop.f32.mrf.mxu0
        %v6625 = vpop.f32.mrf.mxu0
        %v6626 = vadd.f32 %v6075, %v6625
        %v6627 = vpop.f32.mrf.mxu0
        %6628 = vmatprep.mubr.bf16.mxu0 0
        %6629 = vmatmul.mubr.bf16.gmra.mxu0 %v6461
        %v6630 = vpop.f32.mrf.mxu0
        %v6631 = vadd.f32 %v6080, %v6630
        %v6632 = vpop.f32.mrf.mxu0
        %v6633 = vpop.f32.mrf.mxu0
        %v6634 = vadd.f32 %v6083, %v6633
        %v6635 = vpop.f32.mrf.mxu0
        %6636 = vmatprep.mubr.bf16.mxu0 0
        %6637 = vmatmul.mubr.bf16.gmra.mxu0 %v6464
        %v6638 = vpop.f32.mrf.mxu0
        %v6639 = vadd.f32 %v6088, %v6638
        %v6640 = vpop.f32.mrf.mxu0
        %v6641 = vpop.f32.mrf.mxu0
        %v6642 = vadd.f32 %v6091, %v6641
        %v6643 = vpop.f32.mrf.mxu0
        %6644 = vmatprep.mubr.bf16.mxu0 0
        %6645 = vmatmul.mubr.bf16.gmra.mxu0 %v6467
        %v6646 = vpop.f32.mrf.mxu0
        %v6647 = vadd.f32 %v6096, %v6646
        %v6648 = vpop.f32.mrf.mxu0
        %v6649 = vpop.f32.mrf.mxu0
        %v6650 = vadd.f32 %v6099, %v6649
        %v6651 = vpop.f32.mrf.mxu0
        %6652 = vmatprep.mubr.bf16.mxu0 0
        %6653 = vmatmul.mubr.bf16.gmra.mxu0 %v6470
        %v6654 = vpop.f32.mrf.mxu0
        %v6655 = vadd.f32 %v6104, %v6654
        %v6656 = vpop.f32.mrf.mxu0
        %v6657 = vpop.f32.mrf.mxu0
        %v6658 = vadd.f32 %v6107, %v6657
        %v6659 = vpop.f32.mrf.mxu0
        %6660 = vmatprep.mubr.bf16.mxu0 0
        %6661 = vmatmul.mubr.bf16.gmra.mxu0 %v6473
        %v6662 = vpop.f32.mrf.mxu0
        %v6663 = vadd.f32 %v6112, %v6662
        %v6664 = vpop.f32.mrf.mxu0
        %v6665 = vpop.f32.mrf.mxu0
        %v6666 = vadd.f32 %v6115, %v6665
        %v6667 = vpop.f32.mrf.mxu0
        %6668 = vmatprep.mubr.bf16.mxu0 0
        %6669 = vmatmul.mubr.bf16.gmra.mxu0 %v6476
        %v6670 = vpop.f32.mrf.mxu0
        %v6671 = vadd.f32 %v6120, %v6670
        %v6672 = vpop.f32.mrf.mxu0
        %v6673 = vpop.f32.mrf.mxu0
        %v6674 = vadd.f32 %v6123, %v6673
        %v6675 = vpop.f32.mrf.mxu0
        %6676 = vmatprep.mubr.bf16.mxu0 0
        %6677 = vmatmul.mubr.bf16.gmra.mxu0 %v6479
        %v6678 = vpop.f32.mrf.mxu0
        %v6679 = vadd.f32 %v6128, %v6678
        %v6680 = vpop.f32.mrf.mxu0
        %v6681 = vpop.f32.mrf.mxu0
        %v6682 = vadd.f32 %v6131, %v6681
        %v6683 = vpop.f32.mrf.mxu0
        %6684 = vmatprep.mubr.bf16.mxu0 0
        %6685 = vmatmul.mubr.bf16.gmra.mxu0 %v6482
        %v6686 = vpop.f32.mrf.mxu0
        %v6687 = vadd.f32 %v6136, %v6686
        %v6688 = vpop.f32.mrf.mxu0
        %v6689 = vpop.f32.mrf.mxu0
        %v6690 = vadd.f32 %v6139, %v6689
        %v6691 = vpop.f32.mrf.mxu0
        %6692 = vmatprep.mubr.bf16.mxu0 0
        %6693 = vmatmul.mubr.bf16.gmra.mxu0 %v6485
        %v6694 = vpop.f32.mrf.mxu0
        %v6695 = vadd.f32 %v6144, %v6694
        %v6696 = vpop.f32.mrf.mxu0
        %v6697 = vpop.f32.mrf.mxu0
        %v6698 = vadd.f32 %v6147, %v6697
        %v6699 = vpop.f32.mrf.mxu0
        %6700 = vmatprep.mubr.bf16.mxu0 0
        %6701 = vmatmul.mubr.bf16.gmra.mxu0 %v6488
        %v6702 = vpop.f32.mrf.mxu0
        %v6703 = vadd.f32 %v6152, %v6702
        %v6704 = vpop.f32.mrf.mxu0
        %v6705 = vpop.f32.mrf.mxu0
        %v6706 = vadd.f32 %v6155, %v6705
        %v6707 = vpop.f32.mrf.mxu0
        %6708 = vmatprep.mubr.bf16.mxu0 0
        %6709 = vmatmul.mubr.bf16.gmra.mxu0 %v6491
        %v6710 = vpop.f32.mrf.mxu0
        %v6711 = vadd.f32 %v6160, %v6710
        %v6712 = vpop.f32.mrf.mxu0
        %v6713 = vpop.f32.mrf.mxu0
        %v6714 = vadd.f32 %v6163, %v6713
        %v6715 = vpop.f32.mrf.mxu0
        %6716 = vmatprep.mubr.bf16.mxu0 0
        %6717 = vmatmul.mubr.bf16.gmra.mxu0 %v6494
        %v6718 = vpop.f32.mrf.mxu0
        %v6719 = vadd.f32 %v6168, %v6718
        %v6720 = vpop.f32.mrf.mxu0
        %v6721 = vpop.f32.mrf.mxu0
        %v6722 = vadd.f32 %v6171, %v6721
        %v6723 = vpop.f32.mrf.mxu0
        %6724 = vmatprep.mubr.bf16.mxu0 0
        %6725 = vmatmul.mubr.bf16.gmra.mxu0 %v6497
        %v6726 = vpop.f32.mrf.mxu0
        %v6727 = vadd.f32 %v6176, %v6726
        %v6728 = vpop.f32.mrf.mxu0
        %v6729 = vpop.f32.mrf.mxu0
        %v6730 = vadd.f32 %v6179, %v6729
        %v6731 = vpop.f32.mrf.mxu0
        %6732 = vmatprep.mubr.bf16.mxu0 0
        %6733 = vmatmul.mubr.bf16.gmra.mxu0 %v6500
        %v6734 = vpop.f32.mrf.mxu0
        %v6735 = vadd.f32 %v6184, %v6734
        %v6736 = vpop.f32.mrf.mxu0
        %v6737 = vpop.f32.mrf.mxu0
        %v6738 = vadd.f32 %v6187, %v6737
        %v6739 = vpop.f32.mrf.mxu0
        %6740 = vmatprep.mubr.bf16.mxu0 0
        %6741 = vmatmul.mubr.bf16.gmra.mxu0 %v6503
        %v6742 = vpop.f32.mrf.mxu0
        %v6743 = vadd.f32 %v6192, %v6742
        %v6744 = vpop.f32.mrf.mxu0
        %v6745 = vpop.f32.mrf.mxu0
        %v6746 = vadd.f32 %v6195, %v6745
        %v6747 = vpop.f32.mrf.mxu0
        %6748 = vmatprep.mubr.bf16.mxu0 0
        %6749 = vmatmul.mubr.bf16.gmra.mxu0 %v6506
        %v6750 = vpop.f32.mrf.mxu0
        %v6751 = vadd.f32 %v6200, %v6750
        %v6752 = vpop.f32.mrf.mxu0
        %v6753 = vpop.f32.mrf.mxu0
        %v6754 = vadd.f32 %v6203, %v6753
        %v6755 = vpop.f32.mrf.mxu0
        %6756 = vmatprep.mubr.bf16.mxu0 0
        %6757 = vmatmul.mubr.bf16.gmra.mxu0 %v6509
        %v6758 = vpop.f32.mrf.mxu0
        %v6759 = vadd.f32 %v6208, %v6758
        %v6760 = vpop.f32.mrf.mxu0
        %v6761 = vpop.f32.mrf.mxu0
        %v6762 = vadd.f32 %v6211, %v6761
        %v6763 = vpop.f32.mrf.mxu0
        %6764 = vmatprep.mubr.bf16.mxu0 0
        %6765 = vmatmul.mubr.bf16.gmra.mxu0 %v6512
        %v6766 = vpop.f32.mrf.mxu0
        %v6767 = vadd.f32 %v6216, %v6766
        %v6768 = vpop.f32.mrf.mxu0
        %v6769 = vpop.f32.mrf.mxu0
        %v6770 = vadd.f32 %v6219, %v6769
        %v6771 = vpop.f32.mrf.mxu0
        %6772 = vmatprep.mubr.bf16.mxu0 0
        %6773 = vmatmul.mubr.bf16.gmra.mxu0 %v6515
        %v6774 = vpop.f32.mrf.mxu0
        %v6775 = vadd.f32 %v6224, %v6774
        %v6776 = vpop.f32.mrf.mxu0
        %v6777 = vpop.f32.mrf.mxu0
        %v6778 = vadd.f32 %v6227, %v6777
        %v6779 = vpop.f32.mrf.mxu0
        %6780 = vmatprep.mubr.bf16.mxu0 0
        %6781 = vmatmul.mubr.bf16.gmra.mxu0 %v6518
        %v6782 = vpop.f32.mrf.mxu0
        %v6783 = vadd.f32 %v6232, %v6782
        %v6784 = vpop.f32.mrf.mxu0
        %v6785 = vpop.f32.mrf.mxu0
        %v6786 = vadd.f32 %v6235, %v6785
        %v6787 = vpop.f32.mrf.mxu0
        %6788 = vmatprep.mubr.bf16.mxu0 0
        %6789 = vmatmul.mubr.bf16.gmra.mxu0 %v6521
        %v6790 = vpop.f32.mrf.mxu0
        %v6791 = vadd.f32 %v6240, %v6790
        %v6792 = vpop.f32.mrf.mxu0
        %v6793 = vpop.f32.mrf.mxu0
        %v6794 = vadd.f32 %v6243, %v6793
        %v6795 = vpop.f32.mrf.mxu0
        %6796 = vmatprep.mubr.bf16.mxu0 0
        %6797 = vmatmul.mubr.bf16.gmra.mxu0 %v6524
        %v6798 = vpop.f32.mrf.mxu0
        %v6799 = vadd.f32 %v6248, %v6798
        %v6800 = vpop.f32.mrf.mxu0
        %v6801 = vpop.f32.mrf.mxu0
        %v6802 = vadd.f32 %v6251, %v6801
        %v6803 = vpop.f32.mrf.mxu0
        %6804 = vmatprep.mubr.bf16.mxu0 0
        %6805 = vmatmul.mubr.bf16.gmra.mxu0 %v6527
        %v6806 = vpop.f32.mrf.mxu0
        %v6807 = vadd.f32 %v6256, %v6806
        %v6808 = vpop.f32.mrf.mxu0
        %v6809 = vpop.f32.mrf.mxu0
        %v6810 = vadd.f32 %v6259, %v6809
        %v6811 = vpop.f32.mrf.mxu0
        %6812 = vmatprep.mubr.bf16.mxu0 0
        %6813 = vmatmul.mubr.bf16.gmra.mxu0 %v6530
        %v6814 = vpop.f32.mrf.mxu0
        %v6815 = vadd.f32 %v6264, %v6814
        %v6816 = vpop.f32.mrf.mxu0
        %v6817 = vpop.f32.mrf.mxu0
        %v6818 = vadd.f32 %v6267, %v6817
        %v6819 = vpop.f32.mrf.mxu0
        %6820 = vdwg.mxu0
        %s6821 = scalar_lea.vmem %s4, 32
        %v6822 = vld [vmem:[%s6821] sm:$0xf]
        %v6823 = vld [vmem:[%s6821 + $0x4] sm:$0xf]
        %v6826 = vunpack.c.l.b16 %v6822
        %v6827 = vunpack.c.l.b16 %v6823
        %v6828 = vpack.c.b16 %v6827, %v6826
        %6830 = vmatprep.subr.bf16.mxu0 0
        %6831 = vmatpush1.bf16.msra.mxu0 0
        %6832 = vmatprep.subr.bf16.mxu0 0
        %6833 = vmatpush1.bf16.msra.mxu0 0
        %6834 = vmatprep.subr.bf16.mxu0 0
        %6835 = vmatpush1.bf16.msra.mxu0 0
        %6836 = vmatprep.subr.bf16.mxu0 0
        %6837 = vmatpush1.bf16.msra.mxu0 0
        %6838 = vmatprep.subr.bf16.mxu0 0
        %6839 = vmatpush1.bf16.msra.mxu0 0
        %6840 = vmatprep.subr.bf16.mxu0 0
        %6841 = vmatpush1.bf16.msra.mxu0 0
        %6842 = vmatprep.subr.bf16.mxu0 0
        %6843 = vmatpush1.bf16.msra.mxu0 0
        %6844 = vmatprep.subr.bf16.mxu0 0
        %6845 = vmatpush1.bf16.msra.mxu0 %v6828
        %6846 = vmatprep.subr.bf16.mxu0 0
        %6847 = vmatpush2.bf16.msra.mxu0 0
        %6848 = vmatprep.subr.bf16.mxu0 0
        %6849 = vmatpush2.bf16.msra.mxu0 0
        %6850 = vmatprep.subr.bf16.mxu0 0
        %6851 = vmatpush2.bf16.msra.mxu0 0
        %6852 = vmatprep.subr.bf16.mxu0 0
        %6853 = vmatpush2.bf16.msra.mxu0 0
        %6854 = vmatprep.subr.bf16.mxu0 0
        %6855 = vmatpush2.bf16.msra.mxu0 0
        %6856 = vmatprep.subr.bf16.mxu0 0
        %6857 = vmatpush2.bf16.msra.mxu0 0
        %6858 = vmatprep.subr.bf16.mxu0 0
        %6859 = vmatpush2.bf16.msra.mxu0 0
        %6860 = vmatprep.subr.bf16.mxu0 0
        %6861 = vmatpush2.bf16.msra.mxu0 0
        %6862 = vmatprep.mubr.bf16.mxu0 0
        %6863 = vmatmul.mubr.bf16.gmra.mxu0 %v5886
        %v6864 = vpop.f32.mrf.mxu0
        %v6865 = vadd.f32 0.0, %v6864
        %v6866 = vpop.f32.mrf.mxu0
        %v6867 = vpop.f32.mrf.mxu0
        %v6868 = vadd.f32 0.0, %v6867
        %v6869 = vpop.f32.mrf.mxu0
        %6870 = vmatprep.mubr.bf16.mxu0 0
        %6871 = vmatmul.mubr.bf16.gmra.mxu0 %v5889
        %v6872 = vpop.f32.mrf.mxu0
        %v6873 = vadd.f32 0.0, %v6872
        %v6874 = vpop.f32.mrf.mxu0
        %v6875 = vpop.f32.mrf.mxu0
        %v6876 = vadd.f32 0.0, %v6875
        %v6877 = vpop.f32.mrf.mxu0
        %6878 = vmatprep.mubr.bf16.mxu0 0
        %6879 = vmatmul.mubr.bf16.gmra.mxu0 %v5892
        %v6880 = vpop.f32.mrf.mxu0
        %v6881 = vadd.f32 0.0, %v6880
        %v6882 = vpop.f32.mrf.mxu0
        %v6883 = vpop.f32.mrf.mxu0
        %v6884 = vadd.f32 0.0, %v6883
        %v6885 = vpop.f32.mrf.mxu0
        %6886 = vmatprep.mubr.bf16.mxu0 0
        %6887 = vmatmul.mubr.bf16.gmra.mxu0 %v5895
        %v6888 = vpop.f32.mrf.mxu0
        %v6889 = vadd.f32 0.0, %v6888
        %v6890 = vpop.f32.mrf.mxu0
        %v6891 = vpop.f32.mrf.mxu0
        %v6892 = vadd.f32 0.0, %v6891
        %v6893 = vpop.f32.mrf.mxu0
        %6894 = vmatprep.mubr.bf16.mxu0 0
        %6895 = vmatmul.mubr.bf16.gmra.mxu0 %v5898
        %v6896 = vpop.f32.mrf.mxu0
        %v6897 = vadd.f32 0.0, %v6896
        %v6898 = vpop.f32.mrf.mxu0
        %v6899 = vpop.f32.mrf.mxu0
        %v6900 = vadd.f32 0.0, %v6899
        %v6901 = vpop.f32.mrf.mxu0
        %6902 = vmatprep.mubr.bf16.mxu0 0
        %6903 = vmatmul.mubr.bf16.gmra.mxu0 %v5901
        %v6904 = vpop.f32.mrf.mxu0
        %v6905 = vadd.f32 0.0, %v6904
        %v6906 = vpop.f32.mrf.mxu0
        %v6907 = vpop.f32.mrf.mxu0
        %v6908 = vadd.f32 0.0, %v6907
        %v6909 = vpop.f32.mrf.mxu0
        %6910 = vmatprep.mubr.bf16.mxu0 0
        %6911 = vmatmul.mubr.bf16.gmra.mxu0 %v5904
        %v6912 = vpop.f32.mrf.mxu0
        %v6913 = vadd.f32 0.0, %v6912
        %v6914 = vpop.f32.mrf.mxu0
        %v6915 = vpop.f32.mrf.mxu0
        %v6916 = vadd.f32 0.0, %v6915
        %v6917 = vpop.f32.mrf.mxu0
        %6918 = vmatprep.mubr.bf16.mxu0 0
        %6919 = vmatmul.mubr.bf16.gmra.mxu0 %v5907
        %v6920 = vpop.f32.mrf.mxu0
        %v6921 = vadd.f32 0.0, %v6920
        %v6922 = vpop.f32.mrf.mxu0
        %v6923 = vpop.f32.mrf.mxu0
        %v6924 = vadd.f32 0.0, %v6923
        %v6925 = vpop.f32.mrf.mxu0
        %6926 = vmatprep.mubr.bf16.mxu0 0
        %6927 = vmatmul.mubr.bf16.gmra.mxu0 %v5910
        %v6928 = vpop.f32.mrf.mxu0
        %v6929 = vadd.f32 0.0, %v6928
        %v6930 = vpop.f32.mrf.mxu0
        %v6931 = vpop.f32.mrf.mxu0
        %v6932 = vadd.f32 0.0, %v6931
        %v6933 = vpop.f32.mrf.mxu0
        %6934 = vmatprep.mubr.bf16.mxu0 0
        %6935 = vmatmul.mubr.bf16.gmra.mxu0 %v5913
        %v6936 = vpop.f32.mrf.mxu0
        %v6937 = vadd.f32 0.0, %v6936
        %v6938 = vpop.f32.mrf.mxu0
        %v6939 = vpop.f32.mrf.mxu0
        %v6940 = vadd.f32 0.0, %v6939
        %v6941 = vpop.f32.mrf.mxu0
        %6942 = vmatprep.mubr.bf16.mxu0 0
        %6943 = vmatmul.mubr.bf16.gmra.mxu0 %v5916
        %v6944 = vpop.f32.mrf.mxu0
        %v6945 = vadd.f32 0.0, %v6944
        %v6946 = vpop.f32.mrf.mxu0
        %v6947 = vpop.f32.mrf.mxu0
        %v6948 = vadd.f32 0.0, %v6947
        %v6949 = vpop.f32.mrf.mxu0
        %6950 = vmatprep.mubr.bf16.mxu0 0
        %6951 = vmatmul.mubr.bf16.gmra.mxu0 %v5919
        %v6952 = vpop.f32.mrf.mxu0
        %v6953 = vadd.f32 0.0, %v6952
        %v6954 = vpop.f32.mrf.mxu0
        %v6955 = vpop.f32.mrf.mxu0
        %v6956 = vadd.f32 0.0, %v6955
        %v6957 = vpop.f32.mrf.mxu0
        %6958 = vmatprep.mubr.bf16.mxu0 0
        %6959 = vmatmul.mubr.bf16.gmra.mxu0 %v5922
        %v6960 = vpop.f32.mrf.mxu0
        %v6961 = vadd.f32 0.0, %v6960
        %v6962 = vpop.f32.mrf.mxu0
        %v6963 = vpop.f32.mrf.mxu0
        %v6964 = vadd.f32 0.0, %v6963
        %v6965 = vpop.f32.mrf.mxu0
        %6966 = vmatprep.mubr.bf16.mxu0 0
        %6967 = vmatmul.mubr.bf16.gmra.mxu0 %v5925
        %v6968 = vpop.f32.mrf.mxu0
        %v6969 = vadd.f32 0.0, %v6968
        %v6970 = vpop.f32.mrf.mxu0
        %v6971 = vpop.f32.mrf.mxu0
        %v6972 = vadd.f32 0.0, %v6971
        %v6973 = vpop.f32.mrf.mxu0
        %6974 = vmatprep.mubr.bf16.mxu0 0
        %6975 = vmatmul.mubr.bf16.gmra.mxu0 %v5928
        %v6976 = vpop.f32.mrf.mxu0
        %v6977 = vadd.f32 0.0, %v6976
        %v6978 = vpop.f32.mrf.mxu0
        %v6979 = vpop.f32.mrf.mxu0
        %v6980 = vadd.f32 0.0, %v6979
        %v6981 = vpop.f32.mrf.mxu0
        %6982 = vmatprep.mubr.bf16.mxu0 0
        %6983 = vmatmul.mubr.bf16.gmra.mxu0 %v5931
        %v6984 = vpop.f32.mrf.mxu0
        %v6985 = vadd.f32 0.0, %v6984
        %v6986 = vpop.f32.mrf.mxu0
        %v6987 = vpop.f32.mrf.mxu0
        %v6988 = vadd.f32 0.0, %v6987
        %v6989 = vpop.f32.mrf.mxu0
        %6990 = vmatprep.mubr.bf16.mxu0 0
        %6991 = vmatmul.mubr.bf16.gmra.mxu0 %v5934
        %v6992 = vpop.f32.mrf.mxu0
        %v6993 = vadd.f32 0.0, %v6992
        %v6994 = vpop.f32.mrf.mxu0
        %v6995 = vpop.f32.mrf.mxu0
        %v6996 = vadd.f32 0.0, %v6995
        %v6997 = vpop.f32.mrf.mxu0
        %6998 = vmatprep.mubr.bf16.mxu0 0
        %6999 = vmatmul.mubr.bf16.gmra.mxu0 %v5937
        %v7000 = vpop.f32.mrf.mxu0
        %v7001 = vadd.f32 0.0, %v7000
        %v7002 = vpop.f32.mrf.mxu0
        %v7003 = vpop.f32.mrf.mxu0
        %v7004 = vadd.f32 0.0, %v7003
        %v7005 = vpop.f32.mrf.mxu0
        %7006 = vmatprep.mubr.bf16.mxu0 0
        %7007 = vmatmul.mubr.bf16.gmra.mxu0 %v5940
        %v7008 = vpop.f32.mrf.mxu0
        %v7009 = vadd.f32 0.0, %v7008
        %v7010 = vpop.f32.mrf.mxu0
        %v7011 = vpop.f32.mrf.mxu0
        %v7012 = vadd.f32 0.0, %v7011
        %v7013 = vpop.f32.mrf.mxu0
        %7014 = vmatprep.mubr.bf16.mxu0 0
        %7015 = vmatmul.mubr.bf16.gmra.mxu0 %v5943
        %v7016 = vpop.f32.mrf.mxu0
        %v7017 = vadd.f32 0.0, %v7016
        %v7018 = vpop.f32.mrf.mxu0
        %v7019 = vpop.f32.mrf.mxu0
        %v7020 = vadd.f32 0.0, %v7019
        %v7021 = vpop.f32.mrf.mxu0
        %7022 = vmatprep.mubr.bf16.mxu0 0
        %7023 = vmatmul.mubr.bf16.gmra.mxu0 %v5946
        %v7024 = vpop.f32.mrf.mxu0
        %v7025 = vadd.f32 0.0, %v7024
        %v7026 = vpop.f32.mrf.mxu0
        %v7027 = vpop.f32.mrf.mxu0
        %v7028 = vadd.f32 0.0, %v7027
        %v7029 = vpop.f32.mrf.mxu0
        %7030 = vmatprep.mubr.bf16.mxu0 0
        %7031 = vmatmul.mubr.bf16.gmra.mxu0 %v5949
        %v7032 = vpop.f32.mrf.mxu0
        %v7033 = vadd.f32 0.0, %v7032
        %v7034 = vpop.f32.mrf.mxu0
        %v7035 = vpop.f32.mrf.mxu0
        %v7036 = vadd.f32 0.0, %v7035
        %v7037 = vpop.f32.mrf.mxu0
        %7038 = vmatprep.mubr.bf16.mxu0 0
        %7039 = vmatmul.mubr.bf16.gmra.mxu0 %v5952
        %v7040 = vpop.f32.mrf.mxu0
        %v7041 = vadd.f32 0.0, %v7040
        %v7042 = vpop.f32.mrf.mxu0
        %v7043 = vpop.f32.mrf.mxu0
        %v7044 = vadd.f32 0.0, %v7043
        %v7045 = vpop.f32.mrf.mxu0
        %7046 = vmatprep.mubr.bf16.mxu0 0
        %7047 = vmatmul.mubr.bf16.gmra.mxu0 %v5955
        %v7048 = vpop.f32.mrf.mxu0
        %v7049 = vadd.f32 0.0, %v7048
        %v7050 = vpop.f32.mrf.mxu0
        %v7051 = vpop.f32.mrf.mxu0
        %v7052 = vadd.f32 0.0, %v7051
        %v7053 = vpop.f32.mrf.mxu0
        %7054 = vmatprep.mubr.bf16.mxu0 0
        %7055 = vmatmul.mubr.bf16.gmra.mxu0 %v5958
        %v7056 = vpop.f32.mrf.mxu0
        %v7057 = vadd.f32 0.0, %v7056
        %v7058 = vpop.f32.mrf.mxu0
        %v7059 = vpop.f32.mrf.mxu0
        %v7060 = vadd.f32 0.0, %v7059
        %v7061 = vpop.f32.mrf.mxu0
        %7062 = vmatprep.mubr.bf16.mxu0 0
        %7063 = vmatmul.mubr.bf16.gmra.mxu0 %v5961
        %v7064 = vpop.f32.mrf.mxu0
        %v7065 = vadd.f32 0.0, %v7064
        %v7066 = vpop.f32.mrf.mxu0
        %v7067 = vpop.f32.mrf.mxu0
        %v7068 = vadd.f32 0.0, %v7067
        %v7069 = vpop.f32.mrf.mxu0
        %7070 = vmatprep.mubr.bf16.mxu0 0
        %7071 = vmatmul.mubr.bf16.gmra.mxu0 %v5964
        %v7072 = vpop.f32.mrf.mxu0
        %v7073 = vadd.f32 0.0, %v7072
        %v7074 = vpop.f32.mrf.mxu0
        %v7075 = vpop.f32.mrf.mxu0
        %v7076 = vadd.f32 0.0, %v7075
        %v7077 = vpop.f32.mrf.mxu0
        %7078 = vmatprep.mubr.bf16.mxu0 0
        %7079 = vmatmul.mubr.bf16.gmra.mxu0 %v5967
        %v7080 = vpop.f32.mrf.mxu0
        %v7081 = vadd.f32 0.0, %v7080
        %v7082 = vpop.f32.mrf.mxu0
        %v7083 = vpop.f32.mrf.mxu0
        %v7084 = vadd.f32 0.0, %v7083
        %v7085 = vpop.f32.mrf.mxu0
        %7086 = vmatprep.mubr.bf16.mxu0 0
        %7087 = vmatmul.mubr.bf16.gmra.mxu0 %v5970
        %v7088 = vpop.f32.mrf.mxu0
        %v7089 = vadd.f32 0.0, %v7088
        %v7090 = vpop.f32.mrf.mxu0
        %v7091 = vpop.f32.mrf.mxu0
        %v7092 = vadd.f32 0.0, %v7091
        %v7093 = vpop.f32.mrf.mxu0
        %7094 = vmatprep.mubr.bf16.mxu0 0
        %7095 = vmatmul.mubr.bf16.gmra.mxu0 %v5973
        %v7096 = vpop.f32.mrf.mxu0
        %v7097 = vadd.f32 0.0, %v7096
        %v7098 = vpop.f32.mrf.mxu0
        %v7099 = vpop.f32.mrf.mxu0
        %v7100 = vadd.f32 0.0, %v7099
        %v7101 = vpop.f32.mrf.mxu0
        %7102 = vmatprep.mubr.bf16.mxu0 0
        %7103 = vmatmul.mubr.bf16.gmra.mxu0 %v5976
        %v7104 = vpop.f32.mrf.mxu0
        %v7105 = vadd.f32 0.0, %v7104
        %v7106 = vpop.f32.mrf.mxu0
        %v7107 = vpop.f32.mrf.mxu0
        %v7108 = vadd.f32 0.0, %v7107
        %v7109 = vpop.f32.mrf.mxu0
        %7110 = vmatprep.mubr.bf16.mxu0 0
        %7111 = vmatmul.mubr.bf16.gmra.mxu0 %v5979
        %v7112 = vpop.f32.mrf.mxu0
        %v7113 = vadd.f32 0.0, %v7112
        %v7114 = vpop.f32.mrf.mxu0
        %v7115 = vpop.f32.mrf.mxu0
        %v7116 = vadd.f32 0.0, %v7115
        %v7117 = vpop.f32.mrf.mxu0
        %7118 = vdwg.mxu0
        %v7121 = vunpack.c.l.b16 %v5646
        %v7122 = vunpack.c.l.b16 %v5647
        %v7123 = vpack.c.b16 %v7122, %v7121
        %7125 = vmatprep.subr.bf16.mxu0 0
        %7126 = vmatpush1.bf16.msra.mxu0 0
        %7127 = vmatprep.subr.bf16.mxu0 0
        %7128 = vmatpush1.bf16.msra.mxu0 0
        %7129 = vmatprep.subr.bf16.mxu0 0
        %7130 = vmatpush1.bf16.msra.mxu0 0
        %7131 = vmatprep.subr.bf16.mxu0 0
        %7132 = vmatpush1.bf16.msra.mxu0 0
        %7133 = vmatprep.subr.bf16.mxu0 0
        %7134 = vmatpush1.bf16.msra.mxu0 0
        %7135 = vmatprep.subr.bf16.mxu0 0
        %7136 = vmatpush1.bf16.msra.mxu0 0
        %7137 = vmatprep.subr.bf16.mxu0 0
        %7138 = vmatpush1.bf16.msra.mxu0 0
        %7139 = vmatprep.subr.bf16.mxu0 0
        %7140 = vmatpush1.bf16.msra.mxu0 %v7123
        %7141 = vmatprep.subr.bf16.mxu0 0
        %7142 = vmatpush2.bf16.msra.mxu0 0
        %7143 = vmatprep.subr.bf16.mxu0 0
        %7144 = vmatpush2.bf16.msra.mxu0 0
        %7145 = vmatprep.subr.bf16.mxu0 0
        %7146 = vmatpush2.bf16.msra.mxu0 0
        %7147 = vmatprep.subr.bf16.mxu0 0
        %7148 = vmatpush2.bf16.msra.mxu0 0
        %7149 = vmatprep.subr.bf16.mxu0 0
        %7150 = vmatpush2.bf16.msra.mxu0 0
        %7151 = vmatprep.subr.bf16.mxu0 0
        %7152 = vmatpush2.bf16.msra.mxu0 0
        %7153 = vmatprep.subr.bf16.mxu0 0
        %7154 = vmatpush2.bf16.msra.mxu0 0
        %7155 = vmatprep.subr.bf16.mxu0 0
        %7156 = vmatpush2.bf16.msra.mxu0 0
        %7157 = vmatprep.mubr.bf16.mxu0 0
        %7158 = vmatmul.mubr.bf16.gmra.mxu0 %v6437
        %v7159 = vpop.f32.mrf.mxu0
        %v7160 = vadd.f32 %v6865, %v7159
        %v7161 = vpop.f32.mrf.mxu0
        %v7162 = vpop.f32.mrf.mxu0
        %v7163 = vadd.f32 %v6868, %v7162
        %v7164 = vpop.f32.mrf.mxu0
        %7165 = vmatprep.mubr.bf16.mxu0 0
        %7166 = vmatmul.mubr.bf16.gmra.mxu0 %v6440
        %v7167 = vpop.f32.mrf.mxu0
        %v7168 = vadd.f32 %v6873, %v7167
        %v7169 = vpop.f32.mrf.mxu0
        %v7170 = vpop.f32.mrf.mxu0
        %v7171 = vadd.f32 %v6876, %v7170
        %v7172 = vpop.f32.mrf.mxu0
        %7173 = vmatprep.mubr.bf16.mxu0 0
        %7174 = vmatmul.mubr.bf16.gmra.mxu0 %v6443
        %v7175 = vpop.f32.mrf.mxu0
        %v7176 = vadd.f32 %v6881, %v7175
        %v7177 = vpop.f32.mrf.mxu0
        %v7178 = vpop.f32.mrf.mxu0
        %v7179 = vadd.f32 %v6884, %v7178
        %v7180 = vpop.f32.mrf.mxu0
        %7181 = vmatprep.mubr.bf16.mxu0 0
        %7182 = vmatmul.mubr.bf16.gmra.mxu0 %v6446
        %v7183 = vpop.f32.mrf.mxu0
        %v7184 = vadd.f32 %v6889, %v7183
        %v7185 = vpop.f32.mrf.mxu0
        %v7186 = vpop.f32.mrf.mxu0
        %v7187 = vadd.f32 %v6892, %v7186
        %v7188 = vpop.f32.mrf.mxu0
        %7189 = vmatprep.mubr.bf16.mxu0 0
        %7190 = vmatmul.mubr.bf16.gmra.mxu0 %v6449
        %v7191 = vpop.f32.mrf.mxu0
        %v7192 = vadd.f32 %v6897, %v7191
        %v7193 = vpop.f32.mrf.mxu0
        %v7194 = vpop.f32.mrf.mxu0
        %v7195 = vadd.f32 %v6900, %v7194
        %v7196 = vpop.f32.mrf.mxu0
        %7197 = vmatprep.mubr.bf16.mxu0 0
        %7198 = vmatmul.mubr.bf16.gmra.mxu0 %v6452
        %v7199 = vpop.f32.mrf.mxu0
        %v7200 = vadd.f32 %v6905, %v7199
        %v7201 = vpop.f32.mrf.mxu0
        %v7202 = vpop.f32.mrf.mxu0
        %v7203 = vadd.f32 %v6908, %v7202
        %v7204 = vpop.f32.mrf.mxu0
        %7205 = vmatprep.mubr.bf16.mxu0 0
        %7206 = vmatmul.mubr.bf16.gmra.mxu0 %v6455
        %v7207 = vpop.f32.mrf.mxu0
        %v7208 = vadd.f32 %v6913, %v7207
        %v7209 = vpop.f32.mrf.mxu0
        %v7210 = vpop.f32.mrf.mxu0
        %v7211 = vadd.f32 %v6916, %v7210
        %v7212 = vpop.f32.mrf.mxu0
        %7213 = vmatprep.mubr.bf16.mxu0 0
        %7214 = vmatmul.mubr.bf16.gmra.mxu0 %v6458
        %v7215 = vpop.f32.mrf.mxu0
        %v7216 = vadd.f32 %v6921, %v7215
        %v7217 = vpop.f32.mrf.mxu0
        %v7218 = vpop.f32.mrf.mxu0
        %v7219 = vadd.f32 %v6924, %v7218
        %v7220 = vpop.f32.mrf.mxu0
        %7221 = vmatprep.mubr.bf16.mxu0 0
        %7222 = vmatmul.mubr.bf16.gmra.mxu0 %v6461
        %v7223 = vpop.f32.mrf.mxu0
        %v7224 = vadd.f32 %v6929, %v7223
        %v7225 = vpop.f32.mrf.mxu0
        %v7226 = vpop.f32.mrf.mxu0
        %v7227 = vadd.f32 %v6932, %v7226
        %v7228 = vpop.f32.mrf.mxu0
        %7229 = vmatprep.mubr.bf16.mxu0 0
        %7230 = vmatmul.mubr.bf16.gmra.mxu0 %v6464
        %v7231 = vpop.f32.mrf.mxu0
        %v7232 = vadd.f32 %v6937, %v7231
        %v7233 = vpop.f32.mrf.mxu0
        %v7234 = vpop.f32.mrf.mxu0
        %v7235 = vadd.f32 %v6940, %v7234
        %v7236 = vpop.f32.mrf.mxu0
        %7237 = vmatprep.mubr.bf16.mxu0 0
        %7238 = vmatmul.mubr.bf16.gmra.mxu0 %v6467
        %v7239 = vpop.f32.mrf.mxu0
        %v7240 = vadd.f32 %v6945, %v7239
        %v7241 = vpop.f32.mrf.mxu0
        %v7242 = vpop.f32.mrf.mxu0
        %v7243 = vadd.f32 %v6948, %v7242
        %v7244 = vpop.f32.mrf.mxu0
        %7245 = vmatprep.mubr.bf16.mxu0 0
        %7246 = vmatmul.mubr.bf16.gmra.mxu0 %v6470
        %v7247 = vpop.f32.mrf.mxu0
        %v7248 = vadd.f32 %v6953, %v7247
        %v7249 = vpop.f32.mrf.mxu0
        %v7250 = vpop.f32.mrf.mxu0
        %v7251 = vadd.f32 %v6956, %v7250
        %v7252 = vpop.f32.mrf.mxu0
        %7253 = vmatprep.mubr.bf16.mxu0 0
        %7254 = vmatmul.mubr.bf16.gmra.mxu0 %v6473
        %v7255 = vpop.f32.mrf.mxu0
        %v7256 = vadd.f32 %v6961, %v7255
        %v7257 = vpop.f32.mrf.mxu0
        %v7258 = vpop.f32.mrf.mxu0
        %v7259 = vadd.f32 %v6964, %v7258
        %v7260 = vpop.f32.mrf.mxu0
        %7261 = vmatprep.mubr.bf16.mxu0 0
        %7262 = vmatmul.mubr.bf16.gmra.mxu0 %v6476
        %v7263 = vpop.f32.mrf.mxu0
        %v7264 = vadd.f32 %v6969, %v7263
        %v7265 = vpop.f32.mrf.mxu0
        %v7266 = vpop.f32.mrf.mxu0
        %v7267 = vadd.f32 %v6972, %v7266
        %v7268 = vpop.f32.mrf.mxu0
        %7269 = vmatprep.mubr.bf16.mxu0 0
        %7270 = vmatmul.mubr.bf16.gmra.mxu0 %v6479
        %v7271 = vpop.f32.mrf.mxu0
        %v7272 = vadd.f32 %v6977, %v7271
        %v7273 = vpop.f32.mrf.mxu0
        %v7274 = vpop.f32.mrf.mxu0
        %v7275 = vadd.f32 %v6980, %v7274
        %v7276 = vpop.f32.mrf.mxu0
        %7277 = vmatprep.mubr.bf16.mxu0 0
        %7278 = vmatmul.mubr.bf16.gmra.mxu0 %v6482
        %v7279 = vpop.f32.mrf.mxu0
        %v7280 = vadd.f32 %v6985, %v7279
        %v7281 = vpop.f32.mrf.mxu0
        %v7282 = vpop.f32.mrf.mxu0
        %v7283 = vadd.f32 %v6988, %v7282
        %v7284 = vpop.f32.mrf.mxu0
        %7285 = vmatprep.mubr.bf16.mxu0 0
        %7286 = vmatmul.mubr.bf16.gmra.mxu0 %v6485
        %v7287 = vpop.f32.mrf.mxu0
        %v7288 = vadd.f32 %v6993, %v7287
        %v7289 = vpop.f32.mrf.mxu0
        %v7290 = vpop.f32.mrf.mxu0
        %v7291 = vadd.f32 %v6996, %v7290
        %v7292 = vpop.f32.mrf.mxu0
        %7293 = vmatprep.mubr.bf16.mxu0 0
        %7294 = vmatmul.mubr.bf16.gmra.mxu0 %v6488
        %v7295 = vpop.f32.mrf.mxu0
        %v7296 = vadd.f32 %v7001, %v7295
        %v7297 = vpop.f32.mrf.mxu0
        %v7298 = vpop.f32.mrf.mxu0
        %v7299 = vadd.f32 %v7004, %v7298
        %v7300 = vpop.f32.mrf.mxu0
        %7301 = vmatprep.mubr.bf16.mxu0 0
        %7302 = vmatmul.mubr.bf16.gmra.mxu0 %v6491
        %v7303 = vpop.f32.mrf.mxu0
        %v7304 = vadd.f32 %v7009, %v7303
        %v7305 = vpop.f32.mrf.mxu0
        %v7306 = vpop.f32.mrf.mxu0
        %v7307 = vadd.f32 %v7012, %v7306
        %v7308 = vpop.f32.mrf.mxu0
        %7309 = vmatprep.mubr.bf16.mxu0 0
        %7310 = vmatmul.mubr.bf16.gmra.mxu0 %v6494
        %v7311 = vpop.f32.mrf.mxu0
        %v7312 = vadd.f32 %v7017, %v7311
        %v7313 = vpop.f32.mrf.mxu0
        %v7314 = vpop.f32.mrf.mxu0
        %v7315 = vadd.f32 %v7020, %v7314
        %v7316 = vpop.f32.mrf.mxu0
        %7317 = vmatprep.mubr.bf16.mxu0 0
        %7318 = vmatmul.mubr.bf16.gmra.mxu0 %v6497
        %v7319 = vpop.f32.mrf.mxu0
        %v7320 = vadd.f32 %v7025, %v7319
        %v7321 = vpop.f32.mrf.mxu0
        %v7322 = vpop.f32.mrf.mxu0
        %v7323 = vadd.f32 %v7028, %v7322
        %v7324 = vpop.f32.mrf.mxu0
        %7325 = vmatprep.mubr.bf16.mxu0 0
        %7326 = vmatmul.mubr.bf16.gmra.mxu0 %v6500
        %v7327 = vpop.f32.mrf.mxu0
        %v7328 = vadd.f32 %v7033, %v7327
        %v7329 = vpop.f32.mrf.mxu0
        %v7330 = vpop.f32.mrf.mxu0
        %v7331 = vadd.f32 %v7036, %v7330
        %v7332 = vpop.f32.mrf.mxu0
        %7333 = vmatprep.mubr.bf16.mxu0 0
        %7334 = vmatmul.mubr.bf16.gmra.mxu0 %v6503
        %v7335 = vpop.f32.mrf.mxu0
        %v7336 = vadd.f32 %v7041, %v7335
        %v7337 = vpop.f32.mrf.mxu0
        %v7338 = vpop.f32.mrf.mxu0
        %v7339 = vadd.f32 %v7044, %v7338
        %v7340 = vpop.f32.mrf.mxu0
        %7341 = vmatprep.mubr.bf16.mxu0 0
        %7342 = vmatmul.mubr.bf16.gmra.mxu0 %v6506
        %v7343 = vpop.f32.mrf.mxu0
        %v7344 = vadd.f32 %v7049, %v7343
        %v7345 = vpop.f32.mrf.mxu0
        %v7346 = vpop.f32.mrf.mxu0
        %v7347 = vadd.f32 %v7052, %v7346
        %v7348 = vpop.f32.mrf.mxu0
        %7349 = vmatprep.mubr.bf16.mxu0 0
        %7350 = vmatmul.mubr.bf16.gmra.mxu0 %v6509
        %v7351 = vpop.f32.mrf.mxu0
        %v7352 = vadd.f32 %v7057, %v7351
        %v7353 = vpop.f32.mrf.mxu0
        %v7354 = vpop.f32.mrf.mxu0
        %v7355 = vadd.f32 %v7060, %v7354
        %v7356 = vpop.f32.mrf.mxu0
        %7357 = vmatprep.mubr.bf16.mxu0 0
        %7358 = vmatmul.mubr.bf16.gmra.mxu0 %v6512
        %v7359 = vpop.f32.mrf.mxu0
        %v7360 = vadd.f32 %v7065, %v7359
        %v7361 = vpop.f32.mrf.mxu0
        %v7362 = vpop.f32.mrf.mxu0
        %v7363 = vadd.f32 %v7068, %v7362
        %v7364 = vpop.f32.mrf.mxu0
        %7365 = vmatprep.mubr.bf16.mxu0 0
        %7366 = vmatmul.mubr.bf16.gmra.mxu0 %v6515
        %v7367 = vpop.f32.mrf.mxu0
        %v7368 = vadd.f32 %v7073, %v7367
        %v7369 = vpop.f32.mrf.mxu0
        %v7370 = vpop.f32.mrf.mxu0
        %v7371 = vadd.f32 %v7076, %v7370
        %v7372 = vpop.f32.mrf.mxu0
        %7373 = vmatprep.mubr.bf16.mxu0 0
        %7374 = vmatmul.mubr.bf16.gmra.mxu0 %v6518
        %v7375 = vpop.f32.mrf.mxu0
        %v7376 = vadd.f32 %v7081, %v7375
        %v7377 = vpop.f32.mrf.mxu0
        %v7378 = vpop.f32.mrf.mxu0
        %v7379 = vadd.f32 %v7084, %v7378
        %v7380 = vpop.f32.mrf.mxu0
        %7381 = vmatprep.mubr.bf16.mxu0 0
        %7382 = vmatmul.mubr.bf16.gmra.mxu0 %v6521
        %v7383 = vpop.f32.mrf.mxu0
        %v7384 = vadd.f32 %v7089, %v7383
        %v7385 = vpop.f32.mrf.mxu0
        %v7386 = vpop.f32.mrf.mxu0
        %v7387 = vadd.f32 %v7092, %v7386
        %v7388 = vpop.f32.mrf.mxu0
        %7389 = vmatprep.mubr.bf16.mxu0 0
        %7390 = vmatmul.mubr.bf16.gmra.mxu0 %v6524
        %v7391 = vpop.f32.mrf.mxu0
        %v7392 = vadd.f32 %v7097, %v7391
        %v7393 = vpop.f32.mrf.mxu0
        %v7394 = vpop.f32.mrf.mxu0
        %v7395 = vadd.f32 %v7100, %v7394
        %v7396 = vpop.f32.mrf.mxu0
        %7397 = vmatprep.mubr.bf16.mxu0 0
        %7398 = vmatmul.mubr.bf16.gmra.mxu0 %v6527
        %v7399 = vpop.f32.mrf.mxu0
        %v7400 = vadd.f32 %v7105, %v7399
        %v7401 = vpop.f32.mrf.mxu0
        %v7402 = vpop.f32.mrf.mxu0
        %v7403 = vadd.f32 %v7108, %v7402
        %v7404 = vpop.f32.mrf.mxu0
        %7405 = vmatprep.mubr.bf16.mxu0 0
        %7406 = vmatmul.mubr.bf16.gmra.mxu0 %v6530
        %v7407 = vpop.f32.mrf.mxu0
        %v7408 = vadd.f32 %v7113, %v7407
        %v7409 = vpop.f32.mrf.mxu0
        %v7410 = vpop.f32.mrf.mxu0
        %v7411 = vadd.f32 %v7116, %v7410
        %v7412 = vpop.f32.mrf.mxu0
        %7413 = vdwg.mxu0
        %s7414 = scalar_lea.vmem %s4, 40
        %v7415 = vld [vmem:[%s7414] sm:$0xf]
        %v7416 = vld [vmem:[%s7414 + $0x4] sm:$0xf]
        %v7419 = vunpack.c.l.b16 %v7415
        %v7420 = vunpack.c.l.b16 %v7416
        %v7421 = vpack.c.b16 %v7420, %v7419
        %7423 = vmatprep.subr.bf16.mxu0 0
        %7424 = vmatpush1.bf16.msra.mxu0 0
        %7425 = vmatprep.subr.bf16.mxu0 0
        %7426 = vmatpush1.bf16.msra.mxu0 0
        %7427 = vmatprep.subr.bf16.mxu0 0
        %7428 = vmatpush1.bf16.msra.mxu0 0
        %7429 = vmatprep.subr.bf16.mxu0 0
        %7430 = vmatpush1.bf16.msra.mxu0 0
        %7431 = vmatprep.subr.bf16.mxu0 0
        %7432 = vmatpush1.bf16.msra.mxu0 0
        %7433 = vmatprep.subr.bf16.mxu0 0
        %7434 = vmatpush1.bf16.msra.mxu0 0
        %7435 = vmatprep.subr.bf16.mxu0 0
        %7436 = vmatpush1.bf16.msra.mxu0 0
        %7437 = vmatprep.subr.bf16.mxu0 0
        %7438 = vmatpush1.bf16.msra.mxu0 %v7421
        %7439 = vmatprep.subr.bf16.mxu0 0
        %7440 = vmatpush2.bf16.msra.mxu0 0
        %7441 = vmatprep.subr.bf16.mxu0 0
        %7442 = vmatpush2.bf16.msra.mxu0 0
        %7443 = vmatprep.subr.bf16.mxu0 0
        %7444 = vmatpush2.bf16.msra.mxu0 0
        %7445 = vmatprep.subr.bf16.mxu0 0
        %7446 = vmatpush2.bf16.msra.mxu0 0
        %7447 = vmatprep.subr.bf16.mxu0 0
        %7448 = vmatpush2.bf16.msra.mxu0 0
        %7449 = vmatprep.subr.bf16.mxu0 0
        %7450 = vmatpush2.bf16.msra.mxu0 0
        %7451 = vmatprep.subr.bf16.mxu0 0
        %7452 = vmatpush2.bf16.msra.mxu0 0
        %7453 = vmatprep.subr.bf16.mxu0 0
        %7454 = vmatpush2.bf16.msra.mxu0 0
        %7455 = vmatprep.mubr.bf16.mxu0 0
        %7456 = vmatmul.mubr.bf16.gmra.mxu0 %v5886
        %v7457 = vpop.f32.mrf.mxu0
        %v7458 = vadd.f32 0.0, %v7457
        %v7459 = vpop.f32.mrf.mxu0
        %v7460 = vpop.f32.mrf.mxu0
        %v7461 = vadd.f32 0.0, %v7460
        %v7462 = vpop.f32.mrf.mxu0
        %7463 = vmatprep.mubr.bf16.mxu0 0
        %7464 = vmatmul.mubr.bf16.gmra.mxu0 %v5889
        %v7465 = vpop.f32.mrf.mxu0
        %v7466 = vadd.f32 0.0, %v7465
        %v7467 = vpop.f32.mrf.mxu0
        %v7468 = vpop.f32.mrf.mxu0
        %v7469 = vadd.f32 0.0, %v7468
        %v7470 = vpop.f32.mrf.mxu0
        %7471 = vmatprep.mubr.bf16.mxu0 0
        %7472 = vmatmul.mubr.bf16.gmra.mxu0 %v5892
        %v7473 = vpop.f32.mrf.mxu0
        %v7474 = vadd.f32 0.0, %v7473
        %v7475 = vpop.f32.mrf.mxu0
        %v7476 = vpop.f32.mrf.mxu0
        %v7477 = vadd.f32 0.0, %v7476
        %v7478 = vpop.f32.mrf.mxu0
        %7479 = vmatprep.mubr.bf16.mxu0 0
        %7480 = vmatmul.mubr.bf16.gmra.mxu0 %v5895
        %v7481 = vpop.f32.mrf.mxu0
        %v7482 = vadd.f32 0.0, %v7481
        %v7483 = vpop.f32.mrf.mxu0
        %v7484 = vpop.f32.mrf.mxu0
        %v7485 = vadd.f32 0.0, %v7484
        %v7486 = vpop.f32.mrf.mxu0
        %7487 = vmatprep.mubr.bf16.mxu0 0
        %7488 = vmatmul.mubr.bf16.gmra.mxu0 %v5898
        %v7489 = vpop.f32.mrf.mxu0
        %v7490 = vadd.f32 0.0, %v7489
        %v7491 = vpop.f32.mrf.mxu0
        %v7492 = vpop.f32.mrf.mxu0
        %v7493 = vadd.f32 0.0, %v7492
        %v7494 = vpop.f32.mrf.mxu0
        %7495 = vmatprep.mubr.bf16.mxu0 0
        %7496 = vmatmul.mubr.bf16.gmra.mxu0 %v5901
        %v7497 = vpop.f32.mrf.mxu0
        %v7498 = vadd.f32 0.0, %v7497
        %v7499 = vpop.f32.mrf.mxu0
        %v7500 = vpop.f32.mrf.mxu0
        %v7501 = vadd.f32 0.0, %v7500
        %v7502 = vpop.f32.mrf.mxu0
        %7503 = vmatprep.mubr.bf16.mxu0 0
        %7504 = vmatmul.mubr.bf16.gmra.mxu0 %v5904
        %v7505 = vpop.f32.mrf.mxu0
        %v7506 = vadd.f32 0.0, %v7505
        %v7507 = vpop.f32.mrf.mxu0
        %v7508 = vpop.f32.mrf.mxu0
        %v7509 = vadd.f32 0.0, %v7508
        %v7510 = vpop.f32.mrf.mxu0
        %7511 = vmatprep.mubr.bf16.mxu0 0
        %7512 = vmatmul.mubr.bf16.gmra.mxu0 %v5907
        %v7513 = vpop.f32.mrf.mxu0
        %v7514 = vadd.f32 0.0, %v7513
        %v7515 = vpop.f32.mrf.mxu0
        %v7516 = vpop.f32.mrf.mxu0
        %v7517 = vadd.f32 0.0, %v7516
        %v7518 = vpop.f32.mrf.mxu0
        %7519 = vmatprep.mubr.bf16.mxu0 0
        %7520 = vmatmul.mubr.bf16.gmra.mxu0 %v5910
        %v7521 = vpop.f32.mrf.mxu0
        %v7522 = vadd.f32 0.0, %v7521
        %v7523 = vpop.f32.mrf.mxu0
        %v7524 = vpop.f32.mrf.mxu0
        %v7525 = vadd.f32 0.0, %v7524
        %v7526 = vpop.f32.mrf.mxu0
        %7527 = vmatprep.mubr.bf16.mxu0 0
        %7528 = vmatmul.mubr.bf16.gmra.mxu0 %v5913
        %v7529 = vpop.f32.mrf.mxu0
        %v7530 = vadd.f32 0.0, %v7529
        %v7531 = vpop.f32.mrf.mxu0
        %v7532 = vpop.f32.mrf.mxu0
        %v7533 = vadd.f32 0.0, %v7532
        %v7534 = vpop.f32.mrf.mxu0
        %7535 = vmatprep.mubr.bf16.mxu0 0
        %7536 = vmatmul.mubr.bf16.gmra.mxu0 %v5916
        %v7537 = vpop.f32.mrf.mxu0
        %v7538 = vadd.f32 0.0, %v7537
        %v7539 = vpop.f32.mrf.mxu0
        %v7540 = vpop.f32.mrf.mxu0
        %v7541 = vadd.f32 0.0, %v7540
        %v7542 = vpop.f32.mrf.mxu0
        %7543 = vmatprep.mubr.bf16.mxu0 0
        %7544 = vmatmul.mubr.bf16.gmra.mxu0 %v5919
        %v7545 = vpop.f32.mrf.mxu0
        %v7546 = vadd.f32 0.0, %v7545
        %v7547 = vpop.f32.mrf.mxu0
        %v7548 = vpop.f32.mrf.mxu0
        %v7549 = vadd.f32 0.0, %v7548
        %v7550 = vpop.f32.mrf.mxu0
        %7551 = vmatprep.mubr.bf16.mxu0 0
        %7552 = vmatmul.mubr.bf16.gmra.mxu0 %v5922
        %v7553 = vpop.f32.mrf.mxu0
        %v7554 = vadd.f32 0.0, %v7553
        %v7555 = vpop.f32.mrf.mxu0
        %v7556 = vpop.f32.mrf.mxu0
        %v7557 = vadd.f32 0.0, %v7556
        %v7558 = vpop.f32.mrf.mxu0
        %7559 = vmatprep.mubr.bf16.mxu0 0
        %7560 = vmatmul.mubr.bf16.gmra.mxu0 %v5925
        %v7561 = vpop.f32.mrf.mxu0
        %v7562 = vadd.f32 0.0, %v7561
        %v7563 = vpop.f32.mrf.mxu0
        %v7564 = vpop.f32.mrf.mxu0
        %v7565 = vadd.f32 0.0, %v7564
        %v7566 = vpop.f32.mrf.mxu0
        %7567 = vmatprep.mubr.bf16.mxu0 0
        %7568 = vmatmul.mubr.bf16.gmra.mxu0 %v5928
        %v7569 = vpop.f32.mrf.mxu0
        %v7570 = vadd.f32 0.0, %v7569
        %v7571 = vpop.f32.mrf.mxu0
        %v7572 = vpop.f32.mrf.mxu0
        %v7573 = vadd.f32 0.0, %v7572
        %v7574 = vpop.f32.mrf.mxu0
        %7575 = vmatprep.mubr.bf16.mxu0 0
        %7576 = vmatmul.mubr.bf16.gmra.mxu0 %v5931
        %v7577 = vpop.f32.mrf.mxu0
        %v7578 = vadd.f32 0.0, %v7577
        %v7579 = vpop.f32.mrf.mxu0
        %v7580 = vpop.f32.mrf.mxu0
        %v7581 = vadd.f32 0.0, %v7580
        %v7582 = vpop.f32.mrf.mxu0
        %7583 = vmatprep.mubr.bf16.mxu0 0
        %7584 = vmatmul.mubr.bf16.gmra.mxu0 %v5934
        %v7585 = vpop.f32.mrf.mxu0
        %v7586 = vadd.f32 0.0, %v7585
        %v7587 = vpop.f32.mrf.mxu0
        %v7588 = vpop.f32.mrf.mxu0
        %v7589 = vadd.f32 0.0, %v7588
        %v7590 = vpop.f32.mrf.mxu0
        %7591 = vmatprep.mubr.bf16.mxu0 0
        %7592 = vmatmul.mubr.bf16.gmra.mxu0 %v5937
        %v7593 = vpop.f32.mrf.mxu0
        %v7594 = vadd.f32 0.0, %v7593
        %v7595 = vpop.f32.mrf.mxu0
        %v7596 = vpop.f32.mrf.mxu0
        %v7597 = vadd.f32 0.0, %v7596
        %v7598 = vpop.f32.mrf.mxu0
        %7599 = vmatprep.mubr.bf16.mxu0 0
        %7600 = vmatmul.mubr.bf16.gmra.mxu0 %v5940
        %v7601 = vpop.f32.mrf.mxu0
        %v7602 = vadd.f32 0.0, %v7601
        %v7603 = vpop.f32.mrf.mxu0
        %v7604 = vpop.f32.mrf.mxu0
        %v7605 = vadd.f32 0.0, %v7604
        %v7606 = vpop.f32.mrf.mxu0
        %7607 = vmatprep.mubr.bf16.mxu0 0
        %7608 = vmatmul.mubr.bf16.gmra.mxu0 %v5943
        %v7609 = vpop.f32.mrf.mxu0
        %v7610 = vadd.f32 0.0, %v7609
        %v7611 = vpop.f32.mrf.mxu0
        %v7612 = vpop.f32.mrf.mxu0
        %v7613 = vadd.f32 0.0, %v7612
        %v7614 = vpop.f32.mrf.mxu0
        %7615 = vmatprep.mubr.bf16.mxu0 0
        %7616 = vmatmul.mubr.bf16.gmra.mxu0 %v5946
        %v7617 = vpop.f32.mrf.mxu0
        %v7618 = vadd.f32 0.0, %v7617
        %v7619 = vpop.f32.mrf.mxu0
        %v7620 = vpop.f32.mrf.mxu0
        %v7621 = vadd.f32 0.0, %v7620
        %v7622 = vpop.f32.mrf.mxu0
        %7623 = vmatprep.mubr.bf16.mxu0 0
        %7624 = vmatmul.mubr.bf16.gmra.mxu0 %v5949
        %v7625 = vpop.f32.mrf.mxu0
        %v7626 = vadd.f32 0.0, %v7625
        %v7627 = vpop.f32.mrf.mxu0
        %v7628 = vpop.f32.mrf.mxu0
        %v7629 = vadd.f32 0.0, %v7628
        %v7630 = vpop.f32.mrf.mxu0
        %7631 = vmatprep.mubr.bf16.mxu0 0
        %7632 = vmatmul.mubr.bf16.gmra.mxu0 %v5952
        %v7633 = vpop.f32.mrf.mxu0
        %v7634 = vadd.f32 0.0, %v7633
        %v7635 = vpop.f32.mrf.mxu0
        %v7636 = vpop.f32.mrf.mxu0
        %v7637 = vadd.f32 0.0, %v7636
        %v7638 = vpop.f32.mrf.mxu0
        %7639 = vmatprep.mubr.bf16.mxu0 0
        %7640 = vmatmul.mubr.bf16.gmra.mxu0 %v5955
        %v7641 = vpop.f32.mrf.mxu0
        %v7642 = vadd.f32 0.0, %v7641
        %v7643 = vpop.f32.mrf.mxu0
        %v7644 = vpop.f32.mrf.mxu0
        %v7645 = vadd.f32 0.0, %v7644
        %v7646 = vpop.f32.mrf.mxu0
        %7647 = vmatprep.mubr.bf16.mxu0 0
        %7648 = vmatmul.mubr.bf16.gmra.mxu0 %v5958
        %v7649 = vpop.f32.mrf.mxu0
        %v7650 = vadd.f32 0.0, %v7649
        %v7651 = vpop.f32.mrf.mxu0
        %v7652 = vpop.f32.mrf.mxu0
        %v7653 = vadd.f32 0.0, %v7652
        %v7654 = vpop.f32.mrf.mxu0
        %7655 = vmatprep.mubr.bf16.mxu0 0
        %7656 = vmatmul.mubr.bf16.gmra.mxu0 %v5961
        %v7657 = vpop.f32.mrf.mxu0
        %v7658 = vadd.f32 0.0, %v7657
        %v7659 = vpop.f32.mrf.mxu0
        %v7660 = vpop.f32.mrf.mxu0
        %v7661 = vadd.f32 0.0, %v7660
        %v7662 = vpop.f32.mrf.mxu0
        %7663 = vmatprep.mubr.bf16.mxu0 0
        %7664 = vmatmul.mubr.bf16.gmra.mxu0 %v5964
        %v7665 = vpop.f32.mrf.mxu0
        %v7666 = vadd.f32 0.0, %v7665
        %v7667 = vpop.f32.mrf.mxu0
        %v7668 = vpop.f32.mrf.mxu0
        %v7669 = vadd.f32 0.0, %v7668
        %v7670 = vpop.f32.mrf.mxu0
        %7671 = vmatprep.mubr.bf16.mxu0 0
        %7672 = vmatmul.mubr.bf16.gmra.mxu0 %v5967
        %v7673 = vpop.f32.mrf.mxu0
        %v7674 = vadd.f32 0.0, %v7673
        %v7675 = vpop.f32.mrf.mxu0
        %v7676 = vpop.f32.mrf.mxu0
        %v7677 = vadd.f32 0.0, %v7676
        %v7678 = vpop.f32.mrf.mxu0
        %7679 = vmatprep.mubr.bf16.mxu0 0
        %7680 = vmatmul.mubr.bf16.gmra.mxu0 %v5970
        %v7681 = vpop.f32.mrf.mxu0
        %v7682 = vadd.f32 0.0, %v7681
        %v7683 = vpop.f32.mrf.mxu0
        %v7684 = vpop.f32.mrf.mxu0
        %v7685 = vadd.f32 0.0, %v7684
        %v7686 = vpop.f32.mrf.mxu0
        %7687 = vmatprep.mubr.bf16.mxu0 0
        %7688 = vmatmul.mubr.bf16.gmra.mxu0 %v5973
        %v7689 = vpop.f32.mrf.mxu0
        %v7690 = vadd.f32 0.0, %v7689
        %v7691 = vpop.f32.mrf.mxu0
        %v7692 = vpop.f32.mrf.mxu0
        %v7693 = vadd.f32 0.0, %v7692
        %v7694 = vpop.f32.mrf.mxu0
        %7695 = vmatprep.mubr.bf16.mxu0 0
        %7696 = vmatmul.mubr.bf16.gmra.mxu0 %v5976
        %v7697 = vpop.f32.mrf.mxu0
        %v7698 = vadd.f32 0.0, %v7697
        %v7699 = vpop.f32.mrf.mxu0
        %v7700 = vpop.f32.mrf.mxu0
        %v7701 = vadd.f32 0.0, %v7700
        %v7702 = vpop.f32.mrf.mxu0
        %7703 = vmatprep.mubr.bf16.mxu0 0
        %7704 = vmatmul.mubr.bf16.gmra.mxu0 %v5979
        %v7705 = vpop.f32.mrf.mxu0
        %v7706 = vadd.f32 0.0, %v7705
        %v7707 = vpop.f32.mrf.mxu0
        %v7708 = vpop.f32.mrf.mxu0
        %v7709 = vadd.f32 0.0, %v7708
        %v7710 = vpop.f32.mrf.mxu0
        %7711 = vdwg.mxu0
        %v7714 = vunpack.c.l.b16 %v5649
        %v7715 = vunpack.c.l.b16 %v5650
        %v7716 = vpack.c.b16 %v7715, %v7714
        %7718 = vmatprep.subr.bf16.mxu0 0
        %7719 = vmatpush1.bf16.msra.mxu0 0
        %7720 = vmatprep.subr.bf16.mxu0 0
        %7721 = vmatpush1.bf16.msra.mxu0 0
        %7722 = vmatprep.subr.bf16.mxu0 0
        %7723 = vmatpush1.bf16.msra.mxu0 0
        %7724 = vmatprep.subr.bf16.mxu0 0
        %7725 = vmatpush1.bf16.msra.mxu0 0
        %7726 = vmatprep.subr.bf16.mxu0 0
        %7727 = vmatpush1.bf16.msra.mxu0 0
        %7728 = vmatprep.subr.bf16.mxu0 0
        %7729 = vmatpush1.bf16.msra.mxu0 0
        %7730 = vmatprep.subr.bf16.mxu0 0
        %7731 = vmatpush1.bf16.msra.mxu0 0
        %7732 = vmatprep.subr.bf16.mxu0 0
        %7733 = vmatpush1.bf16.msra.mxu0 %v7716
        %7734 = vmatprep.subr.bf16.mxu0 0
        %7735 = vmatpush2.bf16.msra.mxu0 0
        %7736 = vmatprep.subr.bf16.mxu0 0
        %7737 = vmatpush2.bf16.msra.mxu0 0
        %7738 = vmatprep.subr.bf16.mxu0 0
        %7739 = vmatpush2.bf16.msra.mxu0 0
        %7740 = vmatprep.subr.bf16.mxu0 0
        %7741 = vmatpush2.bf16.msra.mxu0 0
        %7742 = vmatprep.subr.bf16.mxu0 0
        %7743 = vmatpush2.bf16.msra.mxu0 0
        %7744 = vmatprep.subr.bf16.mxu0 0
        %7745 = vmatpush2.bf16.msra.mxu0 0
        %7746 = vmatprep.subr.bf16.mxu0 0
        %7747 = vmatpush2.bf16.msra.mxu0 0
        %7748 = vmatprep.subr.bf16.mxu0 0
        %7749 = vmatpush2.bf16.msra.mxu0 0
        %7750 = vmatprep.mubr.bf16.mxu0 0
        %7751 = vmatmul.mubr.bf16.gmra.mxu0 %v6437
        %v7752 = vpop.f32.mrf.mxu0
        %v7753 = vadd.f32 %v7458, %v7752
        %v7754 = vpop.f32.mrf.mxu0
        %v7755 = vpop.f32.mrf.mxu0
        %v7756 = vadd.f32 %v7461, %v7755
        %v7757 = vpop.f32.mrf.mxu0
        %7758 = vmatprep.mubr.bf16.mxu0 0
        %7759 = vmatmul.mubr.bf16.gmra.mxu0 %v6440
        %v7760 = vpop.f32.mrf.mxu0
        %v7761 = vadd.f32 %v7466, %v7760
        %v7762 = vpop.f32.mrf.mxu0
        %v7763 = vpop.f32.mrf.mxu0
        %v7764 = vadd.f32 %v7469, %v7763
        %v7765 = vpop.f32.mrf.mxu0
        %7766 = vmatprep.mubr.bf16.mxu0 0
        %7767 = vmatmul.mubr.bf16.gmra.mxu0 %v6443
        %v7768 = vpop.f32.mrf.mxu0
        %v7769 = vadd.f32 %v7474, %v7768
        %v7770 = vpop.f32.mrf.mxu0
        %v7771 = vpop.f32.mrf.mxu0
        %v7772 = vadd.f32 %v7477, %v7771
        %v7773 = vpop.f32.mrf.mxu0
        %7774 = vmatprep.mubr.bf16.mxu0 0
        %7775 = vmatmul.mubr.bf16.gmra.mxu0 %v6446
        %v7776 = vpop.f32.mrf.mxu0
        %v7777 = vadd.f32 %v7482, %v7776
        %v7778 = vpop.f32.mrf.mxu0
        %v7779 = vpop.f32.mrf.mxu0
        %v7780 = vadd.f32 %v7485, %v7779
        %v7781 = vpop.f32.mrf.mxu0
        %7782 = vmatprep.mubr.bf16.mxu0 0
        %7783 = vmatmul.mubr.bf16.gmra.mxu0 %v6449
        %v7784 = vpop.f32.mrf.mxu0
        %v7785 = vadd.f32 %v7490, %v7784
        %v7786 = vpop.f32.mrf.mxu0
        %v7787 = vpop.f32.mrf.mxu0
        %v7788 = vadd.f32 %v7493, %v7787
        %v7789 = vpop.f32.mrf.mxu0
        %7790 = vmatprep.mubr.bf16.mxu0 0
        %7791 = vmatmul.mubr.bf16.gmra.mxu0 %v6452
        %v7792 = vpop.f32.mrf.mxu0
        %v7793 = vadd.f32 %v7498, %v7792
        %v7794 = vpop.f32.mrf.mxu0
        %v7795 = vpop.f32.mrf.mxu0
        %v7796 = vadd.f32 %v7501, %v7795
        %v7797 = vpop.f32.mrf.mxu0
        %7798 = vmatprep.mubr.bf16.mxu0 0
        %7799 = vmatmul.mubr.bf16.gmra.mxu0 %v6455
        %v7800 = vpop.f32.mrf.mxu0
        %v7801 = vadd.f32 %v7506, %v7800
        %v7802 = vpop.f32.mrf.mxu0
        %v7803 = vpop.f32.mrf.mxu0
        %v7804 = vadd.f32 %v7509, %v7803
        %v7805 = vpop.f32.mrf.mxu0
        %7806 = vmatprep.mubr.bf16.mxu0 0
        %7807 = vmatmul.mubr.bf16.gmra.mxu0 %v6458
        %v7808 = vpop.f32.mrf.mxu0
        %v7809 = vadd.f32 %v7514, %v7808
        %v7810 = vpop.f32.mrf.mxu0
        %v7811 = vpop.f32.mrf.mxu0
        %v7812 = vadd.f32 %v7517, %v7811
        %v7813 = vpop.f32.mrf.mxu0
        %7814 = vmatprep.mubr.bf16.mxu0 0
        %7815 = vmatmul.mubr.bf16.gmra.mxu0 %v6461
        %v7816 = vpop.f32.mrf.mxu0
        %v7817 = vadd.f32 %v7522, %v7816
        %v7818 = vpop.f32.mrf.mxu0
        %v7819 = vpop.f32.mrf.mxu0
        %v7820 = vadd.f32 %v7525, %v7819
        %v7821 = vpop.f32.mrf.mxu0
        %7822 = vmatprep.mubr.bf16.mxu0 0
        %7823 = vmatmul.mubr.bf16.gmra.mxu0 %v6464
        %v7824 = vpop.f32.mrf.mxu0
        %v7825 = vadd.f32 %v7530, %v7824
        %v7826 = vpop.f32.mrf.mxu0
        %v7827 = vpop.f32.mrf.mxu0
        %v7828 = vadd.f32 %v7533, %v7827
        %v7829 = vpop.f32.mrf.mxu0
        %7830 = vmatprep.mubr.bf16.mxu0 0
        %7831 = vmatmul.mubr.bf16.gmra.mxu0 %v6467
        %v7832 = vpop.f32.mrf.mxu0
        %v7833 = vadd.f32 %v7538, %v7832
        %v7834 = vpop.f32.mrf.mxu0
        %v7835 = vpop.f32.mrf.mxu0
        %v7836 = vadd.f32 %v7541, %v7835
        %v7837 = vpop.f32.mrf.mxu0
        %7838 = vmatprep.mubr.bf16.mxu0 0
        %7839 = vmatmul.mubr.bf16.gmra.mxu0 %v6470
        %v7840 = vpop.f32.mrf.mxu0
        %v7841 = vadd.f32 %v7546, %v7840
        %v7842 = vpop.f32.mrf.mxu0
        %v7843 = vpop.f32.mrf.mxu0
        %v7844 = vadd.f32 %v7549, %v7843
        %v7845 = vpop.f32.mrf.mxu0
        %7846 = vmatprep.mubr.bf16.mxu0 0
        %7847 = vmatmul.mubr.bf16.gmra.mxu0 %v6473
        %v7848 = vpop.f32.mrf.mxu0
        %v7849 = vadd.f32 %v7554, %v7848
        %v7850 = vpop.f32.mrf.mxu0
        %v7851 = vpop.f32.mrf.mxu0
        %v7852 = vadd.f32 %v7557, %v7851
        %v7853 = vpop.f32.mrf.mxu0
        %7854 = vmatprep.mubr.bf16.mxu0 0
        %7855 = vmatmul.mubr.bf16.gmra.mxu0 %v6476
        %v7856 = vpop.f32.mrf.mxu0
        %v7857 = vadd.f32 %v7562, %v7856
        %v7858 = vpop.f32.mrf.mxu0
        %v7859 = vpop.f32.mrf.mxu0
        %v7860 = vadd.f32 %v7565, %v7859
        %v7861 = vpop.f32.mrf.mxu0
        %7862 = vmatprep.mubr.bf16.mxu0 0
        %7863 = vmatmul.mubr.bf16.gmra.mxu0 %v6479
        %v7864 = vpop.f32.mrf.mxu0
        %v7865 = vadd.f32 %v7570, %v7864
        %v7866 = vpop.f32.mrf.mxu0
        %v7867 = vpop.f32.mrf.mxu0
        %v7868 = vadd.f32 %v7573, %v7867
        %v7869 = vpop.f32.mrf.mxu0
        %7870 = vmatprep.mubr.bf16.mxu0 0
        %7871 = vmatmul.mubr.bf16.gmra.mxu0 %v6482
        %v7872 = vpop.f32.mrf.mxu0
        %v7873 = vadd.f32 %v7578, %v7872
        %v7874 = vpop.f32.mrf.mxu0
        %v7875 = vpop.f32.mrf.mxu0
        %v7876 = vadd.f32 %v7581, %v7875
        %v7877 = vpop.f32.mrf.mxu0
        %7878 = vmatprep.mubr.bf16.mxu0 0
        %7879 = vmatmul.mubr.bf16.gmra.mxu0 %v6485
        %v7880 = vpop.f32.mrf.mxu0
        %v7881 = vadd.f32 %v7586, %v7880
        %v7882 = vpop.f32.mrf.mxu0
        %v7883 = vpop.f32.mrf.mxu0
        %v7884 = vadd.f32 %v7589, %v7883
        %v7885 = vpop.f32.mrf.mxu0
        %7886 = vmatprep.mubr.bf16.mxu0 0
        %7887 = vmatmul.mubr.bf16.gmra.mxu0 %v6488
        %v7888 = vpop.f32.mrf.mxu0
        %v7889 = vadd.f32 %v7594, %v7888
        %v7890 = vpop.f32.mrf.mxu0
        %v7891 = vpop.f32.mrf.mxu0
        %v7892 = vadd.f32 %v7597, %v7891
        %v7893 = vpop.f32.mrf.mxu0
        %7894 = vmatprep.mubr.bf16.mxu0 0
        %7895 = vmatmul.mubr.bf16.gmra.mxu0 %v6491
        %v7896 = vpop.f32.mrf.mxu0
        %v7897 = vadd.f32 %v7602, %v7896
        %v7898 = vpop.f32.mrf.mxu0
        %v7899 = vpop.f32.mrf.mxu0
        %v7900 = vadd.f32 %v7605, %v7899
        %v7901 = vpop.f32.mrf.mxu0
        %7902 = vmatprep.mubr.bf16.mxu0 0
        %7903 = vmatmul.mubr.bf16.gmra.mxu0 %v6494
        %v7904 = vpop.f32.mrf.mxu0
        %v7905 = vadd.f32 %v7610, %v7904
        %v7906 = vpop.f32.mrf.mxu0
        %v7907 = vpop.f32.mrf.mxu0
        %v7908 = vadd.f32 %v7613, %v7907
        %v7909 = vpop.f32.mrf.mxu0
        %7910 = vmatprep.mubr.bf16.mxu0 0
        %7911 = vmatmul.mubr.bf16.gmra.mxu0 %v6497
        %v7912 = vpop.f32.mrf.mxu0
        %v7913 = vadd.f32 %v7618, %v7912
        %v7914 = vpop.f32.mrf.mxu0
        %v7915 = vpop.f32.mrf.mxu0
        %v7916 = vadd.f32 %v7621, %v7915
        %v7917 = vpop.f32.mrf.mxu0
        %7918 = vmatprep.mubr.bf16.mxu0 0
        %7919 = vmatmul.mubr.bf16.gmra.mxu0 %v6500
        %v7920 = vpop.f32.mrf.mxu0
        %v7921 = vadd.f32 %v7626, %v7920
        %v7922 = vpop.f32.mrf.mxu0
        %v7923 = vpop.f32.mrf.mxu0
        %v7924 = vadd.f32 %v7629, %v7923
        %v7925 = vpop.f32.mrf.mxu0
        %7926 = vmatprep.mubr.bf16.mxu0 0
        %7927 = vmatmul.mubr.bf16.gmra.mxu0 %v6503
        %v7928 = vpop.f32.mrf.mxu0
        %v7929 = vadd.f32 %v7634, %v7928
        %v7930 = vpop.f32.mrf.mxu0
        %v7931 = vpop.f32.mrf.mxu0
        %v7932 = vadd.f32 %v7637, %v7931
        %v7933 = vpop.f32.mrf.mxu0
        %7934 = vmatprep.mubr.bf16.mxu0 0
        %7935 = vmatmul.mubr.bf16.gmra.mxu0 %v6506
        %v7936 = vpop.f32.mrf.mxu0
        %v7937 = vadd.f32 %v7642, %v7936
        %v7938 = vpop.f32.mrf.mxu0
        %v7939 = vpop.f32.mrf.mxu0
        %v7940 = vadd.f32 %v7645, %v7939
        %v7941 = vpop.f32.mrf.mxu0
        %7942 = vmatprep.mubr.bf16.mxu0 0
        %7943 = vmatmul.mubr.bf16.gmra.mxu0 %v6509
        %v7944 = vpop.f32.mrf.mxu0
        %v7945 = vadd.f32 %v7650, %v7944
        %v7946 = vpop.f32.mrf.mxu0
        %v7947 = vpop.f32.mrf.mxu0
        %v7948 = vadd.f32 %v7653, %v7947
        %v7949 = vpop.f32.mrf.mxu0
        %7950 = vmatprep.mubr.bf16.mxu0 0
        %7951 = vmatmul.mubr.bf16.gmra.mxu0 %v6512
        %v7952 = vpop.f32.mrf.mxu0
        %v7953 = vadd.f32 %v7658, %v7952
        %v7954 = vpop.f32.mrf.mxu0
        %v7955 = vpop.f32.mrf.mxu0
        %v7956 = vadd.f32 %v7661, %v7955
        %v7957 = vpop.f32.mrf.mxu0
        %7958 = vmatprep.mubr.bf16.mxu0 0
        %7959 = vmatmul.mubr.bf16.gmra.mxu0 %v6515
        %v7960 = vpop.f32.mrf.mxu0
        %v7961 = vadd.f32 %v7666, %v7960
        %v7962 = vpop.f32.mrf.mxu0
        %v7963 = vpop.f32.mrf.mxu0
        %v7964 = vadd.f32 %v7669, %v7963
        %v7965 = vpop.f32.mrf.mxu0
        %7966 = vmatprep.mubr.bf16.mxu0 0
        %7967 = vmatmul.mubr.bf16.gmra.mxu0 %v6518
        %v7968 = vpop.f32.mrf.mxu0
        %v7969 = vadd.f32 %v7674, %v7968
        %v7970 = vpop.f32.mrf.mxu0
        %v7971 = vpop.f32.mrf.mxu0
        %v7972 = vadd.f32 %v7677, %v7971
        %v7973 = vpop.f32.mrf.mxu0
        %7974 = vmatprep.mubr.bf16.mxu0 0
        %7975 = vmatmul.mubr.bf16.gmra.mxu0 %v6521
        %v7976 = vpop.f32.mrf.mxu0
        %v7977 = vadd.f32 %v7682, %v7976
        %v7978 = vpop.f32.mrf.mxu0
        %v7979 = vpop.f32.mrf.mxu0
        %v7980 = vadd.f32 %v7685, %v7979
        %v7981 = vpop.f32.mrf.mxu0
        %7982 = vmatprep.mubr.bf16.mxu0 0
        %7983 = vmatmul.mubr.bf16.gmra.mxu0 %v6524
        %v7984 = vpop.f32.mrf.mxu0
        %v7985 = vadd.f32 %v7690, %v7984
        %v7986 = vpop.f32.mrf.mxu0
        %v7987 = vpop.f32.mrf.mxu0
        %v7988 = vadd.f32 %v7693, %v7987
        %v7989 = vpop.f32.mrf.mxu0
        %7990 = vmatprep.mubr.bf16.mxu0 0
        %7991 = vmatmul.mubr.bf16.gmra.mxu0 %v6527
        %v7992 = vpop.f32.mrf.mxu0
        %v7993 = vadd.f32 %v7698, %v7992
        %v7994 = vpop.f32.mrf.mxu0
        %v7995 = vpop.f32.mrf.mxu0
        %v7996 = vadd.f32 %v7701, %v7995
        %v7997 = vpop.f32.mrf.mxu0
        %7998 = vmatprep.mubr.bf16.mxu0 0
        %7999 = vmatmul.mubr.bf16.gmra.mxu0 %v6530
        %v8000 = vpop.f32.mrf.mxu0
        %v8001 = vadd.f32 %v7706, %v8000
        %v8002 = vpop.f32.mrf.mxu0
        %v8003 = vpop.f32.mrf.mxu0
        %v8004 = vadd.f32 %v7709, %v8003
        %v8005 = vpop.f32.mrf.mxu0
        %8006 = vdwg.mxu0
        %s8007 = scalar_lea.vmem [#allocation2], 32
        %v8008 = vld [vmem:[%s8007] sm:$0xf]
        %v8009 = vld [vmem:[%s8007 + $0x4] sm:$0xf]
        %v8010 = vld [vmem:[%s8007 + $0x8] sm:$0xf]
        %v8011 = vld [vmem:[%s8007 + $0xc] sm:$0xf]
        %v8012 = vld [vmem:[%s8007 + $0x10] sm:$0xf]
        %v8013 = vld [vmem:[%s8007 + $0x14] sm:$0xf]
        %v8014 = vld [vmem:[%s8007 + $0x18] sm:$0xf]
        %v8015 = vld [vmem:[%s8007 + $0x1c] sm:$0xf]
        %v8016 = vld [vmem:[%s8007 + $0x20] sm:$0xf]
        %v8017 = vld [vmem:[%s8007 + $0x24] sm:$0xf]
        %v8018 = vld [vmem:[%s8007 + $0x28] sm:$0xf]
        %v8019 = vld [vmem:[%s8007 + $0x2c] sm:$0xf]
        %v8020 = vld [vmem:[%s8007 + $0x30] sm:$0xf]
        %v8021 = vld [vmem:[%s8007 + $0x34] sm:$0xf]
        %v8022 = vld [vmem:[%s8007 + $0x38] sm:$0xf]
        %v8023 = vld [vmem:[%s8007 + $0x3c] sm:$0xf]
        %v8024 = vld [vmem:[%s8007 + $0x40] sm:$0xf]
        %v8025 = vld [vmem:[%s8007 + $0x44] sm:$0xf]
        %v8026 = vld [vmem:[%s8007 + $0x48] sm:$0xf]
        %v8027 = vld [vmem:[%s8007 + $0x4c] sm:$0xf]
        %v8028 = vld [vmem:[%s8007 + $0x50] sm:$0xf]
        %v8029 = vld [vmem:[%s8007 + $0x54] sm:$0xf]
        %v8030 = vld [vmem:[%s8007 + $0x58] sm:$0xf]
        %v8031 = vld [vmem:[%s8007 + $0x5c] sm:$0xf]
        %v8032 = vld [vmem:[%s8007 + $0x60] sm:$0xf]
        %v8033 = vld [vmem:[%s8007 + $0x64] sm:$0xf]
        %v8034 = vld [vmem:[%s8007 + $0x68] sm:$0xf]
        %v8035 = vld [vmem:[%s8007 + $0x6c] sm:$0xf]
        %v8036 = vld [vmem:[%s8007 + $0x70] sm:$0xf]
        %v8037 = vld [vmem:[%s8007 + $0x74] sm:$0xf]
        %v8038 = vld [vmem:[%s8007 + $0x78] sm:$0xf]
        %v8039 = vld [vmem:[%s8007 + $0x7c] sm:$0xf]
        %v8040 = vld [vmem:[%s8007 + $0x80] sm:$0xf]
        %v8041 = vld [vmem:[%s8007 + $0x84] sm:$0xf]
        %v8042 = vld [vmem:[%s8007 + $0x88] sm:$0xf]
        %v8043 = vld [vmem:[%s8007 + $0x8c] sm:$0xf]
        %v8044 = vld [vmem:[%s8007 + $0x90] sm:$0xf]
        %v8045 = vld [vmem:[%s8007 + $0x94] sm:$0xf]
        %v8046 = vld [vmem:[%s8007 + $0x98] sm:$0xf]
        %v8047 = vld [vmem:[%s8007 + $0x9c] sm:$0xf]
        %v8048 = vld [vmem:[%s8007 + $0xa0] sm:$0xf]
        %v8049 = vld [vmem:[%s8007 + $0xa4] sm:$0xf]
        %v8050 = vld [vmem:[%s8007 + $0xa8] sm:$0xf]
        %v8051 = vld [vmem:[%s8007 + $0xac] sm:$0xf]
        %v8052 = vld [vmem:[%s8007 + $0xb0] sm:$0xf]
        %v8053 = vld [vmem:[%s8007 + $0xb4] sm:$0xf]
        %v8054 = vld [vmem:[%s8007 + $0xb8] sm:$0xf]
        %v8055 = vld [vmem:[%s8007 + $0xbc] sm:$0xf]
        %v8056 = vld [vmem:[%s8007 + $0xc0] sm:$0xf]
        %v8057 = vld [vmem:[%s8007 + $0xc4] sm:$0xf]
        %v8058 = vld [vmem:[%s8007 + $0xc8] sm:$0xf]
        %v8059 = vld [vmem:[%s8007 + $0xcc] sm:$0xf]
        %v8060 = vld [vmem:[%s8007 + $0xd0] sm:$0xf]
        %v8061 = vld [vmem:[%s8007 + $0xd4] sm:$0xf]
        %v8062 = vld [vmem:[%s8007 + $0xd8] sm:$0xf]
        %v8063 = vld [vmem:[%s8007 + $0xdc] sm:$0xf]
        %v8064 = vld [vmem:[%s8007 + $0xe0] sm:$0xf]
        %v8065 = vld [vmem:[%s8007 + $0xe4] sm:$0xf]
        %v8066 = vld [vmem:[%s8007 + $0xe8] sm:$0xf]
        %v8067 = vld [vmem:[%s8007 + $0xec] sm:$0xf]
        %v8068 = vld [vmem:[%s8007 + $0xf0] sm:$0xf]
        %v8069 = vld [vmem:[%s8007 + $0xf4] sm:$0xf]
        %v8070 = vld [vmem:[%s8007 + $0xf8] sm:$0xf]
        %v8071 = vld [vmem:[%s8007 + $0xfc] sm:$0xf]
        %s8072 = scalar_lea.vmem %s4, 48
        %v8073 = vld [vmem:[%s8072] sm:$0xf]
        %v8074 = vld [vmem:[%s8072 + $0x4] sm:$0xf]
        %v8139 = vunpack.c.l.b16 %v8008
        %v8140 = vunpack.c.l.b16 %v8009
        %v8141 = vunpack.c.l.b16 %v8010
        %v8142 = vunpack.c.l.b16 %v8011
        %v8143 = vunpack.c.l.b16 %v8012
        %v8144 = vunpack.c.l.b16 %v8013
        %v8145 = vunpack.c.l.b16 %v8014
        %v8146 = vunpack.c.l.b16 %v8015
        %v8147 = vunpack.c.l.b16 %v8016
        %v8148 = vunpack.c.l.b16 %v8017
        %v8149 = vunpack.c.l.b16 %v8018
        %v8150 = vunpack.c.l.b16 %v8019
        %v8151 = vunpack.c.l.b16 %v8020
        %v8152 = vunpack.c.l.b16 %v8021
        %v8153 = vunpack.c.l.b16 %v8022
        %v8154 = vunpack.c.l.b16 %v8023
        %v8155 = vunpack.c.l.b16 %v8024
        %v8156 = vunpack.c.l.b16 %v8025
        %v8157 = vunpack.c.l.b16 %v8026
        %v8158 = vunpack.c.l.b16 %v8027
        %v8159 = vunpack.c.l.b16 %v8028
        %v8160 = vunpack.c.l.b16 %v8029
        %v8161 = vunpack.c.l.b16 %v8030
        %v8162 = vunpack.c.l.b16 %v8031
        %v8163 = vunpack.c.l.b16 %v8032
        %v8164 = vunpack.c.l.b16 %v8033
        %v8165 = vunpack.c.l.b16 %v8034
        %v8166 = vunpack.c.l.b16 %v8035
        %v8167 = vunpack.c.l.b16 %v8036
        %v8168 = vunpack.c.l.b16 %v8037
        %v8169 = vunpack.c.l.b16 %v8038
        %v8170 = vunpack.c.l.b16 %v8039
        %v8171 = vunpack.c.l.b16 %v8040
        %v8172 = vunpack.c.l.b16 %v8041
        %v8173 = vunpack.c.l.b16 %v8042
        %v8174 = vunpack.c.l.b16 %v8043
        %v8175 = vunpack.c.l.b16 %v8044
        %v8176 = vunpack.c.l.b16 %v8045
        %v8177 = vunpack.c.l.b16 %v8046
        %v8178 = vunpack.c.l.b16 %v8047
        %v8179 = vunpack.c.l.b16 %v8048
        %v8180 = vunpack.c.l.b16 %v8049
        %v8181 = vunpack.c.l.b16 %v8050
        %v8182 = vunpack.c.l.b16 %v8051
        %v8183 = vunpack.c.l.b16 %v8052
        %v8184 = vunpack.c.l.b16 %v8053
        %v8185 = vunpack.c.l.b16 %v8054
        %v8186 = vunpack.c.l.b16 %v8055
        %v8187 = vunpack.c.l.b16 %v8056
        %v8188 = vunpack.c.l.b16 %v8057
        %v8189 = vunpack.c.l.b16 %v8058
        %v8190 = vunpack.c.l.b16 %v8059
        %v8191 = vunpack.c.l.b16 %v8060
        %v8192 = vunpack.c.l.b16 %v8061
        %v8193 = vunpack.c.l.b16 %v8062
        %v8194 = vunpack.c.l.b16 %v8063
        %v8195 = vunpack.c.l.b16 %v8064
        %v8196 = vunpack.c.l.b16 %v8065
        %v8197 = vunpack.c.l.b16 %v8066
        %v8198 = vunpack.c.l.b16 %v8067
        %v8199 = vunpack.c.l.b16 %v8068
        %v8200 = vunpack.c.l.b16 %v8069
        %v8201 = vunpack.c.l.b16 %v8070
        %v8202 = vunpack.c.l.b16 %v8071
        %v8203 = vpack.c.b16 %v8140, %v8139
        %v8204 = vpack.c.b16 %v8142, %v8141
        %v8205 = vpack.c.b16 %v8144, %v8143
        %v8206 = vpack.c.b16 %v8146, %v8145
        %v8207 = vpack.c.b16 %v8148, %v8147
        %v8208 = vpack.c.b16 %v8150, %v8149
        %v8209 = vpack.c.b16 %v8152, %v8151
        %v8210 = vpack.c.b16 %v8154, %v8153
        %v8211 = vpack.c.b16 %v8156, %v8155
        %v8212 = vpack.c.b16 %v8158, %v8157
        %v8213 = vpack.c.b16 %v8160, %v8159
        %v8214 = vpack.c.b16 %v8162, %v8161
        %v8215 = vpack.c.b16 %v8164, %v8163
        %v8216 = vpack.c.b16 %v8166, %v8165
        %v8217 = vpack.c.b16 %v8168, %v8167
        %v8218 = vpack.c.b16 %v8170, %v8169
        %v8219 = vpack.c.b16 %v8172, %v8171
        %v8220 = vpack.c.b16 %v8174, %v8173
        %v8221 = vpack.c.b16 %v8176, %v8175
        %v8222 = vpack.c.b16 %v8178, %v8177
        %v8223 = vpack.c.b16 %v8180, %v8179
        %v8224 = vpack.c.b16 %v8182, %v8181
        %v8225 = vpack.c.b16 %v8184, %v8183
        %v8226 = vpack.c.b16 %v8186, %v8185
        %v8227 = vpack.c.b16 %v8188, %v8187
        %v8228 = vpack.c.b16 %v8190, %v8189
        %v8229 = vpack.c.b16 %v8192, %v8191
        %v8230 = vpack.c.b16 %v8194, %v8193
        %v8231 = vpack.c.b16 %v8196, %v8195
        %v8232 = vpack.c.b16 %v8198, %v8197
        %v8233 = vpack.c.b16 %v8200, %v8199
        %v8234 = vpack.c.b16 %v8202, %v8201
        %v8237 = vunpack.c.l.b16 %v8073
        %v8238 = vunpack.c.l.b16 %v8074
        %v8239 = vpack.c.b16 %v8238, %v8237
        %v8242 = vsel %vm5884, %v8203, 0
        %v8245 = vsel %vm5884, %v8204, 0
        %v8248 = vsel %vm5884, %v8205, 0
        %v8251 = vsel %vm5884, %v8206, 0
        %v8254 = vsel %vm5884, %v8207, 0
        %v8257 = vsel %vm5884, %v8208, 0
        %v8260 = vsel %vm5884, %v8209, 0
        %v8263 = vsel %vm5884, %v8210, 0
        %v8266 = vsel %vm5884, %v8211, 0
        %v8269 = vsel %vm5884, %v8212, 0
        %v8272 = vsel %vm5884, %v8213, 0
        %v8275 = vsel %vm5884, %v8214, 0
        %v8278 = vsel %vm5884, %v8215, 0
        %v8281 = vsel %vm5884, %v8216, 0
        %v8284 = vsel %vm5884, %v8217, 0
        %v8287 = vsel %vm5884, %v8218, 0
        %v8290 = vsel %vm5884, %v8219, 0
        %v8293 = vsel %vm5884, %v8220, 0
        %v8296 = vsel %vm5884, %v8221, 0
        %v8299 = vsel %vm5884, %v8222, 0
        %v8302 = vsel %vm5884, %v8223, 0
        %v8305 = vsel %vm5884, %v8224, 0
        %v8308 = vsel %vm5884, %v8225, 0
        %v8311 = vsel %vm5884, %v8226, 0
        %v8314 = vsel %vm5884, %v8227, 0
        %v8317 = vsel %vm5884, %v8228, 0
        %v8320 = vsel %vm5884, %v8229, 0
        %v8323 = vsel %vm5884, %v8230, 0
        %v8326 = vsel %vm5884, %v8231, 0
        %v8329 = vsel %vm5884, %v8232, 0
        %v8332 = vsel %vm5884, %v8233, 0
        %v8335 = vsel %vm5884, %v8234, 0
        %8337 = vmatprep.subr.bf16.mxu0 0
        %8338 = vmatpush1.bf16.msra.mxu0 0
        %8339 = vmatprep.subr.bf16.mxu0 0
        %8340 = vmatpush1.bf16.msra.mxu0 0
        %8341 = vmatprep.subr.bf16.mxu0 0
        %8342 = vmatpush1.bf16.msra.mxu0 0
        %8343 = vmatprep.subr.bf16.mxu0 0
        %8344 = vmatpush1.bf16.msra.mxu0 0
        %8345 = vmatprep.subr.bf16.mxu0 0
        %8346 = vmatpush1.bf16.msra.mxu0 0
        %8347 = vmatprep.subr.bf16.mxu0 0
        %8348 = vmatpush1.bf16.msra.mxu0 0
        %8349 = vmatprep.subr.bf16.mxu0 0
        %8350 = vmatpush1.bf16.msra.mxu0 0
        %8351 = vmatprep.subr.bf16.mxu0 0
        %8352 = vmatpush1.bf16.msra.mxu0 %v8239
        %8353 = vmatprep.subr.bf16.mxu0 0
        %8354 = vmatpush2.bf16.msra.mxu0 0
        %8355 = vmatprep.subr.bf16.mxu0 0
        %8356 = vmatpush2.bf16.msra.mxu0 0
        %8357 = vmatprep.subr.bf16.mxu0 0
        %8358 = vmatpush2.bf16.msra.mxu0 0
        %8359 = vmatprep.subr.bf16.mxu0 0
        %8360 = vmatpush2.bf16.msra.mxu0 0
        %8361 = vmatprep.subr.bf16.mxu0 0
        %8362 = vmatpush2.bf16.msra.mxu0 0
        %8363 = vmatprep.subr.bf16.mxu0 0
        %8364 = vmatpush2.bf16.msra.mxu0 0
        %8365 = vmatprep.subr.bf16.mxu0 0
        %8366 = vmatpush2.bf16.msra.mxu0 0
        %8367 = vmatprep.subr.bf16.mxu0 0
        %8368 = vmatpush2.bf16.msra.mxu0 0
        %8369 = vmatprep.mubr.bf16.mxu0 0
        %8370 = vmatmul.mubr.bf16.gmra.mxu0 %v8242
        %v8371 = vpop.f32.mrf.mxu0
        %v8372 = vadd.f32 0.0, %v8371
        %v8373 = vpop.f32.mrf.mxu0
        %v8374 = vpop.f32.mrf.mxu0
        %v8375 = vadd.f32 0.0, %v8374
        %v8376 = vpop.f32.mrf.mxu0
        %8377 = vmatprep.mubr.bf16.mxu0 0
        %8378 = vmatmul.mubr.bf16.gmra.mxu0 %v8245
        %v8379 = vpop.f32.mrf.mxu0
        %v8380 = vadd.f32 0.0, %v8379
        %v8381 = vpop.f32.mrf.mxu0
        %v8382 = vpop.f32.mrf.mxu0
        %v8383 = vadd.f32 0.0, %v8382
        %v8384 = vpop.f32.mrf.mxu0
        %8385 = vmatprep.mubr.bf16.mxu0 0
        %8386 = vmatmul.mubr.bf16.gmra.mxu0 %v8248
        %v8387 = vpop.f32.mrf.mxu0
        %v8388 = vadd.f32 0.0, %v8387
        %v8389 = vpop.f32.mrf.mxu0
        %v8390 = vpop.f32.mrf.mxu0
        %v8391 = vadd.f32 0.0, %v8390
        %v8392 = vpop.f32.mrf.mxu0
        %8393 = vmatprep.mubr.bf16.mxu0 0
        %8394 = vmatmul.mubr.bf16.gmra.mxu0 %v8251
        %v8395 = vpop.f32.mrf.mxu0
        %v8396 = vadd.f32 0.0, %v8395
        %v8397 = vpop.f32.mrf.mxu0
        %v8398 = vpop.f32.mrf.mxu0
        %v8399 = vadd.f32 0.0, %v8398
        %v8400 = vpop.f32.mrf.mxu0
        %8401 = vmatprep.mubr.bf16.mxu0 0
        %8402 = vmatmul.mubr.bf16.gmra.mxu0 %v8254
        %v8403 = vpop.f32.mrf.mxu0
        %v8404 = vadd.f32 0.0, %v8403
        %v8405 = vpop.f32.mrf.mxu0
        %v8406 = vpop.f32.mrf.mxu0
        %v8407 = vadd.f32 0.0, %v8406
        %v8408 = vpop.f32.mrf.mxu0
        %8409 = vmatprep.mubr.bf16.mxu0 0
        %8410 = vmatmul.mubr.bf16.gmra.mxu0 %v8257
        %v8411 = vpop.f32.mrf.mxu0
        %v8412 = vadd.f32 0.0, %v8411
        %v8413 = vpop.f32.mrf.mxu0
        %v8414 = vpop.f32.mrf.mxu0
        %v8415 = vadd.f32 0.0, %v8414
        %v8416 = vpop.f32.mrf.mxu0
        %8417 = vmatprep.mubr.bf16.mxu0 0
        %8418 = vmatmul.mubr.bf16.gmra.mxu0 %v8260
        %v8419 = vpop.f32.mrf.mxu0
        %v8420 = vadd.f32 0.0, %v8419
        %v8421 = vpop.f32.mrf.mxu0
        %v8422 = vpop.f32.mrf.mxu0
        %v8423 = vadd.f32 0.0, %v8422
        %v8424 = vpop.f32.mrf.mxu0
        %8425 = vmatprep.mubr.bf16.mxu0 0
        %8426 = vmatmul.mubr.bf16.gmra.mxu0 %v8263
        %v8427 = vpop.f32.mrf.mxu0
        %v8428 = vadd.f32 0.0, %v8427
        %v8429 = vpop.f32.mrf.mxu0
        %v8430 = vpop.f32.mrf.mxu0
        %v8431 = vadd.f32 0.0, %v8430
        %v8432 = vpop.f32.mrf.mxu0
        %8433 = vmatprep.mubr.bf16.mxu0 0
        %8434 = vmatmul.mubr.bf16.gmra.mxu0 %v8266
        %v8435 = vpop.f32.mrf.mxu0
        %v8436 = vadd.f32 0.0, %v8435
        %v8437 = vpop.f32.mrf.mxu0
        %v8438 = vpop.f32.mrf.mxu0
        %v8439 = vadd.f32 0.0, %v8438
        %v8440 = vpop.f32.mrf.mxu0
        %8441 = vmatprep.mubr.bf16.mxu0 0
        %8442 = vmatmul.mubr.bf16.gmra.mxu0 %v8269
        %v8443 = vpop.f32.mrf.mxu0
        %v8444 = vadd.f32 0.0, %v8443
        %v8445 = vpop.f32.mrf.mxu0
        %v8446 = vpop.f32.mrf.mxu0
        %v8447 = vadd.f32 0.0, %v8446
        %v8448 = vpop.f32.mrf.mxu0
        %8449 = vmatprep.mubr.bf16.mxu0 0
        %8450 = vmatmul.mubr.bf16.gmra.mxu0 %v8272
        %v8451 = vpop.f32.mrf.mxu0
        %v8452 = vadd.f32 0.0, %v8451
        %v8453 = vpop.f32.mrf.mxu0
        %v8454 = vpop.f32.mrf.mxu0
        %v8455 = vadd.f32 0.0, %v8454
        %v8456 = vpop.f32.mrf.mxu0
        %8457 = vmatprep.mubr.bf16.mxu0 0
        %8458 = vmatmul.mubr.bf16.gmra.mxu0 %v8275
        %v8459 = vpop.f32.mrf.mxu0
        %v8460 = vadd.f32 0.0, %v8459
        %v8461 = vpop.f32.mrf.mxu0
        %v8462 = vpop.f32.mrf.mxu0
        %v8463 = vadd.f32 0.0, %v8462
        %v8464 = vpop.f32.mrf.mxu0
        %8465 = vmatprep.mubr.bf16.mxu0 0
        %8466 = vmatmul.mubr.bf16.gmra.mxu0 %v8278
        %v8467 = vpop.f32.mrf.mxu0
        %v8468 = vadd.f32 0.0, %v8467
        %v8469 = vpop.f32.mrf.mxu0
        %v8470 = vpop.f32.mrf.mxu0
        %v8471 = vadd.f32 0.0, %v8470
        %v8472 = vpop.f32.mrf.mxu0
        %8473 = vmatprep.mubr.bf16.mxu0 0
        %8474 = vmatmul.mubr.bf16.gmra.mxu0 %v8281
        %v8475 = vpop.f32.mrf.mxu0
        %v8476 = vadd.f32 0.0, %v8475
        %v8477 = vpop.f32.mrf.mxu0
        %v8478 = vpop.f32.mrf.mxu0
        %v8479 = vadd.f32 0.0, %v8478
        %v8480 = vpop.f32.mrf.mxu0
        %8481 = vmatprep.mubr.bf16.mxu0 0
        %8482 = vmatmul.mubr.bf16.gmra.mxu0 %v8284
        %v8483 = vpop.f32.mrf.mxu0
        %v8484 = vadd.f32 0.0, %v8483
        %v8485 = vpop.f32.mrf.mxu0
        %v8486 = vpop.f32.mrf.mxu0
        %v8487 = vadd.f32 0.0, %v8486
        %v8488 = vpop.f32.mrf.mxu0
        %8489 = vmatprep.mubr.bf16.mxu0 0
        %8490 = vmatmul.mubr.bf16.gmra.mxu0 %v8287
        %v8491 = vpop.f32.mrf.mxu0
        %v8492 = vadd.f32 0.0, %v8491
        %v8493 = vpop.f32.mrf.mxu0
        %v8494 = vpop.f32.mrf.mxu0
        %v8495 = vadd.f32 0.0, %v8494
        %v8496 = vpop.f32.mrf.mxu0
        %8497 = vmatprep.mubr.bf16.mxu0 0
        %8498 = vmatmul.mubr.bf16.gmra.mxu0 %v8290
        %v8499 = vpop.f32.mrf.mxu0
        %v8500 = vadd.f32 0.0, %v8499
        %v8501 = vpop.f32.mrf.mxu0
        %v8502 = vpop.f32.mrf.mxu0
        %v8503 = vadd.f32 0.0, %v8502
        %v8504 = vpop.f32.mrf.mxu0
        %8505 = vmatprep.mubr.bf16.mxu0 0
        %8506 = vmatmul.mubr.bf16.gmra.mxu0 %v8293
        %v8507 = vpop.f32.mrf.mxu0
        %v8508 = vadd.f32 0.0, %v8507
        %v8509 = vpop.f32.mrf.mxu0
        %v8510 = vpop.f32.mrf.mxu0
        %v8511 = vadd.f32 0.0, %v8510
        %v8512 = vpop.f32.mrf.mxu0
        %8513 = vmatprep.mubr.bf16.mxu0 0
        %8514 = vmatmul.mubr.bf16.gmra.mxu0 %v8296
        %v8515 = vpop.f32.mrf.mxu0
        %v8516 = vadd.f32 0.0, %v8515
        %v8517 = vpop.f32.mrf.mxu0
        %v8518 = vpop.f32.mrf.mxu0
        %v8519 = vadd.f32 0.0, %v8518
        %v8520 = vpop.f32.mrf.mxu0
        %8521 = vmatprep.mubr.bf16.mxu0 0
        %8522 = vmatmul.mubr.bf16.gmra.mxu0 %v8299
        %v8523 = vpop.f32.mrf.mxu0
        %v8524 = vadd.f32 0.0, %v8523
        %v8525 = vpop.f32.mrf.mxu0
        %v8526 = vpop.f32.mrf.mxu0
        %v8527 = vadd.f32 0.0, %v8526
        %v8528 = vpop.f32.mrf.mxu0
        %8529 = vmatprep.mubr.bf16.mxu0 0
        %8530 = vmatmul.mubr.bf16.gmra.mxu0 %v8302
        %v8531 = vpop.f32.mrf.mxu0
        %v8532 = vadd.f32 0.0, %v8531
        %v8533 = vpop.f32.mrf.mxu0
        %v8534 = vpop.f32.mrf.mxu0
        %v8535 = vadd.f32 0.0, %v8534
        %v8536 = vpop.f32.mrf.mxu0
        %8537 = vmatprep.mubr.bf16.mxu0 0
        %8538 = vmatmul.mubr.bf16.gmra.mxu0 %v8305
        %v8539 = vpop.f32.mrf.mxu0
        %v8540 = vadd.f32 0.0, %v8539
        %v8541 = vpop.f32.mrf.mxu0
        %v8542 = vpop.f32.mrf.mxu0
        %v8543 = vadd.f32 0.0, %v8542
        %v8544 = vpop.f32.mrf.mxu0
        %8545 = vmatprep.mubr.bf16.mxu0 0
        %8546 = vmatmul.mubr.bf16.gmra.mxu0 %v8308
        %v8547 = vpop.f32.mrf.mxu0
        %v8548 = vadd.f32 0.0, %v8547
        %v8549 = vpop.f32.mrf.mxu0
        %v8550 = vpop.f32.mrf.mxu0
        %v8551 = vadd.f32 0.0, %v8550
        %v8552 = vpop.f32.mrf.mxu0
        %8553 = vmatprep.mubr.bf16.mxu0 0
        %8554 = vmatmul.mubr.bf16.gmra.mxu0 %v8311
        %v8555 = vpop.f32.mrf.mxu0
        %v8556 = vadd.f32 0.0, %v8555
        %v8557 = vpop.f32.mrf.mxu0
        %v8558 = vpop.f32.mrf.mxu0
        %v8559 = vadd.f32 0.0, %v8558
        %v8560 = vpop.f32.mrf.mxu0
        %8561 = vmatprep.mubr.bf16.mxu0 0
        %8562 = vmatmul.mubr.bf16.gmra.mxu0 %v8314
        %v8563 = vpop.f32.mrf.mxu0
        %v8564 = vadd.f32 0.0, %v8563
        %v8565 = vpop.f32.mrf.mxu0
        %v8566 = vpop.f32.mrf.mxu0
        %v8567 = vadd.f32 0.0, %v8566
        %v8568 = vpop.f32.mrf.mxu0
        %8569 = vmatprep.mubr.bf16.mxu0 0
        %8570 = vmatmul.mubr.bf16.gmra.mxu0 %v8317
        %v8571 = vpop.f32.mrf.mxu0
        %v8572 = vadd.f32 0.0, %v8571
        %v8573 = vpop.f32.mrf.mxu0
        %v8574 = vpop.f32.mrf.mxu0
        %v8575 = vadd.f32 0.0, %v8574
        %v8576 = vpop.f32.mrf.mxu0
        %8577 = vmatprep.mubr.bf16.mxu0 0
        %8578 = vmatmul.mubr.bf16.gmra.mxu0 %v8320
        %v8579 = vpop.f32.mrf.mxu0
        %v8580 = vadd.f32 0.0, %v8579
        %v8581 = vpop.f32.mrf.mxu0
        %v8582 = vpop.f32.mrf.mxu0
        %v8583 = vadd.f32 0.0, %v8582
        %v8584 = vpop.f32.mrf.mxu0
        %8585 = vmatprep.mubr.bf16.mxu0 0
        %8586 = vmatmul.mubr.bf16.gmra.mxu0 %v8323
        %v8587 = vpop.f32.mrf.mxu0
        %v8588 = vadd.f32 0.0, %v8587
        %v8589 = vpop.f32.mrf.mxu0
        %v8590 = vpop.f32.mrf.mxu0
        %v8591 = vadd.f32 0.0, %v8590
        %v8592 = vpop.f32.mrf.mxu0
        %8593 = vmatprep.mubr.bf16.mxu0 0
        %8594 = vmatmul.mubr.bf16.gmra.mxu0 %v8326
        %v8595 = vpop.f32.mrf.mxu0
        %v8596 = vadd.f32 0.0, %v8595
        %v8597 = vpop.f32.mrf.mxu0
        %v8598 = vpop.f32.mrf.mxu0
        %v8599 = vadd.f32 0.0, %v8598
        %v8600 = vpop.f32.mrf.mxu0
        %8601 = vmatprep.mubr.bf16.mxu0 0
        %8602 = vmatmul.mubr.bf16.gmra.mxu0 %v8329
        %v8603 = vpop.f32.mrf.mxu0
        %v8604 = vadd.f32 0.0, %v8603
        %v8605 = vpop.f32.mrf.mxu0
        %v8606 = vpop.f32.mrf.mxu0
        %v8607 = vadd.f32 0.0, %v8606
        %v8608 = vpop.f32.mrf.mxu0
        %8609 = vmatprep.mubr.bf16.mxu0 0
        %8610 = vmatmul.mubr.bf16.gmra.mxu0 %v8332
        %v8611 = vpop.f32.mrf.mxu0
        %v8612 = vadd.f32 0.0, %v8611
        %v8613 = vpop.f32.mrf.mxu0
        %v8614 = vpop.f32.mrf.mxu0
        %v8615 = vadd.f32 0.0, %v8614
        %v8616 = vpop.f32.mrf.mxu0
        %8617 = vmatprep.mubr.bf16.mxu0 0
        %8618 = vmatmul.mubr.bf16.gmra.mxu0 %v8335
        %v8619 = vpop.f32.mrf.mxu0
        %v8620 = vadd.f32 0.0, %v8619
        %v8621 = vpop.f32.mrf.mxu0
        %v8622 = vpop.f32.mrf.mxu0
        %v8623 = vadd.f32 0.0, %v8622
        %v8624 = vpop.f32.mrf.mxu0
        %8625 = vdwg.mxu0
        %v8626 = vadd.f32 %v6567, %v8372
        %v8627 = vadd.f32 %v6570, %v8375
        %v8628 = vadd.f32 %v6575, %v8380
        %v8629 = vadd.f32 %v6578, %v8383
        %v8630 = vadd.f32 %v6583, %v8388
        %v8631 = vadd.f32 %v6586, %v8391
        %v8632 = vadd.f32 %v6591, %v8396
        %v8633 = vadd.f32 %v6594, %v8399
        %v8634 = vadd.f32 %v6599, %v8404
        %v8635 = vadd.f32 %v6602, %v8407
        %v8636 = vadd.f32 %v6607, %v8412
        %v8637 = vadd.f32 %v6610, %v8415
        %v8638 = vadd.f32 %v6615, %v8420
        %v8639 = vadd.f32 %v6618, %v8423
        %v8640 = vadd.f32 %v6623, %v8428
        %v8641 = vadd.f32 %v6626, %v8431
        %v8642 = vadd.f32 %v6631, %v8436
        %v8643 = vadd.f32 %v6634, %v8439
        %v8644 = vadd.f32 %v6639, %v8444
        %v8645 = vadd.f32 %v6642, %v8447
        %v8646 = vadd.f32 %v6647, %v8452
        %v8647 = vadd.f32 %v6650, %v8455
        %v8648 = vadd.f32 %v6655, %v8460
        %v8649 = vadd.f32 %v6658, %v8463
        %v8650 = vadd.f32 %v6663, %v8468
        %v8651 = vadd.f32 %v6666, %v8471
        %v8652 = vadd.f32 %v6671, %v8476
        %v8653 = vadd.f32 %v6674, %v8479
        %v8654 = vadd.f32 %v6679, %v8484
        %v8655 = vadd.f32 %v6682, %v8487
        %v8656 = vadd.f32 %v6687, %v8492
        %v8657 = vadd.f32 %v6690, %v8495
        %v8658 = vadd.f32 %v6695, %v8500
        %v8659 = vadd.f32 %v6698, %v8503
        %v8660 = vadd.f32 %v6703, %v8508
        %v8661 = vadd.f32 %v6706, %v8511
        %v8662 = vadd.f32 %v6711, %v8516
        %v8663 = vadd.f32 %v6714, %v8519
        %v8664 = vadd.f32 %v6719, %v8524
        %v8665 = vadd.f32 %v6722, %v8527
        %v8666 = vadd.f32 %v6727, %v8532
        %v8667 = vadd.f32 %v6730, %v8535
        %v8668 = vadd.f32 %v6735, %v8540
        %v8669 = vadd.f32 %v6738, %v8543
        %v8670 = vadd.f32 %v6743, %v8548
        %v8671 = vadd.f32 %v6746, %v8551
        %v8672 = vadd.f32 %v6751, %v8556
        %v8673 = vadd.f32 %v6754, %v8559
        %v8674 = vadd.f32 %v6759, %v8564
        %v8675 = vadd.f32 %v6762, %v8567
        %v8676 = vadd.f32 %v6767, %v8572
        %v8677 = vadd.f32 %v6770, %v8575
        %v8678 = vadd.f32 %v6775, %v8580
        %v8679 = vadd.f32 %v6778, %v8583
        %v8680 = vadd.f32 %v6783, %v8588
        %v8681 = vadd.f32 %v6786, %v8591
        %v8682 = vadd.f32 %v6791, %v8596
        %v8683 = vadd.f32 %v6794, %v8599
        %v8684 = vadd.f32 %v6799, %v8604
        %v8685 = vadd.f32 %v6802, %v8607
        %v8686 = vadd.f32 %v6807, %v8612
        %v8687 = vadd.f32 %v6810, %v8615
        %v8688 = vadd.f32 %v6815, %v8620
        %v8689 = vadd.f32 %v6818, %v8623
        %s8690 = scalar_lea.vmem %s4, 56
        %v8691 = vld [vmem:[%s8690] sm:$0xf]
        %v8692 = vld [vmem:[%s8690 + $0x4] sm:$0xf]
        %v8695 = vunpack.c.l.b16 %v8691
        %v8696 = vunpack.c.l.b16 %v8692
        %v8697 = vpack.c.b16 %v8696, %v8695
        %8699 = vmatprep.subr.bf16.mxu0 0
        %8700 = vmatpush1.bf16.msra.mxu0 0
        %8701 = vmatprep.subr.bf16.mxu0 0
        %8702 = vmatpush1.bf16.msra.mxu0 0
        %8703 = vmatprep.subr.bf16.mxu0 0
        %8704 = vmatpush1.bf16.msra.mxu0 0
        %8705 = vmatprep.subr.bf16.mxu0 0
        %8706 = vmatpush1.bf16.msra.mxu0 0
        %8707 = vmatprep.subr.bf16.mxu0 0
        %8708 = vmatpush1.bf16.msra.mxu0 0
        %8709 = vmatprep.subr.bf16.mxu0 0
        %8710 = vmatpush1.bf16.msra.mxu0 0
        %8711 = vmatprep.subr.bf16.mxu0 0
        %8712 = vmatpush1.bf16.msra.mxu0 0
        %8713 = vmatprep.subr.bf16.mxu0 0
        %8714 = vmatpush1.bf16.msra.mxu0 %v8697
        %8715 = vmatprep.subr.bf16.mxu0 0
        %8716 = vmatpush2.bf16.msra.mxu0 0
        %8717 = vmatprep.subr.bf16.mxu0 0
        %8718 = vmatpush2.bf16.msra.mxu0 0
        %8719 = vmatprep.subr.bf16.mxu0 0
        %8720 = vmatpush2.bf16.msra.mxu0 0
        %8721 = vmatprep.subr.bf16.mxu0 0
        %8722 = vmatpush2.bf16.msra.mxu0 0
        %8723 = vmatprep.subr.bf16.mxu0 0
        %8724 = vmatpush2.bf16.msra.mxu0 0
        %8725 = vmatprep.subr.bf16.mxu0 0
        %8726 = vmatpush2.bf16.msra.mxu0 0
        %8727 = vmatprep.subr.bf16.mxu0 0
        %8728 = vmatpush2.bf16.msra.mxu0 0
        %8729 = vmatprep.subr.bf16.mxu0 0
        %8730 = vmatpush2.bf16.msra.mxu0 0
        %8731 = vmatprep.mubr.bf16.mxu0 0
        %8732 = vmatmul.mubr.bf16.gmra.mxu0 %v8242
        %v8733 = vpop.f32.mrf.mxu0
        %v8734 = vadd.f32 0.0, %v8733
        %v8735 = vpop.f32.mrf.mxu0
        %v8736 = vpop.f32.mrf.mxu0
        %v8737 = vadd.f32 0.0, %v8736
        %v8738 = vpop.f32.mrf.mxu0
        %8739 = vmatprep.mubr.bf16.mxu0 0
        %8740 = vmatmul.mubr.bf16.gmra.mxu0 %v8245
        %v8741 = vpop.f32.mrf.mxu0
        %v8742 = vadd.f32 0.0, %v8741
        %v8743 = vpop.f32.mrf.mxu0
        %v8744 = vpop.f32.mrf.mxu0
        %v8745 = vadd.f32 0.0, %v8744
        %v8746 = vpop.f32.mrf.mxu0
        %8747 = vmatprep.mubr.bf16.mxu0 0
        %8748 = vmatmul.mubr.bf16.gmra.mxu0 %v8248
        %v8749 = vpop.f32.mrf.mxu0
        %v8750 = vadd.f32 0.0, %v8749
        %v8751 = vpop.f32.mrf.mxu0
        %v8752 = vpop.f32.mrf.mxu0
        %v8753 = vadd.f32 0.0, %v8752
        %v8754 = vpop.f32.mrf.mxu0
        %8755 = vmatprep.mubr.bf16.mxu0 0
        %8756 = vmatmul.mubr.bf16.gmra.mxu0 %v8251
        %v8757 = vpop.f32.mrf.mxu0
        %v8758 = vadd.f32 0.0, %v8757
        %v8759 = vpop.f32.mrf.mxu0
        %v8760 = vpop.f32.mrf.mxu0
        %v8761 = vadd.f32 0.0, %v8760
        %v8762 = vpop.f32.mrf.mxu0
        %8763 = vmatprep.mubr.bf16.mxu0 0
        %8764 = vmatmul.mubr.bf16.gmra.mxu0 %v8254
        %v8765 = vpop.f32.mrf.mxu0
        %v8766 = vadd.f32 0.0, %v8765
        %v8767 = vpop.f32.mrf.mxu0
        %v8768 = vpop.f32.mrf.mxu0
        %v8769 = vadd.f32 0.0, %v8768
        %v8770 = vpop.f32.mrf.mxu0
        %8771 = vmatprep.mubr.bf16.mxu0 0
        %8772 = vmatmul.mubr.bf16.gmra.mxu0 %v8257
        %v8773 = vpop.f32.mrf.mxu0
        %v8774 = vadd.f32 0.0, %v8773
        %v8775 = vpop.f32.mrf.mxu0
        %v8776 = vpop.f32.mrf.mxu0
        %v8777 = vadd.f32 0.0, %v8776
        %v8778 = vpop.f32.mrf.mxu0
        %8779 = vmatprep.mubr.bf16.mxu0 0
        %8780 = vmatmul.mubr.bf16.gmra.mxu0 %v8260
        %v8781 = vpop.f32.mrf.mxu0
        %v8782 = vadd.f32 0.0, %v8781
        %v8783 = vpop.f32.mrf.mxu0
        %v8784 = vpop.f32.mrf.mxu0
        %v8785 = vadd.f32 0.0, %v8784
        %v8786 = vpop.f32.mrf.mxu0
        %8787 = vmatprep.mubr.bf16.mxu0 0
        %8788 = vmatmul.mubr.bf16.gmra.mxu0 %v8263
        %v8789 = vpop.f32.mrf.mxu0
        %v8790 = vadd.f32 0.0, %v8789
        %v8791 = vpop.f32.mrf.mxu0
        %v8792 = vpop.f32.mrf.mxu0
        %v8793 = vadd.f32 0.0, %v8792
        %v8794 = vpop.f32.mrf.mxu0
        %8795 = vmatprep.mubr.bf16.mxu0 0
        %8796 = vmatmul.mubr.bf16.gmra.mxu0 %v8266
        %v8797 = vpop.f32.mrf.mxu0
        %v8798 = vadd.f32 0.0, %v8797
        %v8799 = vpop.f32.mrf.mxu0
        %v8800 = vpop.f32.mrf.mxu0
        %v8801 = vadd.f32 0.0, %v8800
        %v8802 = vpop.f32.mrf.mxu0
        %8803 = vmatprep.mubr.bf16.mxu0 0
        %8804 = vmatmul.mubr.bf16.gmra.mxu0 %v8269
        %v8805 = vpop.f32.mrf.mxu0
        %v8806 = vadd.f32 0.0, %v8805
        %v8807 = vpop.f32.mrf.mxu0
        %v8808 = vpop.f32.mrf.mxu0
        %v8809 = vadd.f32 0.0, %v8808
        %v8810 = vpop.f32.mrf.mxu0
        %8811 = vmatprep.mubr.bf16.mxu0 0
        %8812 = vmatmul.mubr.bf16.gmra.mxu0 %v8272
        %v8813 = vpop.f32.mrf.mxu0
        %v8814 = vadd.f32 0.0, %v8813
        %v8815 = vpop.f32.mrf.mxu0
        %v8816 = vpop.f32.mrf.mxu0
        %v8817 = vadd.f32 0.0, %v8816
        %v8818 = vpop.f32.mrf.mxu0
        %8819 = vmatprep.mubr.bf16.mxu0 0
        %8820 = vmatmul.mubr.bf16.gmra.mxu0 %v8275
        %v8821 = vpop.f32.mrf.mxu0
        %v8822 = vadd.f32 0.0, %v8821
        %v8823 = vpop.f32.mrf.mxu0
        %v8824 = vpop.f32.mrf.mxu0
        %v8825 = vadd.f32 0.0, %v8824
        %v8826 = vpop.f32.mrf.mxu0
        %8827 = vmatprep.mubr.bf16.mxu0 0
        %8828 = vmatmul.mubr.bf16.gmra.mxu0 %v8278
        %v8829 = vpop.f32.mrf.mxu0
        %v8830 = vadd.f32 0.0, %v8829
        %v8831 = vpop.f32.mrf.mxu0
        %v8832 = vpop.f32.mrf.mxu0
        %v8833 = vadd.f32 0.0, %v8832
        %v8834 = vpop.f32.mrf.mxu0
        %8835 = vmatprep.mubr.bf16.mxu0 0
        %8836 = vmatmul.mubr.bf16.gmra.mxu0 %v8281
        %v8837 = vpop.f32.mrf.mxu0
        %v8838 = vadd.f32 0.0, %v8837
        %v8839 = vpop.f32.mrf.mxu0
        %v8840 = vpop.f32.mrf.mxu0
        %v8841 = vadd.f32 0.0, %v8840
        %v8842 = vpop.f32.mrf.mxu0
        %8843 = vmatprep.mubr.bf16.mxu0 0
        %8844 = vmatmul.mubr.bf16.gmra.mxu0 %v8284
        %v8845 = vpop.f32.mrf.mxu0
        %v8846 = vadd.f32 0.0, %v8845
        %v8847 = vpop.f32.mrf.mxu0
        %v8848 = vpop.f32.mrf.mxu0
        %v8849 = vadd.f32 0.0, %v8848
        %v8850 = vpop.f32.mrf.mxu0
        %8851 = vmatprep.mubr.bf16.mxu0 0
        %8852 = vmatmul.mubr.bf16.gmra.mxu0 %v8287
        %v8853 = vpop.f32.mrf.mxu0
        %v8854 = vadd.f32 0.0, %v8853
        %v8855 = vpop.f32.mrf.mxu0
        %v8856 = vpop.f32.mrf.mxu0
        %v8857 = vadd.f32 0.0, %v8856
        %v8858 = vpop.f32.mrf.mxu0
        %8859 = vmatprep.mubr.bf16.mxu0 0
        %8860 = vmatmul.mubr.bf16.gmra.mxu0 %v8290
        %v8861 = vpop.f32.mrf.mxu0
        %v8862 = vadd.f32 0.0, %v8861
        %v8863 = vpop.f32.mrf.mxu0
        %v8864 = vpop.f32.mrf.mxu0
        %v8865 = vadd.f32 0.0, %v8864
        %v8866 = vpop.f32.mrf.mxu0
        %8867 = vmatprep.mubr.bf16.mxu0 0
        %8868 = vmatmul.mubr.bf16.gmra.mxu0 %v8293
        %v8869 = vpop.f32.mrf.mxu0
        %v8870 = vadd.f32 0.0, %v8869
        %v8871 = vpop.f32.mrf.mxu0
        %v8872 = vpop.f32.mrf.mxu0
        %v8873 = vadd.f32 0.0, %v8872
        %v8874 = vpop.f32.mrf.mxu0
        %8875 = vmatprep.mubr.bf16.mxu0 0
        %8876 = vmatmul.mubr.bf16.gmra.mxu0 %v8296
        %v8877 = vpop.f32.mrf.mxu0
        %v8878 = vadd.f32 0.0, %v8877
        %v8879 = vpop.f32.mrf.mxu0
        %v8880 = vpop.f32.mrf.mxu0
        %v8881 = vadd.f32 0.0, %v8880
        %v8882 = vpop.f32.mrf.mxu0
        %8883 = vmatprep.mubr.bf16.mxu0 0
        %8884 = vmatmul.mubr.bf16.gmra.mxu0 %v8299
        %v8885 = vpop.f32.mrf.mxu0
        %v8886 = vadd.f32 0.0, %v8885
        %v8887 = vpop.f32.mrf.mxu0
        %v8888 = vpop.f32.mrf.mxu0
        %v8889 = vadd.f32 0.0, %v8888
        %v8890 = vpop.f32.mrf.mxu0
        %8891 = vmatprep.mubr.bf16.mxu0 0
        %8892 = vmatmul.mubr.bf16.gmra.mxu0 %v8302
        %v8893 = vpop.f32.mrf.mxu0
        %v8894 = vadd.f32 0.0, %v8893
        %v8895 = vpop.f32.mrf.mxu0
        %v8896 = vpop.f32.mrf.mxu0
        %v8897 = vadd.f32 0.0, %v8896
        %v8898 = vpop.f32.mrf.mxu0
        %8899 = vmatprep.mubr.bf16.mxu0 0
        %8900 = vmatmul.mubr.bf16.gmra.mxu0 %v8305
        %v8901 = vpop.f32.mrf.mxu0
        %v8902 = vadd.f32 0.0, %v8901
        %v8903 = vpop.f32.mrf.mxu0
        %v8904 = vpop.f32.mrf.mxu0
        %v8905 = vadd.f32 0.0, %v8904
        %v8906 = vpop.f32.mrf.mxu0
        %8907 = vmatprep.mubr.bf16.mxu0 0
        %8908 = vmatmul.mubr.bf16.gmra.mxu0 %v8308
        %v8909 = vpop.f32.mrf.mxu0
        %v8910 = vadd.f32 0.0, %v8909
        %v8911 = vpop.f32.mrf.mxu0
        %v8912 = vpop.f32.mrf.mxu0
        %v8913 = vadd.f32 0.0, %v8912
        %v8914 = vpop.f32.mrf.mxu0
        %8915 = vmatprep.mubr.bf16.mxu0 0
        %8916 = vmatmul.mubr.bf16.gmra.mxu0 %v8311
        %v8917 = vpop.f32.mrf.mxu0
        %v8918 = vadd.f32 0.0, %v8917
        %v8919 = vpop.f32.mrf.mxu0
        %v8920 = vpop.f32.mrf.mxu0
        %v8921 = vadd.f32 0.0, %v8920
        %v8922 = vpop.f32.mrf.mxu0
        %8923 = vmatprep.mubr.bf16.mxu0 0
        %8924 = vmatmul.mubr.bf16.gmra.mxu0 %v8314
        %v8925 = vpop.f32.mrf.mxu0
        %v8926 = vadd.f32 0.0, %v8925
        %v8927 = vpop.f32.mrf.mxu0
        %v8928 = vpop.f32.mrf.mxu0
        %v8929 = vadd.f32 0.0, %v8928
        %v8930 = vpop.f32.mrf.mxu0
        %8931 = vmatprep.mubr.bf16.mxu0 0
        %8932 = vmatmul.mubr.bf16.gmra.mxu0 %v8317
        %v8933 = vpop.f32.mrf.mxu0
        %v8934 = vadd.f32 0.0, %v8933
        %v8935 = vpop.f32.mrf.mxu0
        %v8936 = vpop.f32.mrf.mxu0
        %v8937 = vadd.f32 0.0, %v8936
        %v8938 = vpop.f32.mrf.mxu0
        %8939 = vmatprep.mubr.bf16.mxu0 0
        %8940 = vmatmul.mubr.bf16.gmra.mxu0 %v8320
        %v8941 = vpop.f32.mrf.mxu0
        %v8942 = vadd.f32 0.0, %v8941
        %v8943 = vpop.f32.mrf.mxu0
        %v8944 = vpop.f32.mrf.mxu0
        %v8945 = vadd.f32 0.0, %v8944
        %v8946 = vpop.f32.mrf.mxu0
        %8947 = vmatprep.mubr.bf16.mxu0 0
        %8948 = vmatmul.mubr.bf16.gmra.mxu0 %v8323
        %v8949 = vpop.f32.mrf.mxu0
        %v8950 = vadd.f32 0.0, %v8949
        %v8951 = vpop.f32.mrf.mxu0
        %v8952 = vpop.f32.mrf.mxu0
        %v8953 = vadd.f32 0.0, %v8952
        %v8954 = vpop.f32.mrf.mxu0
        %8955 = vmatprep.mubr.bf16.mxu0 0
        %8956 = vmatmul.mubr.bf16.gmra.mxu0 %v8326
        %v8957 = vpop.f32.mrf.mxu0
        %v8958 = vadd.f32 0.0, %v8957
        %v8959 = vpop.f32.mrf.mxu0
        %v8960 = vpop.f32.mrf.mxu0
        %v8961 = vadd.f32 0.0, %v8960
        %v8962 = vpop.f32.mrf.mxu0
        %8963 = vmatprep.mubr.bf16.mxu0 0
        %8964 = vmatmul.mubr.bf16.gmra.mxu0 %v8329
        %v8965 = vpop.f32.mrf.mxu0
        %v8966 = vadd.f32 0.0, %v8965
        %v8967 = vpop.f32.mrf.mxu0
        %v8968 = vpop.f32.mrf.mxu0
        %v8969 = vadd.f32 0.0, %v8968
        %v8970 = vpop.f32.mrf.mxu0
        %8971 = vmatprep.mubr.bf16.mxu0 0
        %8972 = vmatmul.mubr.bf16.gmra.mxu0 %v8332
        %v8973 = vpop.f32.mrf.mxu0
        %v8974 = vadd.f32 0.0, %v8973
        %v8975 = vpop.f32.mrf.mxu0
        %v8976 = vpop.f32.mrf.mxu0
        %v8977 = vadd.f32 0.0, %v8976
        %v8978 = vpop.f32.mrf.mxu0
        %8979 = vmatprep.mubr.bf16.mxu0 0
        %8980 = vmatmul.mubr.bf16.gmra.mxu0 %v8335
        %v8981 = vpop.f32.mrf.mxu0
        %v8982 = vadd.f32 0.0, %v8981
        %v8983 = vpop.f32.mrf.mxu0
        %v8984 = vpop.f32.mrf.mxu0
        %v8985 = vadd.f32 0.0, %v8984
        %v8986 = vpop.f32.mrf.mxu0
        %8987 = vdwg.mxu0
        %v8988 = vadd.f32 %v7160, %v8734
        %v8989 = vadd.f32 %v7163, %v8737
        %v8990 = vadd.f32 %v7168, %v8742
        %v8991 = vadd.f32 %v7171, %v8745
        %v8992 = vadd.f32 %v7176, %v8750
        %v8993 = vadd.f32 %v7179, %v8753
        %v8994 = vadd.f32 %v7184, %v8758
        %v8995 = vadd.f32 %v7187, %v8761
        %v8996 = vadd.f32 %v7192, %v8766
        %v8997 = vadd.f32 %v7195, %v8769
        %v8998 = vadd.f32 %v7200, %v8774
        %v8999 = vadd.f32 %v7203, %v8777
        %v9000 = vadd.f32 %v7208, %v8782
        %v9001 = vadd.f32 %v7211, %v8785
        %v9002 = vadd.f32 %v7216, %v8790
        %v9003 = vadd.f32 %v7219, %v8793
        %v9004 = vadd.f32 %v7224, %v8798
        %v9005 = vadd.f32 %v7227, %v8801
        %v9006 = vadd.f32 %v7232, %v8806
        %v9007 = vadd.f32 %v7235, %v8809
        %v9008 = vadd.f32 %v7240, %v8814
        %v9009 = vadd.f32 %v7243, %v8817
        %v9010 = vadd.f32 %v7248, %v8822
        %v9011 = vadd.f32 %v7251, %v8825
        %v9012 = vadd.f32 %v7256, %v8830
        %v9013 = vadd.f32 %v7259, %v8833
        %v9014 = vadd.f32 %v7264, %v8838
        %v9015 = vadd.f32 %v7267, %v8841
        %v9016 = vadd.f32 %v7272, %v8846
        %v9017 = vadd.f32 %v7275, %v8849
        %v9018 = vadd.f32 %v7280, %v8854
        %v9019 = vadd.f32 %v7283, %v8857
        %v9020 = vadd.f32 %v7288, %v8862
        %v9021 = vadd.f32 %v7291, %v8865
        %v9022 = vadd.f32 %v7296, %v8870
        %v9023 = vadd.f32 %v7299, %v8873
        %v9024 = vadd.f32 %v7304, %v8878
        %v9025 = vadd.f32 %v7307, %v8881
        %v9026 = vadd.f32 %v7312, %v8886
        %v9027 = vadd.f32 %v7315, %v8889
        %v9028 = vadd.f32 %v7320, %v8894
        %v9029 = vadd.f32 %v7323, %v8897
        %v9030 = vadd.f32 %v7328, %v8902
        %v9031 = vadd.f32 %v7331, %v8905
        %v9032 = vadd.f32 %v7336, %v8910
        %v9033 = vadd.f32 %v7339, %v8913
        %v9034 = vadd.f32 %v7344, %v8918
        %v9035 = vadd.f32 %v7347, %v8921
        %v9036 = vadd.f32 %v7352, %v8926
        %v9037 = vadd.f32 %v7355, %v8929
        %v9038 = vadd.f32 %v7360, %v8934
        %v9039 = vadd.f32 %v7363, %v8937
        %v9040 = vadd.f32 %v7368, %v8942
        %v9041 = vadd.f32 %v7371, %v8945
        %v9042 = vadd.f32 %v7376, %v8950
        %v9043 = vadd.f32 %v7379, %v8953
        %v9044 = vadd.f32 %v7384, %v8958
        %v9045 = vadd.f32 %v7387, %v8961
        %v9046 = vadd.f32 %v7392, %v8966
        %v9047 = vadd.f32 %v7395, %v8969
        %v9048 = vadd.f32 %v7400, %v8974
        %v9049 = vadd.f32 %v7403, %v8977
        %v9050 = vadd.f32 %v7408, %v8982
        %v9051 = vadd.f32 %v7411, %v8985
        %s9052 = scalar_lea.vmem %s4, 64
        %v9053 = vld [vmem:[%s9052] sm:$0xf]
        %v9054 = vld [vmem:[%s9052 + $0x4] sm:$0xf]
        %v9057 = vunpack.c.l.b16 %v9053
        %v9058 = vunpack.c.l.b16 %v9054
        %v9059 = vpack.c.b16 %v9058, %v9057
        %9061 = vmatprep.subr.bf16.mxu0 0
        %9062 = vmatpush1.bf16.msra.mxu0 0
        %9063 = vmatprep.subr.bf16.mxu0 0
        %9064 = vmatpush1.bf16.msra.mxu0 0
        %9065 = vmatprep.subr.bf16.mxu0 0
        %9066 = vmatpush1.bf16.msra.mxu0 0
        %9067 = vmatprep.subr.bf16.mxu0 0
        %9068 = vmatpush1.bf16.msra.mxu0 0
        %9069 = vmatprep.subr.bf16.mxu0 0
        %9070 = vmatpush1.bf16.msra.mxu0 0
        %9071 = vmatprep.subr.bf16.mxu0 0
        %9072 = vmatpush1.bf16.msra.mxu0 0
        %9073 = vmatprep.subr.bf16.mxu0 0
        %9074 = vmatpush1.bf16.msra.mxu0 0
        %9075 = vmatprep.subr.bf16.mxu0 0
        %9076 = vmatpush1.bf16.msra.mxu0 %v9059
        %9077 = vmatprep.subr.bf16.mxu0 0
        %9078 = vmatpush2.bf16.msra.mxu0 0
        %9079 = vmatprep.subr.bf16.mxu0 0
        %9080 = vmatpush2.bf16.msra.mxu0 0
        %9081 = vmatprep.subr.bf16.mxu0 0
        %9082 = vmatpush2.bf16.msra.mxu0 0
        %9083 = vmatprep.subr.bf16.mxu0 0
        %9084 = vmatpush2.bf16.msra.mxu0 0
        %9085 = vmatprep.subr.bf16.mxu0 0
        %9086 = vmatpush2.bf16.msra.mxu0 0
        %9087 = vmatprep.subr.bf16.mxu0 0
        %9088 = vmatpush2.bf16.msra.mxu0 0
        %9089 = vmatprep.subr.bf16.mxu0 0
        %9090 = vmatpush2.bf16.msra.mxu0 0
        %9091 = vmatprep.subr.bf16.mxu0 0
        %9092 = vmatpush2.bf16.msra.mxu0 0
        %9093 = vmatprep.mubr.bf16.mxu0 0
        %9094 = vmatmul.mubr.bf16.gmra.mxu0 %v8242
        %v9095 = vpop.f32.mrf.mxu0
        %v9096 = vadd.f32 0.0, %v9095
        %v9097 = vpop.f32.mrf.mxu0
        %v9098 = vpop.f32.mrf.mxu0
        %v9099 = vadd.f32 0.0, %v9098
        %v9100 = vpop.f32.mrf.mxu0
        %9101 = vmatprep.mubr.bf16.mxu0 0
        %9102 = vmatmul.mubr.bf16.gmra.mxu0 %v8245
        %v9103 = vpop.f32.mrf.mxu0
        %v9104 = vadd.f32 0.0, %v9103
        %v9105 = vpop.f32.mrf.mxu0
        %v9106 = vpop.f32.mrf.mxu0
        %v9107 = vadd.f32 0.0, %v9106
        %v9108 = vpop.f32.mrf.mxu0
        %9109 = vmatprep.mubr.bf16.mxu0 0
        %9110 = vmatmul.mubr.bf16.gmra.mxu0 %v8248
        %v9111 = vpop.f32.mrf.mxu0
        %v9112 = vadd.f32 0.0, %v9111
        %v9113 = vpop.f32.mrf.mxu0
        %v9114 = vpop.f32.mrf.mxu0
        %v9115 = vadd.f32 0.0, %v9114
        %v9116 = vpop.f32.mrf.mxu0
        %9117 = vmatprep.mubr.bf16.mxu0 0
        %9118 = vmatmul.mubr.bf16.gmra.mxu0 %v8251
        %v9119 = vpop.f32.mrf.mxu0
        %v9120 = vadd.f32 0.0, %v9119
        %v9121 = vpop.f32.mrf.mxu0
        %v9122 = vpop.f32.mrf.mxu0
        %v9123 = vadd.f32 0.0, %v9122
        %v9124 = vpop.f32.mrf.mxu0
        %9125 = vmatprep.mubr.bf16.mxu0 0
        %9126 = vmatmul.mubr.bf16.gmra.mxu0 %v8254
        %v9127 = vpop.f32.mrf.mxu0
        %v9128 = vadd.f32 0.0, %v9127
        %v9129 = vpop.f32.mrf.mxu0
        %v9130 = vpop.f32.mrf.mxu0
        %v9131 = vadd.f32 0.0, %v9130
        %v9132 = vpop.f32.mrf.mxu0
        %9133 = vmatprep.mubr.bf16.mxu0 0
        %9134 = vmatmul.mubr.bf16.gmra.mxu0 %v8257
        %v9135 = vpop.f32.mrf.mxu0
        %v9136 = vadd.f32 0.0, %v9135
        %v9137 = vpop.f32.mrf.mxu0
        %v9138 = vpop.f32.mrf.mxu0
        %v9139 = vadd.f32 0.0, %v9138
        %v9140 = vpop.f32.mrf.mxu0
        %9141 = vmatprep.mubr.bf16.mxu0 0
        %9142 = vmatmul.mubr.bf16.gmra.mxu0 %v8260
        %v9143 = vpop.f32.mrf.mxu0
        %v9144 = vadd.f32 0.0, %v9143
        %v9145 = vpop.f32.mrf.mxu0
        %v9146 = vpop.f32.mrf.mxu0
        %v9147 = vadd.f32 0.0, %v9146
        %v9148 = vpop.f32.mrf.mxu0
        %9149 = vmatprep.mubr.bf16.mxu0 0
        %9150 = vmatmul.mubr.bf16.gmra.mxu0 %v8263
        %v9151 = vpop.f32.mrf.mxu0
        %v9152 = vadd.f32 0.0, %v9151
        %v9153 = vpop.f32.mrf.mxu0
        %v9154 = vpop.f32.mrf.mxu0
        %v9155 = vadd.f32 0.0, %v9154
        %v9156 = vpop.f32.mrf.mxu0
        %9157 = vmatprep.mubr.bf16.mxu0 0
        %9158 = vmatmul.mubr.bf16.gmra.mxu0 %v8266
        %v9159 = vpop.f32.mrf.mxu0
        %v9160 = vadd.f32 0.0, %v9159
        %v9161 = vpop.f32.mrf.mxu0
        %v9162 = vpop.f32.mrf.mxu0
        %v9163 = vadd.f32 0.0, %v9162
        %v9164 = vpop.f32.mrf.mxu0
        %9165 = vmatprep.mubr.bf16.mxu0 0
        %9166 = vmatmul.mubr.bf16.gmra.mxu0 %v8269
        %v9167 = vpop.f32.mrf.mxu0
        %v9168 = vadd.f32 0.0, %v9167
        %v9169 = vpop.f32.mrf.mxu0
        %v9170 = vpop.f32.mrf.mxu0
        %v9171 = vadd.f32 0.0, %v9170
        %v9172 = vpop.f32.mrf.mxu0
        %9173 = vmatprep.mubr.bf16.mxu0 0
        %9174 = vmatmul.mubr.bf16.gmra.mxu0 %v8272
        %v9175 = vpop.f32.mrf.mxu0
        %v9176 = vadd.f32 0.0, %v9175
        %v9177 = vpop.f32.mrf.mxu0
        %v9178 = vpop.f32.mrf.mxu0
        %v9179 = vadd.f32 0.0, %v9178
        %v9180 = vpop.f32.mrf.mxu0
        %9181 = vmatprep.mubr.bf16.mxu0 0
        %9182 = vmatmul.mubr.bf16.gmra.mxu0 %v8275
        %v9183 = vpop.f32.mrf.mxu0
        %v9184 = vadd.f32 0.0, %v9183
        %v9185 = vpop.f32.mrf.mxu0
        %v9186 = vpop.f32.mrf.mxu0
        %v9187 = vadd.f32 0.0, %v9186
        %v9188 = vpop.f32.mrf.mxu0
        %9189 = vmatprep.mubr.bf16.mxu0 0
        %9190 = vmatmul.mubr.bf16.gmra.mxu0 %v8278
        %v9191 = vpop.f32.mrf.mxu0
        %v9192 = vadd.f32 0.0, %v9191
        %v9193 = vpop.f32.mrf.mxu0
        %v9194 = vpop.f32.mrf.mxu0
        %v9195 = vadd.f32 0.0, %v9194
        %v9196 = vpop.f32.mrf.mxu0
        %9197 = vmatprep.mubr.bf16.mxu0 0
        %9198 = vmatmul.mubr.bf16.gmra.mxu0 %v8281
        %v9199 = vpop.f32.mrf.mxu0
        %v9200 = vadd.f32 0.0, %v9199
        %v9201 = vpop.f32.mrf.mxu0
        %v9202 = vpop.f32.mrf.mxu0
        %v9203 = vadd.f32 0.0, %v9202
        %v9204 = vpop.f32.mrf.mxu0
        %9205 = vmatprep.mubr.bf16.mxu0 0
        %9206 = vmatmul.mubr.bf16.gmra.mxu0 %v8284
        %v9207 = vpop.f32.mrf.mxu0
        %v9208 = vadd.f32 0.0, %v9207
        %v9209 = vpop.f32.mrf.mxu0
        %v9210 = vpop.f32.mrf.mxu0
        %v9211 = vadd.f32 0.0, %v9210
        %v9212 = vpop.f32.mrf.mxu0
        %9213 = vmatprep.mubr.bf16.mxu0 0
        %9214 = vmatmul.mubr.bf16.gmra.mxu0 %v8287
        %v9215 = vpop.f32.mrf.mxu0
        %v9216 = vadd.f32 0.0, %v9215
        %v9217 = vpop.f32.mrf.mxu0
        %v9218 = vpop.f32.mrf.mxu0
        %v9219 = vadd.f32 0.0, %v9218
        %v9220 = vpop.f32.mrf.mxu0
        %9221 = vmatprep.mubr.bf16.mxu0 0
        %9222 = vmatmul.mubr.bf16.gmra.mxu0 %v8290
        %v9223 = vpop.f32.mrf.mxu0
        %v9224 = vadd.f32 0.0, %v9223
        %v9225 = vpop.f32.mrf.mxu0
        %v9226 = vpop.f32.mrf.mxu0
        %v9227 = vadd.f32 0.0, %v9226
        %v9228 = vpop.f32.mrf.mxu0
        %9229 = vmatprep.mubr.bf16.mxu0 0
        %9230 = vmatmul.mubr.bf16.gmra.mxu0 %v8293
        %v9231 = vpop.f32.mrf.mxu0
        %v9232 = vadd.f32 0.0, %v9231
        %v9233 = vpop.f32.mrf.mxu0
        %v9234 = vpop.f32.mrf.mxu0
        %v9235 = vadd.f32 0.0, %v9234
        %v9236 = vpop.f32.mrf.mxu0
        %9237 = vmatprep.mubr.bf16.mxu0 0
        %9238 = vmatmul.mubr.bf16.gmra.mxu0 %v8296
        %v9239 = vpop.f32.mrf.mxu0
        %v9240 = vadd.f32 0.0, %v9239
        %v9241 = vpop.f32.mrf.mxu0
        %v9242 = vpop.f32.mrf.mxu0
        %v9243 = vadd.f32 0.0, %v9242
        %v9244 = vpop.f32.mrf.mxu0
        %9245 = vmatprep.mubr.bf16.mxu0 0
        %9246 = vmatmul.mubr.bf16.gmra.mxu0 %v8299
        %v9247 = vpop.f32.mrf.mxu0
        %v9248 = vadd.f32 0.0, %v9247
        %v9249 = vpop.f32.mrf.mxu0
        %v9250 = vpop.f32.mrf.mxu0
        %v9251 = vadd.f32 0.0, %v9250
        %v9252 = vpop.f32.mrf.mxu0
        %9253 = vmatprep.mubr.bf16.mxu0 0
        %9254 = vmatmul.mubr.bf16.gmra.mxu0 %v8302
        %v9255 = vpop.f32.mrf.mxu0
        %v9256 = vadd.f32 0.0, %v9255
        %v9257 = vpop.f32.mrf.mxu0
        %v9258 = vpop.f32.mrf.mxu0
        %v9259 = vadd.f32 0.0, %v9258
        %v9260 = vpop.f32.mrf.mxu0
        %9261 = vmatprep.mubr.bf16.mxu0 0
        %9262 = vmatmul.mubr.bf16.gmra.mxu0 %v8305
        %v9263 = vpop.f32.mrf.mxu0
        %v9264 = vadd.f32 0.0, %v9263
        %v9265 = vpop.f32.mrf.mxu0
        %v9266 = vpop.f32.mrf.mxu0
        %v9267 = vadd.f32 0.0, %v9266
        %v9268 = vpop.f32.mrf.mxu0
        %9269 = vmatprep.mubr.bf16.mxu0 0
        %9270 = vmatmul.mubr.bf16.gmra.mxu0 %v8308
        %v9271 = vpop.f32.mrf.mxu0
        %v9272 = vadd.f32 0.0, %v9271
        %v9273 = vpop.f32.mrf.mxu0
        %v9274 = vpop.f32.mrf.mxu0
        %v9275 = vadd.f32 0.0, %v9274
        %v9276 = vpop.f32.mrf.mxu0
        %9277 = vmatprep.mubr.bf16.mxu0 0
        %9278 = vmatmul.mubr.bf16.gmra.mxu0 %v8311
        %v9279 = vpop.f32.mrf.mxu0
        %v9280 = vadd.f32 0.0, %v9279
        %v9281 = vpop.f32.mrf.mxu0
        %v9282 = vpop.f32.mrf.mxu0
        %v9283 = vadd.f32 0.0, %v9282
        %v9284 = vpop.f32.mrf.mxu0
        %9285 = vmatprep.mubr.bf16.mxu0 0
        %9286 = vmatmul.mubr.bf16.gmra.mxu0 %v8314
        %v9287 = vpop.f32.mrf.mxu0
        %v9288 = vadd.f32 0.0, %v9287
        %v9289 = vpop.f32.mrf.mxu0
        %v9290 = vpop.f32.mrf.mxu0
        %v9291 = vadd.f32 0.0, %v9290
        %v9292 = vpop.f32.mrf.mxu0
        %9293 = vmatprep.mubr.bf16.mxu0 0
        %9294 = vmatmul.mubr.bf16.gmra.mxu0 %v8317
        %v9295 = vpop.f32.mrf.mxu0
        %v9296 = vadd.f32 0.0, %v9295
        %v9297 = vpop.f32.mrf.mxu0
        %v9298 = vpop.f32.mrf.mxu0
        %v9299 = vadd.f32 0.0, %v9298
        %v9300 = vpop.f32.mrf.mxu0
        %9301 = vmatprep.mubr.bf16.mxu0 0
        %9302 = vmatmul.mubr.bf16.gmra.mxu0 %v8320
        %v9303 = vpop.f32.mrf.mxu0
        %v9304 = vadd.f32 0.0, %v9303
        %v9305 = vpop.f32.mrf.mxu0
        %v9306 = vpop.f32.mrf.mxu0
        %v9307 = vadd.f32 0.0, %v9306
        %v9308 = vpop.f32.mrf.mxu0
        %9309 = vmatprep.mubr.bf16.mxu0 0
        %9310 = vmatmul.mubr.bf16.gmra.mxu0 %v8323
        %v9311 = vpop.f32.mrf.mxu0
        %v9312 = vadd.f32 0.0, %v9311
        %v9313 = vpop.f32.mrf.mxu0
        %v9314 = vpop.f32.mrf.mxu0
        %v9315 = vadd.f32 0.0, %v9314
        %v9316 = vpop.f32.mrf.mxu0
        %9317 = vmatprep.mubr.bf16.mxu0 0
        %9318 = vmatmul.mubr.bf16.gmra.mxu0 %v8326
        %v9319 = vpop.f32.mrf.mxu0
        %v9320 = vadd.f32 0.0, %v9319
        %v9321 = vpop.f32.mrf.mxu0
        %v9322 = vpop.f32.mrf.mxu0
        %v9323 = vadd.f32 0.0, %v9322
        %v9324 = vpop.f32.mrf.mxu0
        %9325 = vmatprep.mubr.bf16.mxu0 0
        %9326 = vmatmul.mubr.bf16.gmra.mxu0 %v8329
        %v9327 = vpop.f32.mrf.mxu0
        %v9328 = vadd.f32 0.0, %v9327
        %v9329 = vpop.f32.mrf.mxu0
        %v9330 = vpop.f32.mrf.mxu0
        %v9331 = vadd.f32 0.0, %v9330
        %v9332 = vpop.f32.mrf.mxu0
        %9333 = vmatprep.mubr.bf16.mxu0 0
        %9334 = vmatmul.mubr.bf16.gmra.mxu0 %v8332
        %v9335 = vpop.f32.mrf.mxu0
        %v9336 = vadd.f32 0.0, %v9335
        %v9337 = vpop.f32.mrf.mxu0
        %v9338 = vpop.f32.mrf.mxu0
        %v9339 = vadd.f32 0.0, %v9338
        %v9340 = vpop.f32.mrf.mxu0
        %9341 = vmatprep.mubr.bf16.mxu0 0
        %9342 = vmatmul.mubr.bf16.gmra.mxu0 %v8335
        %v9343 = vpop.f32.mrf.mxu0
        %v9344 = vadd.f32 0.0, %v9343
        %v9345 = vpop.f32.mrf.mxu0
        %v9346 = vpop.f32.mrf.mxu0
        %v9347 = vadd.f32 0.0, %v9346
        %v9348 = vpop.f32.mrf.mxu0
        %9349 = vdwg.mxu0
        %v9350 = vadd.f32 %v7753, %v9096
        %v9351 = vadd.f32 %v7756, %v9099
        %v9352 = vadd.f32 %v7761, %v9104
        %v9353 = vadd.f32 %v7764, %v9107
        %v9354 = vadd.f32 %v7769, %v9112
        %v9355 = vadd.f32 %v7772, %v9115
        %v9356 = vadd.f32 %v7777, %v9120
        %v9357 = vadd.f32 %v7780, %v9123
        %v9358 = vadd.f32 %v7785, %v9128
        %v9359 = vadd.f32 %v7788, %v9131
        %v9360 = vadd.f32 %v7793, %v9136
        %v9361 = vadd.f32 %v7796, %v9139
        %v9362 = vadd.f32 %v7801, %v9144
        %v9363 = vadd.f32 %v7804, %v9147
        %v9364 = vadd.f32 %v7809, %v9152
        %v9365 = vadd.f32 %v7812, %v9155
        %v9366 = vadd.f32 %v7817, %v9160
        %v9367 = vadd.f32 %v7820, %v9163
        %v9368 = vadd.f32 %v7825, %v9168
        %v9369 = vadd.f32 %v7828, %v9171
        %v9370 = vadd.f32 %v7833, %v9176
        %v9371 = vadd.f32 %v7836, %v9179
        %v9372 = vadd.f32 %v7841, %v9184
        %v9373 = vadd.f32 %v7844, %v9187
        %v9374 = vadd.f32 %v7849, %v9192
        %v9375 = vadd.f32 %v7852, %v9195
        %v9376 = vadd.f32 %v7857, %v9200
        %v9377 = vadd.f32 %v7860, %v9203
        %v9378 = vadd.f32 %v7865, %v9208
        %v9379 = vadd.f32 %v7868, %v9211
        %v9380 = vadd.f32 %v7873, %v9216
        %v9381 = vadd.f32 %v7876, %v9219
        %v9382 = vadd.f32 %v7881, %v9224
        %v9383 = vadd.f32 %v7884, %v9227
        %v9384 = vadd.f32 %v7889, %v9232
        %v9385 = vadd.f32 %v7892, %v9235
        %v9386 = vadd.f32 %v7897, %v9240
        %v9387 = vadd.f32 %v7900, %v9243
        %v9388 = vadd.f32 %v7905, %v9248
        %v9389 = vadd.f32 %v7908, %v9251
        %v9390 = vadd.f32 %v7913, %v9256
        %v9391 = vadd.f32 %v7916, %v9259
        %v9392 = vadd.f32 %v7921, %v9264
        %v9393 = vadd.f32 %v7924, %v9267
        %v9394 = vadd.f32 %v7929, %v9272
        %v9395 = vadd.f32 %v7932, %v9275
        %v9396 = vadd.f32 %v7937, %v9280
        %v9397 = vadd.f32 %v7940, %v9283
        %v9398 = vadd.f32 %v7945, %v9288
        %v9399 = vadd.f32 %v7948, %v9291
        %v9400 = vadd.f32 %v7953, %v9296
        %v9401 = vadd.f32 %v7956, %v9299
        %v9402 = vadd.f32 %v7961, %v9304
        %v9403 = vadd.f32 %v7964, %v9307
        %v9404 = vadd.f32 %v7969, %v9312
        %v9405 = vadd.f32 %v7972, %v9315
        %v9406 = vadd.f32 %v7977, %v9320
        %v9407 = vadd.f32 %v7980, %v9323
        %v9408 = vadd.f32 %v7985, %v9328
        %v9409 = vadd.f32 %v7988, %v9331
        %v9410 = vadd.f32 %v7993, %v9336
        %v9411 = vadd.f32 %v7996, %v9339
        %v9412 = vadd.f32 %v8001, %v9344
        %v9413 = vadd.f32 %v8004, %v9347
        %v9414 = vrot.slane %v8626, 7
        %v9415 = vrot.slane %v8627, 7
        %v9416 = vrot.slane %v8628, 7
        %v9417 = vrot.slane %v8629, 7
        %v9418 = vrot.slane %v8630, 7
        %v9419 = vrot.slane %v8631, 7
        %v9420 = vrot.slane %v8632, 7
        %v9421 = vrot.slane %v8633, 7
        %v9422 = vrot.slane %v8634, 7
        %v9423 = vrot.slane %v8635, 7
        %v9424 = vrot.slane %v8636, 7
        %v9425 = vrot.slane %v8637, 7
        %v9426 = vrot.slane %v8638, 7
        %v9427 = vrot.slane %v8639, 7
        %v9428 = vrot.slane %v8640, 7
        %v9429 = vrot.slane %v8641, 7
        %v9430 = vrot.slane %v8642, 7
        %v9431 = vrot.slane %v8643, 7
        %v9432 = vrot.slane %v8644, 7
        %v9433 = vrot.slane %v8645, 7
        %v9434 = vrot.slane %v8646, 7
        %v9435 = vrot.slane %v8647, 7
        %v9436 = vrot.slane %v8648, 7
        %v9437 = vrot.slane %v8649, 7
        %v9438 = vrot.slane %v8650, 7
        %v9439 = vrot.slane %v8651, 7
        %v9440 = vrot.slane %v8652, 7
        %v9441 = vrot.slane %v8653, 7
        %v9442 = vrot.slane %v8654, 7
        %v9443 = vrot.slane %v8655, 7
        %v9444 = vrot.slane %v8656, 7
        %v9445 = vrot.slane %v8657, 7
        %v9446 = vrot.slane %v8658, 7
        %v9447 = vrot.slane %v8659, 7
        %v9448 = vrot.slane %v8660, 7
        %v9449 = vrot.slane %v8661, 7
        %v9450 = vrot.slane %v8662, 7
        %v9451 = vrot.slane %v8663, 7
        %v9452 = vrot.slane %v8664, 7
        %v9453 = vrot.slane %v8665, 7
        %v9454 = vrot.slane %v8666, 7
        %v9455 = vrot.slane %v8667, 7
        %v9456 = vrot.slane %v8668, 7
        %v9457 = vrot.slane %v8669, 7
        %v9458 = vrot.slane %v8670, 7
        %v9459 = vrot.slane %v8671, 7
        %v9460 = vrot.slane %v8672, 7
        %v9461 = vrot.slane %v8673, 7
        %v9462 = vrot.slane %v8674, 7
        %v9463 = vrot.slane %v8675, 7
        %v9464 = vrot.slane %v8676, 7
        %v9465 = vrot.slane %v8677, 7
        %v9466 = vrot.slane %v8678, 7
        %v9467 = vrot.slane %v8679, 7
        %v9468 = vrot.slane %v8680, 7
        %v9469 = vrot.slane %v8681, 7
        %v9470 = vrot.slane %v8682, 7
        %v9471 = vrot.slane %v8683, 7
        %v9472 = vrot.slane %v8684, 7
        %v9473 = vrot.slane %v8685, 7
        %v9474 = vrot.slane %v8686, 7
        %v9475 = vrot.slane %v8687, 7
        %v9476 = vrot.slane %v8688, 7
        %v9477 = vrot.slane %v8689, 7
        %v9478 = vsel %vm4279, %v9476, %v9477
        %v9479 = vsel %vm4279, %v9475, %v9476
        %v9480 = vsel %vm4279, %v9474, %v9475
        %v9481 = vsel %vm4279, %v9473, %v9474
        %v9482 = vsel %vm4279, %v9472, %v9473
        %v9483 = vsel %vm4279, %v9471, %v9472
        %v9484 = vsel %vm4279, %v9470, %v9471
        %v9485 = vsel %vm4279, %v9469, %v9470
        %v9486 = vsel %vm4279, %v9468, %v9469
        %v9487 = vsel %vm4279, %v9467, %v9468
        %v9488 = vsel %vm4279, %v9466, %v9467
        %v9489 = vsel %vm4279, %v9465, %v9466
        %v9490 = vsel %vm4279, %v9464, %v9465
        %v9491 = vsel %vm4279, %v9463, %v9464
        %v9492 = vsel %vm4279, %v9462, %v9463
        %v9493 = vsel %vm4279, %v9461, %v9462
        %v9494 = vsel %vm4279, %v9460, %v9461
        %v9495 = vsel %vm4279, %v9459, %v9460
        %v9496 = vsel %vm4279, %v9458, %v9459
        %v9497 = vsel %vm4279, %v9457, %v9458
        %v9498 = vsel %vm4279, %v9456, %v9457
        %v9499 = vsel %vm4279, %v9455, %v9456
        %v9500 = vsel %vm4279, %v9454, %v9455
        %v9501 = vsel %vm4279, %v9453, %v9454
        %v9502 = vsel %vm4279, %v9452, %v9453
        %v9503 = vsel %vm4279, %v9451, %v9452
        %v9504 = vsel %vm4279, %v9450, %v9451
        %v9505 = vsel %vm4279, %v9449, %v9450
        %v9506 = vsel %vm4279, %v9448, %v9449
        %v9507 = vsel %vm4279, %v9447, %v9448
        %v9508 = vsel %vm4279, %v9446, %v9447
        %v9509 = vsel %vm4279, %v9445, %v9446
        %v9510 = vsel %vm4279, %v9444, %v9445
        %v9511 = vsel %vm4279, %v9443, %v9444
        %v9512 = vsel %vm4279, %v9442, %v9443
        %v9513 = vsel %vm4279, %v9441, %v9442
        %v9514 = vsel %vm4279, %v9440, %v9441
        %v9515 = vsel %vm4279, %v9439, %v9440
        %v9516 = vsel %vm4279, %v9438, %v9439
        %v9517 = vsel %vm4279, %v9437, %v9438
        %v9518 = vsel %vm4279, %v9436, %v9437
        %v9519 = vsel %vm4279, %v9435, %v9436
        %v9520 = vsel %vm4279, %v9434, %v9435
        %v9521 = vsel %vm4279, %v9433, %v9434
        %v9522 = vsel %vm4279, %v9432, %v9433
        %v9523 = vsel %vm4279, %v9431, %v9432
        %v9524 = vsel %vm4279, %v9430, %v9431
        %v9525 = vsel %vm4279, %v9429, %v9430
        %v9526 = vsel %vm4279, %v9428, %v9429
        %v9527 = vsel %vm4279, %v9427, %v9428
        %v9528 = vsel %vm4279, %v9426, %v9427
        %v9529 = vsel %vm4279, %v9425, %v9426
        %v9530 = vsel %vm4279, %v9424, %v9425
        %v9531 = vsel %vm4279, %v9423, %v9424
        %v9532 = vsel %vm4279, %v9422, %v9423
        %v9533 = vsel %vm4279, %v9421, %v9422
        %v9534 = vsel %vm4279, %v9420, %v9421
        %v9535 = vsel %vm4279, %v9419, %v9420
        %v9536 = vsel %vm4279, %v9418, %v9419
        %v9537 = vsel %vm4279, %v9417, %v9418
        %v9538 = vsel %vm4279, %v9416, %v9417
        %v9539 = vsel %vm4279, %v9415, %v9416
        %v9540 = vsel %vm4279, %v9414, %v9415
        %v9541 = vsel %vm4279, %v9477, %v9414
        %v9542 = vadd.f32 %v9541, %v8988
        %v9543 = vadd.f32 %v9540, %v8989
        %v9544 = vadd.f32 %v9539, %v8990
        %v9545 = vadd.f32 %v9538, %v8991
        %v9546 = vadd.f32 %v9537, %v8992
        %v9547 = vadd.f32 %v9536, %v8993
        %v9548 = vadd.f32 %v9535, %v8994
        %v9549 = vadd.f32 %v9534, %v8995
        %v9550 = vadd.f32 %v9533, %v8996
        %v9551 = vadd.f32 %v9532, %v8997
        %v9552 = vadd.f32 %v9531, %v8998
        %v9553 = vadd.f32 %v9530, %v8999
        %v9554 = vadd.f32 %v9529, %v9000
        %v9555 = vadd.f32 %v9528, %v9001
        %v9556 = vadd.f32 %v9527, %v9002
        %v9557 = vadd.f32 %v9526, %v9003
        %v9558 = vadd.f32 %v9525, %v9004
        %v9559 = vadd.f32 %v9524, %v9005
        %v9560 = vadd.f32 %v9523, %v9006
        %v9561 = vadd.f32 %v9522, %v9007
        %v9562 = vadd.f32 %v9521, %v9008
        %v9563 = vadd.f32 %v9520, %v9009
        %v9564 = vadd.f32 %v9519, %v9010
        %v9565 = vadd.f32 %v9518, %v9011
        %v9566 = vadd.f32 %v9517, %v9012
        %v9567 = vadd.f32 %v9516, %v9013
        %v9568 = vadd.f32 %v9515, %v9014
        %v9569 = vadd.f32 %v9514, %v9015
        %v9570 = vadd.f32 %v9513, %v9016
        %v9571 = vadd.f32 %v9512, %v9017
        %v9572 = vadd.f32 %v9511, %v9018
        %v9573 = vadd.f32 %v9510, %v9019
        %v9574 = vadd.f32 %v9509, %v9020
        %v9575 = vadd.f32 %v9508, %v9021
        %v9576 = vadd.f32 %v9507, %v9022
        %v9577 = vadd.f32 %v9506, %v9023
        %v9578 = vadd.f32 %v9505, %v9024
        %v9579 = vadd.f32 %v9504, %v9025
        %v9580 = vadd.f32 %v9503, %v9026
        %v9581 = vadd.f32 %v9502, %v9027
        %v9582 = vadd.f32 %v9501, %v9028
        %v9583 = vadd.f32 %v9500, %v9029
        %v9584 = vadd.f32 %v9499, %v9030
        %v9585 = vadd.f32 %v9498, %v9031
        %v9586 = vadd.f32 %v9497, %v9032
        %v9587 = vadd.f32 %v9496, %v9033
        %v9588 = vadd.f32 %v9495, %v9034
        %v9589 = vadd.f32 %v9494, %v9035
        %v9590 = vadd.f32 %v9493, %v9036
        %v9591 = vadd.f32 %v9492, %v9037
        %v9592 = vadd.f32 %v9491, %v9038
        %v9593 = vadd.f32 %v9490, %v9039
        %v9594 = vadd.f32 %v9489, %v9040
        %v9595 = vadd.f32 %v9488, %v9041
        %v9596 = vadd.f32 %v9487, %v9042
        %v9597 = vadd.f32 %v9486, %v9043
        %v9598 = vadd.f32 %v9485, %v9044
        %v9599 = vadd.f32 %v9484, %v9045
        %v9600 = vadd.f32 %v9483, %v9046
        %v9601 = vadd.f32 %v9482, %v9047
        %v9602 = vadd.f32 %v9481, %v9048
        %v9603 = vadd.f32 %v9480, %v9049
        %v9604 = vadd.f32 %v9479, %v9050
        %v9605 = vadd.f32 %v9478, %v9051
        %v9606 = vrot.slane %v9350, 1
        %v9607 = vrot.slane %v9351, 1
        %v9608 = vrot.slane %v9352, 1
        %v9609 = vrot.slane %v9353, 1
        %v9610 = vrot.slane %v9354, 1
        %v9611 = vrot.slane %v9355, 1
        %v9612 = vrot.slane %v9356, 1
        %v9613 = vrot.slane %v9357, 1
        %v9614 = vrot.slane %v9358, 1
        %v9615 = vrot.slane %v9359, 1
        %v9616 = vrot.slane %v9360, 1
        %v9617 = vrot.slane %v9361, 1
        %v9618 = vrot.slane %v9362, 1
        %v9619 = vrot.slane %v9363, 1
        %v9620 = vrot.slane %v9364, 1
        %v9621 = vrot.slane %v9365, 1
        %v9622 = vrot.slane %v9366, 1
        %v9623 = vrot.slane %v9367, 1
        %v9624 = vrot.slane %v9368, 1
        %v9625 = vrot.slane %v9369, 1
        %v9626 = vrot.slane %v9370, 1
        %v9627 = vrot.slane %v9371, 1
        %v9628 = vrot.slane %v9372, 1
        %v9629 = vrot.slane %v9373, 1
        %v9630 = vrot.slane %v9374, 1
        %v9631 = vrot.slane %v9375, 1
        %v9632 = vrot.slane %v9376, 1
        %v9633 = vrot.slane %v9377, 1
        %v9634 = vrot.slane %v9378, 1
        %v9635 = vrot.slane %v9379, 1
        %v9636 = vrot.slane %v9380, 1
        %v9637 = vrot.slane %v9381, 1
        %v9638 = vrot.slane %v9382, 1
        %v9639 = vrot.slane %v9383, 1
        %v9640 = vrot.slane %v9384, 1
        %v9641 = vrot.slane %v9385, 1
        %v9642 = vrot.slane %v9386, 1
        %v9643 = vrot.slane %v9387, 1
        %v9644 = vrot.slane %v9388, 1
        %v9645 = vrot.slane %v9389, 1
        %v9646 = vrot.slane %v9390, 1
        %v9647 = vrot.slane %v9391, 1
        %v9648 = vrot.slane %v9392, 1
        %v9649 = vrot.slane %v9393, 1
        %v9650 = vrot.slane %v9394, 1
        %v9651 = vrot.slane %v9395, 1
        %v9652 = vrot.slane %v9396, 1
        %v9653 = vrot.slane %v9397, 1
        %v9654 = vrot.slane %v9398, 1
        %v9655 = vrot.slane %v9399, 1
        %v9656 = vrot.slane %v9400, 1
        %v9657 = vrot.slane %v9401, 1
        %v9658 = vrot.slane %v9402, 1
        %v9659 = vrot.slane %v9403, 1
        %v9660 = vrot.slane %v9404, 1
        %v9661 = vrot.slane %v9405, 1
        %v9662 = vrot.slane %v9406, 1
        %v9663 = vrot.slane %v9407, 1
        %v9664 = vrot.slane %v9408, 1
        %v9665 = vrot.slane %v9409, 1
        %v9666 = vrot.slane %v9410, 1
        %v9667 = vrot.slane %v9411, 1
        %v9668 = vrot.slane %v9412, 1
        %v9669 = vrot.slane %v9413, 1
        %v9670 = vsel %vm4472, %v9668, %v9669
        %v9671 = vsel %vm4472, %v9667, %v9668
        %v9672 = vsel %vm4472, %v9666, %v9667
        %v9673 = vsel %vm4472, %v9665, %v9666
        %v9674 = vsel %vm4472, %v9664, %v9665
        %v9675 = vsel %vm4472, %v9663, %v9664
        %v9676 = vsel %vm4472, %v9662, %v9663
        %v9677 = vsel %vm4472, %v9661, %v9662
        %v9678 = vsel %vm4472, %v9660, %v9661
        %v9679 = vsel %vm4472, %v9659, %v9660
        %v9680 = vsel %vm4472, %v9658, %v9659
        %v9681 = vsel %vm4472, %v9657, %v9658
        %v9682 = vsel %vm4472, %v9656, %v9657
        %v9683 = vsel %vm4472, %v9655, %v9656
        %v9684 = vsel %vm4472, %v9654, %v9655
        %v9685 = vsel %vm4472, %v9653, %v9654
        %v9686 = vsel %vm4472, %v9652, %v9653
        %v9687 = vsel %vm4472, %v9651, %v9652
        %v9688 = vsel %vm4472, %v9650, %v9651
        %v9689 = vsel %vm4472, %v9649, %v9650
        %v9690 = vsel %vm4472, %v9648, %v9649
        %v9691 = vsel %vm4472, %v9647, %v9648
        %v9692 = vsel %vm4472, %v9646, %v9647
        %v9693 = vsel %vm4472, %v9645, %v9646
        %v9694 = vsel %vm4472, %v9644, %v9645
        %v9695 = vsel %vm4472, %v9643, %v9644
        %v9696 = vsel %vm4472, %v9642, %v9643
        %v9697 = vsel %vm4472, %v9641, %v9642
        %v9698 = vsel %vm4472, %v9640, %v9641
        %v9699 = vsel %vm4472, %v9639, %v9640
        %v9700 = vsel %vm4472, %v9638, %v9639
        %v9701 = vsel %vm4472, %v9637, %v9638
        %v9702 = vsel %vm4472, %v9636, %v9637
        %v9703 = vsel %vm4472, %v9635, %v9636
        %v9704 = vsel %vm4472, %v9634, %v9635
        %v9705 = vsel %vm4472, %v9633, %v9634
        %v9706 = vsel %vm4472, %v9632, %v9633
        %v9707 = vsel %vm4472, %v9631, %v9632
        %v9708 = vsel %vm4472, %v9630, %v9631
        %v9709 = vsel %vm4472, %v9629, %v9630
        %v9710 = vsel %vm4472, %v9628, %v9629
        %v9711 = vsel %vm4472, %v9627, %v9628
        %v9712 = vsel %vm4472, %v9626, %v9627
        %v9713 = vsel %vm4472, %v9625, %v9626
        %v9714 = vsel %vm4472, %v9624, %v9625
        %v9715 = vsel %vm4472, %v9623, %v9624
        %v9716 = vsel %vm4472, %v9622, %v9623
        %v9717 = vsel %vm4472, %v9621, %v9622
        %v9718 = vsel %vm4472, %v9620, %v9621
        %v9719 = vsel %vm4472, %v9619, %v9620
        %v9720 = vsel %vm4472, %v9618, %v9619
        %v9721 = vsel %vm4472, %v9617, %v9618
        %v9722 = vsel %vm4472, %v9616, %v9617
        %v9723 = vsel %vm4472, %v9615, %v9616
        %v9724 = vsel %vm4472, %v9614, %v9615
        %v9725 = vsel %vm4472, %v9613, %v9614
        %v9726 = vsel %vm4472, %v9612, %v9613
        %v9727 = vsel %vm4472, %v9611, %v9612
        %v9728 = vsel %vm4472, %v9610, %v9611
        %v9729 = vsel %vm4472, %v9609, %v9610
        %v9730 = vsel %vm4472, %v9608, %v9609
        %v9731 = vsel %vm4472, %v9607, %v9608
        %v9732 = vsel %vm4472, %v9606, %v9607
        %v9733 = vsel %vm4472, %v9669, %v9606
        %v9734 = vadd.f32 %v9542, %v9732
        %v9735 = vadd.f32 %v9543, %v9731
        %v9736 = vadd.f32 %v9544, %v9730
        %v9737 = vadd.f32 %v9545, %v9729
        %v9738 = vadd.f32 %v9546, %v9728
        %v9739 = vadd.f32 %v9547, %v9727
        %v9740 = vadd.f32 %v9548, %v9726
        %v9741 = vadd.f32 %v9549, %v9725
        %v9742 = vadd.f32 %v9550, %v9724
        %v9743 = vadd.f32 %v9551, %v9723
        %v9744 = vadd.f32 %v9552, %v9722
        %v9745 = vadd.f32 %v9553, %v9721
        %v9746 = vadd.f32 %v9554, %v9720
        %v9747 = vadd.f32 %v9555, %v9719
        %v9748 = vadd.f32 %v9556, %v9718
        %v9749 = vadd.f32 %v9557, %v9717
        %v9750 = vadd.f32 %v9558, %v9716
        %v9751 = vadd.f32 %v9559, %v9715
        %v9752 = vadd.f32 %v9560, %v9714
        %v9753 = vadd.f32 %v9561, %v9713
        %v9754 = vadd.f32 %v9562, %v9712
        %v9755 = vadd.f32 %v9563, %v9711
        %v9756 = vadd.f32 %v9564, %v9710
        %v9757 = vadd.f32 %v9565, %v9709
        %v9758 = vadd.f32 %v9566, %v9708
        %v9759 = vadd.f32 %v9567, %v9707
        %v9760 = vadd.f32 %v9568, %v9706
        %v9761 = vadd.f32 %v9569, %v9705
        %v9762 = vadd.f32 %v9570, %v9704
        %v9763 = vadd.f32 %v9571, %v9703
        %v9764 = vadd.f32 %v9572, %v9702
        %v9765 = vadd.f32 %v9573, %v9701
        %v9766 = vadd.f32 %v9574, %v9700
        %v9767 = vadd.f32 %v9575, %v9699
        %v9768 = vadd.f32 %v9576, %v9698
        %v9769 = vadd.f32 %v9577, %v9697
        %v9770 = vadd.f32 %v9578, %v9696
        %v9771 = vadd.f32 %v9579, %v9695
        %v9772 = vadd.f32 %v9580, %v9694
        %v9773 = vadd.f32 %v9581, %v9693
        %v9774 = vadd.f32 %v9582, %v9692
        %v9775 = vadd.f32 %v9583, %v9691
        %v9776 = vadd.f32 %v9584, %v9690
        %v9777 = vadd.f32 %v9585, %v9689
        %v9778 = vadd.f32 %v9586, %v9688
        %v9779 = vadd.f32 %v9587, %v9687
        %v9780 = vadd.f32 %v9588, %v9686
        %v9781 = vadd.f32 %v9589, %v9685
        %v9782 = vadd.f32 %v9590, %v9684
        %v9783 = vadd.f32 %v9591, %v9683
        %v9784 = vadd.f32 %v9592, %v9682
        %v9785 = vadd.f32 %v9593, %v9681
        %v9786 = vadd.f32 %v9594, %v9680
        %v9787 = vadd.f32 %v9595, %v9679
        %v9788 = vadd.f32 %v9596, %v9678
        %v9789 = vadd.f32 %v9597, %v9677
        %v9790 = vadd.f32 %v9598, %v9676
        %v9791 = vadd.f32 %v9599, %v9675
        %v9792 = vadd.f32 %v9600, %v9674
        %v9793 = vadd.f32 %v9601, %v9673
        %v9794 = vadd.f32 %v9602, %v9672
        %v9795 = vadd.f32 %v9603, %v9671
        %v9796 = vadd.f32 %v9604, %v9670
        %v9797 = vadd.f32 %v9605, %v9733
        %v9798 = vld [vmem:[%s5] sm:$0x1]
        %v9800 = vlaneseq
        %v9801 = vshrl.u32 %v9800, 7
        %v9802 = vsub.s32 0, %v9801
        %v9803 = vrot.slane %v9798, %v9802
        %v9805 = vadd.f32 %v9734, %v9803
        %v9806 = vadd.f32 %v9735, %v9803
        %v9807 = vadd.f32 %v9736, %v9803
        %v9808 = vadd.f32 %v9737, %v9803
        %v9809 = vadd.f32 %v9738, %v9803
        %v9810 = vadd.f32 %v9739, %v9803
        %v9811 = vadd.f32 %v9740, %v9803
        %v9812 = vadd.f32 %v9741, %v9803
        %v9813 = vadd.f32 %v9742, %v9803
        %v9814 = vadd.f32 %v9743, %v9803
        %v9815 = vadd.f32 %v9744, %v9803
        %v9816 = vadd.f32 %v9745, %v9803
        %v9817 = vadd.f32 %v9746, %v9803
        %v9818 = vadd.f32 %v9747, %v9803
        %v9819 = vadd.f32 %v9748, %v9803
        %v9820 = vadd.f32 %v9749, %v9803
        %v9821 = vadd.f32 %v9750, %v9803
        %v9822 = vadd.f32 %v9751, %v9803
        %v9823 = vadd.f32 %v9752, %v9803
        %v9824 = vadd.f32 %v9753, %v9803
        %v9825 = vadd.f32 %v9754, %v9803
        %v9826 = vadd.f32 %v9755, %v9803
        %v9827 = vadd.f32 %v9756, %v9803
        %v9828 = vadd.f32 %v9757, %v9803
        %v9829 = vadd.f32 %v9758, %v9803
        %v9830 = vadd.f32 %v9759, %v9803
        %v9831 = vadd.f32 %v9760, %v9803
        %v9832 = vadd.f32 %v9761, %v9803
        %v9833 = vadd.f32 %v9762, %v9803
        %v9834 = vadd.f32 %v9763, %v9803
        %v9835 = vadd.f32 %v9764, %v9803
        %v9836 = vadd.f32 %v9765, %v9803
        %v9837 = vadd.f32 %v9766, %v9803
        %v9838 = vadd.f32 %v9767, %v9803
        %v9839 = vadd.f32 %v9768, %v9803
        %v9840 = vadd.f32 %v9769, %v9803
        %v9841 = vadd.f32 %v9770, %v9803
        %v9842 = vadd.f32 %v9771, %v9803
        %v9843 = vadd.f32 %v9772, %v9803
        %v9844 = vadd.f32 %v9773, %v9803
        %v9845 = vadd.f32 %v9774, %v9803
        %v9846 = vadd.f32 %v9775, %v9803
        %v9847 = vadd.f32 %v9776, %v9803
        %v9848 = vadd.f32 %v9777, %v9803
        %v9849 = vadd.f32 %v9778, %v9803
        %v9850 = vadd.f32 %v9779, %v9803
        %v9851 = vadd.f32 %v9780, %v9803
        %v9852 = vadd.f32 %v9781, %v9803
        %v9853 = vadd.f32 %v9782, %v9803
        %v9854 = vadd.f32 %v9783, %v9803
        %v9855 = vadd.f32 %v9784, %v9803
        %v9856 = vadd.f32 %v9785, %v9803
        %v9857 = vadd.f32 %v9786, %v9803
        %v9858 = vadd.f32 %v9787, %v9803
        %v9859 = vadd.f32 %v9788, %v9803
        %v9860 = vadd.f32 %v9789, %v9803
        %v9861 = vadd.f32 %v9790, %v9803
        %v9862 = vadd.f32 %v9791, %v9803
        %v9863 = vadd.f32 %v9792, %v9803
        %v9864 = vadd.f32 %v9793, %v9803
        %v9865 = vadd.f32 %v9794, %v9803
        %v9866 = vadd.f32 %v9795, %v9803
        %v9867 = vadd.f32 %v9796, %v9803
        %v9868 = vadd.f32 %v9797, %v9803
        %v9869 = vmul.f32 %v9805, 0.1
        %v9870 = vmul.f32 %v9806, 0.1
        %v9871 = vmul.f32 %v9807, 0.1
        %v9872 = vmul.f32 %v9808, 0.1
        %v9873 = vmul.f32 %v9809, 0.1
        %v9874 = vmul.f32 %v9810, 0.1
        %v9875 = vmul.f32 %v9811, 0.1
        %v9876 = vmul.f32 %v9812, 0.1
        %v9877 = vmul.f32 %v9813, 0.1
        %v9878 = vmul.f32 %v9814, 0.1
        %v9879 = vmul.f32 %v9815, 0.1
        %v9880 = vmul.f32 %v9816, 0.1
        %v9881 = vmul.f32 %v9817, 0.1
        %v9882 = vmul.f32 %v9818, 0.1
        %v9883 = vmul.f32 %v9819, 0.1
        %v9884 = vmul.f32 %v9820, 0.1
        %v9885 = vmul.f32 %v9821, 0.1
        %v9886 = vmul.f32 %v9822, 0.1
        %v9887 = vmul.f32 %v9823, 0.1
        %v9888 = vmul.f32 %v9824, 0.1
        %v9889 = vmul.f32 %v9825, 0.1
        %v9890 = vmul.f32 %v9826, 0.1
        %v9891 = vmul.f32 %v9827, 0.1
        %v9892 = vmul.f32 %v9828, 0.1
        %v9893 = vmul.f32 %v9829, 0.1
        %v9894 = vmul.f32 %v9830, 0.1
        %v9895 = vmul.f32 %v9831, 0.1
        %v9896 = vmul.f32 %v9832, 0.1
        %v9897 = vmul.f32 %v9833, 0.1
        %v9898 = vmul.f32 %v9834, 0.1
        %v9899 = vmul.f32 %v9835, 0.1
        %v9900 = vmul.f32 %v9836, 0.1
        %v9901 = vmul.f32 %v9837, 0.1
        %v9902 = vmul.f32 %v9838, 0.1
        %v9903 = vmul.f32 %v9839, 0.1
        %v9904 = vmul.f32 %v9840, 0.1
        %v9905 = vmul.f32 %v9841, 0.1
        %v9906 = vmul.f32 %v9842, 0.1
        %v9907 = vmul.f32 %v9843, 0.1
        %v9908 = vmul.f32 %v9844, 0.1
        %v9909 = vmul.f32 %v9845, 0.1
        %v9910 = vmul.f32 %v9846, 0.1
        %v9911 = vmul.f32 %v9847, 0.1
        %v9912 = vmul.f32 %v9848, 0.1
        %v9913 = vmul.f32 %v9849, 0.1
        %v9914 = vmul.f32 %v9850, 0.1
        %v9915 = vmul.f32 %v9851, 0.1
        %v9916 = vmul.f32 %v9852, 0.1
        %v9917 = vmul.f32 %v9853, 0.1
        %v9918 = vmul.f32 %v9854, 0.1
        %v9919 = vmul.f32 %v9855, 0.1
        %v9920 = vmul.f32 %v9856, 0.1
        %v9921 = vmul.f32 %v9857, 0.1
        %v9922 = vmul.f32 %v9858, 0.1
        %v9923 = vmul.f32 %v9859, 0.1
        %v9924 = vmul.f32 %v9860, 0.1
        %v9925 = vmul.f32 %v9861, 0.1
        %v9926 = vmul.f32 %v9862, 0.1
        %v9927 = vmul.f32 %v9863, 0.1
        %v9928 = vmul.f32 %v9864, 0.1
        %v9929 = vmul.f32 %v9865, 0.1
        %v9930 = vmul.f32 %v9866, 0.1
        %v9931 = vmul.f32 %v9867, 0.1
        %v9932 = vmul.f32 %v9868, 0.1
        %v9933 = vmax.f32 %v9805, %v9869
        %v9934 = vmax.f32 %v9806, %v9870
        %v9935 = vmax.f32 %v9807, %v9871
        %v9936 = vmax.f32 %v9808, %v9872
        %v9937 = vmax.f32 %v9809, %v9873
        %v9938 = vmax.f32 %v9810, %v9874
        %v9939 = vmax.f32 %v9811, %v9875
        %v9940 = vmax.f32 %v9812, %v9876
        %v9941 = vmax.f32 %v9813, %v9877
        %v9942 = vmax.f32 %v9814, %v9878
        %v9943 = vmax.f32 %v9815, %v9879
        %v9944 = vmax.f32 %v9816, %v9880
        %v9945 = vmax.f32 %v9817, %v9881
        %v9946 = vmax.f32 %v9818, %v9882
        %v9947 = vmax.f32 %v9819, %v9883
        %v9948 = vmax.f32 %v9820, %v9884
        %v9949 = vmax.f32 %v9821, %v9885
        %v9950 = vmax.f32 %v9822, %v9886
        %v9951 = vmax.f32 %v9823, %v9887
        %v9952 = vmax.f32 %v9824, %v9888
        %v9953 = vmax.f32 %v9825, %v9889
        %v9954 = vmax.f32 %v9826, %v9890
        %v9955 = vmax.f32 %v9827, %v9891
        %v9956 = vmax.f32 %v9828, %v9892
        %v9957 = vmax.f32 %v9829, %v9893
        %v9958 = vmax.f32 %v9830, %v9894
        %v9959 = vmax.f32 %v9831, %v9895
        %v9960 = vmax.f32 %v9832, %v9896
        %v9961 = vmax.f32 %v9833, %v9897
        %v9962 = vmax.f32 %v9834, %v9898
        %v9963 = vmax.f32 %v9835, %v9899
        %v9964 = vmax.f32 %v9836, %v9900
        %v9965 = vmax.f32 %v9837, %v9901
        %v9966 = vmax.f32 %v9838, %v9902
        %v9967 = vmax.f32 %v9839, %v9903
        %v9968 = vmax.f32 %v9840, %v9904
        %v9969 = vmax.f32 %v9841, %v9905
        %v9970 = vmax.f32 %v9842, %v9906
        %v9971 = vmax.f32 %v9843, %v9907
        %v9972 = vmax.f32 %v9844, %v9908
        %v9973 = vmax.f32 %v9845, %v9909
        %v9974 = vmax.f32 %v9846, %v9910
        %v9975 = vmax.f32 %v9847, %v9911
        %v9976 = vmax.f32 %v9848, %v9912
        %v9977 = vmax.f32 %v9849, %v9913
        %v9978 = vmax.f32 %v9850, %v9914
        %v9979 = vmax.f32 %v9851, %v9915
        %v9980 = vmax.f32 %v9852, %v9916
        %v9981 = vmax.f32 %v9853, %v9917
        %v9982 = vmax.f32 %v9854, %v9918
        %v9983 = vmax.f32 %v9855, %v9919
        %v9984 = vmax.f32 %v9856, %v9920
        %v9985 = vmax.f32 %v9857, %v9921
        %v9986 = vmax.f32 %v9858, %v9922
        %v9987 = vmax.f32 %v9859, %v9923
        %v9988 = vmax.f32 %v9860, %v9924
        %v9989 = vmax.f32 %v9861, %v9925
        %v9990 = vmax.f32 %v9862, %v9926
        %v9991 = vmax.f32 %v9863, %v9927
        %v9992 = vmax.f32 %v9864, %v9928
        %v9993 = vmax.f32 %v9865, %v9929
        %v9994 = vmax.f32 %v9866, %v9930
        %v9995 = vmax.f32 %v9867, %v9931
        %v9996 = vmax.f32 %v9868, %v9932
        %v9997 = vpack.c.bf16 %v9934, %v9933
        %v9998 = vpack.c.bf16 %v9936, %v9935
        %v9999 = vpack.c.bf16 %v9938, %v9937
        %v10000 = vpack.c.bf16 %v9940, %v9939
        %v10001 = vpack.c.bf16 %v9942, %v9941
        %v10002 = vpack.c.bf16 %v9944, %v9943
        %v10003 = vpack.c.bf16 %v9946, %v9945
        %v10004 = vpack.c.bf16 %v9948, %v9947
        %v10005 = vpack.c.bf16 %v9950, %v9949
        %v10006 = vpack.c.bf16 %v9952, %v9951
        %v10007 = vpack.c.bf16 %v9954, %v9953
        %v10008 = vpack.c.bf16 %v9956, %v9955
        %v10009 = vpack.c.bf16 %v9958, %v9957
        %v10010 = vpack.c.bf16 %v9960, %v9959
        %v10011 = vpack.c.bf16 %v9962, %v9961
        %v10012 = vpack.c.bf16 %v9964, %v9963
        %v10013 = vpack.c.bf16 %v9966, %v9965
        %v10014 = vpack.c.bf16 %v9968, %v9967
        %v10015 = vpack.c.bf16 %v9970, %v9969
        %v10016 = vpack.c.bf16 %v9972, %v9971
        %v10017 = vpack.c.bf16 %v9974, %v9973
        %v10018 = vpack.c.bf16 %v9976, %v9975
        %v10019 = vpack.c.bf16 %v9978, %v9977
        %v10020 = vpack.c.bf16 %v9980, %v9979
        %v10021 = vpack.c.bf16 %v9982, %v9981
        %v10022 = vpack.c.bf16 %v9984, %v9983
        %v10023 = vpack.c.bf16 %v9986, %v9985
        %v10024 = vpack.c.bf16 %v9988, %v9987
        %v10025 = vpack.c.bf16 %v9990, %v9989
        %v10026 = vpack.c.bf16 %v9992, %v9991
        %v10027 = vpack.c.bf16 %v9994, %v9993
        %v10028 = vpack.c.bf16 %v9996, %v9995
        %v10029 = vld [vmem:[%s6] sm:$0xf]
        %v10030 = vld [vmem:[%s6 + $0x4] sm:$0xf]
        %v10031 = vld [vmem:[%s6 + $0x8] sm:$0xf]
        %v10032 = vld [vmem:[%s6 + $0xc] sm:$0xf]
        %v10033 = vld [vmem:[%s7] sm:$0x1]
        %v10035 = vlaneseq
        %v10036 = vshrl.u32 %v10035, 7
        %v10037 = vsub.s32 0, %v10036
        %v10038 = vrot.slane %v10033, %v10037
        %v10044 = vunpack.c.l.b16 %v10029
        %v10045 = vunpack.c.l.b16 %v10030
        %v10046 = vunpack.c.l.b16 %v10031
        %v10047 = vunpack.c.l.b16 %v10032
        %v10048 = vpack.c.b16 %v10045, %v10044
        %v10049 = vpack.c.b16 %v10047, %v10046
        %v10053 = vsel %vm625, %v9997, 0
        %v10056 = vsel %vm625, %v9998, 0
        %v10059 = vsel %vm625, %v9999, 0
        %v10062 = vsel %vm625, %v10000, 0
        %v10065 = vsel %vm625, %v10001, 0
        %v10068 = vsel %vm625, %v10002, 0
        %v10071 = vsel %vm625, %v10003, 0
        %v10074 = vsel %vm625, %v10004, 0
        %v10077 = vsel %vm625, %v10005, 0
        %v10080 = vsel %vm625, %v10006, 0
        %v10083 = vsel %vm625, %v10007, 0
        %v10086 = vsel %vm625, %v10008, 0
        %v10089 = vsel %vm625, %v10009, 0
        %v10092 = vsel %vm625, %v10010, 0
        %v10095 = vsel %vm625, %v10011, 0
        %v10098 = vsel %vm625, %v10012, 0
        %v10101 = vsel %vm625, %v10013, 0
        %v10104 = vsel %vm625, %v10014, 0
        %v10107 = vsel %vm625, %v10015, 0
        %v10110 = vsel %vm625, %v10016, 0
        %v10113 = vsel %vm625, %v10017, 0
        %v10116 = vsel %vm625, %v10018, 0
        %v10119 = vsel %vm625, %v10019, 0
        %v10122 = vsel %vm625, %v10020, 0
        %v10125 = vsel %vm625, %v10021, 0
        %v10128 = vsel %vm625, %v10022, 0
        %v10131 = vsel %vm625, %v10023, 0
        %v10134 = vsel %vm625, %v10024, 0
        %v10137 = vsel %vm625, %v10025, 0
        %v10140 = vsel %vm625, %v10026, 0
        %v10143 = vsel %vm625, %v10027, 0
        %v10146 = vsel %vm625, %v10028, 0
        %10148 = vmatprep.subr.bf16.mxu0 0
        %10149 = vmatpush1.bf16.msra.mxu0 0
        %10150 = vmatprep.subr.bf16.mxu0 0
        %10151 = vmatpush1.bf16.msra.mxu0 0
        %10152 = vmatprep.subr.bf16.mxu0 0
        %10153 = vmatpush1.bf16.msra.mxu0 0
        %10154 = vmatprep.subr.bf16.mxu0 0
        %10155 = vmatpush1.bf16.msra.mxu0 0
        %10156 = vmatprep.subr.bf16.mxu0 0
        %10157 = vmatpush1.bf16.msra.mxu0 0
        %10158 = vmatprep.subr.bf16.mxu0 0
        %10159 = vmatpush1.bf16.msra.mxu0 0
        %10160 = vmatprep.subr.bf16.mxu0 0
        %10161 = vmatpush1.bf16.msra.mxu0 %v10049
        %10162 = vmatprep.subr.bf16.mxu0 0
        %10163 = vmatpush1.bf16.msra.mxu0 %v10048
        %10164 = vmatprep.subr.bf16.mxu0 0
        %10165 = vmatpush2.bf16.msra.mxu0 0
        %10166 = vmatprep.subr.bf16.mxu0 0
        %10167 = vmatpush2.bf16.msra.mxu0 0
        %10168 = vmatprep.subr.bf16.mxu0 0
        %10169 = vmatpush2.bf16.msra.mxu0 0
        %10170 = vmatprep.subr.bf16.mxu0 0
        %10171 = vmatpush2.bf16.msra.mxu0 0
        %10172 = vmatprep.subr.bf16.mxu0 0
        %10173 = vmatpush2.bf16.msra.mxu0 0
        %10174 = vmatprep.subr.bf16.mxu0 0
        %10175 = vmatpush2.bf16.msra.mxu0 0
        %10176 = vmatprep.subr.bf16.mxu0 0
        %10177 = vmatpush2.bf16.msra.mxu0 0
        %10178 = vmatprep.subr.bf16.mxu0 0
        %10179 = vmatpush2.bf16.msra.mxu0 0
        %10180 = vmatprep.mubr.bf16.mxu0 0
        %10181 = vmatmul.mubr.bf16.gmra.mxu0 %v10053
        %v10182 = vpop.f32.mrf.mxu0
        %v10183 = vadd.f32 %v10038, %v10182
        %v10184 = vpop.f32.mrf.mxu0
        %v10185 = vpop.f32.mrf.mxu0
        %v10186 = vadd.f32 %v10038, %v10185
        %v10187 = vpop.f32.mrf.mxu0
        %10188 = vmatprep.mubr.bf16.mxu0 0
        %10189 = vmatmul.mubr.bf16.gmra.mxu0 %v10056
        %v10190 = vpop.f32.mrf.mxu0
        %v10191 = vadd.f32 %v10038, %v10190
        %v10192 = vpop.f32.mrf.mxu0
        %v10193 = vpop.f32.mrf.mxu0
        %v10194 = vadd.f32 %v10038, %v10193
        %v10195 = vpop.f32.mrf.mxu0
        %10196 = vmatprep.mubr.bf16.mxu0 0
        %10197 = vmatmul.mubr.bf16.gmra.mxu0 %v10059
        %v10198 = vpop.f32.mrf.mxu0
        %v10199 = vadd.f32 %v10038, %v10198
        %v10200 = vpop.f32.mrf.mxu0
        %v10201 = vpop.f32.mrf.mxu0
        %v10202 = vadd.f32 %v10038, %v10201
        %v10203 = vpop.f32.mrf.mxu0
        %10204 = vmatprep.mubr.bf16.mxu0 0
        %10205 = vmatmul.mubr.bf16.gmra.mxu0 %v10062
        %v10206 = vpop.f32.mrf.mxu0
        %v10207 = vadd.f32 %v10038, %v10206
        %v10208 = vpop.f32.mrf.mxu0
        %v10209 = vpop.f32.mrf.mxu0
        %v10210 = vadd.f32 %v10038, %v10209
        %v10211 = vpop.f32.mrf.mxu0
        %10212 = vmatprep.mubr.bf16.mxu0 0
        %10213 = vmatmul.mubr.bf16.gmra.mxu0 %v10065
        %v10214 = vpop.f32.mrf.mxu0
        %v10215 = vadd.f32 %v10038, %v10214
        %v10216 = vpop.f32.mrf.mxu0
        %v10217 = vpop.f32.mrf.mxu0
        %v10218 = vadd.f32 %v10038, %v10217
        %v10219 = vpop.f32.mrf.mxu0
        %10220 = vmatprep.mubr.bf16.mxu0 0
        %10221 = vmatmul.mubr.bf16.gmra.mxu0 %v10068
        %v10222 = vpop.f32.mrf.mxu0
        %v10223 = vadd.f32 %v10038, %v10222
        %v10224 = vpop.f32.mrf.mxu0
        %v10225 = vpop.f32.mrf.mxu0
        %v10226 = vadd.f32 %v10038, %v10225
        %v10227 = vpop.f32.mrf.mxu0
        %10228 = vmatprep.mubr.bf16.mxu0 0
        %10229 = vmatmul.mubr.bf16.gmra.mxu0 %v10071
        %v10230 = vpop.f32.mrf.mxu0
        %v10231 = vadd.f32 %v10038, %v10230
        %v10232 = vpop.f32.mrf.mxu0
        %v10233 = vpop.f32.mrf.mxu0
        %v10234 = vadd.f32 %v10038, %v10233
        %v10235 = vpop.f32.mrf.mxu0
        %10236 = vmatprep.mubr.bf16.mxu0 0
        %10237 = vmatmul.mubr.bf16.gmra.mxu0 %v10074
        %v10238 = vpop.f32.mrf.mxu0
        %v10239 = vadd.f32 %v10038, %v10238
        %v10240 = vpop.f32.mrf.mxu0
        %v10241 = vpop.f32.mrf.mxu0
        %v10242 = vadd.f32 %v10038, %v10241
        %v10243 = vpop.f32.mrf.mxu0
        %10244 = vmatprep.mubr.bf16.mxu0 0
        %10245 = vmatmul.mubr.bf16.gmra.mxu0 %v10077
        %v10246 = vpop.f32.mrf.mxu0
        %v10247 = vadd.f32 %v10038, %v10246
        %v10248 = vpop.f32.mrf.mxu0
        %v10249 = vpop.f32.mrf.mxu0
        %v10250 = vadd.f32 %v10038, %v10249
        %v10251 = vpop.f32.mrf.mxu0
        %10252 = vmatprep.mubr.bf16.mxu0 0
        %10253 = vmatmul.mubr.bf16.gmra.mxu0 %v10080
        %v10254 = vpop.f32.mrf.mxu0
        %v10255 = vadd.f32 %v10038, %v10254
        %v10256 = vpop.f32.mrf.mxu0
        %v10257 = vpop.f32.mrf.mxu0
        %v10258 = vadd.f32 %v10038, %v10257
        %v10259 = vpop.f32.mrf.mxu0
        %10260 = vmatprep.mubr.bf16.mxu0 0
        %10261 = vmatmul.mubr.bf16.gmra.mxu0 %v10083
        %v10262 = vpop.f32.mrf.mxu0
        %v10263 = vadd.f32 %v10038, %v10262
        %v10264 = vpop.f32.mrf.mxu0
        %v10265 = vpop.f32.mrf.mxu0
        %v10266 = vadd.f32 %v10038, %v10265
        %v10267 = vpop.f32.mrf.mxu0
        %10268 = vmatprep.mubr.bf16.mxu0 0
        %10269 = vmatmul.mubr.bf16.gmra.mxu0 %v10086
        %v10270 = vpop.f32.mrf.mxu0
        %v10271 = vadd.f32 %v10038, %v10270
        %v10272 = vpop.f32.mrf.mxu0
        %v10273 = vpop.f32.mrf.mxu0
        %v10274 = vadd.f32 %v10038, %v10273
        %v10275 = vpop.f32.mrf.mxu0
        %10276 = vmatprep.mubr.bf16.mxu0 0
        %10277 = vmatmul.mubr.bf16.gmra.mxu0 %v10089
        %v10278 = vpop.f32.mrf.mxu0
        %v10279 = vadd.f32 %v10038, %v10278
        %v10280 = vpop.f32.mrf.mxu0
        %v10281 = vpop.f32.mrf.mxu0
        %v10282 = vadd.f32 %v10038, %v10281
        %v10283 = vpop.f32.mrf.mxu0
        %10284 = vmatprep.mubr.bf16.mxu0 0
        %10285 = vmatmul.mubr.bf16.gmra.mxu0 %v10092
        %v10286 = vpop.f32.mrf.mxu0
        %v10287 = vadd.f32 %v10038, %v10286
        %v10288 = vpop.f32.mrf.mxu0
        %v10289 = vpop.f32.mrf.mxu0
        %v10290 = vadd.f32 %v10038, %v10289
        %v10291 = vpop.f32.mrf.mxu0
        %10292 = vmatprep.mubr.bf16.mxu0 0
        %10293 = vmatmul.mubr.bf16.gmra.mxu0 %v10095
        %v10294 = vpop.f32.mrf.mxu0
        %v10295 = vadd.f32 %v10038, %v10294
        %v10296 = vpop.f32.mrf.mxu0
        %v10297 = vpop.f32.mrf.mxu0
        %v10298 = vadd.f32 %v10038, %v10297
        %v10299 = vpop.f32.mrf.mxu0
        %10300 = vmatprep.mubr.bf16.mxu0 0
        %10301 = vmatmul.mubr.bf16.gmra.mxu0 %v10098
        %v10302 = vpop.f32.mrf.mxu0
        %v10303 = vadd.f32 %v10038, %v10302
        %v10304 = vpop.f32.mrf.mxu0
        %v10305 = vpop.f32.mrf.mxu0
        %v10306 = vadd.f32 %v10038, %v10305
        %v10307 = vpop.f32.mrf.mxu0
        %10308 = vmatprep.mubr.bf16.mxu0 0
        %10309 = vmatmul.mubr.bf16.gmra.mxu0 %v10101
        %v10310 = vpop.f32.mrf.mxu0
        %v10311 = vadd.f32 %v10038, %v10310
        %v10312 = vpop.f32.mrf.mxu0
        %v10313 = vpop.f32.mrf.mxu0
        %v10314 = vadd.f32 %v10038, %v10313
        %v10315 = vpop.f32.mrf.mxu0
        %10316 = vmatprep.mubr.bf16.mxu0 0
        %10317 = vmatmul.mubr.bf16.gmra.mxu0 %v10104
        %v10318 = vpop.f32.mrf.mxu0
        %v10319 = vadd.f32 %v10038, %v10318
        %v10320 = vpop.f32.mrf.mxu0
        %v10321 = vpop.f32.mrf.mxu0
        %v10322 = vadd.f32 %v10038, %v10321
        %v10323 = vpop.f32.mrf.mxu0
        %10324 = vmatprep.mubr.bf16.mxu0 0
        %10325 = vmatmul.mubr.bf16.gmra.mxu0 %v10107
        %v10326 = vpop.f32.mrf.mxu0
        %v10327 = vadd.f32 %v10038, %v10326
        %v10328 = vpop.f32.mrf.mxu0
        %v10329 = vpop.f32.mrf.mxu0
        %v10330 = vadd.f32 %v10038, %v10329
        %v10331 = vpop.f32.mrf.mxu0
        %10332 = vmatprep.mubr.bf16.mxu0 0
        %10333 = vmatmul.mubr.bf16.gmra.mxu0 %v10110
        %v10334 = vpop.f32.mrf.mxu0
        %v10335 = vadd.f32 %v10038, %v10334
        %v10336 = vpop.f32.mrf.mxu0
        %v10337 = vpop.f32.mrf.mxu0
        %v10338 = vadd.f32 %v10038, %v10337
        %v10339 = vpop.f32.mrf.mxu0
        %10340 = vmatprep.mubr.bf16.mxu0 0
        %10341 = vmatmul.mubr.bf16.gmra.mxu0 %v10113
        %v10342 = vpop.f32.mrf.mxu0
        %v10343 = vadd.f32 %v10038, %v10342
        %v10344 = vpop.f32.mrf.mxu0
        %v10345 = vpop.f32.mrf.mxu0
        %v10346 = vadd.f32 %v10038, %v10345
        %v10347 = vpop.f32.mrf.mxu0
        %10348 = vmatprep.mubr.bf16.mxu0 0
        %10349 = vmatmul.mubr.bf16.gmra.mxu0 %v10116
        %v10350 = vpop.f32.mrf.mxu0
        %v10351 = vadd.f32 %v10038, %v10350
        %v10352 = vpop.f32.mrf.mxu0
        %v10353 = vpop.f32.mrf.mxu0
        %v10354 = vadd.f32 %v10038, %v10353
        %v10355 = vpop.f32.mrf.mxu0
        %10356 = vmatprep.mubr.bf16.mxu0 0
        %10357 = vmatmul.mubr.bf16.gmra.mxu0 %v10119
        %v10358 = vpop.f32.mrf.mxu0
        %v10359 = vadd.f32 %v10038, %v10358
        %v10360 = vpop.f32.mrf.mxu0
        %v10361 = vpop.f32.mrf.mxu0
        %v10362 = vadd.f32 %v10038, %v10361
        %v10363 = vpop.f32.mrf.mxu0
        %10364 = vmatprep.mubr.bf16.mxu0 0
        %10365 = vmatmul.mubr.bf16.gmra.mxu0 %v10122
        %v10366 = vpop.f32.mrf.mxu0
        %v10367 = vadd.f32 %v10038, %v10366
        %v10368 = vpop.f32.mrf.mxu0
        %v10369 = vpop.f32.mrf.mxu0
        %v10370 = vadd.f32 %v10038, %v10369
        %v10371 = vpop.f32.mrf.mxu0
        %10372 = vmatprep.mubr.bf16.mxu0 0
        %10373 = vmatmul.mubr.bf16.gmra.mxu0 %v10125
        %v10374 = vpop.f32.mrf.mxu0
        %v10375 = vadd.f32 %v10038, %v10374
        %v10376 = vpop.f32.mrf.mxu0
        %v10377 = vpop.f32.mrf.mxu0
        %v10378 = vadd.f32 %v10038, %v10377
        %v10379 = vpop.f32.mrf.mxu0
        %10380 = vmatprep.mubr.bf16.mxu0 0
        %10381 = vmatmul.mubr.bf16.gmra.mxu0 %v10128
        %v10382 = vpop.f32.mrf.mxu0
        %v10383 = vadd.f32 %v10038, %v10382
        %v10384 = vpop.f32.mrf.mxu0
        %v10385 = vpop.f32.mrf.mxu0
        %v10386 = vadd.f32 %v10038, %v10385
        %v10387 = vpop.f32.mrf.mxu0
        %10388 = vmatprep.mubr.bf16.mxu0 0
        %10389 = vmatmul.mubr.bf16.gmra.mxu0 %v10131
        %v10390 = vpop.f32.mrf.mxu0
        %v10391 = vadd.f32 %v10038, %v10390
        %v10392 = vpop.f32.mrf.mxu0
        %v10393 = vpop.f32.mrf.mxu0
        %v10394 = vadd.f32 %v10038, %v10393
        %v10395 = vpop.f32.mrf.mxu0
        %10396 = vmatprep.mubr.bf16.mxu0 0
        %10397 = vmatmul.mubr.bf16.gmra.mxu0 %v10134
        %v10398 = vpop.f32.mrf.mxu0
        %v10399 = vadd.f32 %v10038, %v10398
        %v10400 = vpop.f32.mrf.mxu0
        %v10401 = vpop.f32.mrf.mxu0
        %v10402 = vadd.f32 %v10038, %v10401
        %v10403 = vpop.f32.mrf.mxu0
        %10404 = vmatprep.mubr.bf16.mxu0 0
        %10405 = vmatmul.mubr.bf16.gmra.mxu0 %v10137
        %v10406 = vpop.f32.mrf.mxu0
        %v10407 = vadd.f32 %v10038, %v10406
        %v10408 = vpop.f32.mrf.mxu0
        %v10409 = vpop.f32.mrf.mxu0
        %v10410 = vadd.f32 %v10038, %v10409
        %v10411 = vpop.f32.mrf.mxu0
        %10412 = vmatprep.mubr.bf16.mxu0 0
        %10413 = vmatmul.mubr.bf16.gmra.mxu0 %v10140
        %v10414 = vpop.f32.mrf.mxu0
        %v10415 = vadd.f32 %v10038, %v10414
        %v10416 = vpop.f32.mrf.mxu0
        %v10417 = vpop.f32.mrf.mxu0
        %v10418 = vadd.f32 %v10038, %v10417
        %v10419 = vpop.f32.mrf.mxu0
        %10420 = vmatprep.mubr.bf16.mxu0 0
        %10421 = vmatmul.mubr.bf16.gmra.mxu0 %v10143
        %v10422 = vpop.f32.mrf.mxu0
        %v10423 = vadd.f32 %v10038, %v10422
        %v10424 = vpop.f32.mrf.mxu0
        %v10425 = vpop.f32.mrf.mxu0
        %v10426 = vadd.f32 %v10038, %v10425
        %v10427 = vpop.f32.mrf.mxu0
        %10428 = vmatprep.mubr.bf16.mxu0 0
        %10429 = vmatmul.mubr.bf16.gmra.mxu0 %v10146
        %v10430 = vpop.f32.mrf.mxu0
        %v10431 = vadd.f32 %v10038, %v10430
        %v10432 = vpop.f32.mrf.mxu0
        %v10433 = vpop.f32.mrf.mxu0
        %v10434 = vadd.f32 %v10038, %v10433
        %v10435 = vpop.f32.mrf.mxu0
        %10436 = vdwg.mxu0
        %10437 = vst [vmem:[%s298] sm:$0xff] %v10183
        %10438 = vst [vmem:[%s298 + $0x8] sm:$0xff] %v10186
        %10439 = vst [vmem:[%s298 + $0x10] sm:$0xff] %v10191
        %10440 = vst [vmem:[%s298 + $0x18] sm:$0xff] %v10194
        %10441 = vst [vmem:[%s298 + $0x20] sm:$0xff] %v10199
        %10442 = vst [vmem:[%s298 + $0x28] sm:$0xff] %v10202
        %10443 = vst [vmem:[%s298 + $0x30] sm:$0xff] %v10207
        %10444 = vst [vmem:[%s298 + $0x38] sm:$0xff] %v10210
        %10445 = vst [vmem:[%s298 + $0x40] sm:$0xff] %v10215
        %10446 = vst [vmem:[%s298 + $0x48] sm:$0xff] %v10218
        %10447 = vst [vmem:[%s298 + $0x50] sm:$0xff] %v10223
        %10448 = vst [vmem:[%s298 + $0x58] sm:$0xff] %v10226
        %10449 = vst [vmem:[%s298 + $0x60] sm:$0xff] %v10231
        %10450 = vst [vmem:[%s298 + $0x68] sm:$0xff] %v10234
        %10451 = vst [vmem:[%s298 + $0x70] sm:$0xff] %v10239
        %10452 = vst [vmem:[%s298 + $0x78] sm:$0xff] %v10242
        %10453 = vst [vmem:[%s298 + $0x80] sm:$0xff] %v10247
        %10454 = vst [vmem:[%s298 + $0x88] sm:$0xff] %v10250
        %10455 = vst [vmem:[%s298 + $0x90] sm:$0xff] %v10255
        %10456 = vst [vmem:[%s298 + $0x98] sm:$0xff] %v10258
        %10457 = vst [vmem:[%s298 + $0xa0] sm:$0xff] %v10263
        %10458 = vst [vmem:[%s298 + $0xa8] sm:$0xff] %v10266
        %10459 = vst [vmem:[%s298 + $0xb0] sm:$0xff] %v10271
        %10460 = vst [vmem:[%s298 + $0xb8] sm:$0xff] %v10274
        %10461 = vst [vmem:[%s298 + $0xc0] sm:$0xff] %v10279
        %10462 = vst [vmem:[%s298 + $0xc8] sm:$0xff] %v10282
        %10463 = vst [vmem:[%s298 + $0xd0] sm:$0xff] %v10287
        %10464 = vst [vmem:[%s298 + $0xd8] sm:$0xff] %v10290
        %10465 = vst [vmem:[%s298 + $0xe0] sm:$0xff] %v10295
        %10466 = vst [vmem:[%s298 + $0xe8] sm:$0xff] %v10298
        %10467 = vst [vmem:[%s298 + $0xf0] sm:$0xff] %v10303
        %10468 = vst [vmem:[%s298 + $0xf8] sm:$0xff] %v10306
        %10469 = vst [vmem:[%s298 + $0x100] sm:$0xff] %v10311
        %10470 = vst [vmem:[%s298 + $0x108] sm:$0xff] %v10314
        %10471 = vst [vmem:[%s298 + $0x110] sm:$0xff] %v10319
        %10472 = vst [vmem:[%s298 + $0x118] sm:$0xff] %v10322
        %10473 = vst [vmem:[%s298 + $0x120] sm:$0xff] %v10327
        %10474 = vst [vmem:[%s298 + $0x128] sm:$0xff] %v10330
        %10475 = vst [vmem:[%s298 + $0x130] sm:$0xff] %v10335
        %10476 = vst [vmem:[%s298 + $0x138] sm:$0xff] %v10338
        %10477 = vst [vmem:[%s298 + $0x140] sm:$0xff] %v10343
        %10478 = vst [vmem:[%s298 + $0x148] sm:$0xff] %v10346
        %10479 = vst [vmem:[%s298 + $0x150] sm:$0xff] %v10351
        %10480 = vst [vmem:[%s298 + $0x158] sm:$0xff] %v10354
        %10481 = vst [vmem:[%s298 + $0x160] sm:$0xff] %v10359
        %10482 = vst [vmem:[%s298 + $0x168] sm:$0xff] %v10362
        %10483 = vst [vmem:[%s298 + $0x170] sm:$0xff] %v10367
        %10484 = vst [vmem:[%s298 + $0x178] sm:$0xff] %v10370
        %10485 = vst [vmem:[%s298 + $0x180] sm:$0xff] %v10375
        %10486 = vst [vmem:[%s298 + $0x188] sm:$0xff] %v10378
        %10487 = vst [vmem:[%s298 + $0x190] sm:$0xff] %v10383
        %10488 = vst [vmem:[%s298 + $0x198] sm:$0xff] %v10386
        %10489 = vst [vmem:[%s298 + $0x1a0] sm:$0xff] %v10391
        %10490 = vst [vmem:[%s298 + $0x1a8] sm:$0xff] %v10394
        %10491 = vst [vmem:[%s298 + $0x1b0] sm:$0xff] %v10399
        %10492 = vst [vmem:[%s298 + $0x1b8] sm:$0xff] %v10402
        %10493 = vst [vmem:[%s298 + $0x1c0] sm:$0xff] %v10407
        %10494 = vst [vmem:[%s298 + $0x1c8] sm:$0xff] %v10410
        %10495 = vst [vmem:[%s298 + $0x1d0] sm:$0xff] %v10415
        %10496 = vst [vmem:[%s298 + $0x1d8] sm:$0xff] %v10418
        %10497 = vst [vmem:[%s298 + $0x1e0] sm:$0xff] %v10423
        %10498 = vst [vmem:[%s298 + $0x1e8] sm:$0xff] %v10426
        %10499 = vst [vmem:[%s298 + $0x1f0] sm:$0xff] %v10431
        %10500 = vst [vmem:[%s298 + $0x1f8] sm:$0xff] %v10434
        %s10501 = sand.u32 %s203, 1
        %s10502 = scalar_lea.sflag [#allocation4], %s10501
        %s10503 = sand.u32 %s203, 1
        %s10504 = smul.addr %s10503, 512
        %s10505 = scalar_lea.vmem [#allocation3], %s10504
        // Predicated region
        $region53: #{tpu_custom_call.1} parent=51 // pred_check
          %p10506 = pneg %p213
        $region54: #{tpu_custom_call.1} parent=51 // pred_check_branch
          %10508 = sbr.rel (%p10506) target = $region56
        $region55: #{tpu_custom_call.1} parent=51 // pred_region
          %s10510 = ssub.s32 8192, 8192
          %10511 = vsyncadd %s10502, %s10510
          %s10512 = smul.addr %s22, 64
          %s10513 = smul.addr %s10512, 128
          %s10514 = scalar_lea.hbm %s8, %s10513
          %s10515 = sshll.u32 %s10505, 4
          %s10516 = int_to_ptr.vmem [resolvable:$true] %s10515
          %10521 = dma.vmem_to_hbm [thread:$0]  %s10516, 8192, %s10514, %s10502, 128, 128, 8
        $region56: #{tpu_custom_call.1} parent=51 // pred_fallthru
          _
      $region52: #{tpu_custom_call.1} parent=5 // pred_fallthru
        _
      %p10522 = scmp.le.s32.totalorder 2, %s17
      // Predicated region
      $region57: #{tpu_custom_call.1} parent=5 // pred_check
        %p10523 = pneg %p10522
      $region58: #{tpu_custom_call.1} parent=5 // pred_check_branch
        %10525 = sbr.rel (%p10523) target = $region60
      $region59: #{tpu_custom_call.1} parent=5 // pred_region
        %s10526 = ssub.s32 %s17, 2
        // Predicated region
        $region61: #{tpu_custom_call.1} parent=59 // pred_check
          %p10527 = pneg %p219
        $region62: #{tpu_custom_call.1} parent=59 // pred_check_branch
          %10529 = sbr.rel (%p10527) target = $region64
        $region63: #{tpu_custom_call.1} parent=59 // pred_region
          %s10530 = sand.u32 %s204, 1
          %s10531 = scalar_lea.sflag [#allocation4], %s10530
          %s10532 = sand.u32 %s204, 1
          %s10533 = smul.addr %s10532, 512
          %s10534 = scalar_lea.vmem [#allocation3], %s10533
          %10535 = dma.done %s10531, 8192
        $region64: #{tpu_custom_call.1} parent=59 // pred_fallthru
          _
      $region60: #{tpu_custom_call.1} parent=5 // pred_fallthru
        _
    $region6: #{tpu_custom_call.1} parent=1 // loop_footer
      %s21 = sadd.s32 1, %s17
    $region7: #{tpu_custom_call.1} parent=1 // loop_footer_branch
      %16 = sbr.rel target = $region3
    $region8: #{tpu_custom_call.1} parent=1 // loop_exit
      _
    %10536 = vsyncpa [#allocation4], 1
    %s10537 = scalar_lea.sflag [#allocation4], 1
    %10538 = vsyncpa %s10537, 1

</llo_original>
